<compile_context>
chip_gen: v6e
topology: v6e:2x2x1
jax: 0.10.0
libtpu: 0.0.40
codegen_flags: <defaults>
</compile_context>

<pallas_src>
import functools

import jax
import jax.numpy as jnp
from jax.experimental import pallas as pl
from jax.experimental.pallas import tpu as pltpu

_EPS = 1e-5
_DROP_P = 0.3
_DROP_THRESH_INT = int(round(_DROP_P * (1 << 32)))   # drop if hash bits < thresh
_KEEP_SCALE = 1.0 / (1.0 - _DROP_P)


def _hash_u32(x):
    """lowbias32-style uint32 mixer (plain VPU int ops; interpret-safe)."""
    x = x ^ (x >> 16)
    x = x * jnp.uint32(0x7FEB352D)
    x = x ^ (x >> 15)
    x = x * jnp.uint32(0x846CA68B)
    x = x ^ (x >> 16)
    return x


def _dropout(v, seed_u32, salt):
    """Inverted dropout p=0.3, counter-based hash, integer-domain compare."""
    m, k = v.shape
    idx = (jax.lax.broadcasted_iota(jnp.int32, (m, k), 0) * k
           + jax.lax.broadcasted_iota(jnp.int32, (m, k), 1)).astype(jnp.uint32)
    bits = _hash_u32(idx + seed_u32 * jnp.uint32(0x9E3779B9) + jnp.uint32(salt))
    keep = bits >= jnp.uint32(_DROP_THRESH_INT)
    return jnp.where(keep, v * jnp.float32(_KEEP_SCALE), jnp.float32(0.0))


def _pad1(v):
    """Zero-pad H and W by 1 as a value (no scratch write/read round trip)."""
    n, h, w, c = v.shape
    zc = jnp.zeros((n, h, 1, c), v.dtype)
    v = jnp.concatenate([zc, v, zc], axis=2)           # (n, h, w+2, c)
    zr = jnp.zeros((n, 1, w + 2, c), v.dtype)
    return jnp.concatenate([zr, v, zr], axis=1)        # (n, h+2, w+2, c)


def _conv3x3(xpad, w_flat, n, h, w, cin, cout):
    """3x3 'same' conv: im2col (lane-concat of 9 shifted views) + ONE matmul.

    xpad: (n, h+2, w+2, cin) value.  w_flat: (9*cin, cout) value, row order
    (dy*3 + dx)*cin + ci, i.e. torch OIHW weight transposed to (ky,kx,ci,co).
    """
    cols = []
    for dy in range(3):
        rows = xpad[:, dy:dy + h]                      # clean slice on H
        for dx in range(3):
            cols.append(rows[:, :, dx:dx + w, :])      # (n, h, w, cin)
    patch = jnp.concatenate(cols, axis=-1)             # (n, h, w, 9*cin)
    # w is a multiple of 8 -> layout-preserving reshape (no relayout copy).
    patch = patch.reshape(n * h * w, 9 * cin)
    return jnp.dot(patch, w_flat, preferred_element_type=jnp.float32)  # (M, cout)


def _bn_train(x2d, gamma, beta):
    """BatchNorm2d training mode, single pass (sum + sum-of-squares)."""
    m = x2d.shape[0]
    inv_m = jnp.float32(1.0 / m)
    s = jnp.sum(x2d, axis=0, keepdims=True)            # (1, C)
    ss = jnp.sum(x2d * x2d, axis=0, keepdims=True)     # (1, C)
    mean = s * inv_m
    var = jnp.maximum(ss * inv_m - mean * mean, jnp.float32(0.0))  # biased var
    scale = gamma * jax.lax.rsqrt(var + jnp.float32(_EPS))
    shift = beta - mean * scale
    return x2d * scale + shift


def basic_block2_kernel(seed_ref, x_ref, w1_ref, g1_ref, b1_ref,
                        w2_ref, g2_ref, b2_ref, o_ref):
    n, h, w, c = x_ref.shape
    m = n * h * w
    seed_u32 = seed_ref[0].astype(jnp.uint32)

    x = x_ref[...].astype(jnp.float32)                 # (n, h, w, c), unpadded

    # --- conv1 -> bn1 (batch stats) -> relu -> dropout(0.3) ---
    h1 = _conv3x3(_pad1(x), w1_ref[...], n, h, w, c, c)        # (m, c)
    h1 = _bn_train(h1, g1_ref[...], b1_ref[...])
    h1 = jnp.maximum(h1, jnp.float32(0.0))
    h1 = _dropout(h1, seed_u32, salt=1)

    # --- conv2 -> bn2 (batch stats) -> dropout(0.3) ---
    h2 = _conv3x3(_pad1(h1.reshape(n, h, w, c)), w2_ref[...], n, h, w, c, c)
    h2 = _bn_train(h2, g2_ref[...], b2_ref[...])
    h2 = _dropout(h2, seed_u32, salt=2)

    # --- identity shortcut (unpadded x, no slicing) + final relu ---
    out = jnp.maximum(h2 + x.reshape(m, c), jnp.float32(0.0))
    o_ref[...] = out.reshape(n, h, w, c).astype(o_ref.dtype)


@functools.partial(jax.jit)
def basic_block2(x_nchw, w1, g1, b1, w2, g2, b2, seed):
    """x_nchw: (N, C, H, W) f32.  Returns (N, C, H, W) f32."""
    x = jnp.transpose(x_nchw, (0, 2, 3, 1))            # NCHW -> NHWC (lane = C)
    n, h, w, c = x.shape

    out_nhwc = pl.pallas_call(
        basic_block2_kernel,
        out_shape=jax.ShapeDtypeStruct((n, h, w, c), jnp.float32),
        in_specs=[
            pl.BlockSpec(memory_space=pltpu.MemorySpace.SMEM),   # seed
            pl.BlockSpec(memory_space=pltpu.MemorySpace.VMEM),   # x (unpadded)
            pl.BlockSpec(memory_space=pltpu.MemorySpace.VMEM),   # w1 (9*Cin, C)
            pl.BlockSpec(memory_space=pltpu.MemorySpace.VMEM),   # gamma1 (1, C)
            pl.BlockSpec(memory_space=pltpu.MemorySpace.VMEM),   # beta1  (1, C)
            pl.BlockSpec(memory_space=pltpu.MemorySpace.VMEM),   # w2 (9*C, C)
            pl.BlockSpec(memory_space=pltpu.MemorySpace.VMEM),   # gamma2 (1, C)
            pl.BlockSpec(memory_space=pltpu.MemorySpace.VMEM),   # beta2  (1, C)
        ],
        out_specs=pl.BlockSpec(memory_space=pltpu.MemorySpace.VMEM),
    )(seed, x, w1, g1, b1, w2, g2, b2)

    return jnp.transpose(out_nhwc, (0, 3, 1, 2))       # NHWC -> NCHW


def make_params(key, in_planes, planes):
    """Deterministic synthetic parameters matching BasicBlock2.__init__.

    Conv weights are stored pre-flattened as (9*Cin, Cout); a PyTorch OIHW
    weight maps via  w.transpose(2, 3, 1, 0).reshape(9 * Cin, Cout).
    """
    k1, k2 = jax.random.split(key)
    w1 = (jax.random.normal(k1, (9 * in_planes, planes), jnp.float32)
          * (2.0 / (9 * in_planes)) ** 0.5)
    w2 = (jax.random.normal(k2, (9 * planes, planes), jnp.float32)
          * (2.0 / (9 * planes)) ** 0.5)
    # BatchNorm2d defaults: weight=1, bias=0
    g1 = jnp.ones((1, planes), jnp.float32)
    b1 = jnp.zeros((1, planes), jnp.float32)
    g2 = jnp.ones((1, planes), jnp.float32)
    b2 = jnp.zeros((1, planes), jnp.float32)
    return w1, g1, b1, w2, g2, b2


if __name__ == "__main__":
    key = jax.random.PRNGKey(0)
    kx, kp = jax.random.split(key)

    N, C, H, W = 2, 4, 16, 16            # in_planes == planes == 4, stride=1
    x = jax.random.normal(kx, (N, C, H, W), jnp.float32)
    w1, g1, b1, w2, g2, b2 = make_params(kp, C, C)
    seed = jnp.array([12345], dtype=jnp.int32)

    out = basic_block2(x, w1, g1, b1, w2, g2, b2, seed)
    out = jax.block_until_ready(out)

    assert out.shape == (N, C, H, W)
    assert bool(jnp.all(jnp.isfinite(out)))
    assert bool(jnp.all(out >= 0.0))      # final ReLU
    print("KERNEL_OK")
</pallas_src>

<mosaic_0001>
module attributes {stable_mosaic.version = 11 : i64} {
  func.func @basic_block2_kernel(%arg0: memref<1xi32, #tpu.memory_space<smem>>, %arg1: memref<2x16x16x4xf32, #tpu.memory_space<vmem>>, %arg2: memref<36x4xf32, #tpu.memory_space<vmem>>, %arg3: memref<1x4xf32, #tpu.memory_space<vmem>>, %arg4: memref<1x4xf32, #tpu.memory_space<vmem>>, %arg5: memref<36x4xf32, #tpu.memory_space<vmem>>, %arg6: memref<1x4xf32, #tpu.memory_space<vmem>>, %arg7: memref<1x4xf32, #tpu.memory_space<vmem>>, %arg8: memref<2x16x16x4xf32, #tpu.memory_space<vmem>>) attributes {dimension_semantics = [], scalar_prefetch = 0 : i64, scratch_operands = 0 : i64, tpu.core_type = #tpu.core_type<tc>} {
    %c0 = arith.constant 0 : index
    %0 = memref.load %arg0[%c0] : memref<1xi32, #tpu.memory_space<smem>>
    %c0_0 = arith.constant 0 : index
    %c0_1 = arith.constant 0 : index
    %c0_2 = arith.constant 0 : index
    %c0_3 = arith.constant 0 : index
    %1 = vector.load %arg1[%c0_0, %c0_1, %c0_2, %c0_3] : memref<2x16x16x4xf32, #tpu.memory_space<vmem>>, vector<2x16x16x4xf32>
    %cst = arith.constant 0.000000e+00 : f32
    %2 = vector.broadcast %cst : f32 to vector<2x16x1x4xf32>
    %3 = tpu.concatenate %2, %1, %2 in 2 : vector<2x16x1x4xf32>, vector<2x16x16x4xf32>, vector<2x16x1x4xf32> -> vector<2x16x18x4xf32>
    %cst_4 = arith.constant 0.000000e+00 : f32
    %4 = vector.broadcast %cst_4 : f32 to vector<2x1x18x4xf32>
    %5 = tpu.concatenate %4, %3, %4 in 1 : vector<2x1x18x4xf32>, vector<2x16x18x4xf32>, vector<2x1x18x4xf32> -> vector<2x18x18x4xf32>
    %c0_5 = arith.constant 0 : index
    %c0_6 = arith.constant 0 : index
    %6 = vector.load %arg2[%c0_5, %c0_6] : memref<36x4xf32, #tpu.memory_space<vmem>>, vector<36x4xf32>
    %7 = vector.extract_strided_slice %5 {offsets = [0, 0, 0, 0], sizes = [2, 16, 18, 4], strides = [1, 1, 1, 1]} : vector<2x18x18x4xf32> to vector<2x16x18x4xf32>
    %8 = vector.extract_strided_slice %7 {offsets = [0, 0, 0, 0], sizes = [2, 16, 16, 4], strides = [1, 1, 1, 1]} : vector<2x16x18x4xf32> to vector<2x16x16x4xf32>
    %9 = vector.extract_strided_slice %7 {offsets = [0, 0, 1, 0], sizes = [2, 16, 16, 4], strides = [1, 1, 1, 1]} : vector<2x16x18x4xf32> to vector<2x16x16x4xf32>
    %10 = vector.extract_strided_slice %7 {offsets = [0, 0, 2, 0], sizes = [2, 16, 16, 4], strides = [1, 1, 1, 1]} : vector<2x16x18x4xf32> to vector<2x16x16x4xf32>
    %11 = vector.extract_strided_slice %5 {offsets = [0, 1, 0, 0], sizes = [2, 16, 18, 4], strides = [1, 1, 1, 1]} : vector<2x18x18x4xf32> to vector<2x16x18x4xf32>
    %12 = vector.extract_strided_slice %11 {offsets = [0, 0, 0, 0], sizes = [2, 16, 16, 4], strides = [1, 1, 1, 1]} : vector<2x16x18x4xf32> to vector<2x16x16x4xf32>
    %13 = vector.extract_strided_slice %11 {offsets = [0, 0, 1, 0], sizes = [2, 16, 16, 4], strides = [1, 1, 1, 1]} : vector<2x16x18x4xf32> to vector<2x16x16x4xf32>
    %14 = vector.extract_strided_slice %11 {offsets = [0, 0, 2, 0], sizes = [2, 16, 16, 4], strides = [1, 1, 1, 1]} : vector<2x16x18x4xf32> to vector<2x16x16x4xf32>
    %15 = vector.extract_strided_slice %5 {offsets = [0, 2, 0, 0], sizes = [2, 16, 18, 4], strides = [1, 1, 1, 1]} : vector<2x18x18x4xf32> to vector<2x16x18x4xf32>
    %16 = vector.extract_strided_slice %15 {offsets = [0, 0, 0, 0], sizes = [2, 16, 16, 4], strides = [1, 1, 1, 1]} : vector<2x16x18x4xf32> to vector<2x16x16x4xf32>
    %17 = vector.extract_strided_slice %15 {offsets = [0, 0, 1, 0], sizes = [2, 16, 16, 4], strides = [1, 1, 1, 1]} : vector<2x16x18x4xf32> to vector<2x16x16x4xf32>
    %18 = vector.extract_strided_slice %15 {offsets = [0, 0, 2, 0], sizes = [2, 16, 16, 4], strides = [1, 1, 1, 1]} : vector<2x16x18x4xf32> to vector<2x16x16x4xf32>
    %19 = tpu.concatenate %8, %9, %10, %12, %13, %14, %16, %17, %18 in 3 : vector<2x16x16x4xf32>, vector<2x16x16x4xf32>, vector<2x16x16x4xf32>, vector<2x16x16x4xf32>, vector<2x16x16x4xf32>, vector<2x16x16x4xf32>, vector<2x16x16x4xf32>, vector<2x16x16x4xf32>, vector<2x16x16x4xf32> -> vector<2x16x16x36xf32>
    %20 = vector.shape_cast %19 : vector<2x16x16x36xf32> to vector<512x36xf32>
    %cst_7 = arith.constant dense<0.000000e+00> : vector<512x4xf32>
    %21 = tpu.matmul %20, %6, %cst_7 {dimension_numbers = #tpu.dot_dimension_numbers<[1], [0], [0], [1], [0, 0, 1, 1], [], []>} : vector<512x36xf32>, vector<36x4xf32>, vector<512x4xf32> -> vector<512x4xf32>
    %c0_8 = arith.constant 0 : index
    %c0_9 = arith.constant 0 : index
    %22 = vector.load %arg3[%c0_8, %c0_9] : memref<1x4xf32, #tpu.memory_space<vmem>>, vector<1x4xf32>
    %c0_10 = arith.constant 0 : index
    %c0_11 = arith.constant 0 : index
    %23 = vector.load %arg4[%c0_10, %c0_11] : memref<1x4xf32, #tpu.memory_space<vmem>>, vector<1x4xf32>
    %cst_12 = arith.constant dense<0.000000e+00> : vector<4xf32>
    %24 = vector.multi_reduction <add>, %21, %cst_12 [0] : vector<512x4xf32> to vector<4xf32>
    %25 = vector.shape_cast %24 : vector<4xf32> to vector<1x4xf32>
    %26 = arith.mulf %21, %21 : vector<512x4xf32>
    %cst_13 = arith.constant dense<0.000000e+00> : vector<4xf32>
    %27 = vector.multi_reduction <add>, %26, %cst_13 [0] : vector<512x4xf32> to vector<4xf32>
    %28 = vector.shape_cast %27 : vector<4xf32> to vector<1x4xf32>
    %cst_14 = arith.constant 0.001953125 : f32
    %29 = vector.broadcast %cst_14 : f32 to vector<1x4xf32>
    %30 = arith.mulf %25, %29 : vector<1x4xf32>
    %cst_15 = arith.constant 0.001953125 : f32
    %31 = vector.broadcast %cst_15 : f32 to vector<1x4xf32>
    %32 = arith.mulf %28, %31 : vector<1x4xf32>
    %33 = arith.mulf %30, %30 : vector<1x4xf32>
    %34 = arith.subf %32, %33 : vector<1x4xf32>
    %cst_16 = arith.constant 0.000000e+00 : f32
    %35 = vector.broadcast %cst_16 : f32 to vector<1x4xf32>
    %36 = arith.maximumf %34, %35 : vector<1x4xf32>
    %cst_17 = arith.constant 9.99999974E-6 : f32
    %37 = vector.broadcast %cst_17 : f32 to vector<1x4xf32>
    %38 = arith.addf %36, %37 : vector<1x4xf32>
    %39 = math.rsqrt %38 : vector<1x4xf32>
    %40 = arith.mulf %22, %39 : vector<1x4xf32>
    %41 = arith.mulf %30, %40 : vector<1x4xf32>
    %42 = arith.subf %23, %41 : vector<1x4xf32>
    %43 = vector.broadcast %40 : vector<1x4xf32> to vector<512x4xf32>
    %44 = arith.mulf %21, %43 : vector<512x4xf32>
    %45 = vector.broadcast %42 : vector<1x4xf32> to vector<512x4xf32>
    %46 = arith.addf %44, %45 : vector<512x4xf32>
    %cst_18 = arith.constant 0.000000e+00 : f32
    %47 = vector.broadcast %cst_18 : f32 to vector<512x4xf32>
    %48 = arith.maximumf %46, %47 : vector<512x4xf32>
    %49 = tpu.iota {dimensions = array<i32: 0>} : vector<512x4xi32>
    %c4_i32 = arith.constant 4 : i32
    %50 = vector.broadcast %c4_i32 : i32 to vector<512x4xi32>
    %51 = arith.muli %49, %50 : vector<512x4xi32>
    %52 = tpu.iota {dimensions = array<i32: 1>} : vector<512x4xi32>
    %53 = arith.addi %51, %52 : vector<512x4xi32>
    %c-1640531527_i32 = arith.constant -1640531527 : i32
    %54 = arith.muli %0, %c-1640531527_i32 : i32
    %55 = vector.broadcast %54 : i32 to vector<512x4xi32>
    %56 = arith.addi %53, %55 : vector<512x4xi32>
    %c1_i32 = arith.constant 1 : i32
    %57 = vector.broadcast %c1_i32 : i32 to vector<512x4xi32>
    %58 = arith.addi %56, %57 : vector<512x4xi32>
    %c16_i32 = arith.constant 16 : i32
    %59 = vector.broadcast %c16_i32 : i32 to vector<512x4xi32>
    %60 = arith.shrui %58, %59 : vector<512x4xi32>
    %61 = arith.xori %58, %60 : vector<512x4xi32>
    %c2146121005_i32 = arith.constant 2146121005 : i32
    %62 = vector.broadcast %c2146121005_i32 : i32 to vector<512x4xi32>
    %63 = arith.muli %61, %62 : vector<512x4xi32>
    %c15_i32 = arith.constant 15 : i32
    %64 = vector.broadcast %c15_i32 : i32 to vector<512x4xi32>
    %65 = arith.shrui %63, %64 : vector<512x4xi32>
    %66 = arith.xori %63, %65 : vector<512x4xi32>
    %c-2073254261_i32 = arith.constant -2073254261 : i32
    %67 = vector.broadcast %c-2073254261_i32 : i32 to vector<512x4xi32>
    %68 = arith.muli %66, %67 : vector<512x4xi32>
    %c16_i32_19 = arith.constant 16 : i32
    %69 = vector.broadcast %c16_i32_19 : i32 to vector<512x4xi32>
    %70 = arith.shrui %68, %69 : vector<512x4xi32>
    %71 = arith.xori %68, %70 : vector<512x4xi32>
    %c1288490189_i32 = arith.constant 1288490189 : i32
    %72 = vector.broadcast %c1288490189_i32 : i32 to vector<512x4xi32>
    %73 = arith.cmpi uge, %71, %72 : vector<512x4xi32>
    %cst_20 = arith.constant 1.42857146 : f32
    %74 = vector.broadcast %cst_20 : f32 to vector<512x4xf32>
    %75 = arith.mulf %48, %74 : vector<512x4xf32>
    %cst_21 = arith.constant 0.000000e+00 : f32
    %76 = vector.broadcast %cst_21 : f32 to vector<512x4xf32>
    %77 = arith.select %73, %75, %76 : vector<512x4xi1>, vector<512x4xf32>
    %78 = vector.shape_cast %77 : vector<512x4xf32> to vector<2x16x16x4xf32>
    %cst_22 = arith.constant 0.000000e+00 : f32
    %79 = vector.broadcast %cst_22 : f32 to vector<2x16x1x4xf32>
    %80 = tpu.concatenate %79, %78, %79 in 2 : vector<2x16x1x4xf32>, vector<2x16x16x4xf32>, vector<2x16x1x4xf32> -> vector<2x16x18x4xf32>
    %cst_23 = arith.constant 0.000000e+00 : f32
    %81 = vector.broadcast %cst_23 : f32 to vector<2x1x18x4xf32>
    %82 = tpu.concatenate %81, %80, %81 in 1 : vector<2x1x18x4xf32>, vector<2x16x18x4xf32>, vector<2x1x18x4xf32> -> vector<2x18x18x4xf32>
    %c0_24 = arith.constant 0 : index
    %c0_25 = arith.constant 0 : index
    %83 = vector.load %arg5[%c0_24, %c0_25] : memref<36x4xf32, #tpu.memory_space<vmem>>, vector<36x4xf32>
    %84 = vector.extract_strided_slice %82 {offsets = [0, 0, 0, 0], sizes = [2, 16, 18, 4], strides = [1, 1, 1, 1]} : vector<2x18x18x4xf32> to vector<2x16x18x4xf32>
    %85 = vector.extract_strided_slice %84 {offsets = [0, 0, 0, 0], sizes = [2, 16, 16, 4], strides = [1, 1, 1, 1]} : vector<2x16x18x4xf32> to vector<2x16x16x4xf32>
    %86 = vector.extract_strided_slice %84 {offsets = [0, 0, 1, 0], sizes = [2, 16, 16, 4], strides = [1, 1, 1, 1]} : vector<2x16x18x4xf32> to vector<2x16x16x4xf32>
    %87 = vector.extract_strided_slice %84 {offsets = [0, 0, 2, 0], sizes = [2, 16, 16, 4], strides = [1, 1, 1, 1]} : vector<2x16x18x4xf32> to vector<2x16x16x4xf32>
    %88 = vector.extract_strided_slice %82 {offsets = [0, 1, 0, 0], sizes = [2, 16, 18, 4], strides = [1, 1, 1, 1]} : vector<2x18x18x4xf32> to vector<2x16x18x4xf32>
    %89 = vector.extract_strided_slice %88 {offsets = [0, 0, 0, 0], sizes = [2, 16, 16, 4], strides = [1, 1, 1, 1]} : vector<2x16x18x4xf32> to vector<2x16x16x4xf32>
    %90 = vector.extract_strided_slice %88 {offsets = [0, 0, 1, 0], sizes = [2, 16, 16, 4], strides = [1, 1, 1, 1]} : vector<2x16x18x4xf32> to vector<2x16x16x4xf32>
    %91 = vector.extract_strided_slice %88 {offsets = [0, 0, 2, 0], sizes = [2, 16, 16, 4], strides = [1, 1, 1, 1]} : vector<2x16x18x4xf32> to vector<2x16x16x4xf32>
    %92 = vector.extract_strided_slice %82 {offsets = [0, 2, 0, 0], sizes = [2, 16, 18, 4], strides = [1, 1, 1, 1]} : vector<2x18x18x4xf32> to vector<2x16x18x4xf32>
    %93 = vector.extract_strided_slice %92 {offsets = [0, 0, 0, 0], sizes = [2, 16, 16, 4], strides = [1, 1, 1, 1]} : vector<2x16x18x4xf32> to vector<2x16x16x4xf32>
    %94 = vector.extract_strided_slice %92 {offsets = [0, 0, 1, 0], sizes = [2, 16, 16, 4], strides = [1, 1, 1, 1]} : vector<2x16x18x4xf32> to vector<2x16x16x4xf32>
    %95 = vector.extract_strided_slice %92 {offsets = [0, 0, 2, 0], sizes = [2, 16, 16, 4], strides = [1, 1, 1, 1]} : vector<2x16x18x4xf32> to vector<2x16x16x4xf32>
    %96 = tpu.concatenate %85, %86, %87, %89, %90, %91, %93, %94, %95 in 3 : vector<2x16x16x4xf32>, vector<2x16x16x4xf32>, vector<2x16x16x4xf32>, vector<2x16x16x4xf32>, vector<2x16x16x4xf32>, vector<2x16x16x4xf32>, vector<2x16x16x4xf32>, vector<2x16x16x4xf32>, vector<2x16x16x4xf32> -> vector<2x16x16x36xf32>
    %97 = vector.shape_cast %96 : vector<2x16x16x36xf32> to vector<512x36xf32>
    %cst_26 = arith.constant dense<0.000000e+00> : vector<512x4xf32>
    %98 = tpu.matmul %97, %83, %cst_26 {dimension_numbers = #tpu.dot_dimension_numbers<[1], [0], [0], [1], [0, 0, 1, 1], [], []>} : vector<512x36xf32>, vector<36x4xf32>, vector<512x4xf32> -> vector<512x4xf32>
    %c0_27 = arith.constant 0 : index
    %c0_28 = arith.constant 0 : index
    %99 = vector.load %arg6[%c0_27, %c0_28] : memref<1x4xf32, #tpu.memory_space<vmem>>, vector<1x4xf32>
    %c0_29 = arith.constant 0 : index
    %c0_30 = arith.constant 0 : index
    %100 = vector.load %arg7[%c0_29, %c0_30] : memref<1x4xf32, #tpu.memory_space<vmem>>, vector<1x4xf32>
    %cst_31 = arith.constant dense<0.000000e+00> : vector<4xf32>
    %101 = vector.multi_reduction <add>, %98, %cst_31 [0] : vector<512x4xf32> to vector<4xf32>
    %102 = vector.shape_cast %101 : vector<4xf32> to vector<1x4xf32>
    %103 = arith.mulf %98, %98 : vector<512x4xf32>
    %cst_32 = arith.constant dense<0.000000e+00> : vector<4xf32>
    %104 = vector.multi_reduction <add>, %103, %cst_32 [0] : vector<512x4xf32> to vector<4xf32>
    %105 = vector.shape_cast %104 : vector<4xf32> to vector<1x4xf32>
    %cst_33 = arith.constant 0.001953125 : f32
    %106 = vector.broadcast %cst_33 : f32 to vector<1x4xf32>
    %107 = arith.mulf %102, %106 : vector<1x4xf32>
    %cst_34 = arith.constant 0.001953125 : f32
    %108 = vector.broadcast %cst_34 : f32 to vector<1x4xf32>
    %109 = arith.mulf %105, %108 : vector<1x4xf32>
    %110 = arith.mulf %107, %107 : vector<1x4xf32>
    %111 = arith.subf %109, %110 : vector<1x4xf32>
    %cst_35 = arith.constant 0.000000e+00 : f32
    %112 = vector.broadcast %cst_35 : f32 to vector<1x4xf32>
    %113 = arith.maximumf %111, %112 : vector<1x4xf32>
    %cst_36 = arith.constant 9.99999974E-6 : f32
    %114 = vector.broadcast %cst_36 : f32 to vector<1x4xf32>
    %115 = arith.addf %113, %114 : vector<1x4xf32>
    %116 = math.rsqrt %115 : vector<1x4xf32>
    %117 = arith.mulf %99, %116 : vector<1x4xf32>
    %118 = arith.mulf %107, %117 : vector<1x4xf32>
    %119 = arith.subf %100, %118 : vector<1x4xf32>
    %120 = vector.broadcast %117 : vector<1x4xf32> to vector<512x4xf32>
    %121 = arith.mulf %98, %120 : vector<512x4xf32>
    %122 = vector.broadcast %119 : vector<1x4xf32> to vector<512x4xf32>
    %123 = arith.addf %121, %122 : vector<512x4xf32>
    %124 = tpu.iota {dimensions = array<i32: 0>} : vector<512x4xi32>
    %c4_i32_37 = arith.constant 4 : i32
    %125 = vector.broadcast %c4_i32_37 : i32 to vector<512x4xi32>
    %126 = arith.muli %124, %125 : vector<512x4xi32>
    %127 = tpu.iota {dimensions = array<i32: 1>} : vector<512x4xi32>
    %128 = arith.addi %126, %127 : vector<512x4xi32>
    %c-1640531527_i32_38 = arith.constant -1640531527 : i32
    %129 = arith.muli %0, %c-1640531527_i32_38 : i32
    %130 = vector.broadcast %129 : i32 to vector<512x4xi32>
    %131 = arith.addi %128, %130 : vector<512x4xi32>
    %c2_i32 = arith.constant 2 : i32
    %132 = vector.broadcast %c2_i32 : i32 to vector<512x4xi32>
    %133 = arith.addi %131, %132 : vector<512x4xi32>
    %c16_i32_39 = arith.constant 16 : i32
    %134 = vector.broadcast %c16_i32_39 : i32 to vector<512x4xi32>
    %135 = arith.shrui %133, %134 : vector<512x4xi32>
    %136 = arith.xori %133, %135 : vector<512x4xi32>
    %c2146121005_i32_40 = arith.constant 2146121005 : i32
    %137 = vector.broadcast %c2146121005_i32_40 : i32 to vector<512x4xi32>
    %138 = arith.muli %136, %137 : vector<512x4xi32>
    %c15_i32_41 = arith.constant 15 : i32
    %139 = vector.broadcast %c15_i32_41 : i32 to vector<512x4xi32>
    %140 = arith.shrui %138, %139 : vector<512x4xi32>
    %141 = arith.xori %138, %140 : vector<512x4xi32>
    %c-2073254261_i32_42 = arith.constant -2073254261 : i32
    %142 = vector.broadcast %c-2073254261_i32_42 : i32 to vector<512x4xi32>
    %143 = arith.muli %141, %142 : vector<512x4xi32>
    %c16_i32_43 = arith.constant 16 : i32
    %144 = vector.broadcast %c16_i32_43 : i32 to vector<512x4xi32>
    %145 = arith.shrui %143, %144 : vector<512x4xi32>
    %146 = arith.xori %143, %145 : vector<512x4xi32>
    %c1288490189_i32_44 = arith.constant 1288490189 : i32
    %147 = vector.broadcast %c1288490189_i32_44 : i32 to vector<512x4xi32>
    %148 = arith.cmpi uge, %146, %147 : vector<512x4xi32>
    %cst_45 = arith.constant 1.42857146 : f32
    %149 = vector.broadcast %cst_45 : f32 to vector<512x4xf32>
    %150 = arith.mulf %123, %149 : vector<512x4xf32>
    %cst_46 = arith.constant 0.000000e+00 : f32
    %151 = vector.broadcast %cst_46 : f32 to vector<512x4xf32>
    %152 = arith.select %148, %150, %151 : vector<512x4xi1>, vector<512x4xf32>
    %153 = vector.shape_cast %1 : vector<2x16x16x4xf32> to vector<512x4xf32>
    %154 = arith.addf %152, %153 : vector<512x4xf32>
    %cst_47 = arith.constant 0.000000e+00 : f32
    %155 = vector.broadcast %cst_47 : f32 to vector<512x4xf32>
    %156 = arith.maximumf %154, %155 : vector<512x4xf32>
    %157 = vector.shape_cast %156 : vector<512x4xf32> to vector<2x16x16x4xf32>
    %c0_48 = arith.constant 0 : index
    %c0_49 = arith.constant 0 : index
    %c0_50 = arith.constant 0 : index
    %c0_51 = arith.constant 0 : index
    %158 = vector.load %arg8[%c0_48, %c0_49, %c0_50, %c0_51] : memref<2x16x16x4xf32, #tpu.memory_space<vmem>>, vector<2x16x16x4xf32>
    tpu.vector_store %arg8[%c0_48, %c0_49, %c0_50, %c0_51], %157 {strides = array<i32>} : memref<2x16x16x4xf32, #tpu.memory_space<vmem>>, vector<2x16x16x4xf32>,
    return
  }
}

</mosaic_0001>

<llo_original>
// kernel: basic_block2.1
$region0: #{basic_block2.1}
  #allocation0 [shape = 'u32[]', space=smem, size = 0x4, offset = 0x4, fixed_abs, tag = 'smem constant byte address 0x4 - core index']
  #allocation1 [shape = 'u32[144,128]{1,0:T(1,128)}', space=vmem, size = 0x12000, scoped, tag = 'internal scratch']
  #allocation2 [shape = 's32[1]{0:T(128)S(6)}', space=smem, size = 0x200, scoped, tag = 'scoped memory for basic_block2.1']
  %s0 = inlined_call_operand.<no memory space> [shape: s32[1], index: 0, kind: input, shape index: {}]
  %s1 = inlined_call_operand.vmem [shape: f32[2,16,16,4], index: 1, kind: input, shape index: {}]
  %s2 = inlined_call_operand.vmem [shape: f32[36,4], index: 2, kind: input, shape index: {}]
  %s3 = inlined_call_operand.vmem [shape: f32[1,4], index: 3, kind: input, shape index: {}]
  %s4 = inlined_call_operand.vmem [shape: f32[1,4], index: 4, kind: input, shape index: {}]
  %s5 = inlined_call_operand.vmem [shape: f32[36,4], index: 5, kind: input, shape index: {}]
  %s6 = inlined_call_operand.vmem [shape: f32[1,4], index: 6, kind: input, shape index: {}]
  %s7 = inlined_call_operand.vmem [shape: f32[1,4], index: 7, kind: input, shape index: {}]
  %s8 = inlined_call_operand.vmem [shape: f32[2,16,16,4], index: 8, kind: output, shape index: {}]
  %s9 = sld [smem:[#allocation0]]
  $region42: #{basic_block2.1} parent=0
    _
  %s11 = ssub.s32 1, %s9
  %s12 = scalar_select 0, %s11, %s9
  %13 = sst [smem:[#allocation2]] %s0
  // Predicated region
  $region2: #{basic_block2.1} parent=0 // pred_check
    _
  $region3: #{basic_block2.1} parent=0 // pred_check_branch
    %15 = sbr.rel (0) target = $region5
  $region4: #{basic_block2.1} parent=0 // pred_region
    _
  $region5: #{basic_block2.1} parent=0 // pred_fallthru
    _
  // Predicated region
  $region6: #{basic_block2.1} parent=0 // pred_check
    _
  $region7: #{basic_block2.1} parent=0 // pred_check_branch
    %17 = sbr.rel (0) target = $region9
  $region8: #{basic_block2.1} parent=0 // pred_region
    _
  $region9: #{basic_block2.1} parent=0 // pred_fallthru
    _
  // Predicated region
  $region10: #{basic_block2.1} parent=0 // pred_check
    _
  $region11: #{basic_block2.1} parent=0 // pred_check_branch
    %19 = sbr.rel (0) target = $region13
  $region12: #{basic_block2.1} parent=0 // pred_region
    _
  $region13: #{basic_block2.1} parent=0 // pred_fallthru
    _
  // Predicated region
  $region14: #{basic_block2.1} parent=0 // pred_check
    _
  $region15: #{basic_block2.1} parent=0 // pred_check_branch
    %21 = sbr.rel (0) target = $region17
  $region16: #{basic_block2.1} parent=0 // pred_region
    _
  $region17: #{basic_block2.1} parent=0 // pred_fallthru
    _
  // Predicated region
  $region18: #{basic_block2.1} parent=0 // pred_check
    _
  $region19: #{basic_block2.1} parent=0 // pred_check_branch
    %23 = sbr.rel (0) target = $region21
  $region20: #{basic_block2.1} parent=0 // pred_region
    _
  $region21: #{basic_block2.1} parent=0 // pred_fallthru
    _
  // Predicated region
  $region22: #{basic_block2.1} parent=0 // pred_check
    _
  $region23: #{basic_block2.1} parent=0 // pred_check_branch
    %25 = sbr.rel (0) target = $region25
  $region24: #{basic_block2.1} parent=0 // pred_region
    _
  $region25: #{basic_block2.1} parent=0 // pred_fallthru
    _
  // Predicated region
  $region26: #{basic_block2.1} parent=0 // pred_check
    _
  $region27: #{basic_block2.1} parent=0 // pred_check_branch
    %27 = sbr.rel (0) target = $region29
  $region28: #{basic_block2.1} parent=0 // pred_region
    _
  $region29: #{basic_block2.1} parent=0 // pred_fallthru
    _
  // Predicated region
  $region30: #{basic_block2.1} parent=0 // pred_check
    _
  $region31: #{basic_block2.1} parent=0 // pred_check_branch
    %29 = sbr.rel (0) target = $region33
  $region32: #{basic_block2.1} parent=0 // pred_region
    _
  $region33: #{basic_block2.1} parent=0 // pred_fallthru
    _
  %s30 = sld [smem:[#allocation2]]
  %v31 = vld [vmem:[%s1] sm:$0xff]
  %v32 = vld [vmem:[%s1 + $0x8] sm:$0xff]
  %v33 = vld [vmem:[%s1 + $0x10] sm:$0xff]
  %v34 = vld [vmem:[%s1 + $0x18] sm:$0xff]
  %v35 = vld [vmem:[%s1 + $0x20] sm:$0xff]
  %v36 = vld [vmem:[%s1 + $0x28] sm:$0xff]
  %v37 = vld [vmem:[%s1 + $0x30] sm:$0xff]
  %v38 = vld [vmem:[%s1 + $0x38] sm:$0xff]
  %v39 = vld [vmem:[%s1 + $0x40] sm:$0xff]
  %v40 = vld [vmem:[%s1 + $0x48] sm:$0xff]
  %v41 = vld [vmem:[%s1 + $0x50] sm:$0xff]
  %v42 = vld [vmem:[%s1 + $0x58] sm:$0xff]
  %v43 = vld [vmem:[%s1 + $0x60] sm:$0xff]
  %v44 = vld [vmem:[%s1 + $0x68] sm:$0xff]
  %v45 = vld [vmem:[%s1 + $0x70] sm:$0xff]
  %v46 = vld [vmem:[%s1 + $0x78] sm:$0xff]
  %v47 = vld [vmem:[%s1 + $0x80] sm:$0xff]
  %v48 = vld [vmem:[%s1 + $0x88] sm:$0xff]
  %v49 = vld [vmem:[%s1 + $0x90] sm:$0xff]
  %v50 = vld [vmem:[%s1 + $0x98] sm:$0xff]
  %v51 = vld [vmem:[%s1 + $0xa0] sm:$0xff]
  %v52 = vld [vmem:[%s1 + $0xa8] sm:$0xff]
  %v53 = vld [vmem:[%s1 + $0xb0] sm:$0xff]
  %v54 = vld [vmem:[%s1 + $0xb8] sm:$0xff]
  %v55 = vld [vmem:[%s1 + $0xc0] sm:$0xff]
  %v56 = vld [vmem:[%s1 + $0xc8] sm:$0xff]
  %v57 = vld [vmem:[%s1 + $0xd0] sm:$0xff]
  %v58 = vld [vmem:[%s1 + $0xd8] sm:$0xff]
  %v59 = vld [vmem:[%s1 + $0xe0] sm:$0xff]
  %v60 = vld [vmem:[%s1 + $0xe8] sm:$0xff]
  %v61 = vld [vmem:[%s1 + $0xf0] sm:$0xff]
  %v62 = vld [vmem:[%s1 + $0xf8] sm:$0xff]
  %v63 = vld [vmem:[%s1 + $0x100] sm:$0xff]
  %v64 = vld [vmem:[%s1 + $0x108] sm:$0xff]
  %v65 = vld [vmem:[%s1 + $0x110] sm:$0xff]
  %v66 = vld [vmem:[%s1 + $0x118] sm:$0xff]
  %v67 = vld [vmem:[%s1 + $0x120] sm:$0xff]
  %v68 = vld [vmem:[%s1 + $0x128] sm:$0xff]
  %v69 = vld [vmem:[%s1 + $0x130] sm:$0xff]
  %v70 = vld [vmem:[%s1 + $0x138] sm:$0xff]
  %v71 = vld [vmem:[%s1 + $0x140] sm:$0xff]
  %v72 = vld [vmem:[%s1 + $0x148] sm:$0xff]
  %v73 = vld [vmem:[%s1 + $0x150] sm:$0xff]
  %v74 = vld [vmem:[%s1 + $0x158] sm:$0xff]
  %v75 = vld [vmem:[%s1 + $0x160] sm:$0xff]
  %v76 = vld [vmem:[%s1 + $0x168] sm:$0xff]
  %v77 = vld [vmem:[%s1 + $0x170] sm:$0xff]
  %v78 = vld [vmem:[%s1 + $0x178] sm:$0xff]
  %v79 = vld [vmem:[%s1 + $0x180] sm:$0xff]
  %v80 = vld [vmem:[%s1 + $0x188] sm:$0xff]
  %v81 = vld [vmem:[%s1 + $0x190] sm:$0xff]
  %v82 = vld [vmem:[%s1 + $0x198] sm:$0xff]
  %v83 = vld [vmem:[%s1 + $0x1a0] sm:$0xff]
  %v84 = vld [vmem:[%s1 + $0x1a8] sm:$0xff]
  %v85 = vld [vmem:[%s1 + $0x1b0] sm:$0xff]
  %v86 = vld [vmem:[%s1 + $0x1b8] sm:$0xff]
  %v87 = vld [vmem:[%s1 + $0x1c0] sm:$0xff]
  %v88 = vld [vmem:[%s1 + $0x1c8] sm:$0xff]
  %v89 = vld [vmem:[%s1 + $0x1d0] sm:$0xff]
  %v90 = vld [vmem:[%s1 + $0x1d8] sm:$0xff]
  %v91 = vld [vmem:[%s1 + $0x1e0] sm:$0xff]
  %v92 = vld [vmem:[%s1 + $0x1e8] sm:$0xff]
  %v93 = vld [vmem:[%s1 + $0x1f0] sm:$0xff]
  %v94 = vld [vmem:[%s1 + $0x1f8] sm:$0xff]
  %vm159 = vcmask 1040384
  %v160 = vrot.slane %v31, 7
  %v161 = vrot.slane %v32, 7
  %v162 = vsel %vm159, %v160, %v161
  %v163 = vrot.slane %v33, 7
  %v164 = vrot.slane %v34, 7
  %v165 = vsel %vm159, %v163, %v164
  %v166 = vrot.slane %v35, 7
  %v167 = vrot.slane %v36, 7
  %v168 = vsel %vm159, %v166, %v167
  %v169 = vrot.slane %v37, 7
  %v170 = vrot.slane %v38, 7
  %v171 = vsel %vm159, %v169, %v170
  %v172 = vrot.slane %v39, 7
  %v173 = vrot.slane %v40, 7
  %v174 = vsel %vm159, %v172, %v173
  %v175 = vrot.slane %v41, 7
  %v176 = vrot.slane %v42, 7
  %v177 = vsel %vm159, %v175, %v176
  %v178 = vrot.slane %v43, 7
  %v179 = vrot.slane %v44, 7
  %v180 = vsel %vm159, %v178, %v179
  %v181 = vrot.slane %v45, 7
  %v182 = vrot.slane %v46, 7
  %v183 = vsel %vm159, %v181, %v182
  %v184 = vrot.slane %v47, 7
  %v185 = vrot.slane %v48, 7
  %v186 = vsel %vm159, %v184, %v185
  %v187 = vrot.slane %v49, 7
  %v188 = vrot.slane %v50, 7
  %v189 = vsel %vm159, %v187, %v188
  %v190 = vrot.slane %v51, 7
  %v191 = vrot.slane %v52, 7
  %v192 = vsel %vm159, %v190, %v191
  %v193 = vrot.slane %v53, 7
  %v194 = vrot.slane %v54, 7
  %v195 = vsel %vm159, %v193, %v194
  %v196 = vrot.slane %v55, 7
  %v197 = vrot.slane %v56, 7
  %v198 = vsel %vm159, %v196, %v197
  %v199 = vrot.slane %v57, 7
  %v200 = vrot.slane %v58, 7
  %v201 = vsel %vm159, %v199, %v200
  %v202 = vrot.slane %v59, 7
  %v203 = vrot.slane %v60, 7
  %v204 = vsel %vm159, %v202, %v203
  %v205 = vrot.slane %v61, 7
  %v206 = vrot.slane %v62, 7
  %v207 = vsel %vm159, %v205, %v206
  %v208 = vrot.slane %v63, 7
  %v209 = vrot.slane %v64, 7
  %v210 = vsel %vm159, %v208, %v209
  %v211 = vrot.slane %v65, 7
  %v212 = vrot.slane %v66, 7
  %v213 = vsel %vm159, %v211, %v212
  %v214 = vrot.slane %v67, 7
  %v215 = vrot.slane %v68, 7
  %v216 = vsel %vm159, %v214, %v215
  %v217 = vrot.slane %v69, 7
  %v218 = vrot.slane %v70, 7
  %v219 = vsel %vm159, %v217, %v218
  %v220 = vrot.slane %v71, 7
  %v221 = vrot.slane %v72, 7
  %v222 = vsel %vm159, %v220, %v221
  %v223 = vrot.slane %v73, 7
  %v224 = vrot.slane %v74, 7
  %v225 = vsel %vm159, %v223, %v224
  %v226 = vrot.slane %v75, 7
  %v227 = vrot.slane %v76, 7
  %v228 = vsel %vm159, %v226, %v227
  %v229 = vrot.slane %v77, 7
  %v230 = vrot.slane %v78, 7
  %v231 = vsel %vm159, %v229, %v230
  %v232 = vrot.slane %v79, 7
  %v233 = vrot.slane %v80, 7
  %v234 = vsel %vm159, %v232, %v233
  %v235 = vrot.slane %v81, 7
  %v236 = vrot.slane %v82, 7
  %v237 = vsel %vm159, %v235, %v236
  %v238 = vrot.slane %v83, 7
  %v239 = vrot.slane %v84, 7
  %v240 = vsel %vm159, %v238, %v239
  %v241 = vrot.slane %v85, 7
  %v242 = vrot.slane %v86, 7
  %v243 = vsel %vm159, %v241, %v242
  %v244 = vrot.slane %v87, 7
  %v245 = vrot.slane %v88, 7
  %v246 = vsel %vm159, %v244, %v245
  %v247 = vrot.slane %v89, 7
  %v248 = vrot.slane %v90, 7
  %v249 = vsel %vm159, %v247, %v248
  %v250 = vrot.slane %v91, 7
  %v251 = vrot.slane %v92, 7
  %v252 = vsel %vm159, %v250, %v251
  %v253 = vrot.slane %v93, 7
  %v254 = vrot.slane %v94, 7
  %v255 = vsel %vm159, %v253, %v254
  %v350 = vsel %vm159, 0.0, %v160
  %v351 = vsel %vm159, 0.0, %v163
  %v352 = vsel %vm159, 0.0, %v166
  %v353 = vsel %vm159, 0.0, %v169
  %v354 = vsel %vm159, 0.0, %v172
  %v355 = vsel %vm159, 0.0, %v175
  %v356 = vsel %vm159, 0.0, %v178
  %v357 = vsel %vm159, 0.0, %v181
  %v358 = vsel %vm159, 0.0, %v184
  %v359 = vsel %vm159, 0.0, %v187
  %v360 = vsel %vm159, 0.0, %v190
  %v361 = vsel %vm159, 0.0, %v193
  %v362 = vsel %vm159, 0.0, %v196
  %v363 = vsel %vm159, 0.0, %v199
  %v364 = vsel %vm159, 0.0, %v202
  %v365 = vsel %vm159, 0.0, %v205
  %v366 = vsel %vm159, 0.0, %v208
  %v367 = vsel %vm159, 0.0, %v211
  %v368 = vsel %vm159, 0.0, %v214
  %v369 = vsel %vm159, 0.0, %v217
  %v370 = vsel %vm159, 0.0, %v220
  %v371 = vsel %vm159, 0.0, %v223
  %v372 = vsel %vm159, 0.0, %v226
  %v373 = vsel %vm159, 0.0, %v229
  %v374 = vsel %vm159, 0.0, %v232
  %v375 = vsel %vm159, 0.0, %v235
  %v376 = vsel %vm159, 0.0, %v238
  %v377 = vsel %vm159, 0.0, %v241
  %v378 = vsel %vm159, 0.0, %v244
  %v379 = vsel %vm159, 0.0, %v247
  %v380 = vsel %vm159, 0.0, %v250
  %v381 = vsel %vm159, 0.0, %v253
  %v382 = vsel %vm159, %v161, 0.0
  %v383 = vsel %vm159, %v164, 0.0
  %v384 = vsel %vm159, %v167, 0.0
  %v385 = vsel %vm159, %v170, 0.0
  %v386 = vsel %vm159, %v173, 0.0
  %v387 = vsel %vm159, %v176, 0.0
  %v388 = vsel %vm159, %v179, 0.0
  %v389 = vsel %vm159, %v182, 0.0
  %v390 = vsel %vm159, %v185, 0.0
  %v391 = vsel %vm159, %v188, 0.0
  %v392 = vsel %vm159, %v191, 0.0
  %v393 = vsel %vm159, %v194, 0.0
  %v394 = vsel %vm159, %v197, 0.0
  %v395 = vsel %vm159, %v200, 0.0
  %v396 = vsel %vm159, %v203, 0.0
  %v397 = vsel %vm159, %v206, 0.0
  %v398 = vsel %vm159, %v209, 0.0
  %v399 = vsel %vm159, %v212, 0.0
  %v400 = vsel %vm159, %v215, 0.0
  %v401 = vsel %vm159, %v218, 0.0
  %v402 = vsel %vm159, %v221, 0.0
  %v403 = vsel %vm159, %v224, 0.0
  %v404 = vsel %vm159, %v227, 0.0
  %v405 = vsel %vm159, %v230, 0.0
  %v406 = vsel %vm159, %v233, 0.0
  %v407 = vsel %vm159, %v236, 0.0
  %v408 = vsel %vm159, %v239, 0.0
  %v409 = vsel %vm159, %v242, 0.0
  %v410 = vsel %vm159, %v245, 0.0
  %v411 = vsel %vm159, %v248, 0.0
  %v412 = vsel %vm159, %v251, 0.0
  %v413 = vsel %vm159, %v254, 0.0
  %v414 = vld [vmem:[%s2] sm:$0xff]
  %v415 = vld [vmem:[%s2 + $0x8] sm:$0xff]
  %v416 = vld [vmem:[%s2 + $0x10] sm:$0xff]
  %v417 = vld [vmem:[%s2 + $0x18] sm:$0xff]
  %v418 = vld [vmem:[%s2 + $0x20] sm:$0xf]
  %vm480 = vcmask 1046528
  %v481 = vrot.slane 0.0, 1
  %v482 = vsel %vm480, %v481, %v481
  %v483 = vrot.slane %v350, 1
  %v484 = vrot.slane %v162, 1
  %v485 = vsel %vm480, %v483, %v484
  %v486 = vrot.slane %v382, 1
  %v487 = vsel %vm480, %v484, %v486
  %v488 = vrot.slane %v351, 1
  %v489 = vrot.slane %v165, 1
  %v490 = vsel %vm480, %v488, %v489
  %v491 = vrot.slane %v383, 1
  %v492 = vsel %vm480, %v489, %v491
  %v493 = vrot.slane %v352, 1
  %v494 = vrot.slane %v168, 1
  %v495 = vsel %vm480, %v493, %v494
  %v496 = vrot.slane %v384, 1
  %v497 = vsel %vm480, %v494, %v496
  %v498 = vrot.slane %v353, 1
  %v499 = vrot.slane %v171, 1
  %v500 = vsel %vm480, %v498, %v499
  %v501 = vrot.slane %v385, 1
  %v502 = vsel %vm480, %v499, %v501
  %v503 = vrot.slane %v354, 1
  %v504 = vrot.slane %v174, 1
  %v505 = vsel %vm480, %v503, %v504
  %v506 = vrot.slane %v386, 1
  %v507 = vsel %vm480, %v504, %v506
  %v508 = vrot.slane %v355, 1
  %v509 = vrot.slane %v177, 1
  %v510 = vsel %vm480, %v508, %v509
  %v511 = vrot.slane %v387, 1
  %v512 = vsel %vm480, %v509, %v511
  %v513 = vrot.slane %v356, 1
  %v514 = vrot.slane %v180, 1
  %v515 = vsel %vm480, %v513, %v514
  %v516 = vrot.slane %v388, 1
  %v517 = vsel %vm480, %v514, %v516
  %v518 = vrot.slane %v357, 1
  %v519 = vrot.slane %v183, 1
  %v520 = vsel %vm480, %v518, %v519
  %v521 = vrot.slane %v389, 1
  %v522 = vsel %vm480, %v519, %v521
  %v523 = vrot.slane %v358, 1
  %v524 = vrot.slane %v186, 1
  %v525 = vsel %vm480, %v523, %v524
  %v526 = vrot.slane %v390, 1
  %v527 = vsel %vm480, %v524, %v526
  %v528 = vrot.slane %v359, 1
  %v529 = vrot.slane %v189, 1
  %v530 = vsel %vm480, %v528, %v529
  %v531 = vrot.slane %v391, 1
  %v532 = vsel %vm480, %v529, %v531
  %v533 = vrot.slane %v360, 1
  %v534 = vrot.slane %v192, 1
  %v535 = vsel %vm480, %v533, %v534
  %v536 = vrot.slane %v392, 1
  %v537 = vsel %vm480, %v534, %v536
  %v538 = vrot.slane %v361, 1
  %v539 = vrot.slane %v195, 1
  %v540 = vsel %vm480, %v538, %v539
  %v541 = vrot.slane %v393, 1
  %v542 = vsel %vm480, %v539, %v541
  %v543 = vrot.slane %v362, 1
  %v544 = vrot.slane %v198, 1
  %v545 = vsel %vm480, %v543, %v544
  %v546 = vrot.slane %v394, 1
  %v547 = vsel %vm480, %v544, %v546
  %v548 = vrot.slane %v363, 1
  %v549 = vrot.slane %v201, 1
  %v550 = vsel %vm480, %v548, %v549
  %v551 = vrot.slane %v395, 1
  %v552 = vsel %vm480, %v549, %v551
  %v553 = vrot.slane %v364, 1
  %v554 = vrot.slane %v204, 1
  %v555 = vsel %vm480, %v553, %v554
  %v556 = vrot.slane %v396, 1
  %v557 = vsel %vm480, %v554, %v556
  %v558 = vrot.slane %v366, 1
  %v559 = vrot.slane %v210, 1
  %v560 = vsel %vm480, %v558, %v559
  %v561 = vrot.slane %v398, 1
  %v562 = vsel %vm480, %v559, %v561
  %v563 = vrot.slane %v367, 1
  %v564 = vrot.slane %v213, 1
  %v565 = vsel %vm480, %v563, %v564
  %v566 = vrot.slane %v399, 1
  %v567 = vsel %vm480, %v564, %v566
  %v568 = vrot.slane %v368, 1
  %v569 = vrot.slane %v216, 1
  %v570 = vsel %vm480, %v568, %v569
  %v571 = vrot.slane %v400, 1
  %v572 = vsel %vm480, %v569, %v571
  %v573 = vrot.slane %v369, 1
  %v574 = vrot.slane %v219, 1
  %v575 = vsel %vm480, %v573, %v574
  %v576 = vrot.slane %v401, 1
  %v577 = vsel %vm480, %v574, %v576
  %v578 = vrot.slane %v370, 1
  %v579 = vrot.slane %v222, 1
  %v580 = vsel %vm480, %v578, %v579
  %v581 = vrot.slane %v402, 1
  %v582 = vsel %vm480, %v579, %v581
  %v583 = vrot.slane %v371, 1
  %v584 = vrot.slane %v225, 1
  %v585 = vsel %vm480, %v583, %v584
  %v586 = vrot.slane %v403, 1
  %v587 = vsel %vm480, %v584, %v586
  %v588 = vrot.slane %v372, 1
  %v589 = vrot.slane %v228, 1
  %v590 = vsel %vm480, %v588, %v589
  %v591 = vrot.slane %v404, 1
  %v592 = vsel %vm480, %v589, %v591
  %v593 = vrot.slane %v373, 1
  %v594 = vrot.slane %v231, 1
  %v595 = vsel %vm480, %v593, %v594
  %v596 = vrot.slane %v405, 1
  %v597 = vsel %vm480, %v594, %v596
  %v598 = vrot.slane %v374, 1
  %v599 = vrot.slane %v234, 1
  %v600 = vsel %vm480, %v598, %v599
  %v601 = vrot.slane %v406, 1
  %v602 = vsel %vm480, %v599, %v601
  %v603 = vrot.slane %v375, 1
  %v604 = vrot.slane %v237, 1
  %v605 = vsel %vm480, %v603, %v604
  %v606 = vrot.slane %v407, 1
  %v607 = vsel %vm480, %v604, %v606
  %v608 = vrot.slane %v376, 1
  %v609 = vrot.slane %v240, 1
  %v610 = vsel %vm480, %v608, %v609
  %v611 = vrot.slane %v408, 1
  %v612 = vsel %vm480, %v609, %v611
  %v613 = vrot.slane %v377, 1
  %v614 = vrot.slane %v243, 1
  %v615 = vsel %vm480, %v613, %v614
  %v616 = vrot.slane %v409, 1
  %v617 = vsel %vm480, %v614, %v616
  %v618 = vrot.slane %v378, 1
  %v619 = vrot.slane %v246, 1
  %v620 = vsel %vm480, %v618, %v619
  %v621 = vrot.slane %v410, 1
  %v622 = vsel %vm480, %v619, %v621
  %v623 = vrot.slane %v379, 1
  %v624 = vrot.slane %v249, 1
  %v625 = vsel %vm480, %v623, %v624
  %v626 = vrot.slane %v411, 1
  %v627 = vsel %vm480, %v624, %v626
  %v628 = vrot.slane %v380, 1
  %v629 = vrot.slane %v252, 1
  %v630 = vsel %vm480, %v628, %v629
  %v631 = vrot.slane %v412, 1
  %v632 = vsel %vm480, %v629, %v631
  %633 = vrot.lane.b32.xlu0 %v482, 4
  %v634 = vpop.permute.xlu0 %633
  %635 = vrot.lane.b32.xlu0 %v485, 4
  %v636 = vpop.permute.xlu0 %635
  %637 = vrot.lane.b32.xlu0 %v487, 4
  %v638 = vpop.permute.xlu0 %637
  %639 = vrot.lane.b32.xlu0 %v490, 4
  %v640 = vpop.permute.xlu0 %639
  %641 = vrot.lane.b32.xlu0 %v492, 4
  %v642 = vpop.permute.xlu0 %641
  %643 = vrot.lane.b32.xlu0 %v495, 4
  %v644 = vpop.permute.xlu0 %643
  %645 = vrot.lane.b32.xlu0 %v497, 4
  %v646 = vpop.permute.xlu0 %645
  %647 = vrot.lane.b32.xlu0 %v500, 4
  %v648 = vpop.permute.xlu0 %647
  %649 = vrot.lane.b32.xlu0 %v502, 4
  %v650 = vpop.permute.xlu0 %649
  %651 = vrot.lane.b32.xlu0 %v505, 4
  %v652 = vpop.permute.xlu0 %651
  %653 = vrot.lane.b32.xlu0 %v507, 4
  %v654 = vpop.permute.xlu0 %653
  %655 = vrot.lane.b32.xlu0 %v510, 4
  %v656 = vpop.permute.xlu0 %655
  %657 = vrot.lane.b32.xlu0 %v512, 4
  %v658 = vpop.permute.xlu0 %657
  %659 = vrot.lane.b32.xlu0 %v515, 4
  %v660 = vpop.permute.xlu0 %659
  %661 = vrot.lane.b32.xlu0 %v517, 4
  %v662 = vpop.permute.xlu0 %661
  %663 = vrot.lane.b32.xlu0 %v520, 4
  %v664 = vpop.permute.xlu0 %663
  %665 = vrot.lane.b32.xlu0 %v522, 4
  %v666 = vpop.permute.xlu0 %665
  %667 = vrot.lane.b32.xlu0 %v525, 4
  %v668 = vpop.permute.xlu0 %667
  %669 = vrot.lane.b32.xlu0 %v527, 4
  %v670 = vpop.permute.xlu0 %669
  %671 = vrot.lane.b32.xlu0 %v530, 4
  %v672 = vpop.permute.xlu0 %671
  %673 = vrot.lane.b32.xlu0 %v532, 4
  %v674 = vpop.permute.xlu0 %673
  %675 = vrot.lane.b32.xlu0 %v535, 4
  %v676 = vpop.permute.xlu0 %675
  %677 = vrot.lane.b32.xlu0 %v537, 4
  %v678 = vpop.permute.xlu0 %677
  %679 = vrot.lane.b32.xlu0 %v540, 4
  %v680 = vpop.permute.xlu0 %679
  %681 = vrot.lane.b32.xlu0 %v542, 4
  %v682 = vpop.permute.xlu0 %681
  %683 = vrot.lane.b32.xlu0 %v545, 4
  %v684 = vpop.permute.xlu0 %683
  %685 = vrot.lane.b32.xlu0 %v547, 4
  %v686 = vpop.permute.xlu0 %685
  %687 = vrot.lane.b32.xlu0 %v550, 4
  %v688 = vpop.permute.xlu0 %687
  %689 = vrot.lane.b32.xlu0 %v552, 4
  %v690 = vpop.permute.xlu0 %689
  %691 = vrot.lane.b32.xlu0 %v555, 4
  %v692 = vpop.permute.xlu0 %691
  %693 = vrot.lane.b32.xlu0 %v557, 4
  %v694 = vpop.permute.xlu0 %693
  %695 = vrot.lane.b32.xlu0 %v560, 4
  %v696 = vpop.permute.xlu0 %695
  %697 = vrot.lane.b32.xlu0 %v562, 4
  %v698 = vpop.permute.xlu0 %697
  %699 = vrot.lane.b32.xlu0 %v565, 4
  %v700 = vpop.permute.xlu0 %699
  %701 = vrot.lane.b32.xlu0 %v567, 4
  %v702 = vpop.permute.xlu0 %701
  %703 = vrot.lane.b32.xlu0 %v570, 4
  %v704 = vpop.permute.xlu0 %703
  %705 = vrot.lane.b32.xlu0 %v572, 4
  %v706 = vpop.permute.xlu0 %705
  %707 = vrot.lane.b32.xlu0 %v575, 4
  %v708 = vpop.permute.xlu0 %707
  %709 = vrot.lane.b32.xlu0 %v577, 4
  %v710 = vpop.permute.xlu0 %709
  %711 = vrot.lane.b32.xlu0 %v580, 4
  %v712 = vpop.permute.xlu0 %711
  %713 = vrot.lane.b32.xlu0 %v582, 4
  %v714 = vpop.permute.xlu0 %713
  %715 = vrot.lane.b32.xlu0 %v585, 4
  %v716 = vpop.permute.xlu0 %715
  %717 = vrot.lane.b32.xlu0 %v587, 4
  %v718 = vpop.permute.xlu0 %717
  %719 = vrot.lane.b32.xlu0 %v590, 4
  %v720 = vpop.permute.xlu0 %719
  %721 = vrot.lane.b32.xlu0 %v592, 4
  %v722 = vpop.permute.xlu0 %721
  %723 = vrot.lane.b32.xlu0 %v595, 4
  %v724 = vpop.permute.xlu0 %723
  %725 = vrot.lane.b32.xlu0 %v597, 4
  %v726 = vpop.permute.xlu0 %725
  %727 = vrot.lane.b32.xlu0 %v600, 4
  %v728 = vpop.permute.xlu0 %727
  %729 = vrot.lane.b32.xlu0 %v602, 4
  %v730 = vpop.permute.xlu0 %729
  %731 = vrot.lane.b32.xlu0 %v605, 4
  %v732 = vpop.permute.xlu0 %731
  %733 = vrot.lane.b32.xlu0 %v607, 4
  %v734 = vpop.permute.xlu0 %733
  %735 = vrot.lane.b32.xlu0 %v610, 4
  %v736 = vpop.permute.xlu0 %735
  %737 = vrot.lane.b32.xlu0 %v612, 4
  %v738 = vpop.permute.xlu0 %737
  %739 = vrot.lane.b32.xlu0 %v615, 4
  %v740 = vpop.permute.xlu0 %739
  %741 = vrot.lane.b32.xlu0 %v617, 4
  %v742 = vpop.permute.xlu0 %741
  %743 = vrot.lane.b32.xlu0 %v620, 4
  %v744 = vpop.permute.xlu0 %743
  %745 = vrot.lane.b32.xlu0 %v622, 4
  %v746 = vpop.permute.xlu0 %745
  %747 = vrot.lane.b32.xlu0 %v625, 4
  %v748 = vpop.permute.xlu0 %747
  %749 = vrot.lane.b32.xlu0 %v627, 4
  %v750 = vpop.permute.xlu0 %749
  %751 = vrot.lane.b32.xlu0 %v630, 4
  %v752 = vpop.permute.xlu0 %751
  %753 = vrot.lane.b32.xlu0 %v632, 4
  %v754 = vpop.permute.xlu0 %753
  %vm816 = vcmask 1045504
  %v817 = vrot.slane 0.0, 2
  %v818 = vsel %vm816, %v817, %v817
  %v819 = vrot.slane %v350, 2
  %v820 = vrot.slane %v162, 2
  %v821 = vsel %vm816, %v819, %v820
  %v822 = vrot.slane %v382, 2
  %v823 = vsel %vm816, %v820, %v822
  %v824 = vrot.slane %v351, 2
  %v825 = vrot.slane %v165, 2
  %v826 = vsel %vm816, %v824, %v825
  %v827 = vrot.slane %v383, 2
  %v828 = vsel %vm816, %v825, %v827
  %v829 = vrot.slane %v352, 2
  %v830 = vrot.slane %v168, 2
  %v831 = vsel %vm816, %v829, %v830
  %v832 = vrot.slane %v384, 2
  %v833 = vsel %vm816, %v830, %v832
  %v834 = vrot.slane %v353, 2
  %v835 = vrot.slane %v171, 2
  %v836 = vsel %vm816, %v834, %v835
  %v837 = vrot.slane %v385, 2
  %v838 = vsel %vm816, %v835, %v837
  %v839 = vrot.slane %v354, 2
  %v840 = vrot.slane %v174, 2
  %v841 = vsel %vm816, %v839, %v840
  %v842 = vrot.slane %v386, 2
  %v843 = vsel %vm816, %v840, %v842
  %v844 = vrot.slane %v355, 2
  %v845 = vrot.slane %v177, 2
  %v846 = vsel %vm816, %v844, %v845
  %v847 = vrot.slane %v387, 2
  %v848 = vsel %vm816, %v845, %v847
  %v849 = vrot.slane %v356, 2
  %v850 = vrot.slane %v180, 2
  %v851 = vsel %vm816, %v849, %v850
  %v852 = vrot.slane %v388, 2
  %v853 = vsel %vm816, %v850, %v852
  %v854 = vrot.slane %v357, 2
  %v855 = vrot.slane %v183, 2
  %v856 = vsel %vm816, %v854, %v855
  %v857 = vrot.slane %v389, 2
  %v858 = vsel %vm816, %v855, %v857
  %v859 = vrot.slane %v358, 2
  %v860 = vrot.slane %v186, 2
  %v861 = vsel %vm816, %v859, %v860
  %v862 = vrot.slane %v390, 2
  %v863 = vsel %vm816, %v860, %v862
  %v864 = vrot.slane %v359, 2
  %v865 = vrot.slane %v189, 2
  %v866 = vsel %vm816, %v864, %v865
  %v867 = vrot.slane %v391, 2
  %v868 = vsel %vm816, %v865, %v867
  %v869 = vrot.slane %v360, 2
  %v870 = vrot.slane %v192, 2
  %v871 = vsel %vm816, %v869, %v870
  %v872 = vrot.slane %v392, 2
  %v873 = vsel %vm816, %v870, %v872
  %v874 = vrot.slane %v361, 2
  %v875 = vrot.slane %v195, 2
  %v876 = vsel %vm816, %v874, %v875
  %v877 = vrot.slane %v393, 2
  %v878 = vsel %vm816, %v875, %v877
  %v879 = vrot.slane %v362, 2
  %v880 = vrot.slane %v198, 2
  %v881 = vsel %vm816, %v879, %v880
  %v882 = vrot.slane %v394, 2
  %v883 = vsel %vm816, %v880, %v882
  %v884 = vrot.slane %v363, 2
  %v885 = vrot.slane %v201, 2
  %v886 = vsel %vm816, %v884, %v885
  %v887 = vrot.slane %v395, 2
  %v888 = vsel %vm816, %v885, %v887
  %v889 = vrot.slane %v364, 2
  %v890 = vrot.slane %v204, 2
  %v891 = vsel %vm816, %v889, %v890
  %v892 = vrot.slane %v396, 2
  %v893 = vsel %vm816, %v890, %v892
  %v894 = vrot.slane %v366, 2
  %v895 = vrot.slane %v210, 2
  %v896 = vsel %vm816, %v894, %v895
  %v897 = vrot.slane %v398, 2
  %v898 = vsel %vm816, %v895, %v897
  %v899 = vrot.slane %v367, 2
  %v900 = vrot.slane %v213, 2
  %v901 = vsel %vm816, %v899, %v900
  %v902 = vrot.slane %v399, 2
  %v903 = vsel %vm816, %v900, %v902
  %v904 = vrot.slane %v368, 2
  %v905 = vrot.slane %v216, 2
  %v906 = vsel %vm816, %v904, %v905
  %v907 = vrot.slane %v400, 2
  %v908 = vsel %vm816, %v905, %v907
  %v909 = vrot.slane %v369, 2
  %v910 = vrot.slane %v219, 2
  %v911 = vsel %vm816, %v909, %v910
  %v912 = vrot.slane %v401, 2
  %v913 = vsel %vm816, %v910, %v912
  %v914 = vrot.slane %v370, 2
  %v915 = vrot.slane %v222, 2
  %v916 = vsel %vm816, %v914, %v915
  %v917 = vrot.slane %v402, 2
  %v918 = vsel %vm816, %v915, %v917
  %v919 = vrot.slane %v371, 2
  %v920 = vrot.slane %v225, 2
  %v921 = vsel %vm816, %v919, %v920
  %v922 = vrot.slane %v403, 2
  %v923 = vsel %vm816, %v920, %v922
  %v924 = vrot.slane %v372, 2
  %v925 = vrot.slane %v228, 2
  %v926 = vsel %vm816, %v924, %v925
  %v927 = vrot.slane %v404, 2
  %v928 = vsel %vm816, %v925, %v927
  %v929 = vrot.slane %v373, 2
  %v930 = vrot.slane %v231, 2
  %v931 = vsel %vm816, %v929, %v930
  %v932 = vrot.slane %v405, 2
  %v933 = vsel %vm816, %v930, %v932
  %v934 = vrot.slane %v374, 2
  %v935 = vrot.slane %v234, 2
  %v936 = vsel %vm816, %v934, %v935
  %v937 = vrot.slane %v406, 2
  %v938 = vsel %vm816, %v935, %v937
  %v939 = vrot.slane %v375, 2
  %v940 = vrot.slane %v237, 2
  %v941 = vsel %vm816, %v939, %v940
  %v942 = vrot.slane %v407, 2
  %v943 = vsel %vm816, %v940, %v942
  %v944 = vrot.slane %v376, 2
  %v945 = vrot.slane %v240, 2
  %v946 = vsel %vm816, %v944, %v945
  %v947 = vrot.slane %v408, 2
  %v948 = vsel %vm816, %v945, %v947
  %v949 = vrot.slane %v377, 2
  %v950 = vrot.slane %v243, 2
  %v951 = vsel %vm816, %v949, %v950
  %v952 = vrot.slane %v409, 2
  %v953 = vsel %vm816, %v950, %v952
  %v954 = vrot.slane %v378, 2
  %v955 = vrot.slane %v246, 2
  %v956 = vsel %vm816, %v954, %v955
  %v957 = vrot.slane %v410, 2
  %v958 = vsel %vm816, %v955, %v957
  %v959 = vrot.slane %v379, 2
  %v960 = vrot.slane %v249, 2
  %v961 = vsel %vm816, %v959, %v960
  %v962 = vrot.slane %v411, 2
  %v963 = vsel %vm816, %v960, %v962
  %v964 = vrot.slane %v380, 2
  %v965 = vrot.slane %v252, 2
  %v966 = vsel %vm816, %v964, %v965
  %v967 = vrot.slane %v412, 2
  %v968 = vsel %vm816, %v965, %v967
  %969 = vrot.lane.b32.xlu0 %v818, 8
  %v970 = vpop.permute.xlu0 %969
  %971 = vrot.lane.b32.xlu0 %v821, 8
  %v972 = vpop.permute.xlu0 %971
  %973 = vrot.lane.b32.xlu0 %v823, 8
  %v974 = vpop.permute.xlu0 %973
  %975 = vrot.lane.b32.xlu0 %v826, 8
  %v976 = vpop.permute.xlu0 %975
  %977 = vrot.lane.b32.xlu0 %v828, 8
  %v978 = vpop.permute.xlu0 %977
  %979 = vrot.lane.b32.xlu0 %v831, 8
  %v980 = vpop.permute.xlu0 %979
  %981 = vrot.lane.b32.xlu0 %v833, 8
  %v982 = vpop.permute.xlu0 %981
  %983 = vrot.lane.b32.xlu0 %v836, 8
  %v984 = vpop.permute.xlu0 %983
  %985 = vrot.lane.b32.xlu0 %v838, 8
  %v986 = vpop.permute.xlu0 %985
  %987 = vrot.lane.b32.xlu0 %v841, 8
  %v988 = vpop.permute.xlu0 %987
  %989 = vrot.lane.b32.xlu0 %v843, 8
  %v990 = vpop.permute.xlu0 %989
  %991 = vrot.lane.b32.xlu0 %v846, 8
  %v992 = vpop.permute.xlu0 %991
  %993 = vrot.lane.b32.xlu0 %v848, 8
  %v994 = vpop.permute.xlu0 %993
  %995 = vrot.lane.b32.xlu0 %v851, 8
  %v996 = vpop.permute.xlu0 %995
  %997 = vrot.lane.b32.xlu0 %v853, 8
  %v998 = vpop.permute.xlu0 %997
  %999 = vrot.lane.b32.xlu0 %v856, 8
  %v1000 = vpop.permute.xlu0 %999
  %1001 = vrot.lane.b32.xlu0 %v858, 8
  %v1002 = vpop.permute.xlu0 %1001
  %1003 = vrot.lane.b32.xlu0 %v861, 8
  %v1004 = vpop.permute.xlu0 %1003
  %1005 = vrot.lane.b32.xlu0 %v863, 8
  %v1006 = vpop.permute.xlu0 %1005
  %1007 = vrot.lane.b32.xlu0 %v866, 8
  %v1008 = vpop.permute.xlu0 %1007
  %1009 = vrot.lane.b32.xlu0 %v868, 8
  %v1010 = vpop.permute.xlu0 %1009
  %1011 = vrot.lane.b32.xlu0 %v871, 8
  %v1012 = vpop.permute.xlu0 %1011
  %1013 = vrot.lane.b32.xlu0 %v873, 8
  %v1014 = vpop.permute.xlu0 %1013
  %1015 = vrot.lane.b32.xlu0 %v876, 8
  %v1016 = vpop.permute.xlu0 %1015
  %1017 = vrot.lane.b32.xlu0 %v878, 8
  %v1018 = vpop.permute.xlu0 %1017
  %1019 = vrot.lane.b32.xlu0 %v881, 8
  %v1020 = vpop.permute.xlu0 %1019
  %1021 = vrot.lane.b32.xlu0 %v883, 8
  %v1022 = vpop.permute.xlu0 %1021
  %1023 = vrot.lane.b32.xlu0 %v886, 8
  %v1024 = vpop.permute.xlu0 %1023
  %1025 = vrot.lane.b32.xlu0 %v888, 8
  %v1026 = vpop.permute.xlu0 %1025
  %1027 = vrot.lane.b32.xlu0 %v891, 8
  %v1028 = vpop.permute.xlu0 %1027
  %1029 = vrot.lane.b32.xlu0 %v893, 8
  %v1030 = vpop.permute.xlu0 %1029
  %1031 = vrot.lane.b32.xlu0 %v896, 8
  %v1032 = vpop.permute.xlu0 %1031
  %1033 = vrot.lane.b32.xlu0 %v898, 8
  %v1034 = vpop.permute.xlu0 %1033
  %1035 = vrot.lane.b32.xlu0 %v901, 8
  %v1036 = vpop.permute.xlu0 %1035
  %1037 = vrot.lane.b32.xlu0 %v903, 8
  %v1038 = vpop.permute.xlu0 %1037
  %1039 = vrot.lane.b32.xlu0 %v906, 8
  %v1040 = vpop.permute.xlu0 %1039
  %1041 = vrot.lane.b32.xlu0 %v908, 8
  %v1042 = vpop.permute.xlu0 %1041
  %1043 = vrot.lane.b32.xlu0 %v911, 8
  %v1044 = vpop.permute.xlu0 %1043
  %1045 = vrot.lane.b32.xlu0 %v913, 8
  %v1046 = vpop.permute.xlu0 %1045
  %1047 = vrot.lane.b32.xlu0 %v916, 8
  %v1048 = vpop.permute.xlu0 %1047
  %1049 = vrot.lane.b32.xlu0 %v918, 8
  %v1050 = vpop.permute.xlu0 %1049
  %1051 = vrot.lane.b32.xlu0 %v921, 8
  %v1052 = vpop.permute.xlu0 %1051
  %1053 = vrot.lane.b32.xlu0 %v923, 8
  %v1054 = vpop.permute.xlu0 %1053
  %1055 = vrot.lane.b32.xlu0 %v926, 8
  %v1056 = vpop.permute.xlu0 %1055
  %1057 = vrot.lane.b32.xlu0 %v928, 8
  %v1058 = vpop.permute.xlu0 %1057
  %1059 = vrot.lane.b32.xlu0 %v931, 8
  %v1060 = vpop.permute.xlu0 %1059
  %1061 = vrot.lane.b32.xlu0 %v933, 8
  %v1062 = vpop.permute.xlu0 %1061
  %1063 = vrot.lane.b32.xlu0 %v936, 8
  %v1064 = vpop.permute.xlu0 %1063
  %1065 = vrot.lane.b32.xlu0 %v938, 8
  %v1066 = vpop.permute.xlu0 %1065
  %1067 = vrot.lane.b32.xlu0 %v941, 8
  %v1068 = vpop.permute.xlu0 %1067
  %1069 = vrot.lane.b32.xlu0 %v943, 8
  %v1070 = vpop.permute.xlu0 %1069
  %1071 = vrot.lane.b32.xlu0 %v946, 8
  %v1072 = vpop.permute.xlu0 %1071
  %1073 = vrot.lane.b32.xlu0 %v948, 8
  %v1074 = vpop.permute.xlu0 %1073
  %1075 = vrot.lane.b32.xlu0 %v951, 8
  %v1076 = vpop.permute.xlu0 %1075
  %1077 = vrot.lane.b32.xlu0 %v953, 8
  %v1078 = vpop.permute.xlu0 %1077
  %1079 = vrot.lane.b32.xlu0 %v956, 8
  %v1080 = vpop.permute.xlu0 %1079
  %1081 = vrot.lane.b32.xlu0 %v958, 8
  %v1082 = vpop.permute.xlu0 %1081
  %1083 = vrot.lane.b32.xlu0 %v961, 8
  %v1084 = vpop.permute.xlu0 %1083
  %1085 = vrot.lane.b32.xlu0 %v963, 8
  %v1086 = vpop.permute.xlu0 %1085
  %1087 = vrot.lane.b32.xlu0 %v966, 8
  %v1088 = vpop.permute.xlu0 %1087
  %1089 = vrot.lane.b32.xlu0 %v968, 8
  %v1090 = vpop.permute.xlu0 %1089
  %1154 = vrot.lane.b32.xlu0 %v350, 12
  %v1155 = vpop.permute.xlu0 %1154
  %1156 = vrot.lane.b32.xlu0 %v162, 12
  %v1157 = vpop.permute.xlu0 %1156
  %1158 = vrot.lane.b32.xlu0 %v351, 12
  %v1159 = vpop.permute.xlu0 %1158
  %1160 = vrot.lane.b32.xlu0 %v165, 12
  %v1161 = vpop.permute.xlu0 %1160
  %1162 = vrot.lane.b32.xlu0 %v352, 12
  %v1163 = vpop.permute.xlu0 %1162
  %1164 = vrot.lane.b32.xlu0 %v168, 12
  %v1165 = vpop.permute.xlu0 %1164
  %1166 = vrot.lane.b32.xlu0 %v353, 12
  %v1167 = vpop.permute.xlu0 %1166
  %1168 = vrot.lane.b32.xlu0 %v171, 12
  %v1169 = vpop.permute.xlu0 %1168
  %1170 = vrot.lane.b32.xlu0 %v354, 12
  %v1171 = vpop.permute.xlu0 %1170
  %1172 = vrot.lane.b32.xlu0 %v174, 12
  %v1173 = vpop.permute.xlu0 %1172
  %1174 = vrot.lane.b32.xlu0 %v355, 12
  %v1175 = vpop.permute.xlu0 %1174
  %1176 = vrot.lane.b32.xlu0 %v177, 12
  %v1177 = vpop.permute.xlu0 %1176
  %1178 = vrot.lane.b32.xlu0 %v356, 12
  %v1179 = vpop.permute.xlu0 %1178
  %1180 = vrot.lane.b32.xlu0 %v180, 12
  %v1181 = vpop.permute.xlu0 %1180
  %1182 = vrot.lane.b32.xlu0 %v357, 12
  %v1183 = vpop.permute.xlu0 %1182
  %1184 = vrot.lane.b32.xlu0 %v183, 12
  %v1185 = vpop.permute.xlu0 %1184
  %1186 = vrot.lane.b32.xlu0 %v358, 12
  %v1187 = vpop.permute.xlu0 %1186
  %1188 = vrot.lane.b32.xlu0 %v186, 12
  %v1189 = vpop.permute.xlu0 %1188
  %1190 = vrot.lane.b32.xlu0 %v359, 12
  %v1191 = vpop.permute.xlu0 %1190
  %1192 = vrot.lane.b32.xlu0 %v189, 12
  %v1193 = vpop.permute.xlu0 %1192
  %1194 = vrot.lane.b32.xlu0 %v360, 12
  %v1195 = vpop.permute.xlu0 %1194
  %1196 = vrot.lane.b32.xlu0 %v192, 12
  %v1197 = vpop.permute.xlu0 %1196
  %1198 = vrot.lane.b32.xlu0 %v361, 12
  %v1199 = vpop.permute.xlu0 %1198
  %1200 = vrot.lane.b32.xlu0 %v195, 12
  %v1201 = vpop.permute.xlu0 %1200
  %1202 = vrot.lane.b32.xlu0 %v362, 12
  %v1203 = vpop.permute.xlu0 %1202
  %1204 = vrot.lane.b32.xlu0 %v198, 12
  %v1205 = vpop.permute.xlu0 %1204
  %1206 = vrot.lane.b32.xlu0 %v363, 12
  %v1207 = vpop.permute.xlu0 %1206
  %1208 = vrot.lane.b32.xlu0 %v201, 12
  %v1209 = vpop.permute.xlu0 %1208
  %1210 = vrot.lane.b32.xlu0 %v364, 12
  %v1211 = vpop.permute.xlu0 %1210
  %1212 = vrot.lane.b32.xlu0 %v204, 12
  %v1213 = vpop.permute.xlu0 %1212
  %1214 = vrot.lane.b32.xlu0 %v365, 12
  %v1215 = vpop.permute.xlu0 %1214
  %1216 = vrot.lane.b32.xlu0 %v207, 12
  %v1217 = vpop.permute.xlu0 %1216
  %1218 = vrot.lane.b32.xlu0 %v366, 12
  %v1219 = vpop.permute.xlu0 %1218
  %1220 = vrot.lane.b32.xlu0 %v210, 12
  %v1221 = vpop.permute.xlu0 %1220
  %1222 = vrot.lane.b32.xlu0 %v367, 12
  %v1223 = vpop.permute.xlu0 %1222
  %1224 = vrot.lane.b32.xlu0 %v213, 12
  %v1225 = vpop.permute.xlu0 %1224
  %1226 = vrot.lane.b32.xlu0 %v368, 12
  %v1227 = vpop.permute.xlu0 %1226
  %1228 = vrot.lane.b32.xlu0 %v216, 12
  %v1229 = vpop.permute.xlu0 %1228
  %1230 = vrot.lane.b32.xlu0 %v369, 12
  %v1231 = vpop.permute.xlu0 %1230
  %1232 = vrot.lane.b32.xlu0 %v219, 12
  %v1233 = vpop.permute.xlu0 %1232
  %1234 = vrot.lane.b32.xlu0 %v370, 12
  %v1235 = vpop.permute.xlu0 %1234
  %1236 = vrot.lane.b32.xlu0 %v222, 12
  %v1237 = vpop.permute.xlu0 %1236
  %1238 = vrot.lane.b32.xlu0 %v371, 12
  %v1239 = vpop.permute.xlu0 %1238
  %1240 = vrot.lane.b32.xlu0 %v225, 12
  %v1241 = vpop.permute.xlu0 %1240
  %1242 = vrot.lane.b32.xlu0 %v372, 12
  %v1243 = vpop.permute.xlu0 %1242
  %1244 = vrot.lane.b32.xlu0 %v228, 12
  %v1245 = vpop.permute.xlu0 %1244
  %1246 = vrot.lane.b32.xlu0 %v373, 12
  %v1247 = vpop.permute.xlu0 %1246
  %1248 = vrot.lane.b32.xlu0 %v231, 12
  %v1249 = vpop.permute.xlu0 %1248
  %1250 = vrot.lane.b32.xlu0 %v374, 12
  %v1251 = vpop.permute.xlu0 %1250
  %1252 = vrot.lane.b32.xlu0 %v234, 12
  %v1253 = vpop.permute.xlu0 %1252
  %1254 = vrot.lane.b32.xlu0 %v375, 12
  %v1255 = vpop.permute.xlu0 %1254
  %1256 = vrot.lane.b32.xlu0 %v237, 12
  %v1257 = vpop.permute.xlu0 %1256
  %1258 = vrot.lane.b32.xlu0 %v376, 12
  %v1259 = vpop.permute.xlu0 %1258
  %1260 = vrot.lane.b32.xlu0 %v240, 12
  %v1261 = vpop.permute.xlu0 %1260
  %1262 = vrot.lane.b32.xlu0 %v377, 12
  %v1263 = vpop.permute.xlu0 %1262
  %1264 = vrot.lane.b32.xlu0 %v243, 12
  %v1265 = vpop.permute.xlu0 %1264
  %1266 = vrot.lane.b32.xlu0 %v378, 12
  %v1267 = vpop.permute.xlu0 %1266
  %1268 = vrot.lane.b32.xlu0 %v246, 12
  %v1269 = vpop.permute.xlu0 %1268
  %1270 = vrot.lane.b32.xlu0 %v379, 12
  %v1271 = vpop.permute.xlu0 %1270
  %1272 = vrot.lane.b32.xlu0 %v249, 12
  %v1273 = vpop.permute.xlu0 %1272
  %1274 = vrot.lane.b32.xlu0 %v380, 12
  %v1275 = vpop.permute.xlu0 %1274
  %1276 = vrot.lane.b32.xlu0 %v252, 12
  %v1277 = vpop.permute.xlu0 %1276
  %1278 = vrot.lane.b32.xlu0 %v381, 12
  %v1279 = vpop.permute.xlu0 %1278
  %1280 = vrot.lane.b32.xlu0 %v255, 12
  %v1281 = vpop.permute.xlu0 %1280
  %v1348 = vrot.slane %v365, 1
  %v1349 = vrot.slane %v207, 1
  %v1350 = vsel %vm480, %v1348, %v1349
  %v1351 = vrot.slane %v397, 1
  %v1352 = vsel %vm480, %v1349, %v1351
  %v1353 = vrot.slane %v381, 1
  %v1354 = vrot.slane %v255, 1
  %v1355 = vsel %vm480, %v1353, %v1354
  %v1356 = vrot.slane %v413, 1
  %v1357 = vsel %vm480, %v1354, %v1356
  %1358 = vrot.lane.b32.xlu0 %v485, 16
  %v1359 = vpop.permute.xlu0 %1358
  %1360 = vrot.lane.b32.xlu0 %v487, 16
  %v1361 = vpop.permute.xlu0 %1360
  %1362 = vrot.lane.b32.xlu0 %v490, 16
  %v1363 = vpop.permute.xlu0 %1362
  %1364 = vrot.lane.b32.xlu0 %v492, 16
  %v1365 = vpop.permute.xlu0 %1364
  %1366 = vrot.lane.b32.xlu0 %v495, 16
  %v1367 = vpop.permute.xlu0 %1366
  %1368 = vrot.lane.b32.xlu0 %v497, 16
  %v1369 = vpop.permute.xlu0 %1368
  %1370 = vrot.lane.b32.xlu0 %v500, 16
  %v1371 = vpop.permute.xlu0 %1370
  %1372 = vrot.lane.b32.xlu0 %v502, 16
  %v1373 = vpop.permute.xlu0 %1372
  %1374 = vrot.lane.b32.xlu0 %v505, 16
  %v1375 = vpop.permute.xlu0 %1374
  %1376 = vrot.lane.b32.xlu0 %v507, 16
  %v1377 = vpop.permute.xlu0 %1376
  %1378 = vrot.lane.b32.xlu0 %v510, 16
  %v1379 = vpop.permute.xlu0 %1378
  %1380 = vrot.lane.b32.xlu0 %v512, 16
  %v1381 = vpop.permute.xlu0 %1380
  %1382 = vrot.lane.b32.xlu0 %v515, 16
  %v1383 = vpop.permute.xlu0 %1382
  %1384 = vrot.lane.b32.xlu0 %v517, 16
  %v1385 = vpop.permute.xlu0 %1384
  %1386 = vrot.lane.b32.xlu0 %v520, 16
  %v1387 = vpop.permute.xlu0 %1386
  %1388 = vrot.lane.b32.xlu0 %v522, 16
  %v1389 = vpop.permute.xlu0 %1388
  %1390 = vrot.lane.b32.xlu0 %v525, 16
  %v1391 = vpop.permute.xlu0 %1390
  %1392 = vrot.lane.b32.xlu0 %v527, 16
  %v1393 = vpop.permute.xlu0 %1392
  %1394 = vrot.lane.b32.xlu0 %v530, 16
  %v1395 = vpop.permute.xlu0 %1394
  %1396 = vrot.lane.b32.xlu0 %v532, 16
  %v1397 = vpop.permute.xlu0 %1396
  %1398 = vrot.lane.b32.xlu0 %v535, 16
  %v1399 = vpop.permute.xlu0 %1398
  %1400 = vrot.lane.b32.xlu0 %v537, 16
  %v1401 = vpop.permute.xlu0 %1400
  %1402 = vrot.lane.b32.xlu0 %v540, 16
  %v1403 = vpop.permute.xlu0 %1402
  %1404 = vrot.lane.b32.xlu0 %v542, 16
  %v1405 = vpop.permute.xlu0 %1404
  %1406 = vrot.lane.b32.xlu0 %v545, 16
  %v1407 = vpop.permute.xlu0 %1406
  %1408 = vrot.lane.b32.xlu0 %v547, 16
  %v1409 = vpop.permute.xlu0 %1408
  %1410 = vrot.lane.b32.xlu0 %v550, 16
  %v1411 = vpop.permute.xlu0 %1410
  %1412 = vrot.lane.b32.xlu0 %v552, 16
  %v1413 = vpop.permute.xlu0 %1412
  %1414 = vrot.lane.b32.xlu0 %v555, 16
  %v1415 = vpop.permute.xlu0 %1414
  %1416 = vrot.lane.b32.xlu0 %v557, 16
  %v1417 = vpop.permute.xlu0 %1416
  %1418 = vrot.lane.b32.xlu0 %v1350, 16
  %v1419 = vpop.permute.xlu0 %1418
  %1420 = vrot.lane.b32.xlu0 %v1352, 16
  %v1421 = vpop.permute.xlu0 %1420
  %1422 = vrot.lane.b32.xlu0 %v560, 16
  %v1423 = vpop.permute.xlu0 %1422
  %1424 = vrot.lane.b32.xlu0 %v562, 16
  %v1425 = vpop.permute.xlu0 %1424
  %1426 = vrot.lane.b32.xlu0 %v565, 16
  %v1427 = vpop.permute.xlu0 %1426
  %1428 = vrot.lane.b32.xlu0 %v567, 16
  %v1429 = vpop.permute.xlu0 %1428
  %1430 = vrot.lane.b32.xlu0 %v570, 16
  %v1431 = vpop.permute.xlu0 %1430
  %1432 = vrot.lane.b32.xlu0 %v572, 16
  %v1433 = vpop.permute.xlu0 %1432
  %1434 = vrot.lane.b32.xlu0 %v575, 16
  %v1435 = vpop.permute.xlu0 %1434
  %1436 = vrot.lane.b32.xlu0 %v577, 16
  %v1437 = vpop.permute.xlu0 %1436
  %1438 = vrot.lane.b32.xlu0 %v580, 16
  %v1439 = vpop.permute.xlu0 %1438
  %1440 = vrot.lane.b32.xlu0 %v582, 16
  %v1441 = vpop.permute.xlu0 %1440
  %1442 = vrot.lane.b32.xlu0 %v585, 16
  %v1443 = vpop.permute.xlu0 %1442
  %1444 = vrot.lane.b32.xlu0 %v587, 16
  %v1445 = vpop.permute.xlu0 %1444
  %1446 = vrot.lane.b32.xlu0 %v590, 16
  %v1447 = vpop.permute.xlu0 %1446
  %1448 = vrot.lane.b32.xlu0 %v592, 16
  %v1449 = vpop.permute.xlu0 %1448
  %1450 = vrot.lane.b32.xlu0 %v595, 16
  %v1451 = vpop.permute.xlu0 %1450
  %1452 = vrot.lane.b32.xlu0 %v597, 16
  %v1453 = vpop.permute.xlu0 %1452
  %1454 = vrot.lane.b32.xlu0 %v600, 16
  %v1455 = vpop.permute.xlu0 %1454
  %1456 = vrot.lane.b32.xlu0 %v602, 16
  %v1457 = vpop.permute.xlu0 %1456
  %1458 = vrot.lane.b32.xlu0 %v605, 16
  %v1459 = vpop.permute.xlu0 %1458
  %1460 = vrot.lane.b32.xlu0 %v607, 16
  %v1461 = vpop.permute.xlu0 %1460
  %1462 = vrot.lane.b32.xlu0 %v610, 16
  %v1463 = vpop.permute.xlu0 %1462
  %1464 = vrot.lane.b32.xlu0 %v612, 16
  %v1465 = vpop.permute.xlu0 %1464
  %1466 = vrot.lane.b32.xlu0 %v615, 16
  %v1467 = vpop.permute.xlu0 %1466
  %1468 = vrot.lane.b32.xlu0 %v617, 16
  %v1469 = vpop.permute.xlu0 %1468
  %1470 = vrot.lane.b32.xlu0 %v620, 16
  %v1471 = vpop.permute.xlu0 %1470
  %1472 = vrot.lane.b32.xlu0 %v622, 16
  %v1473 = vpop.permute.xlu0 %1472
  %1474 = vrot.lane.b32.xlu0 %v625, 16
  %v1475 = vpop.permute.xlu0 %1474
  %1476 = vrot.lane.b32.xlu0 %v627, 16
  %v1477 = vpop.permute.xlu0 %1476
  %1478 = vrot.lane.b32.xlu0 %v630, 16
  %v1479 = vpop.permute.xlu0 %1478
  %1480 = vrot.lane.b32.xlu0 %v632, 16
  %v1481 = vpop.permute.xlu0 %1480
  %1482 = vrot.lane.b32.xlu0 %v1355, 16
  %v1483 = vpop.permute.xlu0 %1482
  %1484 = vrot.lane.b32.xlu0 %v1357, 16
  %v1485 = vpop.permute.xlu0 %1484
  %v1550 = vrot.slane %v365, 2
  %v1551 = vrot.slane %v207, 2
  %v1552 = vsel %vm816, %v1550, %v1551
  %v1553 = vrot.slane %v397, 2
  %v1554 = vsel %vm816, %v1551, %v1553
  %v1555 = vrot.slane %v381, 2
  %v1556 = vrot.slane %v255, 2
  %v1557 = vsel %vm816, %v1555, %v1556
  %v1558 = vrot.slane %v413, 2
  %v1559 = vsel %vm816, %v1556, %v1558
  %1560 = vrot.lane.b32.xlu0 %v821, 20
  %v1561 = vpop.permute.xlu0 %1560
  %1562 = vrot.lane.b32.xlu0 %v823, 20
  %v1563 = vpop.permute.xlu0 %1562
  %1564 = vrot.lane.b32.xlu0 %v826, 20
  %v1565 = vpop.permute.xlu0 %1564
  %1566 = vrot.lane.b32.xlu0 %v828, 20
  %v1567 = vpop.permute.xlu0 %1566
  %1568 = vrot.lane.b32.xlu0 %v831, 20
  %v1569 = vpop.permute.xlu0 %1568
  %1570 = vrot.lane.b32.xlu0 %v833, 20
  %v1571 = vpop.permute.xlu0 %1570
  %1572 = vrot.lane.b32.xlu0 %v836, 20
  %v1573 = vpop.permute.xlu0 %1572
  %1574 = vrot.lane.b32.xlu0 %v838, 20
  %v1575 = vpop.permute.xlu0 %1574
  %1576 = vrot.lane.b32.xlu0 %v841, 20
  %v1577 = vpop.permute.xlu0 %1576
  %1578 = vrot.lane.b32.xlu0 %v843, 20
  %v1579 = vpop.permute.xlu0 %1578
  %1580 = vrot.lane.b32.xlu0 %v846, 20
  %v1581 = vpop.permute.xlu0 %1580
  %1582 = vrot.lane.b32.xlu0 %v848, 20
  %v1583 = vpop.permute.xlu0 %1582
  %1584 = vrot.lane.b32.xlu0 %v851, 20
  %v1585 = vpop.permute.xlu0 %1584
  %1586 = vrot.lane.b32.xlu0 %v853, 20
  %v1587 = vpop.permute.xlu0 %1586
  %1588 = vrot.lane.b32.xlu0 %v856, 20
  %v1589 = vpop.permute.xlu0 %1588
  %1590 = vrot.lane.b32.xlu0 %v858, 20
  %v1591 = vpop.permute.xlu0 %1590
  %1592 = vrot.lane.b32.xlu0 %v861, 20
  %v1593 = vpop.permute.xlu0 %1592
  %1594 = vrot.lane.b32.xlu0 %v863, 20
  %v1595 = vpop.permute.xlu0 %1594
  %1596 = vrot.lane.b32.xlu0 %v866, 20
  %v1597 = vpop.permute.xlu0 %1596
  %1598 = vrot.lane.b32.xlu0 %v868, 20
  %v1599 = vpop.permute.xlu0 %1598
  %1600 = vrot.lane.b32.xlu0 %v871, 20
  %v1601 = vpop.permute.xlu0 %1600
  %1602 = vrot.lane.b32.xlu0 %v873, 20
  %v1603 = vpop.permute.xlu0 %1602
  %1604 = vrot.lane.b32.xlu0 %v876, 20
  %v1605 = vpop.permute.xlu0 %1604
  %1606 = vrot.lane.b32.xlu0 %v878, 20
  %v1607 = vpop.permute.xlu0 %1606
  %1608 = vrot.lane.b32.xlu0 %v881, 20
  %v1609 = vpop.permute.xlu0 %1608
  %1610 = vrot.lane.b32.xlu0 %v883, 20
  %v1611 = vpop.permute.xlu0 %1610
  %1612 = vrot.lane.b32.xlu0 %v886, 20
  %v1613 = vpop.permute.xlu0 %1612
  %1614 = vrot.lane.b32.xlu0 %v888, 20
  %v1615 = vpop.permute.xlu0 %1614
  %1616 = vrot.lane.b32.xlu0 %v891, 20
  %v1617 = vpop.permute.xlu0 %1616
  %1618 = vrot.lane.b32.xlu0 %v893, 20
  %v1619 = vpop.permute.xlu0 %1618
  %1620 = vrot.lane.b32.xlu0 %v1552, 20
  %v1621 = vpop.permute.xlu0 %1620
  %1622 = vrot.lane.b32.xlu0 %v1554, 20
  %v1623 = vpop.permute.xlu0 %1622
  %1624 = vrot.lane.b32.xlu0 %v896, 20
  %v1625 = vpop.permute.xlu0 %1624
  %1626 = vrot.lane.b32.xlu0 %v898, 20
  %v1627 = vpop.permute.xlu0 %1626
  %1628 = vrot.lane.b32.xlu0 %v901, 20
  %v1629 = vpop.permute.xlu0 %1628
  %1630 = vrot.lane.b32.xlu0 %v903, 20
  %v1631 = vpop.permute.xlu0 %1630
  %1632 = vrot.lane.b32.xlu0 %v906, 20
  %v1633 = vpop.permute.xlu0 %1632
  %1634 = vrot.lane.b32.xlu0 %v908, 20
  %v1635 = vpop.permute.xlu0 %1634
  %1636 = vrot.lane.b32.xlu0 %v911, 20
  %v1637 = vpop.permute.xlu0 %1636
  %1638 = vrot.lane.b32.xlu0 %v913, 20
  %v1639 = vpop.permute.xlu0 %1638
  %1640 = vrot.lane.b32.xlu0 %v916, 20
  %v1641 = vpop.permute.xlu0 %1640
  %1642 = vrot.lane.b32.xlu0 %v918, 20
  %v1643 = vpop.permute.xlu0 %1642
  %1644 = vrot.lane.b32.xlu0 %v921, 20
  %v1645 = vpop.permute.xlu0 %1644
  %1646 = vrot.lane.b32.xlu0 %v923, 20
  %v1647 = vpop.permute.xlu0 %1646
  %1648 = vrot.lane.b32.xlu0 %v926, 20
  %v1649 = vpop.permute.xlu0 %1648
  %1650 = vrot.lane.b32.xlu0 %v928, 20
  %v1651 = vpop.permute.xlu0 %1650
  %1652 = vrot.lane.b32.xlu0 %v931, 20
  %v1653 = vpop.permute.xlu0 %1652
  %1654 = vrot.lane.b32.xlu0 %v933, 20
  %v1655 = vpop.permute.xlu0 %1654
  %1656 = vrot.lane.b32.xlu0 %v936, 20
  %v1657 = vpop.permute.xlu0 %1656
  %1658 = vrot.lane.b32.xlu0 %v938, 20
  %v1659 = vpop.permute.xlu0 %1658
  %1660 = vrot.lane.b32.xlu0 %v941, 20
  %v1661 = vpop.permute.xlu0 %1660
  %1662 = vrot.lane.b32.xlu0 %v943, 20
  %v1663 = vpop.permute.xlu0 %1662
  %1664 = vrot.lane.b32.xlu0 %v946, 20
  %v1665 = vpop.permute.xlu0 %1664
  %1666 = vrot.lane.b32.xlu0 %v948, 20
  %v1667 = vpop.permute.xlu0 %1666
  %1668 = vrot.lane.b32.xlu0 %v951, 20
  %v1669 = vpop.permute.xlu0 %1668
  %1670 = vrot.lane.b32.xlu0 %v953, 20
  %v1671 = vpop.permute.xlu0 %1670
  %1672 = vrot.lane.b32.xlu0 %v956, 20
  %v1673 = vpop.permute.xlu0 %1672
  %1674 = vrot.lane.b32.xlu0 %v958, 20
  %v1675 = vpop.permute.xlu0 %1674
  %1676 = vrot.lane.b32.xlu0 %v961, 20
  %v1677 = vpop.permute.xlu0 %1676
  %1678 = vrot.lane.b32.xlu0 %v963, 20
  %v1679 = vpop.permute.xlu0 %1678
  %1680 = vrot.lane.b32.xlu0 %v966, 20
  %v1681 = vpop.permute.xlu0 %1680
  %1682 = vrot.lane.b32.xlu0 %v968, 20
  %v1683 = vpop.permute.xlu0 %1682
  %1684 = vrot.lane.b32.xlu0 %v1557, 20
  %v1685 = vpop.permute.xlu0 %1684
  %1686 = vrot.lane.b32.xlu0 %v1559, 20
  %v1687 = vpop.permute.xlu0 %1686
  %1752 = vrot.lane.b32.xlu0 %v351, 24
  %v1753 = vpop.permute.xlu0 %1752
  %1754 = vrot.lane.b32.xlu0 %v165, 24
  %v1755 = vpop.permute.xlu0 %1754
  %1756 = vrot.lane.b32.xlu0 %v352, 24
  %v1757 = vpop.permute.xlu0 %1756
  %1758 = vrot.lane.b32.xlu0 %v168, 24
  %v1759 = vpop.permute.xlu0 %1758
  %1760 = vrot.lane.b32.xlu0 %v353, 24
  %v1761 = vpop.permute.xlu0 %1760
  %1762 = vrot.lane.b32.xlu0 %v171, 24
  %v1763 = vpop.permute.xlu0 %1762
  %1764 = vrot.lane.b32.xlu0 %v354, 24
  %v1765 = vpop.permute.xlu0 %1764
  %1766 = vrot.lane.b32.xlu0 %v174, 24
  %v1767 = vpop.permute.xlu0 %1766
  %1768 = vrot.lane.b32.xlu0 %v355, 24
  %v1769 = vpop.permute.xlu0 %1768
  %1770 = vrot.lane.b32.xlu0 %v177, 24
  %v1771 = vpop.permute.xlu0 %1770
  %1772 = vrot.lane.b32.xlu0 %v356, 24
  %v1773 = vpop.permute.xlu0 %1772
  %1774 = vrot.lane.b32.xlu0 %v180, 24
  %v1775 = vpop.permute.xlu0 %1774
  %1776 = vrot.lane.b32.xlu0 %v357, 24
  %v1777 = vpop.permute.xlu0 %1776
  %1778 = vrot.lane.b32.xlu0 %v183, 24
  %v1779 = vpop.permute.xlu0 %1778
  %1780 = vrot.lane.b32.xlu0 %v358, 24
  %v1781 = vpop.permute.xlu0 %1780
  %1782 = vrot.lane.b32.xlu0 %v186, 24
  %v1783 = vpop.permute.xlu0 %1782
  %1784 = vrot.lane.b32.xlu0 %v359, 24
  %v1785 = vpop.permute.xlu0 %1784
  %1786 = vrot.lane.b32.xlu0 %v189, 24
  %v1787 = vpop.permute.xlu0 %1786
  %1788 = vrot.lane.b32.xlu0 %v360, 24
  %v1789 = vpop.permute.xlu0 %1788
  %1790 = vrot.lane.b32.xlu0 %v192, 24
  %v1791 = vpop.permute.xlu0 %1790
  %1792 = vrot.lane.b32.xlu0 %v361, 24
  %v1793 = vpop.permute.xlu0 %1792
  %1794 = vrot.lane.b32.xlu0 %v195, 24
  %v1795 = vpop.permute.xlu0 %1794
  %1796 = vrot.lane.b32.xlu0 %v362, 24
  %v1797 = vpop.permute.xlu0 %1796
  %1798 = vrot.lane.b32.xlu0 %v198, 24
  %v1799 = vpop.permute.xlu0 %1798
  %1800 = vrot.lane.b32.xlu0 %v363, 24
  %v1801 = vpop.permute.xlu0 %1800
  %1802 = vrot.lane.b32.xlu0 %v201, 24
  %v1803 = vpop.permute.xlu0 %1802
  %1804 = vrot.lane.b32.xlu0 %v364, 24
  %v1805 = vpop.permute.xlu0 %1804
  %1806 = vrot.lane.b32.xlu0 %v204, 24
  %v1807 = vpop.permute.xlu0 %1806
  %1808 = vrot.lane.b32.xlu0 %v365, 24
  %v1809 = vpop.permute.xlu0 %1808
  %1810 = vrot.lane.b32.xlu0 %v207, 24
  %v1811 = vpop.permute.xlu0 %1810
  %1812 = vrot.lane.b32.xlu0 0.0, 24
  %v1813 = vpop.permute.xlu0 %1812
  %1814 = vrot.lane.b32.xlu0 %v367, 24
  %v1815 = vpop.permute.xlu0 %1814
  %1816 = vrot.lane.b32.xlu0 %v213, 24
  %v1817 = vpop.permute.xlu0 %1816
  %1818 = vrot.lane.b32.xlu0 %v368, 24
  %v1819 = vpop.permute.xlu0 %1818
  %1820 = vrot.lane.b32.xlu0 %v216, 24
  %v1821 = vpop.permute.xlu0 %1820
  %1822 = vrot.lane.b32.xlu0 %v369, 24
  %v1823 = vpop.permute.xlu0 %1822
  %1824 = vrot.lane.b32.xlu0 %v219, 24
  %v1825 = vpop.permute.xlu0 %1824
  %1826 = vrot.lane.b32.xlu0 %v370, 24
  %v1827 = vpop.permute.xlu0 %1826
  %1828 = vrot.lane.b32.xlu0 %v222, 24
  %v1829 = vpop.permute.xlu0 %1828
  %1830 = vrot.lane.b32.xlu0 %v371, 24
  %v1831 = vpop.permute.xlu0 %1830
  %1832 = vrot.lane.b32.xlu0 %v225, 24
  %v1833 = vpop.permute.xlu0 %1832
  %1834 = vrot.lane.b32.xlu0 %v372, 24
  %v1835 = vpop.permute.xlu0 %1834
  %1836 = vrot.lane.b32.xlu0 %v228, 24
  %v1837 = vpop.permute.xlu0 %1836
  %1838 = vrot.lane.b32.xlu0 %v373, 24
  %v1839 = vpop.permute.xlu0 %1838
  %1840 = vrot.lane.b32.xlu0 %v231, 24
  %v1841 = vpop.permute.xlu0 %1840
  %1842 = vrot.lane.b32.xlu0 %v374, 24
  %v1843 = vpop.permute.xlu0 %1842
  %1844 = vrot.lane.b32.xlu0 %v234, 24
  %v1845 = vpop.permute.xlu0 %1844
  %1846 = vrot.lane.b32.xlu0 %v375, 24
  %v1847 = vpop.permute.xlu0 %1846
  %1848 = vrot.lane.b32.xlu0 %v237, 24
  %v1849 = vpop.permute.xlu0 %1848
  %1850 = vrot.lane.b32.xlu0 %v376, 24
  %v1851 = vpop.permute.xlu0 %1850
  %1852 = vrot.lane.b32.xlu0 %v240, 24
  %v1853 = vpop.permute.xlu0 %1852
  %1854 = vrot.lane.b32.xlu0 %v377, 24
  %v1855 = vpop.permute.xlu0 %1854
  %1856 = vrot.lane.b32.xlu0 %v243, 24
  %v1857 = vpop.permute.xlu0 %1856
  %1858 = vrot.lane.b32.xlu0 %v378, 24
  %v1859 = vpop.permute.xlu0 %1858
  %1860 = vrot.lane.b32.xlu0 %v246, 24
  %v1861 = vpop.permute.xlu0 %1860
  %1862 = vrot.lane.b32.xlu0 %v379, 24
  %v1863 = vpop.permute.xlu0 %1862
  %1864 = vrot.lane.b32.xlu0 %v249, 24
  %v1865 = vpop.permute.xlu0 %1864
  %1866 = vrot.lane.b32.xlu0 %v380, 24
  %v1867 = vpop.permute.xlu0 %1866
  %1868 = vrot.lane.b32.xlu0 %v252, 24
  %v1869 = vpop.permute.xlu0 %1868
  %1870 = vrot.lane.b32.xlu0 %v381, 24
  %v1871 = vpop.permute.xlu0 %1870
  %1872 = vrot.lane.b32.xlu0 %v255, 24
  %v1873 = vpop.permute.xlu0 %1872
  %1935 = vrot.lane.b32.xlu0 %v490, 28
  %v1936 = vpop.permute.xlu0 %1935
  %1937 = vrot.lane.b32.xlu0 %v492, 28
  %v1938 = vpop.permute.xlu0 %1937
  %1939 = vrot.lane.b32.xlu0 %v495, 28
  %v1940 = vpop.permute.xlu0 %1939
  %1941 = vrot.lane.b32.xlu0 %v497, 28
  %v1942 = vpop.permute.xlu0 %1941
  %1943 = vrot.lane.b32.xlu0 %v500, 28
  %v1944 = vpop.permute.xlu0 %1943
  %1945 = vrot.lane.b32.xlu0 %v502, 28
  %v1946 = vpop.permute.xlu0 %1945
  %1947 = vrot.lane.b32.xlu0 %v505, 28
  %v1948 = vpop.permute.xlu0 %1947
  %1949 = vrot.lane.b32.xlu0 %v507, 28
  %v1950 = vpop.permute.xlu0 %1949
  %1951 = vrot.lane.b32.xlu0 %v510, 28
  %v1952 = vpop.permute.xlu0 %1951
  %1953 = vrot.lane.b32.xlu0 %v512, 28
  %v1954 = vpop.permute.xlu0 %1953
  %1955 = vrot.lane.b32.xlu0 %v515, 28
  %v1956 = vpop.permute.xlu0 %1955
  %1957 = vrot.lane.b32.xlu0 %v517, 28
  %v1958 = vpop.permute.xlu0 %1957
  %1959 = vrot.lane.b32.xlu0 %v520, 28
  %v1960 = vpop.permute.xlu0 %1959
  %1961 = vrot.lane.b32.xlu0 %v522, 28
  %v1962 = vpop.permute.xlu0 %1961
  %1963 = vrot.lane.b32.xlu0 %v525, 28
  %v1964 = vpop.permute.xlu0 %1963
  %1965 = vrot.lane.b32.xlu0 %v527, 28
  %v1966 = vpop.permute.xlu0 %1965
  %1967 = vrot.lane.b32.xlu0 %v530, 28
  %v1968 = vpop.permute.xlu0 %1967
  %1969 = vrot.lane.b32.xlu0 %v532, 28
  %v1970 = vpop.permute.xlu0 %1969
  %1971 = vrot.lane.b32.xlu0 %v535, 28
  %v1972 = vpop.permute.xlu0 %1971
  %1973 = vrot.lane.b32.xlu0 %v537, 28
  %v1974 = vpop.permute.xlu0 %1973
  %1975 = vrot.lane.b32.xlu0 %v540, 28
  %v1976 = vpop.permute.xlu0 %1975
  %1977 = vrot.lane.b32.xlu0 %v542, 28
  %v1978 = vpop.permute.xlu0 %1977
  %1979 = vrot.lane.b32.xlu0 %v545, 28
  %v1980 = vpop.permute.xlu0 %1979
  %1981 = vrot.lane.b32.xlu0 %v547, 28
  %v1982 = vpop.permute.xlu0 %1981
  %1983 = vrot.lane.b32.xlu0 %v550, 28
  %v1984 = vpop.permute.xlu0 %1983
  %1985 = vrot.lane.b32.xlu0 %v552, 28
  %v1986 = vpop.permute.xlu0 %1985
  %1987 = vrot.lane.b32.xlu0 %v555, 28
  %v1988 = vpop.permute.xlu0 %1987
  %1989 = vrot.lane.b32.xlu0 %v557, 28
  %v1990 = vpop.permute.xlu0 %1989
  %1991 = vrot.lane.b32.xlu0 %v1350, 28
  %v1992 = vpop.permute.xlu0 %1991
  %1993 = vrot.lane.b32.xlu0 %v1352, 28
  %v1994 = vpop.permute.xlu0 %1993
  %1995 = vrot.lane.b32.xlu0 %v482, 28
  %v1996 = vpop.permute.xlu0 %1995
  %1997 = vrot.lane.b32.xlu0 %v565, 28
  %v1998 = vpop.permute.xlu0 %1997
  %1999 = vrot.lane.b32.xlu0 %v567, 28
  %v2000 = vpop.permute.xlu0 %1999
  %2001 = vrot.lane.b32.xlu0 %v570, 28
  %v2002 = vpop.permute.xlu0 %2001
  %2003 = vrot.lane.b32.xlu0 %v572, 28
  %v2004 = vpop.permute.xlu0 %2003
  %2005 = vrot.lane.b32.xlu0 %v575, 28
  %v2006 = vpop.permute.xlu0 %2005
  %2007 = vrot.lane.b32.xlu0 %v577, 28
  %v2008 = vpop.permute.xlu0 %2007
  %2009 = vrot.lane.b32.xlu0 %v580, 28
  %v2010 = vpop.permute.xlu0 %2009
  %2011 = vrot.lane.b32.xlu0 %v582, 28
  %v2012 = vpop.permute.xlu0 %2011
  %2013 = vrot.lane.b32.xlu0 %v585, 28
  %v2014 = vpop.permute.xlu0 %2013
  %2015 = vrot.lane.b32.xlu0 %v587, 28
  %v2016 = vpop.permute.xlu0 %2015
  %2017 = vrot.lane.b32.xlu0 %v590, 28
  %v2018 = vpop.permute.xlu0 %2017
  %2019 = vrot.lane.b32.xlu0 %v592, 28
  %v2020 = vpop.permute.xlu0 %2019
  %2021 = vrot.lane.b32.xlu0 %v595, 28
  %v2022 = vpop.permute.xlu0 %2021
  %2023 = vrot.lane.b32.xlu0 %v597, 28
  %v2024 = vpop.permute.xlu0 %2023
  %2025 = vrot.lane.b32.xlu0 %v600, 28
  %v2026 = vpop.permute.xlu0 %2025
  %2027 = vrot.lane.b32.xlu0 %v602, 28
  %v2028 = vpop.permute.xlu0 %2027
  %2029 = vrot.lane.b32.xlu0 %v605, 28
  %v2030 = vpop.permute.xlu0 %2029
  %2031 = vrot.lane.b32.xlu0 %v607, 28
  %v2032 = vpop.permute.xlu0 %2031
  %2033 = vrot.lane.b32.xlu0 %v610, 28
  %v2034 = vpop.permute.xlu0 %2033
  %2035 = vrot.lane.b32.xlu0 %v612, 28
  %v2036 = vpop.permute.xlu0 %2035
  %2037 = vrot.lane.b32.xlu0 %v615, 28
  %v2038 = vpop.permute.xlu0 %2037
  %2039 = vrot.lane.b32.xlu0 %v617, 28
  %v2040 = vpop.permute.xlu0 %2039
  %2041 = vrot.lane.b32.xlu0 %v620, 28
  %v2042 = vpop.permute.xlu0 %2041
  %2043 = vrot.lane.b32.xlu0 %v622, 28
  %v2044 = vpop.permute.xlu0 %2043
  %2045 = vrot.lane.b32.xlu0 %v625, 28
  %v2046 = vpop.permute.xlu0 %2045
  %2047 = vrot.lane.b32.xlu0 %v627, 28
  %v2048 = vpop.permute.xlu0 %2047
  %2049 = vrot.lane.b32.xlu0 %v630, 28
  %v2050 = vpop.permute.xlu0 %2049
  %2051 = vrot.lane.b32.xlu0 %v632, 28
  %v2052 = vpop.permute.xlu0 %2051
  %2053 = vrot.lane.b32.xlu0 %v1355, 28
  %v2054 = vpop.permute.xlu0 %2053
  %2055 = vrot.lane.b32.xlu0 %v1357, 28
  %v2056 = vpop.permute.xlu0 %2055
  %2118 = vrot.lane.b32.xlu0 %v826, 32
  %v2119 = vpop.permute.xlu0 %2118
  %2120 = vrot.lane.b32.xlu0 %v828, 32
  %v2121 = vpop.permute.xlu0 %2120
  %2122 = vrot.lane.b32.xlu0 %v831, 32
  %v2123 = vpop.permute.xlu0 %2122
  %2124 = vrot.lane.b32.xlu0 %v833, 32
  %v2125 = vpop.permute.xlu0 %2124
  %2126 = vrot.lane.b32.xlu0 %v836, 32
  %v2127 = vpop.permute.xlu0 %2126
  %2128 = vrot.lane.b32.xlu0 %v838, 32
  %v2129 = vpop.permute.xlu0 %2128
  %2130 = vrot.lane.b32.xlu0 %v841, 32
  %v2131 = vpop.permute.xlu0 %2130
  %2132 = vrot.lane.b32.xlu0 %v843, 32
  %v2133 = vpop.permute.xlu0 %2132
  %2134 = vrot.lane.b32.xlu0 %v846, 32
  %v2135 = vpop.permute.xlu0 %2134
  %2136 = vrot.lane.b32.xlu0 %v848, 32
  %v2137 = vpop.permute.xlu0 %2136
  %2138 = vrot.lane.b32.xlu0 %v851, 32
  %v2139 = vpop.permute.xlu0 %2138
  %2140 = vrot.lane.b32.xlu0 %v853, 32
  %v2141 = vpop.permute.xlu0 %2140
  %2142 = vrot.lane.b32.xlu0 %v856, 32
  %v2143 = vpop.permute.xlu0 %2142
  %2144 = vrot.lane.b32.xlu0 %v858, 32
  %v2145 = vpop.permute.xlu0 %2144
  %2146 = vrot.lane.b32.xlu0 %v861, 32
  %v2147 = vpop.permute.xlu0 %2146
  %2148 = vrot.lane.b32.xlu0 %v863, 32
  %v2149 = vpop.permute.xlu0 %2148
  %2150 = vrot.lane.b32.xlu0 %v866, 32
  %v2151 = vpop.permute.xlu0 %2150
  %2152 = vrot.lane.b32.xlu0 %v868, 32
  %v2153 = vpop.permute.xlu0 %2152
  %2154 = vrot.lane.b32.xlu0 %v871, 32
  %v2155 = vpop.permute.xlu0 %2154
  %2156 = vrot.lane.b32.xlu0 %v873, 32
  %v2157 = vpop.permute.xlu0 %2156
  %2158 = vrot.lane.b32.xlu0 %v876, 32
  %v2159 = vpop.permute.xlu0 %2158
  %2160 = vrot.lane.b32.xlu0 %v878, 32
  %v2161 = vpop.permute.xlu0 %2160
  %2162 = vrot.lane.b32.xlu0 %v881, 32
  %v2163 = vpop.permute.xlu0 %2162
  %2164 = vrot.lane.b32.xlu0 %v883, 32
  %v2165 = vpop.permute.xlu0 %2164
  %2166 = vrot.lane.b32.xlu0 %v886, 32
  %v2167 = vpop.permute.xlu0 %2166
  %2168 = vrot.lane.b32.xlu0 %v888, 32
  %v2169 = vpop.permute.xlu0 %2168
  %2170 = vrot.lane.b32.xlu0 %v891, 32
  %v2171 = vpop.permute.xlu0 %2170
  %2172 = vrot.lane.b32.xlu0 %v893, 32
  %v2173 = vpop.permute.xlu0 %2172
  %2174 = vrot.lane.b32.xlu0 %v1552, 32
  %v2175 = vpop.permute.xlu0 %2174
  %2176 = vrot.lane.b32.xlu0 %v1554, 32
  %v2177 = vpop.permute.xlu0 %2176
  %2178 = vrot.lane.b32.xlu0 %v818, 32
  %v2179 = vpop.permute.xlu0 %2178
  %2180 = vrot.lane.b32.xlu0 %v901, 32
  %v2181 = vpop.permute.xlu0 %2180
  %2182 = vrot.lane.b32.xlu0 %v903, 32
  %v2183 = vpop.permute.xlu0 %2182
  %2184 = vrot.lane.b32.xlu0 %v906, 32
  %v2185 = vpop.permute.xlu0 %2184
  %2186 = vrot.lane.b32.xlu0 %v908, 32
  %v2187 = vpop.permute.xlu0 %2186
  %2188 = vrot.lane.b32.xlu0 %v911, 32
  %v2189 = vpop.permute.xlu0 %2188
  %2190 = vrot.lane.b32.xlu0 %v913, 32
  %v2191 = vpop.permute.xlu0 %2190
  %2192 = vrot.lane.b32.xlu0 %v916, 32
  %v2193 = vpop.permute.xlu0 %2192
  %2194 = vrot.lane.b32.xlu0 %v918, 32
  %v2195 = vpop.permute.xlu0 %2194
  %2196 = vrot.lane.b32.xlu0 %v921, 32
  %v2197 = vpop.permute.xlu0 %2196
  %2198 = vrot.lane.b32.xlu0 %v923, 32
  %v2199 = vpop.permute.xlu0 %2198
  %2200 = vrot.lane.b32.xlu0 %v926, 32
  %v2201 = vpop.permute.xlu0 %2200
  %2202 = vrot.lane.b32.xlu0 %v928, 32
  %v2203 = vpop.permute.xlu0 %2202
  %2204 = vrot.lane.b32.xlu0 %v931, 32
  %v2205 = vpop.permute.xlu0 %2204
  %2206 = vrot.lane.b32.xlu0 %v933, 32
  %v2207 = vpop.permute.xlu0 %2206
  %2208 = vrot.lane.b32.xlu0 %v936, 32
  %v2209 = vpop.permute.xlu0 %2208
  %2210 = vrot.lane.b32.xlu0 %v938, 32
  %v2211 = vpop.permute.xlu0 %2210
  %2212 = vrot.lane.b32.xlu0 %v941, 32
  %v2213 = vpop.permute.xlu0 %2212
  %2214 = vrot.lane.b32.xlu0 %v943, 32
  %v2215 = vpop.permute.xlu0 %2214
  %2216 = vrot.lane.b32.xlu0 %v946, 32
  %v2217 = vpop.permute.xlu0 %2216
  %2218 = vrot.lane.b32.xlu0 %v948, 32
  %v2219 = vpop.permute.xlu0 %2218
  %2220 = vrot.lane.b32.xlu0 %v951, 32
  %v2221 = vpop.permute.xlu0 %2220
  %2222 = vrot.lane.b32.xlu0 %v953, 32
  %v2223 = vpop.permute.xlu0 %2222
  %2224 = vrot.lane.b32.xlu0 %v956, 32
  %v2225 = vpop.permute.xlu0 %2224
  %2226 = vrot.lane.b32.xlu0 %v958, 32
  %v2227 = vpop.permute.xlu0 %2226
  %2228 = vrot.lane.b32.xlu0 %v961, 32
  %v2229 = vpop.permute.xlu0 %2228
  %2230 = vrot.lane.b32.xlu0 %v963, 32
  %v2231 = vpop.permute.xlu0 %2230
  %2232 = vrot.lane.b32.xlu0 %v966, 32
  %v2233 = vpop.permute.xlu0 %2232
  %2234 = vrot.lane.b32.xlu0 %v968, 32
  %v2235 = vpop.permute.xlu0 %2234
  %2236 = vrot.lane.b32.xlu0 %v1557, 32
  %v2237 = vpop.permute.xlu0 %2236
  %2238 = vrot.lane.b32.xlu0 %v1559, 32
  %v2239 = vpop.permute.xlu0 %2238
  %vm2301 = vcmask 31744
  %v2302 = vsel %vm2301, 0.0, %v634
  %v2303 = vsel %vm2301, %v350, %v636
  %v2304 = vsel %vm2301, %v162, %v638
  %v2305 = vsel %vm2301, %v351, %v640
  %v2306 = vsel %vm2301, %v165, %v642
  %v2307 = vsel %vm2301, %v352, %v644
  %v2308 = vsel %vm2301, %v168, %v646
  %v2309 = vsel %vm2301, %v353, %v648
  %v2310 = vsel %vm2301, %v171, %v650
  %v2311 = vsel %vm2301, %v354, %v652
  %v2312 = vsel %vm2301, %v174, %v654
  %v2313 = vsel %vm2301, %v355, %v656
  %v2314 = vsel %vm2301, %v177, %v658
  %v2315 = vsel %vm2301, %v356, %v660
  %v2316 = vsel %vm2301, %v180, %v662
  %v2317 = vsel %vm2301, %v357, %v664
  %v2318 = vsel %vm2301, %v183, %v666
  %v2319 = vsel %vm2301, %v358, %v668
  %v2320 = vsel %vm2301, %v186, %v670
  %v2321 = vsel %vm2301, %v359, %v672
  %v2322 = vsel %vm2301, %v189, %v674
  %v2323 = vsel %vm2301, %v360, %v676
  %v2324 = vsel %vm2301, %v192, %v678
  %v2325 = vsel %vm2301, %v361, %v680
  %v2326 = vsel %vm2301, %v195, %v682
  %v2327 = vsel %vm2301, %v362, %v684
  %v2328 = vsel %vm2301, %v198, %v686
  %v2329 = vsel %vm2301, %v363, %v688
  %v2330 = vsel %vm2301, %v201, %v690
  %v2331 = vsel %vm2301, %v364, %v692
  %v2332 = vsel %vm2301, %v204, %v694
  %v2333 = vsel %vm2301, %v366, %v696
  %v2334 = vsel %vm2301, %v210, %v698
  %v2335 = vsel %vm2301, %v367, %v700
  %v2336 = vsel %vm2301, %v213, %v702
  %v2337 = vsel %vm2301, %v368, %v704
  %v2338 = vsel %vm2301, %v216, %v706
  %v2339 = vsel %vm2301, %v369, %v708
  %v2340 = vsel %vm2301, %v219, %v710
  %v2341 = vsel %vm2301, %v370, %v712
  %v2342 = vsel %vm2301, %v222, %v714
  %v2343 = vsel %vm2301, %v371, %v716
  %v2344 = vsel %vm2301, %v225, %v718
  %v2345 = vsel %vm2301, %v372, %v720
  %v2346 = vsel %vm2301, %v228, %v722
  %v2347 = vsel %vm2301, %v373, %v724
  %v2348 = vsel %vm2301, %v231, %v726
  %v2349 = vsel %vm2301, %v374, %v728
  %v2350 = vsel %vm2301, %v234, %v730
  %v2351 = vsel %vm2301, %v375, %v732
  %v2352 = vsel %vm2301, %v237, %v734
  %v2353 = vsel %vm2301, %v376, %v736
  %v2354 = vsel %vm2301, %v240, %v738
  %v2355 = vsel %vm2301, %v377, %v740
  %v2356 = vsel %vm2301, %v243, %v742
  %v2357 = vsel %vm2301, %v378, %v744
  %v2358 = vsel %vm2301, %v246, %v746
  %v2359 = vsel %vm2301, %v379, %v748
  %v2360 = vsel %vm2301, %v249, %v750
  %v2361 = vsel %vm2301, %v380, %v752
  %v2362 = vsel %vm2301, %v252, %v754
  %vm2363 = vcmask 64512
  %v2364 = vsel %vm2363, %v2302, %v970
  %v2365 = vsel %vm2363, %v2303, %v972
  %v2366 = vsel %vm2363, %v2304, %v974
  %v2367 = vsel %vm2363, %v2305, %v976
  %v2368 = vsel %vm2363, %v2306, %v978
  %v2369 = vsel %vm2363, %v2307, %v980
  %v2370 = vsel %vm2363, %v2308, %v982
  %v2371 = vsel %vm2363, %v2309, %v984
  %v2372 = vsel %vm2363, %v2310, %v986
  %v2373 = vsel %vm2363, %v2311, %v988
  %v2374 = vsel %vm2363, %v2312, %v990
  %v2375 = vsel %vm2363, %v2313, %v992
  %v2376 = vsel %vm2363, %v2314, %v994
  %v2377 = vsel %vm2363, %v2315, %v996
  %v2378 = vsel %vm2363, %v2316, %v998
  %v2379 = vsel %vm2363, %v2317, %v1000
  %v2380 = vsel %vm2363, %v2318, %v1002
  %v2381 = vsel %vm2363, %v2319, %v1004
  %v2382 = vsel %vm2363, %v2320, %v1006
  %v2383 = vsel %vm2363, %v2321, %v1008
  %v2384 = vsel %vm2363, %v2322, %v1010
  %v2385 = vsel %vm2363, %v2323, %v1012
  %v2386 = vsel %vm2363, %v2324, %v1014
  %v2387 = vsel %vm2363, %v2325, %v1016
  %v2388 = vsel %vm2363, %v2326, %v1018
  %v2389 = vsel %vm2363, %v2327, %v1020
  %v2390 = vsel %vm2363, %v2328, %v1022
  %v2391 = vsel %vm2363, %v2329, %v1024
  %v2392 = vsel %vm2363, %v2330, %v1026
  %v2393 = vsel %vm2363, %v2331, %v1028
  %v2394 = vsel %vm2363, %v2332, %v1030
  %v2395 = vsel %vm2363, %v2333, %v1032
  %v2396 = vsel %vm2363, %v2334, %v1034
  %v2397 = vsel %vm2363, %v2335, %v1036
  %v2398 = vsel %vm2363, %v2336, %v1038
  %v2399 = vsel %vm2363, %v2337, %v1040
  %v2400 = vsel %vm2363, %v2338, %v1042
  %v2401 = vsel %vm2363, %v2339, %v1044
  %v2402 = vsel %vm2363, %v2340, %v1046
  %v2403 = vsel %vm2363, %v2341, %v1048
  %v2404 = vsel %vm2363, %v2342, %v1050
  %v2405 = vsel %vm2363, %v2343, %v1052
  %v2406 = vsel %vm2363, %v2344, %v1054
  %v2407 = vsel %vm2363, %v2345, %v1056
  %v2408 = vsel %vm2363, %v2346, %v1058
  %v2409 = vsel %vm2363, %v2347, %v1060
  %v2410 = vsel %vm2363, %v2348, %v1062
  %v2411 = vsel %vm2363, %v2349, %v1064
  %v2412 = vsel %vm2363, %v2350, %v1066
  %v2413 = vsel %vm2363, %v2351, %v1068
  %v2414 = vsel %vm2363, %v2352, %v1070
  %v2415 = vsel %vm2363, %v2353, %v1072
  %v2416 = vsel %vm2363, %v2354, %v1074
  %v2417 = vsel %vm2363, %v2355, %v1076
  %v2418 = vsel %vm2363, %v2356, %v1078
  %v2419 = vsel %vm2363, %v2357, %v1080
  %v2420 = vsel %vm2363, %v2358, %v1082
  %v2421 = vsel %vm2363, %v2359, %v1084
  %v2422 = vsel %vm2363, %v2360, %v1086
  %v2423 = vsel %vm2363, %v2361, %v1088
  %v2424 = vsel %vm2363, %v2362, %v1090
  %vm2425 = vcmask 97280
  %v2426 = vsel %vm2425, %v2364, %v1155
  %v2427 = vsel %vm2425, %v2364, %v1157
  %v2428 = vsel %vm2425, %v2365, %v1159
  %v2429 = vsel %vm2425, %v2366, %v1161
  %v2430 = vsel %vm2425, %v2367, %v1163
  %v2431 = vsel %vm2425, %v2368, %v1165
  %v2432 = vsel %vm2425, %v2369, %v1167
  %v2433 = vsel %vm2425, %v2370, %v1169
  %v2434 = vsel %vm2425, %v2371, %v1171
  %v2435 = vsel %vm2425, %v2372, %v1173
  %v2436 = vsel %vm2425, %v2373, %v1175
  %v2437 = vsel %vm2425, %v2374, %v1177
  %v2438 = vsel %vm2425, %v2375, %v1179
  %v2439 = vsel %vm2425, %v2376, %v1181
  %v2440 = vsel %vm2425, %v2377, %v1183
  %v2441 = vsel %vm2425, %v2378, %v1185
  %v2442 = vsel %vm2425, %v2379, %v1187
  %v2443 = vsel %vm2425, %v2380, %v1189
  %v2444 = vsel %vm2425, %v2381, %v1191
  %v2445 = vsel %vm2425, %v2382, %v1193
  %v2446 = vsel %vm2425, %v2383, %v1195
  %v2447 = vsel %vm2425, %v2384, %v1197
  %v2448 = vsel %vm2425, %v2385, %v1199
  %v2449 = vsel %vm2425, %v2386, %v1201
  %v2450 = vsel %vm2425, %v2387, %v1203
  %v2451 = vsel %vm2425, %v2388, %v1205
  %v2452 = vsel %vm2425, %v2389, %v1207
  %v2453 = vsel %vm2425, %v2390, %v1209
  %v2454 = vsel %vm2425, %v2391, %v1211
  %v2455 = vsel %vm2425, %v2392, %v1213
  %v2456 = vsel %vm2425, %v2393, %v1215
  %v2457 = vsel %vm2425, %v2394, %v1217
  %v2458 = vsel %vm2425, %v2364, %v1219
  %v2459 = vsel %vm2425, %v2364, %v1221
  %v2460 = vsel %vm2425, %v2395, %v1223
  %v2461 = vsel %vm2425, %v2396, %v1225
  %v2462 = vsel %vm2425, %v2397, %v1227
  %v2463 = vsel %vm2425, %v2398, %v1229
  %v2464 = vsel %vm2425, %v2399, %v1231
  %v2465 = vsel %vm2425, %v2400, %v1233
  %v2466 = vsel %vm2425, %v2401, %v1235
  %v2467 = vsel %vm2425, %v2402, %v1237
  %v2468 = vsel %vm2425, %v2403, %v1239
  %v2469 = vsel %vm2425, %v2404, %v1241
  %v2470 = vsel %vm2425, %v2405, %v1243
  %v2471 = vsel %vm2425, %v2406, %v1245
  %v2472 = vsel %vm2425, %v2407, %v1247
  %v2473 = vsel %vm2425, %v2408, %v1249
  %v2474 = vsel %vm2425, %v2409, %v1251
  %v2475 = vsel %vm2425, %v2410, %v1253
  %v2476 = vsel %vm2425, %v2411, %v1255
  %v2477 = vsel %vm2425, %v2412, %v1257
  %v2478 = vsel %vm2425, %v2413, %v1259
  %v2479 = vsel %vm2425, %v2414, %v1261
  %v2480 = vsel %vm2425, %v2415, %v1263
  %v2481 = vsel %vm2425, %v2416, %v1265
  %v2482 = vsel %vm2425, %v2417, %v1267
  %v2483 = vsel %vm2425, %v2418, %v1269
  %v2484 = vsel %vm2425, %v2419, %v1271
  %v2485 = vsel %vm2425, %v2420, %v1273
  %v2486 = vsel %vm2425, %v2421, %v1275
  %v2487 = vsel %vm2425, %v2422, %v1277
  %v2488 = vsel %vm2425, %v2423, %v1279
  %v2489 = vsel %vm2425, %v2424, %v1281
  %vm2490 = vcmask 130048
  %v2491 = vsel %vm2490, %v2426, %v1359
  %v2492 = vsel %vm2490, %v2427, %v1361
  %v2493 = vsel %vm2490, %v2428, %v1363
  %v2494 = vsel %vm2490, %v2429, %v1365
  %v2495 = vsel %vm2490, %v2430, %v1367
  %v2496 = vsel %vm2490, %v2431, %v1369
  %v2497 = vsel %vm2490, %v2432, %v1371
  %v2498 = vsel %vm2490, %v2433, %v1373
  %v2499 = vsel %vm2490, %v2434, %v1375
  %v2500 = vsel %vm2490, %v2435, %v1377
  %v2501 = vsel %vm2490, %v2436, %v1379
  %v2502 = vsel %vm2490, %v2437, %v1381
  %v2503 = vsel %vm2490, %v2438, %v1383
  %v2504 = vsel %vm2490, %v2439, %v1385
  %v2505 = vsel %vm2490, %v2440, %v1387
  %v2506 = vsel %vm2490, %v2441, %v1389
  %v2507 = vsel %vm2490, %v2442, %v1391
  %v2508 = vsel %vm2490, %v2443, %v1393
  %v2509 = vsel %vm2490, %v2444, %v1395
  %v2510 = vsel %vm2490, %v2445, %v1397
  %v2511 = vsel %vm2490, %v2446, %v1399
  %v2512 = vsel %vm2490, %v2447, %v1401
  %v2513 = vsel %vm2490, %v2448, %v1403
  %v2514 = vsel %vm2490, %v2449, %v1405
  %v2515 = vsel %vm2490, %v2450, %v1407
  %v2516 = vsel %vm2490, %v2451, %v1409
  %v2517 = vsel %vm2490, %v2452, %v1411
  %v2518 = vsel %vm2490, %v2453, %v1413
  %v2519 = vsel %vm2490, %v2454, %v1415
  %v2520 = vsel %vm2490, %v2455, %v1417
  %v2521 = vsel %vm2490, %v2456, %v1419
  %v2522 = vsel %vm2490, %v2457, %v1421
  %v2523 = vsel %vm2490, %v2458, %v1423
  %v2524 = vsel %vm2490, %v2459, %v1425
  %v2525 = vsel %vm2490, %v2460, %v1427
  %v2526 = vsel %vm2490, %v2461, %v1429
  %v2527 = vsel %vm2490, %v2462, %v1431
  %v2528 = vsel %vm2490, %v2463, %v1433
  %v2529 = vsel %vm2490, %v2464, %v1435
  %v2530 = vsel %vm2490, %v2465, %v1437
  %v2531 = vsel %vm2490, %v2466, %v1439
  %v2532 = vsel %vm2490, %v2467, %v1441
  %v2533 = vsel %vm2490, %v2468, %v1443
  %v2534 = vsel %vm2490, %v2469, %v1445
  %v2535 = vsel %vm2490, %v2470, %v1447
  %v2536 = vsel %vm2490, %v2471, %v1449
  %v2537 = vsel %vm2490, %v2472, %v1451
  %v2538 = vsel %vm2490, %v2473, %v1453
  %v2539 = vsel %vm2490, %v2474, %v1455
  %v2540 = vsel %vm2490, %v2475, %v1457
  %v2541 = vsel %vm2490, %v2476, %v1459
  %v2542 = vsel %vm2490, %v2477, %v1461
  %v2543 = vsel %vm2490, %v2478, %v1463
  %v2544 = vsel %vm2490, %v2479, %v1465
  %v2545 = vsel %vm2490, %v2480, %v1467
  %v2546 = vsel %vm2490, %v2481, %v1469
  %v2547 = vsel %vm2490, %v2482, %v1471
  %v2548 = vsel %vm2490, %v2483, %v1473
  %v2549 = vsel %vm2490, %v2484, %v1475
  %v2550 = vsel %vm2490, %v2485, %v1477
  %v2551 = vsel %vm2490, %v2486, %v1479
  %v2552 = vsel %vm2490, %v2487, %v1481
  %v2553 = vsel %vm2490, %v2488, %v1483
  %v2554 = vsel %vm2490, %v2489, %v1485
  %vm2555 = vcmask 162816
  %v2556 = vsel %vm2555, %v2491, %v1561
  %v2557 = vsel %vm2555, %v2492, %v1563
  %v2558 = vsel %vm2555, %v2493, %v1565
  %v2559 = vsel %vm2555, %v2494, %v1567
  %v2560 = vsel %vm2555, %v2495, %v1569
  %v2561 = vsel %vm2555, %v2496, %v1571
  %v2562 = vsel %vm2555, %v2497, %v1573
  %v2563 = vsel %vm2555, %v2498, %v1575
  %v2564 = vsel %vm2555, %v2499, %v1577
  %v2565 = vsel %vm2555, %v2500, %v1579
  %v2566 = vsel %vm2555, %v2501, %v1581
  %v2567 = vsel %vm2555, %v2502, %v1583
  %v2568 = vsel %vm2555, %v2503, %v1585
  %v2569 = vsel %vm2555, %v2504, %v1587
  %v2570 = vsel %vm2555, %v2505, %v1589
  %v2571 = vsel %vm2555, %v2506, %v1591
  %v2572 = vsel %vm2555, %v2507, %v1593
  %v2573 = vsel %vm2555, %v2508, %v1595
  %v2574 = vsel %vm2555, %v2509, %v1597
  %v2575 = vsel %vm2555, %v2510, %v1599
  %v2576 = vsel %vm2555, %v2511, %v1601
  %v2577 = vsel %vm2555, %v2512, %v1603
  %v2578 = vsel %vm2555, %v2513, %v1605
  %v2579 = vsel %vm2555, %v2514, %v1607
  %v2580 = vsel %vm2555, %v2515, %v1609
  %v2581 = vsel %vm2555, %v2516, %v1611
  %v2582 = vsel %vm2555, %v2517, %v1613
  %v2583 = vsel %vm2555, %v2518, %v1615
  %v2584 = vsel %vm2555, %v2519, %v1617
  %v2585 = vsel %vm2555, %v2520, %v1619
  %v2586 = vsel %vm2555, %v2521, %v1621
  %v2587 = vsel %vm2555, %v2522, %v1623
  %v2588 = vsel %vm2555, %v2523, %v1625
  %v2589 = vsel %vm2555, %v2524, %v1627
  %v2590 = vsel %vm2555, %v2525, %v1629
  %v2591 = vsel %vm2555, %v2526, %v1631
  %v2592 = vsel %vm2555, %v2527, %v1633
  %v2593 = vsel %vm2555, %v2528, %v1635
  %v2594 = vsel %vm2555, %v2529, %v1637
  %v2595 = vsel %vm2555, %v2530, %v1639
  %v2596 = vsel %vm2555, %v2531, %v1641
  %v2597 = vsel %vm2555, %v2532, %v1643
  %v2598 = vsel %vm2555, %v2533, %v1645
  %v2599 = vsel %vm2555, %v2534, %v1647
  %v2600 = vsel %vm2555, %v2535, %v1649
  %v2601 = vsel %vm2555, %v2536, %v1651
  %v2602 = vsel %vm2555, %v2537, %v1653
  %v2603 = vsel %vm2555, %v2538, %v1655
  %v2604 = vsel %vm2555, %v2539, %v1657
  %v2605 = vsel %vm2555, %v2540, %v1659
  %v2606 = vsel %vm2555, %v2541, %v1661
  %v2607 = vsel %vm2555, %v2542, %v1663
  %v2608 = vsel %vm2555, %v2543, %v1665
  %v2609 = vsel %vm2555, %v2544, %v1667
  %v2610 = vsel %vm2555, %v2545, %v1669
  %v2611 = vsel %vm2555, %v2546, %v1671
  %v2612 = vsel %vm2555, %v2547, %v1673
  %v2613 = vsel %vm2555, %v2548, %v1675
  %v2614 = vsel %vm2555, %v2549, %v1677
  %v2615 = vsel %vm2555, %v2550, %v1679
  %v2616 = vsel %vm2555, %v2551, %v1681
  %v2617 = vsel %vm2555, %v2552, %v1683
  %v2618 = vsel %vm2555, %v2553, %v1685
  %v2619 = vsel %vm2555, %v2554, %v1687
  %vm2620 = vcmask 195584
  %v2621 = vsel %vm2620, %v2556, %v1753
  %v2622 = vsel %vm2620, %v2557, %v1755
  %v2623 = vsel %vm2620, %v2558, %v1757
  %v2624 = vsel %vm2620, %v2559, %v1759
  %v2625 = vsel %vm2620, %v2560, %v1761
  %v2626 = vsel %vm2620, %v2561, %v1763
  %v2627 = vsel %vm2620, %v2562, %v1765
  %v2628 = vsel %vm2620, %v2563, %v1767
  %v2629 = vsel %vm2620, %v2564, %v1769
  %v2630 = vsel %vm2620, %v2565, %v1771
  %v2631 = vsel %vm2620, %v2566, %v1773
  %v2632 = vsel %vm2620, %v2567, %v1775
  %v2633 = vsel %vm2620, %v2568, %v1777
  %v2634 = vsel %vm2620, %v2569, %v1779
  %v2635 = vsel %vm2620, %v2570, %v1781
  %v2636 = vsel %vm2620, %v2571, %v1783
  %v2637 = vsel %vm2620, %v2572, %v1785
  %v2638 = vsel %vm2620, %v2573, %v1787
  %v2639 = vsel %vm2620, %v2574, %v1789
  %v2640 = vsel %vm2620, %v2575, %v1791
  %v2641 = vsel %vm2620, %v2576, %v1793
  %v2642 = vsel %vm2620, %v2577, %v1795
  %v2643 = vsel %vm2620, %v2578, %v1797
  %v2644 = vsel %vm2620, %v2579, %v1799
  %v2645 = vsel %vm2620, %v2580, %v1801
  %v2646 = vsel %vm2620, %v2581, %v1803
  %v2647 = vsel %vm2620, %v2582, %v1805
  %v2648 = vsel %vm2620, %v2583, %v1807
  %v2649 = vsel %vm2620, %v2584, %v1809
  %v2650 = vsel %vm2620, %v2585, %v1811
  %v2651 = vsel %vm2620, %v2586, %v1813
  %v2652 = vsel %vm2620, %v2587, %v1813
  %v2653 = vsel %vm2620, %v2588, %v1815
  %v2654 = vsel %vm2620, %v2589, %v1817
  %v2655 = vsel %vm2620, %v2590, %v1819
  %v2656 = vsel %vm2620, %v2591, %v1821
  %v2657 = vsel %vm2620, %v2592, %v1823
  %v2658 = vsel %vm2620, %v2593, %v1825
  %v2659 = vsel %vm2620, %v2594, %v1827
  %v2660 = vsel %vm2620, %v2595, %v1829
  %v2661 = vsel %vm2620, %v2596, %v1831
  %v2662 = vsel %vm2620, %v2597, %v1833
  %v2663 = vsel %vm2620, %v2598, %v1835
  %v2664 = vsel %vm2620, %v2599, %v1837
  %v2665 = vsel %vm2620, %v2600, %v1839
  %v2666 = vsel %vm2620, %v2601, %v1841
  %v2667 = vsel %vm2620, %v2602, %v1843
  %v2668 = vsel %vm2620, %v2603, %v1845
  %v2669 = vsel %vm2620, %v2604, %v1847
  %v2670 = vsel %vm2620, %v2605, %v1849
  %v2671 = vsel %vm2620, %v2606, %v1851
  %v2672 = vsel %vm2620, %v2607, %v1853
  %v2673 = vsel %vm2620, %v2608, %v1855
  %v2674 = vsel %vm2620, %v2609, %v1857
  %v2675 = vsel %vm2620, %v2610, %v1859
  %v2676 = vsel %vm2620, %v2611, %v1861
  %v2677 = vsel %vm2620, %v2612, %v1863
  %v2678 = vsel %vm2620, %v2613, %v1865
  %v2679 = vsel %vm2620, %v2614, %v1867
  %v2680 = vsel %vm2620, %v2615, %v1869
  %v2681 = vsel %vm2620, %v2616, %v1871
  %v2682 = vsel %vm2620, %v2617, %v1873
  %v2683 = vsel %vm2620, %v2618, %v1813
  %v2684 = vsel %vm2620, %v2619, %v1813
  %vm2685 = vcmask 228352
  %v2686 = vsel %vm2685, %v2621, %v1936
  %v2687 = vsel %vm2685, %v2622, %v1938
  %v2688 = vsel %vm2685, %v2623, %v1940
  %v2689 = vsel %vm2685, %v2624, %v1942
  %v2690 = vsel %vm2685, %v2625, %v1944
  %v2691 = vsel %vm2685, %v2626, %v1946
  %v2692 = vsel %vm2685, %v2627, %v1948
  %v2693 = vsel %vm2685, %v2628, %v1950
  %v2694 = vsel %vm2685, %v2629, %v1952
  %v2695 = vsel %vm2685, %v2630, %v1954
  %v2696 = vsel %vm2685, %v2631, %v1956
  %v2697 = vsel %vm2685, %v2632, %v1958
  %v2698 = vsel %vm2685, %v2633, %v1960
  %v2699 = vsel %vm2685, %v2634, %v1962
  %v2700 = vsel %vm2685, %v2635, %v1964
  %v2701 = vsel %vm2685, %v2636, %v1966
  %v2702 = vsel %vm2685, %v2637, %v1968
  %v2703 = vsel %vm2685, %v2638, %v1970
  %v2704 = vsel %vm2685, %v2639, %v1972
  %v2705 = vsel %vm2685, %v2640, %v1974
  %v2706 = vsel %vm2685, %v2641, %v1976
  %v2707 = vsel %vm2685, %v2642, %v1978
  %v2708 = vsel %vm2685, %v2643, %v1980
  %v2709 = vsel %vm2685, %v2644, %v1982
  %v2710 = vsel %vm2685, %v2645, %v1984
  %v2711 = vsel %vm2685, %v2646, %v1986
  %v2712 = vsel %vm2685, %v2647, %v1988
  %v2713 = vsel %vm2685, %v2648, %v1990
  %v2714 = vsel %vm2685, %v2649, %v1992
  %v2715 = vsel %vm2685, %v2650, %v1994
  %v2716 = vsel %vm2685, %v2651, %v1996
  %v2717 = vsel %vm2685, %v2652, %v1996
  %v2718 = vsel %vm2685, %v2653, %v1998
  %v2719 = vsel %vm2685, %v2654, %v2000
  %v2720 = vsel %vm2685, %v2655, %v2002
  %v2721 = vsel %vm2685, %v2656, %v2004
  %v2722 = vsel %vm2685, %v2657, %v2006
  %v2723 = vsel %vm2685, %v2658, %v2008
  %v2724 = vsel %vm2685, %v2659, %v2010
  %v2725 = vsel %vm2685, %v2660, %v2012
  %v2726 = vsel %vm2685, %v2661, %v2014
  %v2727 = vsel %vm2685, %v2662, %v2016
  %v2728 = vsel %vm2685, %v2663, %v2018
  %v2729 = vsel %vm2685, %v2664, %v2020
  %v2730 = vsel %vm2685, %v2665, %v2022
  %v2731 = vsel %vm2685, %v2666, %v2024
  %v2732 = vsel %vm2685, %v2667, %v2026
  %v2733 = vsel %vm2685, %v2668, %v2028
  %v2734 = vsel %vm2685, %v2669, %v2030
  %v2735 = vsel %vm2685, %v2670, %v2032
  %v2736 = vsel %vm2685, %v2671, %v2034
  %v2737 = vsel %vm2685, %v2672, %v2036
  %v2738 = vsel %vm2685, %v2673, %v2038
  %v2739 = vsel %vm2685, %v2674, %v2040
  %v2740 = vsel %vm2685, %v2675, %v2042
  %v2741 = vsel %vm2685, %v2676, %v2044
  %v2742 = vsel %vm2685, %v2677, %v2046
  %v2743 = vsel %vm2685, %v2678, %v2048
  %v2744 = vsel %vm2685, %v2679, %v2050
  %v2745 = vsel %vm2685, %v2680, %v2052
  %v2746 = vsel %vm2685, %v2681, %v2054
  %v2747 = vsel %vm2685, %v2682, %v2056
  %v2748 = vsel %vm2685, %v2683, %v1996
  %v2749 = vsel %vm2685, %v2684, %v1996
  %vm2750 = vcmask 261120
  %v2751 = vsel %vm2750, %v2686, %v2119
  %v2752 = vsel %vm2750, %v2687, %v2121
  %v2753 = vsel %vm2750, %v2688, %v2123
  %v2754 = vsel %vm2750, %v2689, %v2125
  %v2755 = vsel %vm2750, %v2690, %v2127
  %v2756 = vsel %vm2750, %v2691, %v2129
  %v2757 = vsel %vm2750, %v2692, %v2131
  %v2758 = vsel %vm2750, %v2693, %v2133
  %v2759 = vsel %vm2750, %v2694, %v2135
  %v2760 = vsel %vm2750, %v2695, %v2137
  %v2761 = vsel %vm2750, %v2696, %v2139
  %v2762 = vsel %vm2750, %v2697, %v2141
  %v2763 = vsel %vm2750, %v2698, %v2143
  %v2764 = vsel %vm2750, %v2699, %v2145
  %v2765 = vsel %vm2750, %v2700, %v2147
  %v2766 = vsel %vm2750, %v2701, %v2149
  %v2767 = vsel %vm2750, %v2702, %v2151
  %v2768 = vsel %vm2750, %v2703, %v2153
  %v2769 = vsel %vm2750, %v2704, %v2155
  %v2770 = vsel %vm2750, %v2705, %v2157
  %v2771 = vsel %vm2750, %v2706, %v2159
  %v2772 = vsel %vm2750, %v2707, %v2161
  %v2773 = vsel %vm2750, %v2708, %v2163
  %v2774 = vsel %vm2750, %v2709, %v2165
  %v2775 = vsel %vm2750, %v2710, %v2167
  %v2776 = vsel %vm2750, %v2711, %v2169
  %v2777 = vsel %vm2750, %v2712, %v2171
  %v2778 = vsel %vm2750, %v2713, %v2173
  %v2779 = vsel %vm2750, %v2714, %v2175
  %v2780 = vsel %vm2750, %v2715, %v2177
  %v2781 = vsel %vm2750, %v2716, %v2179
  %v2782 = vsel %vm2750, %v2717, %v2179
  %v2783 = vsel %vm2750, %v2718, %v2181
  %v2784 = vsel %vm2750, %v2719, %v2183
  %v2785 = vsel %vm2750, %v2720, %v2185
  %v2786 = vsel %vm2750, %v2721, %v2187
  %v2787 = vsel %vm2750, %v2722, %v2189
  %v2788 = vsel %vm2750, %v2723, %v2191
  %v2789 = vsel %vm2750, %v2724, %v2193
  %v2790 = vsel %vm2750, %v2725, %v2195
  %v2791 = vsel %vm2750, %v2726, %v2197
  %v2792 = vsel %vm2750, %v2727, %v2199
  %v2793 = vsel %vm2750, %v2728, %v2201
  %v2794 = vsel %vm2750, %v2729, %v2203
  %v2795 = vsel %vm2750, %v2730, %v2205
  %v2796 = vsel %vm2750, %v2731, %v2207
  %v2797 = vsel %vm2750, %v2732, %v2209
  %v2798 = vsel %vm2750, %v2733, %v2211
  %v2799 = vsel %vm2750, %v2734, %v2213
  %v2800 = vsel %vm2750, %v2735, %v2215
  %v2801 = vsel %vm2750, %v2736, %v2217
  %v2802 = vsel %vm2750, %v2737, %v2219
  %v2803 = vsel %vm2750, %v2738, %v2221
  %v2804 = vsel %vm2750, %v2739, %v2223
  %v2805 = vsel %vm2750, %v2740, %v2225
  %v2806 = vsel %vm2750, %v2741, %v2227
  %v2807 = vsel %vm2750, %v2742, %v2229
  %v2808 = vsel %vm2750, %v2743, %v2231
  %v2809 = vsel %vm2750, %v2744, %v2233
  %v2810 = vsel %vm2750, %v2745, %v2235
  %v2811 = vsel %vm2750, %v2746, %v2237
  %v2812 = vsel %vm2750, %v2747, %v2239
  %v2813 = vsel %vm2750, %v2748, %v2179
  %v2814 = vsel %vm2750, %v2749, %v2179
  %vm2815 = vcmask 293888
  %v2817 = vsel %vm2815, %v2751, 0
  %v2820 = vsel %vm2815, %v2752, 0
  %v2823 = vsel %vm2815, %v2753, 0
  %v2826 = vsel %vm2815, %v2754, 0
  %v2829 = vsel %vm2815, %v2755, 0
  %v2832 = vsel %vm2815, %v2756, 0
  %v2835 = vsel %vm2815, %v2757, 0
  %v2838 = vsel %vm2815, %v2758, 0
  %v2841 = vsel %vm2815, %v2759, 0
  %v2844 = vsel %vm2815, %v2760, 0
  %v2847 = vsel %vm2815, %v2761, 0
  %v2850 = vsel %vm2815, %v2762, 0
  %v2853 = vsel %vm2815, %v2763, 0
  %v2856 = vsel %vm2815, %v2764, 0
  %v2859 = vsel %vm2815, %v2765, 0
  %v2862 = vsel %vm2815, %v2766, 0
  %v2865 = vsel %vm2815, %v2767, 0
  %v2868 = vsel %vm2815, %v2768, 0
  %v2871 = vsel %vm2815, %v2769, 0
  %v2874 = vsel %vm2815, %v2770, 0
  %v2877 = vsel %vm2815, %v2771, 0
  %v2880 = vsel %vm2815, %v2772, 0
  %v2883 = vsel %vm2815, %v2773, 0
  %v2886 = vsel %vm2815, %v2774, 0
  %v2889 = vsel %vm2815, %v2775, 0
  %v2892 = vsel %vm2815, %v2776, 0
  %v2895 = vsel %vm2815, %v2777, 0
  %v2898 = vsel %vm2815, %v2778, 0
  %v2901 = vsel %vm2815, %v2779, 0
  %v2904 = vsel %vm2815, %v2780, 0
  %v2907 = vsel %vm2815, %v2781, 0
  %v2910 = vsel %vm2815, %v2782, 0
  %v2913 = vsel %vm2815, %v2783, 0
  %v2916 = vsel %vm2815, %v2784, 0
  %v2919 = vsel %vm2815, %v2785, 0
  %v2922 = vsel %vm2815, %v2786, 0
  %v2925 = vsel %vm2815, %v2787, 0
  %v2928 = vsel %vm2815, %v2788, 0
  %v2931 = vsel %vm2815, %v2789, 0
  %v2934 = vsel %vm2815, %v2790, 0
  %v2937 = vsel %vm2815, %v2791, 0
  %v2940 = vsel %vm2815, %v2792, 0
  %v2943 = vsel %vm2815, %v2793, 0
  %v2946 = vsel %vm2815, %v2794, 0
  %v2949 = vsel %vm2815, %v2795, 0
  %v2952 = vsel %vm2815, %v2796, 0
  %v2955 = vsel %vm2815, %v2797, 0
  %v2958 = vsel %vm2815, %v2798, 0
  %v2961 = vsel %vm2815, %v2799, 0
  %v2964 = vsel %vm2815, %v2800, 0
  %v2967 = vsel %vm2815, %v2801, 0
  %v2970 = vsel %vm2815, %v2802, 0
  %v2973 = vsel %vm2815, %v2803, 0
  %v2976 = vsel %vm2815, %v2804, 0
  %v2979 = vsel %vm2815, %v2805, 0
  %v2982 = vsel %vm2815, %v2806, 0
  %v2985 = vsel %vm2815, %v2807, 0
  %v2988 = vsel %vm2815, %v2808, 0
  %v2991 = vsel %vm2815, %v2809, 0
  %v2994 = vsel %vm2815, %v2810, 0
  %v2997 = vsel %vm2815, %v2811, 0
  %v3000 = vsel %vm2815, %v2812, 0
  %v3003 = vsel %vm2815, %v2813, 0
  %v3006 = vsel %vm2815, %v2814, 0
  %vm3008 = vcmask 1043456
  %v3010 = vsel %vm3008, %v418, 0
  %3012 = vmatprep.subr.mxu0 0.0
  %3013 = vmatpush1.msra.mxu0 0.0
  %3014 = vmatprep.subr.mxu0 0.0
  %3015 = vmatpush1.msra.mxu0 0.0
  %3016 = vmatprep.subr.mxu0 0.0
  %3017 = vmatpush1.msra.mxu0 0.0
  %3018 = vmatprep.subr.mxu0 0.0
  %3019 = vmatpush1.msra.mxu0 0.0
  %3020 = vmatprep.subr.mxu0 0.0
  %3021 = vmatpush1.msra.mxu0 0.0
  %3022 = vmatprep.subr.mxu0 0.0
  %3023 = vmatpush1.msra.mxu0 0.0
  %3024 = vmatprep.subr.mxu0 0.0
  %3025 = vmatpush1.msra.mxu0 0.0
  %3026 = vmatprep.subr.mxu0 0.0
  %3027 = vmatpush1.msra.mxu0 0.0
  %3028 = vmatprep.subr.mxu0 0.0
  %3029 = vmatpush1.msra.mxu0 0.0
  %3030 = vmatprep.subr.mxu0 0.0
  %3031 = vmatpush1.msra.mxu0 0.0
  %3032 = vmatprep.subr.mxu0 0.0
  %3033 = vmatpush1.msra.mxu0 0.0
  %3034 = vmatprep.subr.mxu0 0.0
  %3035 = vmatpush1.msra.mxu0 %v3010
  %3036 = vmatprep.subr.mxu0 0.0
  %3037 = vmatpush1.msra.mxu0 %v417
  %3038 = vmatprep.subr.mxu0 0.0
  %3039 = vmatpush1.msra.mxu0 %v416
  %3040 = vmatprep.subr.mxu0 0.0
  %3041 = vmatpush1.msra.mxu0 %v415
  %3042 = vmatprep.subr.mxu0 0.0
  %3043 = vmatpush1.msra.mxu0 %v414
  %3044 = vmatprep.subr.mxu0 0.0
  %3045 = vmatpush2.msra.mxu0 0.0
  %3046 = vmatprep.subr.mxu0 0.0
  %3047 = vmatpush2.msra.mxu0 0.0
  %3048 = vmatprep.subr.mxu0 0.0
  %3049 = vmatpush2.msra.mxu0 0.0
  %3050 = vmatprep.subr.mxu0 0.0
  %3051 = vmatpush2.msra.mxu0 0.0
  %3052 = vmatprep.subr.mxu0 0.0
  %3053 = vmatpush2.msra.mxu0 0.0
  %3054 = vmatprep.subr.mxu0 0.0
  %3055 = vmatpush2.msra.mxu0 0.0
  %3056 = vmatprep.subr.mxu0 0.0
  %3057 = vmatpush2.msra.mxu0 0.0
  %3058 = vmatprep.subr.mxu0 0.0
  %3059 = vmatpush2.msra.mxu0 0.0
  %3060 = vmatprep.subr.mxu0 0.0
  %3061 = vmatpush2.msra.mxu0 0.0
  %3062 = vmatprep.subr.mxu0 0.0
  %3063 = vmatpush2.msra.mxu0 0.0
  %3064 = vmatprep.subr.mxu0 0.0
  %3065 = vmatpush2.msra.mxu0 0.0
  %3066 = vmatprep.subr.mxu0 0.0
  %3067 = vmatpush2.msra.mxu0 0.0
  %3068 = vmatprep.subr.mxu0 0.0
  %3069 = vmatpush2.msra.mxu0 0.0
  %3070 = vmatprep.subr.mxu0 0.0
  %3071 = vmatpush2.msra.mxu0 0.0
  %3072 = vmatprep.subr.mxu0 0.0
  %3073 = vmatpush2.msra.mxu0 0.0
  %3074 = vmatprep.subr.mxu0 0.0
  %3075 = vmatpush2.msra.mxu0 0.0
  %3076 = vmatprep.mubr.f32.mxu0 0.0
  %3077 = vmatmul.mubr.f32.gmra.mxu0 %v2817
  %v3078 = vpop.f32.mrf.mxu0
  %v3079 = vadd.f32 0.0, %v3078
  %v3080 = vpop.f32.mrf.mxu0
  %3081 = vmatprep.mubr.f32.mxu0 0.0
  %3082 = vmatmul.mubr.f32.gmra.mxu0 %v2820
  %v3083 = vpop.f32.mrf.mxu0
  %v3084 = vadd.f32 0.0, %v3083
  %v3085 = vpop.f32.mrf.mxu0
  %3086 = vmatprep.mubr.f32.mxu0 0.0
  %3087 = vmatmul.mubr.f32.gmra.mxu0 %v2823
  %v3088 = vpop.f32.mrf.mxu0
  %v3089 = vadd.f32 0.0, %v3088
  %v3090 = vpop.f32.mrf.mxu0
  %3091 = vmatprep.mubr.f32.mxu0 0.0
  %3092 = vmatmul.mubr.f32.gmra.mxu0 %v2826
  %v3093 = vpop.f32.mrf.mxu0
  %v3094 = vadd.f32 0.0, %v3093
  %v3095 = vpop.f32.mrf.mxu0
  %3096 = vmatprep.mubr.f32.mxu0 0.0
  %3097 = vmatmul.mubr.f32.gmra.mxu0 %v2829
  %v3098 = vpop.f32.mrf.mxu0
  %v3099 = vadd.f32 0.0, %v3098
  %v3100 = vpop.f32.mrf.mxu0
  %3101 = vmatprep.mubr.f32.mxu0 0.0
  %3102 = vmatmul.mubr.f32.gmra.mxu0 %v2832
  %v3103 = vpop.f32.mrf.mxu0
  %v3104 = vadd.f32 0.0, %v3103
  %v3105 = vpop.f32.mrf.mxu0
  %3106 = vmatprep.mubr.f32.mxu0 0.0
  %3107 = vmatmul.mubr.f32.gmra.mxu0 %v2835
  %v3108 = vpop.f32.mrf.mxu0
  %v3109 = vadd.f32 0.0, %v3108
  %v3110 = vpop.f32.mrf.mxu0
  %3111 = vmatprep.mubr.f32.mxu0 0.0
  %3112 = vmatmul.mubr.f32.gmra.mxu0 %v2838
  %v3113 = vpop.f32.mrf.mxu0
  %v3114 = vadd.f32 0.0, %v3113
  %v3115 = vpop.f32.mrf.mxu0
  %3116 = vmatprep.mubr.f32.mxu0 0.0
  %3117 = vmatmul.mubr.f32.gmra.mxu0 %v2841
  %v3118 = vpop.f32.mrf.mxu0
  %v3119 = vadd.f32 0.0, %v3118
  %v3120 = vpop.f32.mrf.mxu0
  %3121 = vmatprep.mubr.f32.mxu0 0.0
  %3122 = vmatmul.mubr.f32.gmra.mxu0 %v2844
  %v3123 = vpop.f32.mrf.mxu0
  %v3124 = vadd.f32 0.0, %v3123
  %v3125 = vpop.f32.mrf.mxu0
  %3126 = vmatprep.mubr.f32.mxu0 0.0
  %3127 = vmatmul.mubr.f32.gmra.mxu0 %v2847
  %v3128 = vpop.f32.mrf.mxu0
  %v3129 = vadd.f32 0.0, %v3128
  %v3130 = vpop.f32.mrf.mxu0
  %3131 = vmatprep.mubr.f32.mxu0 0.0
  %3132 = vmatmul.mubr.f32.gmra.mxu0 %v2850
  %v3133 = vpop.f32.mrf.mxu0
  %v3134 = vadd.f32 0.0, %v3133
  %v3135 = vpop.f32.mrf.mxu0
  %3136 = vmatprep.mubr.f32.mxu0 0.0
  %3137 = vmatmul.mubr.f32.gmra.mxu0 %v2853
  %v3138 = vpop.f32.mrf.mxu0
  %v3139 = vadd.f32 0.0, %v3138
  %v3140 = vpop.f32.mrf.mxu0
  %3141 = vmatprep.mubr.f32.mxu0 0.0
  %3142 = vmatmul.mubr.f32.gmra.mxu0 %v2856
  %v3143 = vpop.f32.mrf.mxu0
  %v3144 = vadd.f32 0.0, %v3143
  %v3145 = vpop.f32.mrf.mxu0
  %3146 = vmatprep.mubr.f32.mxu0 0.0
  %3147 = vmatmul.mubr.f32.gmra.mxu0 %v2859
  %v3148 = vpop.f32.mrf.mxu0
  %v3149 = vadd.f32 0.0, %v3148
  %v3150 = vpop.f32.mrf.mxu0
  %3151 = vmatprep.mubr.f32.mxu0 0.0
  %3152 = vmatmul.mubr.f32.gmra.mxu0 %v2862
  %v3153 = vpop.f32.mrf.mxu0
  %v3154 = vadd.f32 0.0, %v3153
  %v3155 = vpop.f32.mrf.mxu0
  %3156 = vmatprep.mubr.f32.mxu0 0.0
  %3157 = vmatmul.mubr.f32.gmra.mxu0 %v2865
  %v3158 = vpop.f32.mrf.mxu0
  %v3159 = vadd.f32 0.0, %v3158
  %v3160 = vpop.f32.mrf.mxu0
  %3161 = vmatprep.mubr.f32.mxu0 0.0
  %3162 = vmatmul.mubr.f32.gmra.mxu0 %v2868
  %v3163 = vpop.f32.mrf.mxu0
  %v3164 = vadd.f32 0.0, %v3163
  %v3165 = vpop.f32.mrf.mxu0
  %3166 = vmatprep.mubr.f32.mxu0 0.0
  %3167 = vmatmul.mubr.f32.gmra.mxu0 %v2871
  %v3168 = vpop.f32.mrf.mxu0
  %v3169 = vadd.f32 0.0, %v3168
  %v3170 = vpop.f32.mrf.mxu0
  %3171 = vmatprep.mubr.f32.mxu0 0.0
  %3172 = vmatmul.mubr.f32.gmra.mxu0 %v2874
  %v3173 = vpop.f32.mrf.mxu0
  %v3174 = vadd.f32 0.0, %v3173
  %v3175 = vpop.f32.mrf.mxu0
  %3176 = vmatprep.mubr.f32.mxu0 0.0
  %3177 = vmatmul.mubr.f32.gmra.mxu0 %v2877
  %v3178 = vpop.f32.mrf.mxu0
  %v3179 = vadd.f32 0.0, %v3178
  %v3180 = vpop.f32.mrf.mxu0
  %3181 = vmatprep.mubr.f32.mxu0 0.0
  %3182 = vmatmul.mubr.f32.gmra.mxu0 %v2880
  %v3183 = vpop.f32.mrf.mxu0
  %v3184 = vadd.f32 0.0, %v3183
  %v3185 = vpop.f32.mrf.mxu0
  %3186 = vmatprep.mubr.f32.mxu0 0.0
  %3187 = vmatmul.mubr.f32.gmra.mxu0 %v2883
  %v3188 = vpop.f32.mrf.mxu0
  %v3189 = vadd.f32 0.0, %v3188
  %v3190 = vpop.f32.mrf.mxu0
  %3191 = vmatprep.mubr.f32.mxu0 0.0
  %3192 = vmatmul.mubr.f32.gmra.mxu0 %v2886
  %v3193 = vpop.f32.mrf.mxu0
  %v3194 = vadd.f32 0.0, %v3193
  %v3195 = vpop.f32.mrf.mxu0
  %3196 = vmatprep.mubr.f32.mxu0 0.0
  %3197 = vmatmul.mubr.f32.gmra.mxu0 %v2889
  %v3198 = vpop.f32.mrf.mxu0
  %v3199 = vadd.f32 0.0, %v3198
  %v3200 = vpop.f32.mrf.mxu0
  %3201 = vmatprep.mubr.f32.mxu0 0.0
  %3202 = vmatmul.mubr.f32.gmra.mxu0 %v2892
  %v3203 = vpop.f32.mrf.mxu0
  %v3204 = vadd.f32 0.0, %v3203
  %v3205 = vpop.f32.mrf.mxu0
  %3206 = vmatprep.mubr.f32.mxu0 0.0
  %3207 = vmatmul.mubr.f32.gmra.mxu0 %v2895
  %v3208 = vpop.f32.mrf.mxu0
  %v3209 = vadd.f32 0.0, %v3208
  %v3210 = vpop.f32.mrf.mxu0
  %3211 = vmatprep.mubr.f32.mxu0 0.0
  %3212 = vmatmul.mubr.f32.gmra.mxu0 %v2898
  %v3213 = vpop.f32.mrf.mxu0
  %v3214 = vadd.f32 0.0, %v3213
  %v3215 = vpop.f32.mrf.mxu0
  %3216 = vmatprep.mubr.f32.mxu0 0.0
  %3217 = vmatmul.mubr.f32.gmra.mxu0 %v2901
  %v3218 = vpop.f32.mrf.mxu0
  %v3219 = vadd.f32 0.0, %v3218
  %v3220 = vpop.f32.mrf.mxu0
  %3221 = vmatprep.mubr.f32.mxu0 0.0
  %3222 = vmatmul.mubr.f32.gmra.mxu0 %v2904
  %v3223 = vpop.f32.mrf.mxu0
  %v3224 = vadd.f32 0.0, %v3223
  %v3225 = vpop.f32.mrf.mxu0
  %3226 = vmatprep.mubr.f32.mxu0 0.0
  %3227 = vmatmul.mubr.f32.gmra.mxu0 %v2907
  %v3228 = vpop.f32.mrf.mxu0
  %v3229 = vadd.f32 0.0, %v3228
  %v3230 = vpop.f32.mrf.mxu0
  %3231 = vmatprep.mubr.f32.mxu0 0.0
  %3232 = vmatmul.mubr.f32.gmra.mxu0 %v2910
  %v3233 = vpop.f32.mrf.mxu0
  %v3234 = vadd.f32 0.0, %v3233
  %v3235 = vpop.f32.mrf.mxu0
  %3236 = vmatprep.mubr.f32.mxu0 0.0
  %3237 = vmatmul.mubr.f32.gmra.mxu0 %v2913
  %v3238 = vpop.f32.mrf.mxu0
  %v3239 = vadd.f32 0.0, %v3238
  %v3240 = vpop.f32.mrf.mxu0
  %3241 = vmatprep.mubr.f32.mxu0 0.0
  %3242 = vmatmul.mubr.f32.gmra.mxu0 %v2916
  %v3243 = vpop.f32.mrf.mxu0
  %v3244 = vadd.f32 0.0, %v3243
  %v3245 = vpop.f32.mrf.mxu0
  %3246 = vmatprep.mubr.f32.mxu0 0.0
  %3247 = vmatmul.mubr.f32.gmra.mxu0 %v2919
  %v3248 = vpop.f32.mrf.mxu0
  %v3249 = vadd.f32 0.0, %v3248
  %v3250 = vpop.f32.mrf.mxu0
  %3251 = vmatprep.mubr.f32.mxu0 0.0
  %3252 = vmatmul.mubr.f32.gmra.mxu0 %v2922
  %v3253 = vpop.f32.mrf.mxu0
  %v3254 = vadd.f32 0.0, %v3253
  %v3255 = vpop.f32.mrf.mxu0
  %3256 = vmatprep.mubr.f32.mxu0 0.0
  %3257 = vmatmul.mubr.f32.gmra.mxu0 %v2925
  %v3258 = vpop.f32.mrf.mxu0
  %v3259 = vadd.f32 0.0, %v3258
  %v3260 = vpop.f32.mrf.mxu0
  %3261 = vmatprep.mubr.f32.mxu0 0.0
  %3262 = vmatmul.mubr.f32.gmra.mxu0 %v2928
  %v3263 = vpop.f32.mrf.mxu0
  %v3264 = vadd.f32 0.0, %v3263
  %v3265 = vpop.f32.mrf.mxu0
  %3266 = vmatprep.mubr.f32.mxu0 0.0
  %3267 = vmatmul.mubr.f32.gmra.mxu0 %v2931
  %v3268 = vpop.f32.mrf.mxu0
  %v3269 = vadd.f32 0.0, %v3268
  %v3270 = vpop.f32.mrf.mxu0
  %3271 = vmatprep.mubr.f32.mxu0 0.0
  %3272 = vmatmul.mubr.f32.gmra.mxu0 %v2934
  %v3273 = vpop.f32.mrf.mxu0
  %v3274 = vadd.f32 0.0, %v3273
  %v3275 = vpop.f32.mrf.mxu0
  %3276 = vmatprep.mubr.f32.mxu0 0.0
  %3277 = vmatmul.mubr.f32.gmra.mxu0 %v2937
  %v3278 = vpop.f32.mrf.mxu0
  %v3279 = vadd.f32 0.0, %v3278
  %v3280 = vpop.f32.mrf.mxu0
  %3281 = vmatprep.mubr.f32.mxu0 0.0
  %3282 = vmatmul.mubr.f32.gmra.mxu0 %v2940
  %v3283 = vpop.f32.mrf.mxu0
  %v3284 = vadd.f32 0.0, %v3283
  %v3285 = vpop.f32.mrf.mxu0
  %3286 = vmatprep.mubr.f32.mxu0 0.0
  %3287 = vmatmul.mubr.f32.gmra.mxu0 %v2943
  %v3288 = vpop.f32.mrf.mxu0
  %v3289 = vadd.f32 0.0, %v3288
  %v3290 = vpop.f32.mrf.mxu0
  %3291 = vmatprep.mubr.f32.mxu0 0.0
  %3292 = vmatmul.mubr.f32.gmra.mxu0 %v2946
  %v3293 = vpop.f32.mrf.mxu0
  %v3294 = vadd.f32 0.0, %v3293
  %v3295 = vpop.f32.mrf.mxu0
  %3296 = vmatprep.mubr.f32.mxu0 0.0
  %3297 = vmatmul.mubr.f32.gmra.mxu0 %v2949
  %v3298 = vpop.f32.mrf.mxu0
  %v3299 = vadd.f32 0.0, %v3298
  %v3300 = vpop.f32.mrf.mxu0
  %3301 = vmatprep.mubr.f32.mxu0 0.0
  %3302 = vmatmul.mubr.f32.gmra.mxu0 %v2952
  %v3303 = vpop.f32.mrf.mxu0
  %v3304 = vadd.f32 0.0, %v3303
  %v3305 = vpop.f32.mrf.mxu0
  %3306 = vmatprep.mubr.f32.mxu0 0.0
  %3307 = vmatmul.mubr.f32.gmra.mxu0 %v2955
  %v3308 = vpop.f32.mrf.mxu0
  %v3309 = vadd.f32 0.0, %v3308
  %v3310 = vpop.f32.mrf.mxu0
  %3311 = vmatprep.mubr.f32.mxu0 0.0
  %3312 = vmatmul.mubr.f32.gmra.mxu0 %v2958
  %v3313 = vpop.f32.mrf.mxu0
  %v3314 = vadd.f32 0.0, %v3313
  %v3315 = vpop.f32.mrf.mxu0
  %3316 = vmatprep.mubr.f32.mxu0 0.0
  %3317 = vmatmul.mubr.f32.gmra.mxu0 %v2961
  %v3318 = vpop.f32.mrf.mxu0
  %v3319 = vadd.f32 0.0, %v3318
  %v3320 = vpop.f32.mrf.mxu0
  %3321 = vmatprep.mubr.f32.mxu0 0.0
  %3322 = vmatmul.mubr.f32.gmra.mxu0 %v2964
  %v3323 = vpop.f32.mrf.mxu0
  %v3324 = vadd.f32 0.0, %v3323
  %v3325 = vpop.f32.mrf.mxu0
  %3326 = vmatprep.mubr.f32.mxu0 0.0
  %3327 = vmatmul.mubr.f32.gmra.mxu0 %v2967
  %v3328 = vpop.f32.mrf.mxu0
  %v3329 = vadd.f32 0.0, %v3328
  %v3330 = vpop.f32.mrf.mxu0
  %3331 = vmatprep.mubr.f32.mxu0 0.0
  %3332 = vmatmul.mubr.f32.gmra.mxu0 %v2970
  %v3333 = vpop.f32.mrf.mxu0
  %v3334 = vadd.f32 0.0, %v3333
  %v3335 = vpop.f32.mrf.mxu0
  %3336 = vmatprep.mubr.f32.mxu0 0.0
  %3337 = vmatmul.mubr.f32.gmra.mxu0 %v2973
  %v3338 = vpop.f32.mrf.mxu0
  %v3339 = vadd.f32 0.0, %v3338
  %v3340 = vpop.f32.mrf.mxu0
  %3341 = vmatprep.mubr.f32.mxu0 0.0
  %3342 = vmatmul.mubr.f32.gmra.mxu0 %v2976
  %v3343 = vpop.f32.mrf.mxu0
  %v3344 = vadd.f32 0.0, %v3343
  %v3345 = vpop.f32.mrf.mxu0
  %3346 = vmatprep.mubr.f32.mxu0 0.0
  %3347 = vmatmul.mubr.f32.gmra.mxu0 %v2979
  %v3348 = vpop.f32.mrf.mxu0
  %v3349 = vadd.f32 0.0, %v3348
  %v3350 = vpop.f32.mrf.mxu0
  %3351 = vmatprep.mubr.f32.mxu0 0.0
  %3352 = vmatmul.mubr.f32.gmra.mxu0 %v2982
  %v3353 = vpop.f32.mrf.mxu0
  %v3354 = vadd.f32 0.0, %v3353
  %v3355 = vpop.f32.mrf.mxu0
  %3356 = vmatprep.mubr.f32.mxu0 0.0
  %3357 = vmatmul.mubr.f32.gmra.mxu0 %v2985
  %v3358 = vpop.f32.mrf.mxu0
  %v3359 = vadd.f32 0.0, %v3358
  %v3360 = vpop.f32.mrf.mxu0
  %3361 = vmatprep.mubr.f32.mxu0 0.0
  %3362 = vmatmul.mubr.f32.gmra.mxu0 %v2988
  %v3363 = vpop.f32.mrf.mxu0
  %v3364 = vadd.f32 0.0, %v3363
  %v3365 = vpop.f32.mrf.mxu0
  %3366 = vmatprep.mubr.f32.mxu0 0.0
  %3367 = vmatmul.mubr.f32.gmra.mxu0 %v2991
  %v3368 = vpop.f32.mrf.mxu0
  %v3369 = vadd.f32 0.0, %v3368
  %v3370 = vpop.f32.mrf.mxu0
  %3371 = vmatprep.mubr.f32.mxu0 0.0
  %3372 = vmatmul.mubr.f32.gmra.mxu0 %v2994
  %v3373 = vpop.f32.mrf.mxu0
  %v3374 = vadd.f32 0.0, %v3373
  %v3375 = vpop.f32.mrf.mxu0
  %3376 = vmatprep.mubr.f32.mxu0 0.0
  %3377 = vmatmul.mubr.f32.gmra.mxu0 %v2997
  %v3378 = vpop.f32.mrf.mxu0
  %v3379 = vadd.f32 0.0, %v3378
  %v3380 = vpop.f32.mrf.mxu0
  %3381 = vmatprep.mubr.f32.mxu0 0.0
  %3382 = vmatmul.mubr.f32.gmra.mxu0 %v3000
  %v3383 = vpop.f32.mrf.mxu0
  %v3384 = vadd.f32 0.0, %v3383
  %v3385 = vpop.f32.mrf.mxu0
  %3386 = vmatprep.mubr.f32.mxu0 0.0
  %3387 = vmatmul.mubr.f32.gmra.mxu0 %v3003
  %v3388 = vpop.f32.mrf.mxu0
  %v3389 = vadd.f32 0.0, %v3388
  %v3390 = vpop.f32.mrf.mxu0
  %3391 = vmatprep.mubr.f32.mxu0 0.0
  %3392 = vmatmul.mubr.f32.gmra.mxu0 %v3006
  %v3393 = vpop.f32.mrf.mxu0
  %v3394 = vadd.f32 0.0, %v3393
  %v3395 = vpop.f32.mrf.mxu0
  %3396 = vdwg.mxu0
  %v3397 = vld [vmem:[%s3] sm:$0x1]
  %v3398 = vld [vmem:[%s4] sm:$0x1]
  %v3399 = vsel %vm2301, %v3079, 0.0
  %v3400 = vsel %vm2301, %v3084, 0.0
  %v3401 = vadd.f32 %v3399, %v3400
  %v3402 = vsel %vm2301, %v3089, 0.0
  %v3403 = vadd.f32 %v3401, %v3402
  %v3404 = vsel %vm2301, %v3094, 0.0
  %v3405 = vadd.f32 %v3403, %v3404
  %v3406 = vsel %vm2301, %v3099, 0.0
  %v3407 = vadd.f32 %v3405, %v3406
  %v3408 = vsel %vm2301, %v3104, 0.0
  %v3409 = vadd.f32 %v3407, %v3408
  %v3410 = vsel %vm2301, %v3109, 0.0
  %v3411 = vadd.f32 %v3409, %v3410
  %v3412 = vsel %vm2301, %v3114, 0.0
  %v3413 = vadd.f32 %v3411, %v3412
  %v3414 = vsel %vm2301, %v3119, 0.0
  %v3415 = vadd.f32 %v3413, %v3414
  %v3416 = vsel %vm2301, %v3124, 0.0
  %v3417 = vadd.f32 %v3415, %v3416
  %v3418 = vsel %vm2301, %v3129, 0.0
  %v3419 = vadd.f32 %v3417, %v3418
  %v3420 = vsel %vm2301, %v3134, 0.0
  %v3421 = vadd.f32 %v3419, %v3420
  %v3422 = vsel %vm2301, %v3139, 0.0
  %v3423 = vadd.f32 %v3421, %v3422
  %v3424 = vsel %vm2301, %v3144, 0.0
  %v3425 = vadd.f32 %v3423, %v3424
  %v3426 = vsel %vm2301, %v3149, 0.0
  %v3427 = vadd.f32 %v3425, %v3426
  %v3428 = vsel %vm2301, %v3154, 0.0
  %v3429 = vadd.f32 %v3427, %v3428
  %v3430 = vsel %vm2301, %v3159, 0.0
  %v3431 = vadd.f32 %v3429, %v3430
  %v3432 = vsel %vm2301, %v3164, 0.0
  %v3433 = vadd.f32 %v3431, %v3432
  %v3434 = vsel %vm2301, %v3169, 0.0
  %v3435 = vadd.f32 %v3433, %v3434
  %v3436 = vsel %vm2301, %v3174, 0.0
  %v3437 = vadd.f32 %v3435, %v3436
  %v3438 = vsel %vm2301, %v3179, 0.0
  %v3439 = vadd.f32 %v3437, %v3438
  %v3440 = vsel %vm2301, %v3184, 0.0
  %v3441 = vadd.f32 %v3439, %v3440
  %v3442 = vsel %vm2301, %v3189, 0.0
  %v3443 = vadd.f32 %v3441, %v3442
  %v3444 = vsel %vm2301, %v3194, 0.0
  %v3445 = vadd.f32 %v3443, %v3444
  %v3446 = vsel %vm2301, %v3199, 0.0
  %v3447 = vadd.f32 %v3445, %v3446
  %v3448 = vsel %vm2301, %v3204, 0.0
  %v3449 = vadd.f32 %v3447, %v3448
  %v3450 = vsel %vm2301, %v3209, 0.0
  %v3451 = vadd.f32 %v3449, %v3450
  %v3452 = vsel %vm2301, %v3214, 0.0
  %v3453 = vadd.f32 %v3451, %v3452
  %v3454 = vsel %vm2301, %v3219, 0.0
  %v3455 = vadd.f32 %v3453, %v3454
  %v3456 = vsel %vm2301, %v3224, 0.0
  %v3457 = vadd.f32 %v3455, %v3456
  %v3458 = vsel %vm2301, %v3229, 0.0
  %v3459 = vadd.f32 %v3457, %v3458
  %v3460 = vsel %vm2301, %v3234, 0.0
  %v3461 = vadd.f32 %v3459, %v3460
  %v3462 = vsel %vm2301, %v3239, 0.0
  %v3463 = vadd.f32 %v3461, %v3462
  %v3464 = vsel %vm2301, %v3244, 0.0
  %v3465 = vadd.f32 %v3463, %v3464
  %v3466 = vsel %vm2301, %v3249, 0.0
  %v3467 = vadd.f32 %v3465, %v3466
  %v3468 = vsel %vm2301, %v3254, 0.0
  %v3469 = vadd.f32 %v3467, %v3468
  %v3470 = vsel %vm2301, %v3259, 0.0
  %v3471 = vadd.f32 %v3469, %v3470
  %v3472 = vsel %vm2301, %v3264, 0.0
  %v3473 = vadd.f32 %v3471, %v3472
  %v3474 = vsel %vm2301, %v3269, 0.0
  %v3475 = vadd.f32 %v3473, %v3474
  %v3476 = vsel %vm2301, %v3274, 0.0
  %v3477 = vadd.f32 %v3475, %v3476
  %v3478 = vsel %vm2301, %v3279, 0.0
  %v3479 = vadd.f32 %v3477, %v3478
  %v3480 = vsel %vm2301, %v3284, 0.0
  %v3481 = vadd.f32 %v3479, %v3480
  %v3482 = vsel %vm2301, %v3289, 0.0
  %v3483 = vadd.f32 %v3481, %v3482
  %v3484 = vsel %vm2301, %v3294, 0.0
  %v3485 = vadd.f32 %v3483, %v3484
  %v3486 = vsel %vm2301, %v3299, 0.0
  %v3487 = vadd.f32 %v3485, %v3486
  %v3488 = vsel %vm2301, %v3304, 0.0
  %v3489 = vadd.f32 %v3487, %v3488
  %v3490 = vsel %vm2301, %v3309, 0.0
  %v3491 = vadd.f32 %v3489, %v3490
  %v3492 = vsel %vm2301, %v3314, 0.0
  %v3493 = vadd.f32 %v3491, %v3492
  %v3494 = vsel %vm2301, %v3319, 0.0
  %v3495 = vadd.f32 %v3493, %v3494
  %v3496 = vsel %vm2301, %v3324, 0.0
  %v3497 = vadd.f32 %v3495, %v3496
  %v3498 = vsel %vm2301, %v3329, 0.0
  %v3499 = vadd.f32 %v3497, %v3498
  %v3500 = vsel %vm2301, %v3334, 0.0
  %v3501 = vadd.f32 %v3499, %v3500
  %v3502 = vsel %vm2301, %v3339, 0.0
  %v3503 = vadd.f32 %v3501, %v3502
  %v3504 = vsel %vm2301, %v3344, 0.0
  %v3505 = vadd.f32 %v3503, %v3504
  %v3506 = vsel %vm2301, %v3349, 0.0
  %v3507 = vadd.f32 %v3505, %v3506
  %v3508 = vsel %vm2301, %v3354, 0.0
  %v3509 = vadd.f32 %v3507, %v3508
  %v3510 = vsel %vm2301, %v3359, 0.0
  %v3511 = vadd.f32 %v3509, %v3510
  %v3512 = vsel %vm2301, %v3364, 0.0
  %v3513 = vadd.f32 %v3511, %v3512
  %v3514 = vsel %vm2301, %v3369, 0.0
  %v3515 = vadd.f32 %v3513, %v3514
  %v3516 = vsel %vm2301, %v3374, 0.0
  %v3517 = vadd.f32 %v3515, %v3516
  %v3518 = vsel %vm2301, %v3379, 0.0
  %v3519 = vadd.f32 %v3517, %v3518
  %v3520 = vsel %vm2301, %v3384, 0.0
  %v3521 = vadd.f32 %v3519, %v3520
  %v3522 = vsel %vm2301, %v3389, 0.0
  %v3523 = vadd.f32 %v3521, %v3522
  %v3524 = vsel %vm2301, %v3394, 0.0
  %v3525 = vadd.f32 %v3523, %v3524
  %v3526 = vrot.slane %v3525, 4
  %v3527 = vadd.f32 %v3525, %v3526
  %v3528 = vrot.slane %v3527, 2
  %v3529 = vadd.f32 %v3527, %v3528
  %v3530 = vrot.slane %v3529, 1
  %v3531 = vadd.f32 %v3529, %v3530
  %v3532 = vmul.f32 %v3079, %v3079
  %v3533 = vmul.f32 %v3084, %v3084
  %v3534 = vmul.f32 %v3089, %v3089
  %v3535 = vmul.f32 %v3094, %v3094
  %v3536 = vmul.f32 %v3099, %v3099
  %v3537 = vmul.f32 %v3104, %v3104
  %v3538 = vmul.f32 %v3109, %v3109
  %v3539 = vmul.f32 %v3114, %v3114
  %v3540 = vmul.f32 %v3119, %v3119
  %v3541 = vmul.f32 %v3124, %v3124
  %v3542 = vmul.f32 %v3129, %v3129
  %v3543 = vmul.f32 %v3134, %v3134
  %v3544 = vmul.f32 %v3139, %v3139
  %v3545 = vmul.f32 %v3144, %v3144
  %v3546 = vmul.f32 %v3149, %v3149
  %v3547 = vmul.f32 %v3154, %v3154
  %v3548 = vmul.f32 %v3159, %v3159
  %v3549 = vmul.f32 %v3164, %v3164
  %v3550 = vmul.f32 %v3169, %v3169
  %v3551 = vmul.f32 %v3174, %v3174
  %v3552 = vmul.f32 %v3179, %v3179
  %v3553 = vmul.f32 %v3184, %v3184
  %v3554 = vmul.f32 %v3189, %v3189
  %v3555 = vmul.f32 %v3194, %v3194
  %v3556 = vmul.f32 %v3199, %v3199
  %v3557 = vmul.f32 %v3204, %v3204
  %v3558 = vmul.f32 %v3209, %v3209
  %v3559 = vmul.f32 %v3214, %v3214
  %v3560 = vmul.f32 %v3219, %v3219
  %v3561 = vmul.f32 %v3224, %v3224
  %v3562 = vmul.f32 %v3229, %v3229
  %v3563 = vmul.f32 %v3234, %v3234
  %v3564 = vmul.f32 %v3239, %v3239
  %v3565 = vmul.f32 %v3244, %v3244
  %v3566 = vmul.f32 %v3249, %v3249
  %v3567 = vmul.f32 %v3254, %v3254
  %v3568 = vmul.f32 %v3259, %v3259
  %v3569 = vmul.f32 %v3264, %v3264
  %v3570 = vmul.f32 %v3269, %v3269
  %v3571 = vmul.f32 %v3274, %v3274
  %v3572 = vmul.f32 %v3279, %v3279
  %v3573 = vmul.f32 %v3284, %v3284
  %v3574 = vmul.f32 %v3289, %v3289
  %v3575 = vmul.f32 %v3294, %v3294
  %v3576 = vmul.f32 %v3299, %v3299
  %v3577 = vmul.f32 %v3304, %v3304
  %v3578 = vmul.f32 %v3309, %v3309
  %v3579 = vmul.f32 %v3314, %v3314
  %v3580 = vmul.f32 %v3319, %v3319
  %v3581 = vmul.f32 %v3324, %v3324
  %v3582 = vmul.f32 %v3329, %v3329
  %v3583 = vmul.f32 %v3334, %v3334
  %v3584 = vmul.f32 %v3339, %v3339
  %v3585 = vmul.f32 %v3344, %v3344
  %v3586 = vmul.f32 %v3349, %v3349
  %v3587 = vmul.f32 %v3354, %v3354
  %v3588 = vmul.f32 %v3359, %v3359
  %v3589 = vmul.f32 %v3364, %v3364
  %v3590 = vmul.f32 %v3369, %v3369
  %v3591 = vmul.f32 %v3374, %v3374
  %v3592 = vmul.f32 %v3379, %v3379
  %v3593 = vmul.f32 %v3384, %v3384
  %v3594 = vmul.f32 %v3389, %v3389
  %v3595 = vmul.f32 %v3394, %v3394
  %v3596 = vsel %vm2301, %v3532, 0.0
  %v3597 = vsel %vm2301, %v3533, 0.0
  %v3598 = vadd.f32 %v3596, %v3597
  %v3599 = vsel %vm2301, %v3534, 0.0
  %v3600 = vadd.f32 %v3598, %v3599
  %v3601 = vsel %vm2301, %v3535, 0.0
  %v3602 = vadd.f32 %v3600, %v3601
  %v3603 = vsel %vm2301, %v3536, 0.0
  %v3604 = vadd.f32 %v3602, %v3603
  %v3605 = vsel %vm2301, %v3537, 0.0
  %v3606 = vadd.f32 %v3604, %v3605
  %v3607 = vsel %vm2301, %v3538, 0.0
  %v3608 = vadd.f32 %v3606, %v3607
  %v3609 = vsel %vm2301, %v3539, 0.0
  %v3610 = vadd.f32 %v3608, %v3609
  %v3611 = vsel %vm2301, %v3540, 0.0
  %v3612 = vadd.f32 %v3610, %v3611
  %v3613 = vsel %vm2301, %v3541, 0.0
  %v3614 = vadd.f32 %v3612, %v3613
  %v3615 = vsel %vm2301, %v3542, 0.0
  %v3616 = vadd.f32 %v3614, %v3615
  %v3617 = vsel %vm2301, %v3543, 0.0
  %v3618 = vadd.f32 %v3616, %v3617
  %v3619 = vsel %vm2301, %v3544, 0.0
  %v3620 = vadd.f32 %v3618, %v3619
  %v3621 = vsel %vm2301, %v3545, 0.0
  %v3622 = vadd.f32 %v3620, %v3621
  %v3623 = vsel %vm2301, %v3546, 0.0
  %v3624 = vadd.f32 %v3622, %v3623
  %v3625 = vsel %vm2301, %v3547, 0.0
  %v3626 = vadd.f32 %v3624, %v3625
  %v3627 = vsel %vm2301, %v3548, 0.0
  %v3628 = vadd.f32 %v3626, %v3627
  %v3629 = vsel %vm2301, %v3549, 0.0
  %v3630 = vadd.f32 %v3628, %v3629
  %v3631 = vsel %vm2301, %v3550, 0.0
  %v3632 = vadd.f32 %v3630, %v3631
  %v3633 = vsel %vm2301, %v3551, 0.0
  %v3634 = vadd.f32 %v3632, %v3633
  %v3635 = vsel %vm2301, %v3552, 0.0
  %v3636 = vadd.f32 %v3634, %v3635
  %v3637 = vsel %vm2301, %v3553, 0.0
  %v3638 = vadd.f32 %v3636, %v3637
  %v3639 = vsel %vm2301, %v3554, 0.0
  %v3640 = vadd.f32 %v3638, %v3639
  %v3641 = vsel %vm2301, %v3555, 0.0
  %v3642 = vadd.f32 %v3640, %v3641
  %v3643 = vsel %vm2301, %v3556, 0.0
  %v3644 = vadd.f32 %v3642, %v3643
  %v3645 = vsel %vm2301, %v3557, 0.0
  %v3646 = vadd.f32 %v3644, %v3645
  %v3647 = vsel %vm2301, %v3558, 0.0
  %v3648 = vadd.f32 %v3646, %v3647
  %v3649 = vsel %vm2301, %v3559, 0.0
  %v3650 = vadd.f32 %v3648, %v3649
  %v3651 = vsel %vm2301, %v3560, 0.0
  %v3652 = vadd.f32 %v3650, %v3651
  %v3653 = vsel %vm2301, %v3561, 0.0
  %v3654 = vadd.f32 %v3652, %v3653
  %v3655 = vsel %vm2301, %v3562, 0.0
  %v3656 = vadd.f32 %v3654, %v3655
  %v3657 = vsel %vm2301, %v3563, 0.0
  %v3658 = vadd.f32 %v3656, %v3657
  %v3659 = vsel %vm2301, %v3564, 0.0
  %v3660 = vadd.f32 %v3658, %v3659
  %v3661 = vsel %vm2301, %v3565, 0.0
  %v3662 = vadd.f32 %v3660, %v3661
  %v3663 = vsel %vm2301, %v3566, 0.0
  %v3664 = vadd.f32 %v3662, %v3663
  %v3665 = vsel %vm2301, %v3567, 0.0
  %v3666 = vadd.f32 %v3664, %v3665
  %v3667 = vsel %vm2301, %v3568, 0.0
  %v3668 = vadd.f32 %v3666, %v3667
  %v3669 = vsel %vm2301, %v3569, 0.0
  %v3670 = vadd.f32 %v3668, %v3669
  %v3671 = vsel %vm2301, %v3570, 0.0
  %v3672 = vadd.f32 %v3670, %v3671
  %v3673 = vsel %vm2301, %v3571, 0.0
  %v3674 = vadd.f32 %v3672, %v3673
  %v3675 = vsel %vm2301, %v3572, 0.0
  %v3676 = vadd.f32 %v3674, %v3675
  %v3677 = vsel %vm2301, %v3573, 0.0
  %v3678 = vadd.f32 %v3676, %v3677
  %v3679 = vsel %vm2301, %v3574, 0.0
  %v3680 = vadd.f32 %v3678, %v3679
  %v3681 = vsel %vm2301, %v3575, 0.0
  %v3682 = vadd.f32 %v3680, %v3681
  %v3683 = vsel %vm2301, %v3576, 0.0
  %v3684 = vadd.f32 %v3682, %v3683
  %v3685 = vsel %vm2301, %v3577, 0.0
  %v3686 = vadd.f32 %v3684, %v3685
  %v3687 = vsel %vm2301, %v3578, 0.0
  %v3688 = vadd.f32 %v3686, %v3687
  %v3689 = vsel %vm2301, %v3579, 0.0
  %v3690 = vadd.f32 %v3688, %v3689
  %v3691 = vsel %vm2301, %v3580, 0.0
  %v3692 = vadd.f32 %v3690, %v3691
  %v3693 = vsel %vm2301, %v3581, 0.0
  %v3694 = vadd.f32 %v3692, %v3693
  %v3695 = vsel %vm2301, %v3582, 0.0
  %v3696 = vadd.f32 %v3694, %v3695
  %v3697 = vsel %vm2301, %v3583, 0.0
  %v3698 = vadd.f32 %v3696, %v3697
  %v3699 = vsel %vm2301, %v3584, 0.0
  %v3700 = vadd.f32 %v3698, %v3699
  %v3701 = vsel %vm2301, %v3585, 0.0
  %v3702 = vadd.f32 %v3700, %v3701
  %v3703 = vsel %vm2301, %v3586, 0.0
  %v3704 = vadd.f32 %v3702, %v3703
  %v3705 = vsel %vm2301, %v3587, 0.0
  %v3706 = vadd.f32 %v3704, %v3705
  %v3707 = vsel %vm2301, %v3588, 0.0
  %v3708 = vadd.f32 %v3706, %v3707
  %v3709 = vsel %vm2301, %v3589, 0.0
  %v3710 = vadd.f32 %v3708, %v3709
  %v3711 = vsel %vm2301, %v3590, 0.0
  %v3712 = vadd.f32 %v3710, %v3711
  %v3713 = vsel %vm2301, %v3591, 0.0
  %v3714 = vadd.f32 %v3712, %v3713
  %v3715 = vsel %vm2301, %v3592, 0.0
  %v3716 = vadd.f32 %v3714, %v3715
  %v3717 = vsel %vm2301, %v3593, 0.0
  %v3718 = vadd.f32 %v3716, %v3717
  %v3719 = vsel %vm2301, %v3594, 0.0
  %v3720 = vadd.f32 %v3718, %v3719
  %v3721 = vsel %vm2301, %v3595, 0.0
  %v3722 = vadd.f32 %v3720, %v3721
  %v3723 = vrot.slane %v3722, 4
  %v3724 = vadd.f32 %v3722, %v3723
  %v3725 = vrot.slane %v3724, 2
  %v3726 = vadd.f32 %v3724, %v3725
  %v3727 = vrot.slane %v3726, 1
  %v3728 = vadd.f32 %v3726, %v3727
  %v3729 = vmul.f32 %v3531, 0.001953125
  %v3730 = vmul.f32 %v3728, 0.001953125
  %v3731 = vmul.f32 %v3729, %v3729
  %v3732 = vsub.f32 %v3730, %v3731
  %v3733 = vmax.f32 %v3732, 0.0
  %v3734 = vadd.f32 %v3733, 1e-05
  %v3735 = vrsqrt.pop %v3734
  %v3736 = vmul.f32 %v3397, %v3735
  %v3737 = vmul.f32 %v3729, %v3736
  %v3738 = vsub.f32 %v3398, %v3737
  %v3740 = vlaneseq
  %v3741 = vshrl.u32 %v3740, 7
  %v3742 = vsub.s32 0, %v3741
  %v3743 = vrot.slane %v3736, %v3742
  %v3745 = vmul.f32 %v3079, %v3743
  %v3746 = vmul.f32 %v3084, %v3743
  %v3747 = vmul.f32 %v3089, %v3743
  %v3748 = vmul.f32 %v3094, %v3743
  %v3749 = vmul.f32 %v3099, %v3743
  %v3750 = vmul.f32 %v3104, %v3743
  %v3751 = vmul.f32 %v3109, %v3743
  %v3752 = vmul.f32 %v3114, %v3743
  %v3753 = vmul.f32 %v3119, %v3743
  %v3754 = vmul.f32 %v3124, %v3743
  %v3755 = vmul.f32 %v3129, %v3743
  %v3756 = vmul.f32 %v3134, %v3743
  %v3757 = vmul.f32 %v3139, %v3743
  %v3758 = vmul.f32 %v3144, %v3743
  %v3759 = vmul.f32 %v3149, %v3743
  %v3760 = vmul.f32 %v3154, %v3743
  %v3761 = vmul.f32 %v3159, %v3743
  %v3762 = vmul.f32 %v3164, %v3743
  %v3763 = vmul.f32 %v3169, %v3743
  %v3764 = vmul.f32 %v3174, %v3743
  %v3765 = vmul.f32 %v3179, %v3743
  %v3766 = vmul.f32 %v3184, %v3743
  %v3767 = vmul.f32 %v3189, %v3743
  %v3768 = vmul.f32 %v3194, %v3743
  %v3769 = vmul.f32 %v3199, %v3743
  %v3770 = vmul.f32 %v3204, %v3743
  %v3771 = vmul.f32 %v3209, %v3743
  %v3772 = vmul.f32 %v3214, %v3743
  %v3773 = vmul.f32 %v3219, %v3743
  %v3774 = vmul.f32 %v3224, %v3743
  %v3775 = vmul.f32 %v3229, %v3743
  %v3776 = vmul.f32 %v3234, %v3743
  %v3777 = vmul.f32 %v3239, %v3743
  %v3778 = vmul.f32 %v3244, %v3743
  %v3779 = vmul.f32 %v3249, %v3743
  %v3780 = vmul.f32 %v3254, %v3743
  %v3781 = vmul.f32 %v3259, %v3743
  %v3782 = vmul.f32 %v3264, %v3743
  %v3783 = vmul.f32 %v3269, %v3743
  %v3784 = vmul.f32 %v3274, %v3743
  %v3785 = vmul.f32 %v3279, %v3743
  %v3786 = vmul.f32 %v3284, %v3743
  %v3787 = vmul.f32 %v3289, %v3743
  %v3788 = vmul.f32 %v3294, %v3743
  %v3789 = vmul.f32 %v3299, %v3743
  %v3790 = vmul.f32 %v3304, %v3743
  %v3791 = vmul.f32 %v3309, %v3743
  %v3792 = vmul.f32 %v3314, %v3743
  %v3793 = vmul.f32 %v3319, %v3743
  %v3794 = vmul.f32 %v3324, %v3743
  %v3795 = vmul.f32 %v3329, %v3743
  %v3796 = vmul.f32 %v3334, %v3743
  %v3797 = vmul.f32 %v3339, %v3743
  %v3798 = vmul.f32 %v3344, %v3743
  %v3799 = vmul.f32 %v3349, %v3743
  %v3800 = vmul.f32 %v3354, %v3743
  %v3801 = vmul.f32 %v3359, %v3743
  %v3802 = vmul.f32 %v3364, %v3743
  %v3803 = vmul.f32 %v3369, %v3743
  %v3804 = vmul.f32 %v3374, %v3743
  %v3805 = vmul.f32 %v3379, %v3743
  %v3806 = vmul.f32 %v3384, %v3743
  %v3807 = vmul.f32 %v3389, %v3743
  %v3808 = vmul.f32 %v3394, %v3743
  %v3810 = vlaneseq
  %v3811 = vshrl.u32 %v3810, 7
  %v3812 = vsub.s32 0, %v3811
  %v3813 = vrot.slane %v3738, %v3812
  %v3815 = vadd.f32 %v3745, %v3813
  %v3816 = vadd.f32 %v3746, %v3813
  %v3817 = vadd.f32 %v3747, %v3813
  %v3818 = vadd.f32 %v3748, %v3813
  %v3819 = vadd.f32 %v3749, %v3813
  %v3820 = vadd.f32 %v3750, %v3813
  %v3821 = vadd.f32 %v3751, %v3813
  %v3822 = vadd.f32 %v3752, %v3813
  %v3823 = vadd.f32 %v3753, %v3813
  %v3824 = vadd.f32 %v3754, %v3813
  %v3825 = vadd.f32 %v3755, %v3813
  %v3826 = vadd.f32 %v3756, %v3813
  %v3827 = vadd.f32 %v3757, %v3813
  %v3828 = vadd.f32 %v3758, %v3813
  %v3829 = vadd.f32 %v3759, %v3813
  %v3830 = vadd.f32 %v3760, %v3813
  %v3831 = vadd.f32 %v3761, %v3813
  %v3832 = vadd.f32 %v3762, %v3813
  %v3833 = vadd.f32 %v3763, %v3813
  %v3834 = vadd.f32 %v3764, %v3813
  %v3835 = vadd.f32 %v3765, %v3813
  %v3836 = vadd.f32 %v3766, %v3813
  %v3837 = vadd.f32 %v3767, %v3813
  %v3838 = vadd.f32 %v3768, %v3813
  %v3839 = vadd.f32 %v3769, %v3813
  %v3840 = vadd.f32 %v3770, %v3813
  %v3841 = vadd.f32 %v3771, %v3813
  %v3842 = vadd.f32 %v3772, %v3813
  %v3843 = vadd.f32 %v3773, %v3813
  %v3844 = vadd.f32 %v3774, %v3813
  %v3845 = vadd.f32 %v3775, %v3813
  %v3846 = vadd.f32 %v3776, %v3813
  %v3847 = vadd.f32 %v3777, %v3813
  %v3848 = vadd.f32 %v3778, %v3813
  %v3849 = vadd.f32 %v3779, %v3813
  %v3850 = vadd.f32 %v3780, %v3813
  %v3851 = vadd.f32 %v3781, %v3813
  %v3852 = vadd.f32 %v3782, %v3813
  %v3853 = vadd.f32 %v3783, %v3813
  %v3854 = vadd.f32 %v3784, %v3813
  %v3855 = vadd.f32 %v3785, %v3813
  %v3856 = vadd.f32 %v3786, %v3813
  %v3857 = vadd.f32 %v3787, %v3813
  %v3858 = vadd.f32 %v3788, %v3813
  %v3859 = vadd.f32 %v3789, %v3813
  %v3860 = vadd.f32 %v3790, %v3813
  %v3861 = vadd.f32 %v3791, %v3813
  %v3862 = vadd.f32 %v3792, %v3813
  %v3863 = vadd.f32 %v3793, %v3813
  %v3864 = vadd.f32 %v3794, %v3813
  %v3865 = vadd.f32 %v3795, %v3813
  %v3866 = vadd.f32 %v3796, %v3813
  %v3867 = vadd.f32 %v3797, %v3813
  %v3868 = vadd.f32 %v3798, %v3813
  %v3869 = vadd.f32 %v3799, %v3813
  %v3870 = vadd.f32 %v3800, %v3813
  %v3871 = vadd.f32 %v3801, %v3813
  %v3872 = vadd.f32 %v3802, %v3813
  %v3873 = vadd.f32 %v3803, %v3813
  %v3874 = vadd.f32 %v3804, %v3813
  %v3875 = vadd.f32 %v3805, %v3813
  %v3876 = vadd.f32 %v3806, %v3813
  %v3877 = vadd.f32 %v3807, %v3813
  %v3878 = vadd.f32 %v3808, %v3813
  %v3879 = vmax.f32 %v3815, 0.0
  %v3880 = vmax.f32 %v3816, 0.0
  %v3881 = vmax.f32 %v3817, 0.0
  %v3882 = vmax.f32 %v3818, 0.0
  %v3883 = vmax.f32 %v3819, 0.0
  %v3884 = vmax.f32 %v3820, 0.0
  %v3885 = vmax.f32 %v3821, 0.0
  %v3886 = vmax.f32 %v3822, 0.0
  %v3887 = vmax.f32 %v3823, 0.0
  %v3888 = vmax.f32 %v3824, 0.0
  %v3889 = vmax.f32 %v3825, 0.0
  %v3890 = vmax.f32 %v3826, 0.0
  %v3891 = vmax.f32 %v3827, 0.0
  %v3892 = vmax.f32 %v3828, 0.0
  %v3893 = vmax.f32 %v3829, 0.0
  %v3894 = vmax.f32 %v3830, 0.0
  %v3895 = vmax.f32 %v3831, 0.0
  %v3896 = vmax.f32 %v3832, 0.0
  %v3897 = vmax.f32 %v3833, 0.0
  %v3898 = vmax.f32 %v3834, 0.0
  %v3899 = vmax.f32 %v3835, 0.0
  %v3900 = vmax.f32 %v3836, 0.0
  %v3901 = vmax.f32 %v3837, 0.0
  %v3902 = vmax.f32 %v3838, 0.0
  %v3903 = vmax.f32 %v3839, 0.0
  %v3904 = vmax.f32 %v3840, 0.0
  %v3905 = vmax.f32 %v3841, 0.0
  %v3906 = vmax.f32 %v3842, 0.0
  %v3907 = vmax.f32 %v3843, 0.0
  %v3908 = vmax.f32 %v3844, 0.0
  %v3909 = vmax.f32 %v3845, 0.0
  %v3910 = vmax.f32 %v3846, 0.0
  %v3911 = vmax.f32 %v3847, 0.0
  %v3912 = vmax.f32 %v3848, 0.0
  %v3913 = vmax.f32 %v3849, 0.0
  %v3914 = vmax.f32 %v3850, 0.0
  %v3915 = vmax.f32 %v3851, 0.0
  %v3916 = vmax.f32 %v3852, 0.0
  %v3917 = vmax.f32 %v3853, 0.0
  %v3918 = vmax.f32 %v3854, 0.0
  %v3919 = vmax.f32 %v3855, 0.0
  %v3920 = vmax.f32 %v3856, 0.0
  %v3921 = vmax.f32 %v3857, 0.0
  %v3922 = vmax.f32 %v3858, 0.0
  %v3923 = vmax.f32 %v3859, 0.0
  %v3924 = vmax.f32 %v3860, 0.0
  %v3925 = vmax.f32 %v3861, 0.0
  %v3926 = vmax.f32 %v3862, 0.0
  %v3927 = vmax.f32 %v3863, 0.0
  %v3928 = vmax.f32 %v3864, 0.0
  %v3929 = vmax.f32 %v3865, 0.0
  %v3930 = vmax.f32 %v3866, 0.0
  %v3931 = vmax.f32 %v3867, 0.0
  %v3932 = vmax.f32 %v3868, 0.0
  %v3933 = vmax.f32 %v3869, 0.0
  %v3934 = vmax.f32 %v3870, 0.0
  %v3935 = vmax.f32 %v3871, 0.0
  %v3936 = vmax.f32 %v3872, 0.0
  %v3937 = vmax.f32 %v3873, 0.0
  %v3938 = vmax.f32 %v3874, 0.0
  %v3939 = vmax.f32 %v3875, 0.0
  %v3940 = vmax.f32 %v3876, 0.0
  %v3941 = vmax.f32 %v3877, 0.0
  %v3942 = vmax.f32 %v3878, 0.0
  %v3943 = vlaneseq
  %v3944 = vshrl.u32 %v3943, 7
  %v3945 = vadd.s32 %v3944, 8
  %v3946 = vadd.s32 %v3944, 16
  %v3947 = vadd.s32 %v3944, 24
  %v3948 = vadd.s32 %v3944, 32
  %v3949 = vadd.s32 %v3944, 40
  %v3950 = vadd.s32 %v3944, 48
  %v3951 = vadd.s32 %v3944, 56
  %v3952 = vadd.s32 %v3944, 64
  %v3953 = vadd.s32 %v3944, 72
  %v3954 = vadd.s32 %v3944, 80
  %v3955 = vadd.s32 %v3944, 88
  %v3956 = vadd.s32 %v3944, 96
  %v3957 = vadd.s32 %v3944, 104
  %v3958 = vadd.s32 %v3944, 112
  %v3959 = vadd.s32 %v3944, 120
  %v3960 = vadd.s32 %v3944, 128
  %v3961 = vadd.s32 %v3944, 136
  %v3962 = vadd.s32 %v3944, 144
  %v3963 = vadd.s32 %v3944, 152
  %v3964 = vadd.s32 %v3944, 160
  %v3965 = vadd.s32 %v3944, 168
  %v3966 = vadd.s32 %v3944, 176
  %v3967 = vadd.s32 %v3944, 184
  %v3968 = vadd.s32 %v3944, 192
  %v3969 = vadd.s32 %v3944, 200
  %v3970 = vadd.s32 %v3944, 208
  %v3971 = vadd.s32 %v3944, 216
  %v3972 = vadd.s32 %v3944, 224
  %v3973 = vadd.s32 %v3944, 232
  %v3974 = vadd.s32 %v3944, 240
  %v3975 = vadd.s32 %v3944, 248
  %v3976 = vadd.s32 %v3944, 256
  %v3977 = vadd.s32 %v3944, 264
  %v3978 = vadd.s32 %v3944, 272
  %v3979 = vadd.s32 %v3944, 280
  %v3980 = vadd.s32 %v3944, 288
  %v3981 = vadd.s32 %v3944, 296
  %v3982 = vadd.s32 %v3944, 304
  %v3983 = vadd.s32 %v3944, 312
  %v3984 = vadd.s32 %v3944, 320
  %v3985 = vadd.s32 %v3944, 328
  %v3986 = vadd.s32 %v3944, 336
  %v3987 = vadd.s32 %v3944, 344
  %v3988 = vadd.s32 %v3944, 352
  %v3989 = vadd.s32 %v3944, 360
  %v3990 = vadd.s32 %v3944, 368
  %v3991 = vadd.s32 %v3944, 376
  %v3992 = vadd.s32 %v3944, 384
  %v3993 = vadd.s32 %v3944, 392
  %v3994 = vadd.s32 %v3944, 400
  %v3995 = vadd.s32 %v3944, 408
  %v3996 = vadd.s32 %v3944, 416
  %v3997 = vadd.s32 %v3944, 424
  %v3998 = vadd.s32 %v3944, 432
  %v3999 = vadd.s32 %v3944, 440
  %v4000 = vadd.s32 %v3944, 448
  %v4001 = vadd.s32 %v3944, 456
  %v4002 = vadd.s32 %v3944, 464
  %v4003 = vadd.s32 %v3944, 472
  %v4004 = vadd.s32 %v3944, 480
  %v4005 = vadd.s32 %v3944, 488
  %v4006 = vadd.s32 %v3944, 496
  %v4007 = vadd.s32 %v3944, 504
  %v4008 = vmul.u32 %v3944, 4
  %v4009 = vmul.u32 %v3945, 4
  %v4010 = vmul.u32 %v3946, 4
  %v4011 = vmul.u32 %v3947, 4
  %v4012 = vmul.u32 %v3948, 4
  %v4013 = vmul.u32 %v3949, 4
  %v4014 = vmul.u32 %v3950, 4
  %v4015 = vmul.u32 %v3951, 4
  %v4016 = vmul.u32 %v3952, 4
  %v4017 = vmul.u32 %v3953, 4
  %v4018 = vmul.u32 %v3954, 4
  %v4019 = vmul.u32 %v3955, 4
  %v4020 = vmul.u32 %v3956, 4
  %v4021 = vmul.u32 %v3957, 4
  %v4022 = vmul.u32 %v3958, 4
  %v4023 = vmul.u32 %v3959, 4
  %v4024 = vmul.u32 %v3960, 4
  %v4025 = vmul.u32 %v3961, 4
  %v4026 = vmul.u32 %v3962, 4
  %v4027 = vmul.u32 %v3963, 4
  %v4028 = vmul.u32 %v3964, 4
  %v4029 = vmul.u32 %v3965, 4
  %v4030 = vmul.u32 %v3966, 4
  %v4031 = vmul.u32 %v3967, 4
  %v4032 = vmul.u32 %v3968, 4
  %v4033 = vmul.u32 %v3969, 4
  %v4034 = vmul.u32 %v3970, 4
  %v4035 = vmul.u32 %v3971, 4
  %v4036 = vmul.u32 %v3972, 4
  %v4037 = vmul.u32 %v3973, 4
  %v4038 = vmul.u32 %v3974, 4
  %v4039 = vmul.u32 %v3975, 4
  %v4040 = vmul.u32 %v3976, 4
  %v4041 = vmul.u32 %v3977, 4
  %v4042 = vmul.u32 %v3978, 4
  %v4043 = vmul.u32 %v3979, 4
  %v4044 = vmul.u32 %v3980, 4
  %v4045 = vmul.u32 %v3981, 4
  %v4046 = vmul.u32 %v3982, 4
  %v4047 = vmul.u32 %v3983, 4
  %v4048 = vmul.u32 %v3984, 4
  %v4049 = vmul.u32 %v3985, 4
  %v4050 = vmul.u32 %v3986, 4
  %v4051 = vmul.u32 %v3987, 4
  %v4052 = vmul.u32 %v3988, 4
  %v4053 = vmul.u32 %v3989, 4
  %v4054 = vmul.u32 %v3990, 4
  %v4055 = vmul.u32 %v3991, 4
  %v4056 = vmul.u32 %v3992, 4
  %v4057 = vmul.u32 %v3993, 4
  %v4058 = vmul.u32 %v3994, 4
  %v4059 = vmul.u32 %v3995, 4
  %v4060 = vmul.u32 %v3996, 4
  %v4061 = vmul.u32 %v3997, 4
  %v4062 = vmul.u32 %v3998, 4
  %v4063 = vmul.u32 %v3999, 4
  %v4064 = vmul.u32 %v4000, 4
  %v4065 = vmul.u32 %v4001, 4
  %v4066 = vmul.u32 %v4002, 4
  %v4067 = vmul.u32 %v4003, 4
  %v4068 = vmul.u32 %v4004, 4
  %v4069 = vmul.u32 %v4005, 4
  %v4070 = vmul.u32 %v4006, 4
  %v4071 = vmul.u32 %v4007, 4
  %v4072 = vlaneseq
  %v4073 = vand.u32 %v4072, 127
  %v4074 = vadd.s32 %v4008, %v4073
  %v4075 = vadd.s32 %v4009, %v4073
  %v4076 = vadd.s32 %v4010, %v4073
  %v4077 = vadd.s32 %v4011, %v4073
  %v4078 = vadd.s32 %v4012, %v4073
  %v4079 = vadd.s32 %v4013, %v4073
  %v4080 = vadd.s32 %v4014, %v4073
  %v4081 = vadd.s32 %v4015, %v4073
  %v4082 = vadd.s32 %v4016, %v4073
  %v4083 = vadd.s32 %v4017, %v4073
  %v4084 = vadd.s32 %v4018, %v4073
  %v4085 = vadd.s32 %v4019, %v4073
  %v4086 = vadd.s32 %v4020, %v4073
  %v4087 = vadd.s32 %v4021, %v4073
  %v4088 = vadd.s32 %v4022, %v4073
  %v4089 = vadd.s32 %v4023, %v4073
  %v4090 = vadd.s32 %v4024, %v4073
  %v4091 = vadd.s32 %v4025, %v4073
  %v4092 = vadd.s32 %v4026, %v4073
  %v4093 = vadd.s32 %v4027, %v4073
  %v4094 = vadd.s32 %v4028, %v4073
  %v4095 = vadd.s32 %v4029, %v4073
  %v4096 = vadd.s32 %v4030, %v4073
  %v4097 = vadd.s32 %v4031, %v4073
  %v4098 = vadd.s32 %v4032, %v4073
  %v4099 = vadd.s32 %v4033, %v4073
  %v4100 = vadd.s32 %v4034, %v4073
  %v4101 = vadd.s32 %v4035, %v4073
  %v4102 = vadd.s32 %v4036, %v4073
  %v4103 = vadd.s32 %v4037, %v4073
  %v4104 = vadd.s32 %v4038, %v4073
  %v4105 = vadd.s32 %v4039, %v4073
  %v4106 = vadd.s32 %v4040, %v4073
  %v4107 = vadd.s32 %v4041, %v4073
  %v4108 = vadd.s32 %v4042, %v4073
  %v4109 = vadd.s32 %v4043, %v4073
  %v4110 = vadd.s32 %v4044, %v4073
  %v4111 = vadd.s32 %v4045, %v4073
  %v4112 = vadd.s32 %v4046, %v4073
  %v4113 = vadd.s32 %v4047, %v4073
  %v4114 = vadd.s32 %v4048, %v4073
  %v4115 = vadd.s32 %v4049, %v4073
  %v4116 = vadd.s32 %v4050, %v4073
  %v4117 = vadd.s32 %v4051, %v4073
  %v4118 = vadd.s32 %v4052, %v4073
  %v4119 = vadd.s32 %v4053, %v4073
  %v4120 = vadd.s32 %v4054, %v4073
  %v4121 = vadd.s32 %v4055, %v4073
  %v4122 = vadd.s32 %v4056, %v4073
  %v4123 = vadd.s32 %v4057, %v4073
  %v4124 = vadd.s32 %v4058, %v4073
  %v4125 = vadd.s32 %v4059, %v4073
  %v4126 = vadd.s32 %v4060, %v4073
  %v4127 = vadd.s32 %v4061, %v4073
  %v4128 = vadd.s32 %v4062, %v4073
  %v4129 = vadd.s32 %v4063, %v4073
  %v4130 = vadd.s32 %v4064, %v4073
  %v4131 = vadd.s32 %v4065, %v4073
  %v4132 = vadd.s32 %v4066, %v4073
  %v4133 = vadd.s32 %v4067, %v4073
  %v4134 = vadd.s32 %v4068, %v4073
  %v4135 = vadd.s32 %v4069, %v4073
  %v4136 = vadd.s32 %v4070, %v4073
  %v4137 = vadd.s32 %v4071, %v4073
  %s4138 = smul.u32 %s30, 2654435769
  %v4139 = vstv %s4138
  %v4140 = vadd.s32 %v4074, %v4139
  %v4141 = vadd.s32 %v4075, %v4139
  %v4142 = vadd.s32 %v4076, %v4139
  %v4143 = vadd.s32 %v4077, %v4139
  %v4144 = vadd.s32 %v4078, %v4139
  %v4145 = vadd.s32 %v4079, %v4139
  %v4146 = vadd.s32 %v4080, %v4139
  %v4147 = vadd.s32 %v4081, %v4139
  %v4148 = vadd.s32 %v4082, %v4139
  %v4149 = vadd.s32 %v4083, %v4139
  %v4150 = vadd.s32 %v4084, %v4139
  %v4151 = vadd.s32 %v4085, %v4139
  %v4152 = vadd.s32 %v4086, %v4139
  %v4153 = vadd.s32 %v4087, %v4139
  %v4154 = vadd.s32 %v4088, %v4139
  %v4155 = vadd.s32 %v4089, %v4139
  %v4156 = vadd.s32 %v4090, %v4139
  %v4157 = vadd.s32 %v4091, %v4139
  %v4158 = vadd.s32 %v4092, %v4139
  %v4159 = vadd.s32 %v4093, %v4139
  %v4160 = vadd.s32 %v4094, %v4139
  %v4161 = vadd.s32 %v4095, %v4139
  %v4162 = vadd.s32 %v4096, %v4139
  %v4163 = vadd.s32 %v4097, %v4139
  %v4164 = vadd.s32 %v4098, %v4139
  %v4165 = vadd.s32 %v4099, %v4139
  %v4166 = vadd.s32 %v4100, %v4139
  %v4167 = vadd.s32 %v4101, %v4139
  %v4168 = vadd.s32 %v4102, %v4139
  %v4169 = vadd.s32 %v4103, %v4139
  %v4170 = vadd.s32 %v4104, %v4139
  %v4171 = vadd.s32 %v4105, %v4139
  %v4172 = vadd.s32 %v4106, %v4139
  %v4173 = vadd.s32 %v4107, %v4139
  %v4174 = vadd.s32 %v4108, %v4139
  %v4175 = vadd.s32 %v4109, %v4139
  %v4176 = vadd.s32 %v4110, %v4139
  %v4177 = vadd.s32 %v4111, %v4139
  %v4178 = vadd.s32 %v4112, %v4139
  %v4179 = vadd.s32 %v4113, %v4139
  %v4180 = vadd.s32 %v4114, %v4139
  %v4181 = vadd.s32 %v4115, %v4139
  %v4182 = vadd.s32 %v4116, %v4139
  %v4183 = vadd.s32 %v4117, %v4139
  %v4184 = vadd.s32 %v4118, %v4139
  %v4185 = vadd.s32 %v4119, %v4139
  %v4186 = vadd.s32 %v4120, %v4139
  %v4187 = vadd.s32 %v4121, %v4139
  %v4188 = vadd.s32 %v4122, %v4139
  %v4189 = vadd.s32 %v4123, %v4139
  %v4190 = vadd.s32 %v4124, %v4139
  %v4191 = vadd.s32 %v4125, %v4139
  %v4192 = vadd.s32 %v4126, %v4139
  %v4193 = vadd.s32 %v4127, %v4139
  %v4194 = vadd.s32 %v4128, %v4139
  %v4195 = vadd.s32 %v4129, %v4139
  %v4196 = vadd.s32 %v4130, %v4139
  %v4197 = vadd.s32 %v4131, %v4139
  %v4198 = vadd.s32 %v4132, %v4139
  %v4199 = vadd.s32 %v4133, %v4139
  %v4200 = vadd.s32 %v4134, %v4139
  %v4201 = vadd.s32 %v4135, %v4139
  %v4202 = vadd.s32 %v4136, %v4139
  %v4203 = vadd.s32 %v4137, %v4139
  %v4204 = vadd.s32 %v4140, 1
  %v4205 = vadd.s32 %v4141, 1
  %v4206 = vadd.s32 %v4142, 1
  %v4207 = vadd.s32 %v4143, 1
  %v4208 = vadd.s32 %v4144, 1
  %v4209 = vadd.s32 %v4145, 1
  %v4210 = vadd.s32 %v4146, 1
  %v4211 = vadd.s32 %v4147, 1
  %v4212 = vadd.s32 %v4148, 1
  %v4213 = vadd.s32 %v4149, 1
  %v4214 = vadd.s32 %v4150, 1
  %v4215 = vadd.s32 %v4151, 1
  %v4216 = vadd.s32 %v4152, 1
  %v4217 = vadd.s32 %v4153, 1
  %v4218 = vadd.s32 %v4154, 1
  %v4219 = vadd.s32 %v4155, 1
  %v4220 = vadd.s32 %v4156, 1
  %v4221 = vadd.s32 %v4157, 1
  %v4222 = vadd.s32 %v4158, 1
  %v4223 = vadd.s32 %v4159, 1
  %v4224 = vadd.s32 %v4160, 1
  %v4225 = vadd.s32 %v4161, 1
  %v4226 = vadd.s32 %v4162, 1
  %v4227 = vadd.s32 %v4163, 1
  %v4228 = vadd.s32 %v4164, 1
  %v4229 = vadd.s32 %v4165, 1
  %v4230 = vadd.s32 %v4166, 1
  %v4231 = vadd.s32 %v4167, 1
  %v4232 = vadd.s32 %v4168, 1
  %v4233 = vadd.s32 %v4169, 1
  %v4234 = vadd.s32 %v4170, 1
  %v4235 = vadd.s32 %v4171, 1
  %v4236 = vadd.s32 %v4172, 1
  %v4237 = vadd.s32 %v4173, 1
  %v4238 = vadd.s32 %v4174, 1
  %v4239 = vadd.s32 %v4175, 1
  %v4240 = vadd.s32 %v4176, 1
  %v4241 = vadd.s32 %v4177, 1
  %v4242 = vadd.s32 %v4178, 1
  %v4243 = vadd.s32 %v4179, 1
  %v4244 = vadd.s32 %v4180, 1
  %v4245 = vadd.s32 %v4181, 1
  %v4246 = vadd.s32 %v4182, 1
  %v4247 = vadd.s32 %v4183, 1
  %v4248 = vadd.s32 %v4184, 1
  %v4249 = vadd.s32 %v4185, 1
  %v4250 = vadd.s32 %v4186, 1
  %v4251 = vadd.s32 %v4187, 1
  %v4252 = vadd.s32 %v4188, 1
  %v4253 = vadd.s32 %v4189, 1
  %v4254 = vadd.s32 %v4190, 1
  %v4255 = vadd.s32 %v4191, 1
  %v4256 = vadd.s32 %v4192, 1
  %v4257 = vadd.s32 %v4193, 1
  %v4258 = vadd.s32 %v4194, 1
  %v4259 = vadd.s32 %v4195, 1
  %v4260 = vadd.s32 %v4196, 1
  %v4261 = vadd.s32 %v4197, 1
  %v4262 = vadd.s32 %v4198, 1
  %v4263 = vadd.s32 %v4199, 1
  %v4264 = vadd.s32 %v4200, 1
  %v4265 = vadd.s32 %v4201, 1
  %v4266 = vadd.s32 %v4202, 1
  %v4267 = vadd.s32 %v4203, 1
  %v4268 = vshrl.u32 %v4204, 16
  %v4269 = vshrl.u32 %v4205, 16
  %v4270 = vshrl.u32 %v4206, 16
  %v4271 = vshrl.u32 %v4207, 16
  %v4272 = vshrl.u32 %v4208, 16
  %v4273 = vshrl.u32 %v4209, 16
  %v4274 = vshrl.u32 %v4210, 16
  %v4275 = vshrl.u32 %v4211, 16
  %v4276 = vshrl.u32 %v4212, 16
  %v4277 = vshrl.u32 %v4213, 16
  %v4278 = vshrl.u32 %v4214, 16
  %v4279 = vshrl.u32 %v4215, 16
  %v4280 = vshrl.u32 %v4216, 16
  %v4281 = vshrl.u32 %v4217, 16
  %v4282 = vshrl.u32 %v4218, 16
  %v4283 = vshrl.u32 %v4219, 16
  %v4284 = vshrl.u32 %v4220, 16
  %v4285 = vshrl.u32 %v4221, 16
  %v4286 = vshrl.u32 %v4222, 16
  %v4287 = vshrl.u32 %v4223, 16
  %v4288 = vshrl.u32 %v4224, 16
  %v4289 = vshrl.u32 %v4225, 16
  %v4290 = vshrl.u32 %v4226, 16
  %v4291 = vshrl.u32 %v4227, 16
  %v4292 = vshrl.u32 %v4228, 16
  %v4293 = vshrl.u32 %v4229, 16
  %v4294 = vshrl.u32 %v4230, 16
  %v4295 = vshrl.u32 %v4231, 16
  %v4296 = vshrl.u32 %v4232, 16
  %v4297 = vshrl.u32 %v4233, 16
  %v4298 = vshrl.u32 %v4234, 16
  %v4299 = vshrl.u32 %v4235, 16
  %v4300 = vshrl.u32 %v4236, 16
  %v4301 = vshrl.u32 %v4237, 16
  %v4302 = vshrl.u32 %v4238, 16
  %v4303 = vshrl.u32 %v4239, 16
  %v4304 = vshrl.u32 %v4240, 16
  %v4305 = vshrl.u32 %v4241, 16
  %v4306 = vshrl.u32 %v4242, 16
  %v4307 = vshrl.u32 %v4243, 16
  %v4308 = vshrl.u32 %v4244, 16
  %v4309 = vshrl.u32 %v4245, 16
  %v4310 = vshrl.u32 %v4246, 16
  %v4311 = vshrl.u32 %v4247, 16
  %v4312 = vshrl.u32 %v4248, 16
  %v4313 = vshrl.u32 %v4249, 16
  %v4314 = vshrl.u32 %v4250, 16
  %v4315 = vshrl.u32 %v4251, 16
  %v4316 = vshrl.u32 %v4252, 16
  %v4317 = vshrl.u32 %v4253, 16
  %v4318 = vshrl.u32 %v4254, 16
  %v4319 = vshrl.u32 %v4255, 16
  %v4320 = vshrl.u32 %v4256, 16
  %v4321 = vshrl.u32 %v4257, 16
  %v4322 = vshrl.u32 %v4258, 16
  %v4323 = vshrl.u32 %v4259, 16
  %v4324 = vshrl.u32 %v4260, 16
  %v4325 = vshrl.u32 %v4261, 16
  %v4326 = vshrl.u32 %v4262, 16
  %v4327 = vshrl.u32 %v4263, 16
  %v4328 = vshrl.u32 %v4264, 16
  %v4329 = vshrl.u32 %v4265, 16
  %v4330 = vshrl.u32 %v4266, 16
  %v4331 = vshrl.u32 %v4267, 16
  %v4332 = vxor.u32 %v4204, %v4268
  %v4333 = vxor.u32 %v4205, %v4269
  %v4334 = vxor.u32 %v4206, %v4270
  %v4335 = vxor.u32 %v4207, %v4271
  %v4336 = vxor.u32 %v4208, %v4272
  %v4337 = vxor.u32 %v4209, %v4273
  %v4338 = vxor.u32 %v4210, %v4274
  %v4339 = vxor.u32 %v4211, %v4275
  %v4340 = vxor.u32 %v4212, %v4276
  %v4341 = vxor.u32 %v4213, %v4277
  %v4342 = vxor.u32 %v4214, %v4278
  %v4343 = vxor.u32 %v4215, %v4279
  %v4344 = vxor.u32 %v4216, %v4280
  %v4345 = vxor.u32 %v4217, %v4281
  %v4346 = vxor.u32 %v4218, %v4282
  %v4347 = vxor.u32 %v4219, %v4283
  %v4348 = vxor.u32 %v4220, %v4284
  %v4349 = vxor.u32 %v4221, %v4285
  %v4350 = vxor.u32 %v4222, %v4286
  %v4351 = vxor.u32 %v4223, %v4287
  %v4352 = vxor.u32 %v4224, %v4288
  %v4353 = vxor.u32 %v4225, %v4289
  %v4354 = vxor.u32 %v4226, %v4290
  %v4355 = vxor.u32 %v4227, %v4291
  %v4356 = vxor.u32 %v4228, %v4292
  %v4357 = vxor.u32 %v4229, %v4293
  %v4358 = vxor.u32 %v4230, %v4294
  %v4359 = vxor.u32 %v4231, %v4295
  %v4360 = vxor.u32 %v4232, %v4296
  %v4361 = vxor.u32 %v4233, %v4297
  %v4362 = vxor.u32 %v4234, %v4298
  %v4363 = vxor.u32 %v4235, %v4299
  %v4364 = vxor.u32 %v4236, %v4300
  %v4365 = vxor.u32 %v4237, %v4301
  %v4366 = vxor.u32 %v4238, %v4302
  %v4367 = vxor.u32 %v4239, %v4303
  %v4368 = vxor.u32 %v4240, %v4304
  %v4369 = vxor.u32 %v4241, %v4305
  %v4370 = vxor.u32 %v4242, %v4306
  %v4371 = vxor.u32 %v4243, %v4307
  %v4372 = vxor.u32 %v4244, %v4308
  %v4373 = vxor.u32 %v4245, %v4309
  %v4374 = vxor.u32 %v4246, %v4310
  %v4375 = vxor.u32 %v4247, %v4311
  %v4376 = vxor.u32 %v4248, %v4312
  %v4377 = vxor.u32 %v4249, %v4313
  %v4378 = vxor.u32 %v4250, %v4314
  %v4379 = vxor.u32 %v4251, %v4315
  %v4380 = vxor.u32 %v4252, %v4316
  %v4381 = vxor.u32 %v4253, %v4317
  %v4382 = vxor.u32 %v4254, %v4318
  %v4383 = vxor.u32 %v4255, %v4319
  %v4384 = vxor.u32 %v4256, %v4320
  %v4385 = vxor.u32 %v4257, %v4321
  %v4386 = vxor.u32 %v4258, %v4322
  %v4387 = vxor.u32 %v4259, %v4323
  %v4388 = vxor.u32 %v4260, %v4324
  %v4389 = vxor.u32 %v4261, %v4325
  %v4390 = vxor.u32 %v4262, %v4326
  %v4391 = vxor.u32 %v4263, %v4327
  %v4392 = vxor.u32 %v4264, %v4328
  %v4393 = vxor.u32 %v4265, %v4329
  %v4394 = vxor.u32 %v4266, %v4330
  %v4395 = vxor.u32 %v4267, %v4331
  %v4396 = vmul.u32 %v4332, 2146121005
  %v4397 = vmul.u32 %v4333, 2146121005
  %v4398 = vmul.u32 %v4334, 2146121005
  %v4399 = vmul.u32 %v4335, 2146121005
  %v4400 = vmul.u32 %v4336, 2146121005
  %v4401 = vmul.u32 %v4337, 2146121005
  %v4402 = vmul.u32 %v4338, 2146121005
  %v4403 = vmul.u32 %v4339, 2146121005
  %v4404 = vmul.u32 %v4340, 2146121005
  %v4405 = vmul.u32 %v4341, 2146121005
  %v4406 = vmul.u32 %v4342, 2146121005
  %v4407 = vmul.u32 %v4343, 2146121005
  %v4408 = vmul.u32 %v4344, 2146121005
  %v4409 = vmul.u32 %v4345, 2146121005
  %v4410 = vmul.u32 %v4346, 2146121005
  %v4411 = vmul.u32 %v4347, 2146121005
  %v4412 = vmul.u32 %v4348, 2146121005
  %v4413 = vmul.u32 %v4349, 2146121005
  %v4414 = vmul.u32 %v4350, 2146121005
  %v4415 = vmul.u32 %v4351, 2146121005
  %v4416 = vmul.u32 %v4352, 2146121005
  %v4417 = vmul.u32 %v4353, 2146121005
  %v4418 = vmul.u32 %v4354, 2146121005
  %v4419 = vmul.u32 %v4355, 2146121005
  %v4420 = vmul.u32 %v4356, 2146121005
  %v4421 = vmul.u32 %v4357, 2146121005
  %v4422 = vmul.u32 %v4358, 2146121005
  %v4423 = vmul.u32 %v4359, 2146121005
  %v4424 = vmul.u32 %v4360, 2146121005
  %v4425 = vmul.u32 %v4361, 2146121005
  %v4426 = vmul.u32 %v4362, 2146121005
  %v4427 = vmul.u32 %v4363, 2146121005
  %v4428 = vmul.u32 %v4364, 2146121005
  %v4429 = vmul.u32 %v4365, 2146121005
  %v4430 = vmul.u32 %v4366, 2146121005
  %v4431 = vmul.u32 %v4367, 2146121005
  %v4432 = vmul.u32 %v4368, 2146121005
  %v4433 = vmul.u32 %v4369, 2146121005
  %v4434 = vmul.u32 %v4370, 2146121005
  %v4435 = vmul.u32 %v4371, 2146121005
  %v4436 = vmul.u32 %v4372, 2146121005
  %v4437 = vmul.u32 %v4373, 2146121005
  %v4438 = vmul.u32 %v4374, 2146121005
  %v4439 = vmul.u32 %v4375, 2146121005
  %v4440 = vmul.u32 %v4376, 2146121005
  %v4441 = vmul.u32 %v4377, 2146121005
  %v4442 = vmul.u32 %v4378, 2146121005
  %v4443 = vmul.u32 %v4379, 2146121005
  %v4444 = vmul.u32 %v4380, 2146121005
  %v4445 = vmul.u32 %v4381, 2146121005
  %v4446 = vmul.u32 %v4382, 2146121005
  %v4447 = vmul.u32 %v4383, 2146121005
  %v4448 = vmul.u32 %v4384, 2146121005
  %v4449 = vmul.u32 %v4385, 2146121005
  %v4450 = vmul.u32 %v4386, 2146121005
  %v4451 = vmul.u32 %v4387, 2146121005
  %v4452 = vmul.u32 %v4388, 2146121005
  %v4453 = vmul.u32 %v4389, 2146121005
  %v4454 = vmul.u32 %v4390, 2146121005
  %v4455 = vmul.u32 %v4391, 2146121005
  %v4456 = vmul.u32 %v4392, 2146121005
  %v4457 = vmul.u32 %v4393, 2146121005
  %v4458 = vmul.u32 %v4394, 2146121005
  %v4459 = vmul.u32 %v4395, 2146121005
  %v4460 = vshrl.u32 %v4396, 15
  %v4461 = vshrl.u32 %v4397, 15
  %v4462 = vshrl.u32 %v4398, 15
  %v4463 = vshrl.u32 %v4399, 15
  %v4464 = vshrl.u32 %v4400, 15
  %v4465 = vshrl.u32 %v4401, 15
  %v4466 = vshrl.u32 %v4402, 15
  %v4467 = vshrl.u32 %v4403, 15
  %v4468 = vshrl.u32 %v4404, 15
  %v4469 = vshrl.u32 %v4405, 15
  %v4470 = vshrl.u32 %v4406, 15
  %v4471 = vshrl.u32 %v4407, 15
  %v4472 = vshrl.u32 %v4408, 15
  %v4473 = vshrl.u32 %v4409, 15
  %v4474 = vshrl.u32 %v4410, 15
  %v4475 = vshrl.u32 %v4411, 15
  %v4476 = vshrl.u32 %v4412, 15
  %v4477 = vshrl.u32 %v4413, 15
  %v4478 = vshrl.u32 %v4414, 15
  %v4479 = vshrl.u32 %v4415, 15
  %v4480 = vshrl.u32 %v4416, 15
  %v4481 = vshrl.u32 %v4417, 15
  %v4482 = vshrl.u32 %v4418, 15
  %v4483 = vshrl.u32 %v4419, 15
  %v4484 = vshrl.u32 %v4420, 15
  %v4485 = vshrl.u32 %v4421, 15
  %v4486 = vshrl.u32 %v4422, 15
  %v4487 = vshrl.u32 %v4423, 15
  %v4488 = vshrl.u32 %v4424, 15
  %v4489 = vshrl.u32 %v4425, 15
  %v4490 = vshrl.u32 %v4426, 15
  %v4491 = vshrl.u32 %v4427, 15
  %v4492 = vshrl.u32 %v4428, 15
  %v4493 = vshrl.u32 %v4429, 15
  %v4494 = vshrl.u32 %v4430, 15
  %v4495 = vshrl.u32 %v4431, 15
  %v4496 = vshrl.u32 %v4432, 15
  %v4497 = vshrl.u32 %v4433, 15
  %v4498 = vshrl.u32 %v4434, 15
  %v4499 = vshrl.u32 %v4435, 15
  %v4500 = vshrl.u32 %v4436, 15
  %v4501 = vshrl.u32 %v4437, 15
  %v4502 = vshrl.u32 %v4438, 15
  %v4503 = vshrl.u32 %v4439, 15
  %v4504 = vshrl.u32 %v4440, 15
  %v4505 = vshrl.u32 %v4441, 15
  %v4506 = vshrl.u32 %v4442, 15
  %v4507 = vshrl.u32 %v4443, 15
  %v4508 = vshrl.u32 %v4444, 15
  %v4509 = vshrl.u32 %v4445, 15
  %v4510 = vshrl.u32 %v4446, 15
  %v4511 = vshrl.u32 %v4447, 15
  %v4512 = vshrl.u32 %v4448, 15
  %v4513 = vshrl.u32 %v4449, 15
  %v4514 = vshrl.u32 %v4450, 15
  %v4515 = vshrl.u32 %v4451, 15
  %v4516 = vshrl.u32 %v4452, 15
  %v4517 = vshrl.u32 %v4453, 15
  %v4518 = vshrl.u32 %v4454, 15
  %v4519 = vshrl.u32 %v4455, 15
  %v4520 = vshrl.u32 %v4456, 15
  %v4521 = vshrl.u32 %v4457, 15
  %v4522 = vshrl.u32 %v4458, 15
  %v4523 = vshrl.u32 %v4459, 15
  %v4524 = vxor.u32 %v4396, %v4460
  %v4525 = vxor.u32 %v4397, %v4461
  %v4526 = vxor.u32 %v4398, %v4462
  %v4527 = vxor.u32 %v4399, %v4463
  %v4528 = vxor.u32 %v4400, %v4464
  %v4529 = vxor.u32 %v4401, %v4465
  %v4530 = vxor.u32 %v4402, %v4466
  %v4531 = vxor.u32 %v4403, %v4467
  %v4532 = vxor.u32 %v4404, %v4468
  %v4533 = vxor.u32 %v4405, %v4469
  %v4534 = vxor.u32 %v4406, %v4470
  %v4535 = vxor.u32 %v4407, %v4471
  %v4536 = vxor.u32 %v4408, %v4472
  %v4537 = vxor.u32 %v4409, %v4473
  %v4538 = vxor.u32 %v4410, %v4474
  %v4539 = vxor.u32 %v4411, %v4475
  %v4540 = vxor.u32 %v4412, %v4476
  %v4541 = vxor.u32 %v4413, %v4477
  %v4542 = vxor.u32 %v4414, %v4478
  %v4543 = vxor.u32 %v4415, %v4479
  %v4544 = vxor.u32 %v4416, %v4480
  %v4545 = vxor.u32 %v4417, %v4481
  %v4546 = vxor.u32 %v4418, %v4482
  %v4547 = vxor.u32 %v4419, %v4483
  %v4548 = vxor.u32 %v4420, %v4484
  %v4549 = vxor.u32 %v4421, %v4485
  %v4550 = vxor.u32 %v4422, %v4486
  %v4551 = vxor.u32 %v4423, %v4487
  %v4552 = vxor.u32 %v4424, %v4488
  %v4553 = vxor.u32 %v4425, %v4489
  %v4554 = vxor.u32 %v4426, %v4490
  %v4555 = vxor.u32 %v4427, %v4491
  %v4556 = vxor.u32 %v4428, %v4492
  %v4557 = vxor.u32 %v4429, %v4493
  %v4558 = vxor.u32 %v4430, %v4494
  %v4559 = vxor.u32 %v4431, %v4495
  %v4560 = vxor.u32 %v4432, %v4496
  %v4561 = vxor.u32 %v4433, %v4497
  %v4562 = vxor.u32 %v4434, %v4498
  %v4563 = vxor.u32 %v4435, %v4499
  %v4564 = vxor.u32 %v4436, %v4500
  %v4565 = vxor.u32 %v4437, %v4501
  %v4566 = vxor.u32 %v4438, %v4502
  %v4567 = vxor.u32 %v4439, %v4503
  %v4568 = vxor.u32 %v4440, %v4504
  %v4569 = vxor.u32 %v4441, %v4505
  %v4570 = vxor.u32 %v4442, %v4506
  %v4571 = vxor.u32 %v4443, %v4507
  %v4572 = vxor.u32 %v4444, %v4508
  %v4573 = vxor.u32 %v4445, %v4509
  %v4574 = vxor.u32 %v4446, %v4510
  %v4575 = vxor.u32 %v4447, %v4511
  %v4576 = vxor.u32 %v4448, %v4512
  %v4577 = vxor.u32 %v4449, %v4513
  %v4578 = vxor.u32 %v4450, %v4514
  %v4579 = vxor.u32 %v4451, %v4515
  %v4580 = vxor.u32 %v4452, %v4516
  %v4581 = vxor.u32 %v4453, %v4517
  %v4582 = vxor.u32 %v4454, %v4518
  %v4583 = vxor.u32 %v4455, %v4519
  %v4584 = vxor.u32 %v4456, %v4520
  %v4585 = vxor.u32 %v4457, %v4521
  %v4586 = vxor.u32 %v4458, %v4522
  %v4587 = vxor.u32 %v4459, %v4523
  %v4588 = vmul.u32 %v4524, 2221713035
  %v4589 = vmul.u32 %v4525, 2221713035
  %v4590 = vmul.u32 %v4526, 2221713035
  %v4591 = vmul.u32 %v4527, 2221713035
  %v4592 = vmul.u32 %v4528, 2221713035
  %v4593 = vmul.u32 %v4529, 2221713035
  %v4594 = vmul.u32 %v4530, 2221713035
  %v4595 = vmul.u32 %v4531, 2221713035
  %v4596 = vmul.u32 %v4532, 2221713035
  %v4597 = vmul.u32 %v4533, 2221713035
  %v4598 = vmul.u32 %v4534, 2221713035
  %v4599 = vmul.u32 %v4535, 2221713035
  %v4600 = vmul.u32 %v4536, 2221713035
  %v4601 = vmul.u32 %v4537, 2221713035
  %v4602 = vmul.u32 %v4538, 2221713035
  %v4603 = vmul.u32 %v4539, 2221713035
  %v4604 = vmul.u32 %v4540, 2221713035
  %v4605 = vmul.u32 %v4541, 2221713035
  %v4606 = vmul.u32 %v4542, 2221713035
  %v4607 = vmul.u32 %v4543, 2221713035
  %v4608 = vmul.u32 %v4544, 2221713035
  %v4609 = vmul.u32 %v4545, 2221713035
  %v4610 = vmul.u32 %v4546, 2221713035
  %v4611 = vmul.u32 %v4547, 2221713035
  %v4612 = vmul.u32 %v4548, 2221713035
  %v4613 = vmul.u32 %v4549, 2221713035
  %v4614 = vmul.u32 %v4550, 2221713035
  %v4615 = vmul.u32 %v4551, 2221713035
  %v4616 = vmul.u32 %v4552, 2221713035
  %v4617 = vmul.u32 %v4553, 2221713035
  %v4618 = vmul.u32 %v4554, 2221713035
  %v4619 = vmul.u32 %v4555, 2221713035
  %v4620 = vmul.u32 %v4556, 2221713035
  %v4621 = vmul.u32 %v4557, 2221713035
  %v4622 = vmul.u32 %v4558, 2221713035
  %v4623 = vmul.u32 %v4559, 2221713035
  %v4624 = vmul.u32 %v4560, 2221713035
  %v4625 = vmul.u32 %v4561, 2221713035
  %v4626 = vmul.u32 %v4562, 2221713035
  %v4627 = vmul.u32 %v4563, 2221713035
  %v4628 = vmul.u32 %v4564, 2221713035
  %v4629 = vmul.u32 %v4565, 2221713035
  %v4630 = vmul.u32 %v4566, 2221713035
  %v4631 = vmul.u32 %v4567, 2221713035
  %v4632 = vmul.u32 %v4568, 2221713035
  %v4633 = vmul.u32 %v4569, 2221713035
  %v4634 = vmul.u32 %v4570, 2221713035
  %v4635 = vmul.u32 %v4571, 2221713035
  %v4636 = vmul.u32 %v4572, 2221713035
  %v4637 = vmul.u32 %v4573, 2221713035
  %v4638 = vmul.u32 %v4574, 2221713035
  %v4639 = vmul.u32 %v4575, 2221713035
  %v4640 = vmul.u32 %v4576, 2221713035
  %v4641 = vmul.u32 %v4577, 2221713035
  %v4642 = vmul.u32 %v4578, 2221713035
  %v4643 = vmul.u32 %v4579, 2221713035
  %v4644 = vmul.u32 %v4580, 2221713035
  %v4645 = vmul.u32 %v4581, 2221713035
  %v4646 = vmul.u32 %v4582, 2221713035
  %v4647 = vmul.u32 %v4583, 2221713035
  %v4648 = vmul.u32 %v4584, 2221713035
  %v4649 = vmul.u32 %v4585, 2221713035
  %v4650 = vmul.u32 %v4586, 2221713035
  %v4651 = vmul.u32 %v4587, 2221713035
  %v4652 = vshrl.u32 %v4588, 16
  %v4653 = vshrl.u32 %v4589, 16
  %v4654 = vshrl.u32 %v4590, 16
  %v4655 = vshrl.u32 %v4591, 16
  %v4656 = vshrl.u32 %v4592, 16
  %v4657 = vshrl.u32 %v4593, 16
  %v4658 = vshrl.u32 %v4594, 16
  %v4659 = vshrl.u32 %v4595, 16
  %v4660 = vshrl.u32 %v4596, 16
  %v4661 = vshrl.u32 %v4597, 16
  %v4662 = vshrl.u32 %v4598, 16
  %v4663 = vshrl.u32 %v4599, 16
  %v4664 = vshrl.u32 %v4600, 16
  %v4665 = vshrl.u32 %v4601, 16
  %v4666 = vshrl.u32 %v4602, 16
  %v4667 = vshrl.u32 %v4603, 16
  %v4668 = vshrl.u32 %v4604, 16
  %v4669 = vshrl.u32 %v4605, 16
  %v4670 = vshrl.u32 %v4606, 16
  %v4671 = vshrl.u32 %v4607, 16
  %v4672 = vshrl.u32 %v4608, 16
  %v4673 = vshrl.u32 %v4609, 16
  %v4674 = vshrl.u32 %v4610, 16
  %v4675 = vshrl.u32 %v4611, 16
  %v4676 = vshrl.u32 %v4612, 16
  %v4677 = vshrl.u32 %v4613, 16
  %v4678 = vshrl.u32 %v4614, 16
  %v4679 = vshrl.u32 %v4615, 16
  %v4680 = vshrl.u32 %v4616, 16
  %v4681 = vshrl.u32 %v4617, 16
  %v4682 = vshrl.u32 %v4618, 16
  %v4683 = vshrl.u32 %v4619, 16
  %v4684 = vshrl.u32 %v4620, 16
  %v4685 = vshrl.u32 %v4621, 16
  %v4686 = vshrl.u32 %v4622, 16
  %v4687 = vshrl.u32 %v4623, 16
  %v4688 = vshrl.u32 %v4624, 16
  %v4689 = vshrl.u32 %v4625, 16
  %v4690 = vshrl.u32 %v4626, 16
  %v4691 = vshrl.u32 %v4627, 16
  %v4692 = vshrl.u32 %v4628, 16
  %v4693 = vshrl.u32 %v4629, 16
  %v4694 = vshrl.u32 %v4630, 16
  %v4695 = vshrl.u32 %v4631, 16
  %v4696 = vshrl.u32 %v4632, 16
  %v4697 = vshrl.u32 %v4633, 16
  %v4698 = vshrl.u32 %v4634, 16
  %v4699 = vshrl.u32 %v4635, 16
  %v4700 = vshrl.u32 %v4636, 16
  %v4701 = vshrl.u32 %v4637, 16
  %v4702 = vshrl.u32 %v4638, 16
  %v4703 = vshrl.u32 %v4639, 16
  %v4704 = vshrl.u32 %v4640, 16
  %v4705 = vshrl.u32 %v4641, 16
  %v4706 = vshrl.u32 %v4642, 16
  %v4707 = vshrl.u32 %v4643, 16
  %v4708 = vshrl.u32 %v4644, 16
  %v4709 = vshrl.u32 %v4645, 16
  %v4710 = vshrl.u32 %v4646, 16
  %v4711 = vshrl.u32 %v4647, 16
  %v4712 = vshrl.u32 %v4648, 16
  %v4713 = vshrl.u32 %v4649, 16
  %v4714 = vshrl.u32 %v4650, 16
  %v4715 = vshrl.u32 %v4651, 16
  %v4716 = vxor.u32 %v4588, %v4652
  %v4717 = vxor.u32 %v4589, %v4653
  %v4718 = vxor.u32 %v4590, %v4654
  %v4719 = vxor.u32 %v4591, %v4655
  %v4720 = vxor.u32 %v4592, %v4656
  %v4721 = vxor.u32 %v4593, %v4657
  %v4722 = vxor.u32 %v4594, %v4658
  %v4723 = vxor.u32 %v4595, %v4659
  %v4724 = vxor.u32 %v4596, %v4660
  %v4725 = vxor.u32 %v4597, %v4661
  %v4726 = vxor.u32 %v4598, %v4662
  %v4727 = vxor.u32 %v4599, %v4663
  %v4728 = vxor.u32 %v4600, %v4664
  %v4729 = vxor.u32 %v4601, %v4665
  %v4730 = vxor.u32 %v4602, %v4666
  %v4731 = vxor.u32 %v4603, %v4667
  %v4732 = vxor.u32 %v4604, %v4668
  %v4733 = vxor.u32 %v4605, %v4669
  %v4734 = vxor.u32 %v4606, %v4670
  %v4735 = vxor.u32 %v4607, %v4671
  %v4736 = vxor.u32 %v4608, %v4672
  %v4737 = vxor.u32 %v4609, %v4673
  %v4738 = vxor.u32 %v4610, %v4674
  %v4739 = vxor.u32 %v4611, %v4675
  %v4740 = vxor.u32 %v4612, %v4676
  %v4741 = vxor.u32 %v4613, %v4677
  %v4742 = vxor.u32 %v4614, %v4678
  %v4743 = vxor.u32 %v4615, %v4679
  %v4744 = vxor.u32 %v4616, %v4680
  %v4745 = vxor.u32 %v4617, %v4681
  %v4746 = vxor.u32 %v4618, %v4682
  %v4747 = vxor.u32 %v4619, %v4683
  %v4748 = vxor.u32 %v4620, %v4684
  %v4749 = vxor.u32 %v4621, %v4685
  %v4750 = vxor.u32 %v4622, %v4686
  %v4751 = vxor.u32 %v4623, %v4687
  %v4752 = vxor.u32 %v4624, %v4688
  %v4753 = vxor.u32 %v4625, %v4689
  %v4754 = vxor.u32 %v4626, %v4690
  %v4755 = vxor.u32 %v4627, %v4691
  %v4756 = vxor.u32 %v4628, %v4692
  %v4757 = vxor.u32 %v4629, %v4693
  %v4758 = vxor.u32 %v4630, %v4694
  %v4759 = vxor.u32 %v4631, %v4695
  %v4760 = vxor.u32 %v4632, %v4696
  %v4761 = vxor.u32 %v4633, %v4697
  %v4762 = vxor.u32 %v4634, %v4698
  %v4763 = vxor.u32 %v4635, %v4699
  %v4764 = vxor.u32 %v4636, %v4700
  %v4765 = vxor.u32 %v4637, %v4701
  %v4766 = vxor.u32 %v4638, %v4702
  %v4767 = vxor.u32 %v4639, %v4703
  %v4768 = vxor.u32 %v4640, %v4704
  %v4769 = vxor.u32 %v4641, %v4705
  %v4770 = vxor.u32 %v4642, %v4706
  %v4771 = vxor.u32 %v4643, %v4707
  %v4772 = vxor.u32 %v4644, %v4708
  %v4773 = vxor.u32 %v4645, %v4709
  %v4774 = vxor.u32 %v4646, %v4710
  %v4775 = vxor.u32 %v4647, %v4711
  %v4776 = vxor.u32 %v4648, %v4712
  %v4777 = vxor.u32 %v4649, %v4713
  %v4778 = vxor.u32 %v4650, %v4714
  %v4779 = vxor.u32 %v4651, %v4715
  %vm4780 = vcmp.ge.u32.totalorder %v4716, 1288490189
  %vm4781 = vcmp.ge.u32.totalorder %v4717, 1288490189
  %vm4782 = vcmp.ge.u32.totalorder %v4718, 1288490189
  %vm4783 = vcmp.ge.u32.totalorder %v4719, 1288490189
  %vm4784 = vcmp.ge.u32.totalorder %v4720, 1288490189
  %vm4785 = vcmp.ge.u32.totalorder %v4721, 1288490189
  %vm4786 = vcmp.ge.u32.totalorder %v4722, 1288490189
  %vm4787 = vcmp.ge.u32.totalorder %v4723, 1288490189
  %vm4788 = vcmp.ge.u32.totalorder %v4724, 1288490189
  %vm4789 = vcmp.ge.u32.totalorder %v4725, 1288490189
  %vm4790 = vcmp.ge.u32.totalorder %v4726, 1288490189
  %vm4791 = vcmp.ge.u32.totalorder %v4727, 1288490189
  %vm4792 = vcmp.ge.u32.totalorder %v4728, 1288490189
  %vm4793 = vcmp.ge.u32.totalorder %v4729, 1288490189
  %vm4794 = vcmp.ge.u32.totalorder %v4730, 1288490189
  %vm4795 = vcmp.ge.u32.totalorder %v4731, 1288490189
  %vm4796 = vcmp.ge.u32.totalorder %v4732, 1288490189
  %vm4797 = vcmp.ge.u32.totalorder %v4733, 1288490189
  %vm4798 = vcmp.ge.u32.totalorder %v4734, 1288490189
  %vm4799 = vcmp.ge.u32.totalorder %v4735, 1288490189
  %vm4800 = vcmp.ge.u32.totalorder %v4736, 1288490189
  %vm4801 = vcmp.ge.u32.totalorder %v4737, 1288490189
  %vm4802 = vcmp.ge.u32.totalorder %v4738, 1288490189
  %vm4803 = vcmp.ge.u32.totalorder %v4739, 1288490189
  %vm4804 = vcmp.ge.u32.totalorder %v4740, 1288490189
  %vm4805 = vcmp.ge.u32.totalorder %v4741, 1288490189
  %vm4806 = vcmp.ge.u32.totalorder %v4742, 1288490189
  %vm4807 = vcmp.ge.u32.totalorder %v4743, 1288490189
  %vm4808 = vcmp.ge.u32.totalorder %v4744, 1288490189
  %vm4809 = vcmp.ge.u32.totalorder %v4745, 1288490189
  %vm4810 = vcmp.ge.u32.totalorder %v4746, 1288490189
  %vm4811 = vcmp.ge.u32.totalorder %v4747, 1288490189
  %vm4812 = vcmp.ge.u32.totalorder %v4748, 1288490189
  %vm4813 = vcmp.ge.u32.totalorder %v4749, 1288490189
  %vm4814 = vcmp.ge.u32.totalorder %v4750, 1288490189
  %vm4815 = vcmp.ge.u32.totalorder %v4751, 1288490189
  %vm4816 = vcmp.ge.u32.totalorder %v4752, 1288490189
  %vm4817 = vcmp.ge.u32.totalorder %v4753, 1288490189
  %vm4818 = vcmp.ge.u32.totalorder %v4754, 1288490189
  %vm4819 = vcmp.ge.u32.totalorder %v4755, 1288490189
  %vm4820 = vcmp.ge.u32.totalorder %v4756, 1288490189
  %vm4821 = vcmp.ge.u32.totalorder %v4757, 1288490189
  %vm4822 = vcmp.ge.u32.totalorder %v4758, 1288490189
  %vm4823 = vcmp.ge.u32.totalorder %v4759, 1288490189
  %vm4824 = vcmp.ge.u32.totalorder %v4760, 1288490189
  %vm4825 = vcmp.ge.u32.totalorder %v4761, 1288490189
  %vm4826 = vcmp.ge.u32.totalorder %v4762, 1288490189
  %vm4827 = vcmp.ge.u32.totalorder %v4763, 1288490189
  %vm4828 = vcmp.ge.u32.totalorder %v4764, 1288490189
  %vm4829 = vcmp.ge.u32.totalorder %v4765, 1288490189
  %vm4830 = vcmp.ge.u32.totalorder %v4766, 1288490189
  %vm4831 = vcmp.ge.u32.totalorder %v4767, 1288490189
  %vm4832 = vcmp.ge.u32.totalorder %v4768, 1288490189
  %vm4833 = vcmp.ge.u32.totalorder %v4769, 1288490189
  %vm4834 = vcmp.ge.u32.totalorder %v4770, 1288490189
  %vm4835 = vcmp.ge.u32.totalorder %v4771, 1288490189
  %vm4836 = vcmp.ge.u32.totalorder %v4772, 1288490189
  %vm4837 = vcmp.ge.u32.totalorder %v4773, 1288490189
  %vm4838 = vcmp.ge.u32.totalorder %v4774, 1288490189
  %vm4839 = vcmp.ge.u32.totalorder %v4775, 1288490189
  %vm4840 = vcmp.ge.u32.totalorder %v4776, 1288490189
  %vm4841 = vcmp.ge.u32.totalorder %v4777, 1288490189
  %vm4842 = vcmp.ge.u32.totalorder %v4778, 1288490189
  %vm4843 = vcmp.ge.u32.totalorder %v4779, 1288490189
  %v4844 = vmul.f32 %v3879, 1.4285715
  %v4845 = vmul.f32 %v3880, 1.4285715
  %v4846 = vmul.f32 %v3881, 1.4285715
  %v4847 = vmul.f32 %v3882, 1.4285715
  %v4848 = vmul.f32 %v3883, 1.4285715
  %v4849 = vmul.f32 %v3884, 1.4285715
  %v4850 = vmul.f32 %v3885, 1.4285715
  %v4851 = vmul.f32 %v3886, 1.4285715
  %v4852 = vmul.f32 %v3887, 1.4285715
  %v4853 = vmul.f32 %v3888, 1.4285715
  %v4854 = vmul.f32 %v3889, 1.4285715
  %v4855 = vmul.f32 %v3890, 1.4285715
  %v4856 = vmul.f32 %v3891, 1.4285715
  %v4857 = vmul.f32 %v3892, 1.4285715
  %v4858 = vmul.f32 %v3893, 1.4285715
  %v4859 = vmul.f32 %v3894, 1.4285715
  %v4860 = vmul.f32 %v3895, 1.4285715
  %v4861 = vmul.f32 %v3896, 1.4285715
  %v4862 = vmul.f32 %v3897, 1.4285715
  %v4863 = vmul.f32 %v3898, 1.4285715
  %v4864 = vmul.f32 %v3899, 1.4285715
  %v4865 = vmul.f32 %v3900, 1.4285715
  %v4866 = vmul.f32 %v3901, 1.4285715
  %v4867 = vmul.f32 %v3902, 1.4285715
  %v4868 = vmul.f32 %v3903, 1.4285715
  %v4869 = vmul.f32 %v3904, 1.4285715
  %v4870 = vmul.f32 %v3905, 1.4285715
  %v4871 = vmul.f32 %v3906, 1.4285715
  %v4872 = vmul.f32 %v3907, 1.4285715
  %v4873 = vmul.f32 %v3908, 1.4285715
  %v4874 = vmul.f32 %v3909, 1.4285715
  %v4875 = vmul.f32 %v3910, 1.4285715
  %v4876 = vmul.f32 %v3911, 1.4285715
  %v4877 = vmul.f32 %v3912, 1.4285715
  %v4878 = vmul.f32 %v3913, 1.4285715
  %v4879 = vmul.f32 %v3914, 1.4285715
  %v4880 = vmul.f32 %v3915, 1.4285715
  %v4881 = vmul.f32 %v3916, 1.4285715
  %v4882 = vmul.f32 %v3917, 1.4285715
  %v4883 = vmul.f32 %v3918, 1.4285715
  %v4884 = vmul.f32 %v3919, 1.4285715
  %v4885 = vmul.f32 %v3920, 1.4285715
  %v4886 = vmul.f32 %v3921, 1.4285715
  %v4887 = vmul.f32 %v3922, 1.4285715
  %v4888 = vmul.f32 %v3923, 1.4285715
  %v4889 = vmul.f32 %v3924, 1.4285715
  %v4890 = vmul.f32 %v3925, 1.4285715
  %v4891 = vmul.f32 %v3926, 1.4285715
  %v4892 = vmul.f32 %v3927, 1.4285715
  %v4893 = vmul.f32 %v3928, 1.4285715
  %v4894 = vmul.f32 %v3929, 1.4285715
  %v4895 = vmul.f32 %v3930, 1.4285715
  %v4896 = vmul.f32 %v3931, 1.4285715
  %v4897 = vmul.f32 %v3932, 1.4285715
  %v4898 = vmul.f32 %v3933, 1.4285715
  %v4899 = vmul.f32 %v3934, 1.4285715
  %v4900 = vmul.f32 %v3935, 1.4285715
  %v4901 = vmul.f32 %v3936, 1.4285715
  %v4902 = vmul.f32 %v3937, 1.4285715
  %v4903 = vmul.f32 %v3938, 1.4285715
  %v4904 = vmul.f32 %v3939, 1.4285715
  %v4905 = vmul.f32 %v3940, 1.4285715
  %v4906 = vmul.f32 %v3941, 1.4285715
  %v4907 = vmul.f32 %v3942, 1.4285715
  %v4908 = vsel %vm4780, %v4844, 0.0
  %v4909 = vsel %vm4781, %v4845, 0.0
  %v4910 = vsel %vm4782, %v4846, 0.0
  %v4911 = vsel %vm4783, %v4847, 0.0
  %v4912 = vsel %vm4784, %v4848, 0.0
  %v4913 = vsel %vm4785, %v4849, 0.0
  %v4914 = vsel %vm4786, %v4850, 0.0
  %v4915 = vsel %vm4787, %v4851, 0.0
  %v4916 = vsel %vm4788, %v4852, 0.0
  %v4917 = vsel %vm4789, %v4853, 0.0
  %v4918 = vsel %vm4790, %v4854, 0.0
  %v4919 = vsel %vm4791, %v4855, 0.0
  %v4920 = vsel %vm4792, %v4856, 0.0
  %v4921 = vsel %vm4793, %v4857, 0.0
  %v4922 = vsel %vm4794, %v4858, 0.0
  %v4923 = vsel %vm4795, %v4859, 0.0
  %v4924 = vsel %vm4796, %v4860, 0.0
  %v4925 = vsel %vm4797, %v4861, 0.0
  %v4926 = vsel %vm4798, %v4862, 0.0
  %v4927 = vsel %vm4799, %v4863, 0.0
  %v4928 = vsel %vm4800, %v4864, 0.0
  %v4929 = vsel %vm4801, %v4865, 0.0
  %v4930 = vsel %vm4802, %v4866, 0.0
  %v4931 = vsel %vm4803, %v4867, 0.0
  %v4932 = vsel %vm4804, %v4868, 0.0
  %v4933 = vsel %vm4805, %v4869, 0.0
  %v4934 = vsel %vm4806, %v4870, 0.0
  %v4935 = vsel %vm4807, %v4871, 0.0
  %v4936 = vsel %vm4808, %v4872, 0.0
  %v4937 = vsel %vm4809, %v4873, 0.0
  %v4938 = vsel %vm4810, %v4874, 0.0
  %v4939 = vsel %vm4811, %v4875, 0.0
  %v4940 = vsel %vm4812, %v4876, 0.0
  %v4941 = vsel %vm4813, %v4877, 0.0
  %v4942 = vsel %vm4814, %v4878, 0.0
  %v4943 = vsel %vm4815, %v4879, 0.0
  %v4944 = vsel %vm4816, %v4880, 0.0
  %v4945 = vsel %vm4817, %v4881, 0.0
  %v4946 = vsel %vm4818, %v4882, 0.0
  %v4947 = vsel %vm4819, %v4883, 0.0
  %v4948 = vsel %vm4820, %v4884, 0.0
  %v4949 = vsel %vm4821, %v4885, 0.0
  %v4950 = vsel %vm4822, %v4886, 0.0
  %v4951 = vsel %vm4823, %v4887, 0.0
  %v4952 = vsel %vm4824, %v4888, 0.0
  %v4953 = vsel %vm4825, %v4889, 0.0
  %v4954 = vsel %vm4826, %v4890, 0.0
  %v4955 = vsel %vm4827, %v4891, 0.0
  %v4956 = vsel %vm4828, %v4892, 0.0
  %v4957 = vsel %vm4829, %v4893, 0.0
  %v4958 = vsel %vm4830, %v4894, 0.0
  %v4959 = vsel %vm4831, %v4895, 0.0
  %v4960 = vsel %vm4832, %v4896, 0.0
  %v4961 = vsel %vm4833, %v4897, 0.0
  %v4962 = vsel %vm4834, %v4898, 0.0
  %v4963 = vsel %vm4835, %v4899, 0.0
  %v4964 = vsel %vm4836, %v4900, 0.0
  %v4965 = vsel %vm4837, %v4901, 0.0
  %v4966 = vsel %vm4838, %v4902, 0.0
  %v4967 = vsel %vm4839, %v4903, 0.0
  %v4968 = vsel %vm4840, %v4904, 0.0
  %v4969 = vsel %vm4841, %v4905, 0.0
  %v4970 = vsel %vm4842, %v4906, 0.0
  %v4971 = vsel %vm4843, %v4907, 0.0
  %v5036 = vrot.slane %v4908, 7
  %v5037 = vrot.slane %v4909, 7
  %v5038 = vsel %vm159, %v5036, %v5037
  %v5039 = vrot.slane %v4910, 7
  %v5040 = vrot.slane %v4911, 7
  %v5041 = vsel %vm159, %v5039, %v5040
  %v5042 = vrot.slane %v4912, 7
  %v5043 = vrot.slane %v4913, 7
  %v5044 = vsel %vm159, %v5042, %v5043
  %v5045 = vrot.slane %v4914, 7
  %v5046 = vrot.slane %v4915, 7
  %v5047 = vsel %vm159, %v5045, %v5046
  %v5048 = vrot.slane %v4916, 7
  %v5049 = vrot.slane %v4917, 7
  %v5050 = vsel %vm159, %v5048, %v5049
  %v5051 = vrot.slane %v4918, 7
  %v5052 = vrot.slane %v4919, 7
  %v5053 = vsel %vm159, %v5051, %v5052
  %v5054 = vrot.slane %v4920, 7
  %v5055 = vrot.slane %v4921, 7
  %v5056 = vsel %vm159, %v5054, %v5055
  %v5057 = vrot.slane %v4922, 7
  %v5058 = vrot.slane %v4923, 7
  %v5059 = vsel %vm159, %v5057, %v5058
  %v5060 = vrot.slane %v4924, 7
  %v5061 = vrot.slane %v4925, 7
  %v5062 = vsel %vm159, %v5060, %v5061
  %v5063 = vrot.slane %v4926, 7
  %v5064 = vrot.slane %v4927, 7
  %v5065 = vsel %vm159, %v5063, %v5064
  %v5066 = vrot.slane %v4928, 7
  %v5067 = vrot.slane %v4929, 7
  %v5068 = vsel %vm159, %v5066, %v5067
  %v5069 = vrot.slane %v4930, 7
  %v5070 = vrot.slane %v4931, 7
  %v5071 = vsel %vm159, %v5069, %v5070
  %v5072 = vrot.slane %v4932, 7
  %v5073 = vrot.slane %v4933, 7
  %v5074 = vsel %vm159, %v5072, %v5073
  %v5075 = vrot.slane %v4934, 7
  %v5076 = vrot.slane %v4935, 7
  %v5077 = vsel %vm159, %v5075, %v5076
  %v5078 = vrot.slane %v4936, 7
  %v5079 = vrot.slane %v4937, 7
  %v5080 = vsel %vm159, %v5078, %v5079
  %v5081 = vrot.slane %v4938, 7
  %v5082 = vrot.slane %v4939, 7
  %v5083 = vsel %vm159, %v5081, %v5082
  %v5084 = vrot.slane %v4940, 7
  %v5085 = vrot.slane %v4941, 7
  %v5086 = vsel %vm159, %v5084, %v5085
  %v5087 = vrot.slane %v4942, 7
  %v5088 = vrot.slane %v4943, 7
  %v5089 = vsel %vm159, %v5087, %v5088
  %v5090 = vrot.slane %v4944, 7
  %v5091 = vrot.slane %v4945, 7
  %v5092 = vsel %vm159, %v5090, %v5091
  %v5093 = vrot.slane %v4946, 7
  %v5094 = vrot.slane %v4947, 7
  %v5095 = vsel %vm159, %v5093, %v5094
  %v5096 = vrot.slane %v4948, 7
  %v5097 = vrot.slane %v4949, 7
  %v5098 = vsel %vm159, %v5096, %v5097
  %v5099 = vrot.slane %v4950, 7
  %v5100 = vrot.slane %v4951, 7
  %v5101 = vsel %vm159, %v5099, %v5100
  %v5102 = vrot.slane %v4952, 7
  %v5103 = vrot.slane %v4953, 7
  %v5104 = vsel %vm159, %v5102, %v5103
  %v5105 = vrot.slane %v4954, 7
  %v5106 = vrot.slane %v4955, 7
  %v5107 = vsel %vm159, %v5105, %v5106
  %v5108 = vrot.slane %v4956, 7
  %v5109 = vrot.slane %v4957, 7
  %v5110 = vsel %vm159, %v5108, %v5109
  %v5111 = vrot.slane %v4958, 7
  %v5112 = vrot.slane %v4959, 7
  %v5113 = vsel %vm159, %v5111, %v5112
  %v5114 = vrot.slane %v4960, 7
  %v5115 = vrot.slane %v4961, 7
  %v5116 = vsel %vm159, %v5114, %v5115
  %v5117 = vrot.slane %v4962, 7
  %v5118 = vrot.slane %v4963, 7
  %v5119 = vsel %vm159, %v5117, %v5118
  %v5120 = vrot.slane %v4964, 7
  %v5121 = vrot.slane %v4965, 7
  %v5122 = vsel %vm159, %v5120, %v5121
  %v5123 = vrot.slane %v4966, 7
  %v5124 = vrot.slane %v4967, 7
  %v5125 = vsel %vm159, %v5123, %v5124
  %v5126 = vrot.slane %v4968, 7
  %v5127 = vrot.slane %v4969, 7
  %v5128 = vsel %vm159, %v5126, %v5127
  %v5129 = vrot.slane %v4970, 7
  %v5130 = vrot.slane %v4971, 7
  %v5131 = vsel %vm159, %v5129, %v5130
  %v5226 = vsel %vm159, 0.0, %v5036
  %v5227 = vsel %vm159, 0.0, %v5039
  %v5228 = vsel %vm159, 0.0, %v5042
  %v5229 = vsel %vm159, 0.0, %v5045
  %v5230 = vsel %vm159, 0.0, %v5048
  %v5231 = vsel %vm159, 0.0, %v5051
  %v5232 = vsel %vm159, 0.0, %v5054
  %v5233 = vsel %vm159, 0.0, %v5057
  %v5234 = vsel %vm159, 0.0, %v5060
  %v5235 = vsel %vm159, 0.0, %v5063
  %v5236 = vsel %vm159, 0.0, %v5066
  %v5237 = vsel %vm159, 0.0, %v5069
  %v5238 = vsel %vm159, 0.0, %v5072
  %v5239 = vsel %vm159, 0.0, %v5075
  %v5240 = vsel %vm159, 0.0, %v5078
  %v5241 = vsel %vm159, 0.0, %v5081
  %v5242 = vsel %vm159, 0.0, %v5084
  %v5243 = vsel %vm159, 0.0, %v5087
  %v5244 = vsel %vm159, 0.0, %v5090
  %v5245 = vsel %vm159, 0.0, %v5093
  %v5246 = vsel %vm159, 0.0, %v5096
  %v5247 = vsel %vm159, 0.0, %v5099
  %v5248 = vsel %vm159, 0.0, %v5102
  %v5249 = vsel %vm159, 0.0, %v5105
  %v5250 = vsel %vm159, 0.0, %v5108
  %v5251 = vsel %vm159, 0.0, %v5111
  %v5252 = vsel %vm159, 0.0, %v5114
  %v5253 = vsel %vm159, 0.0, %v5117
  %v5254 = vsel %vm159, 0.0, %v5120
  %v5255 = vsel %vm159, 0.0, %v5123
  %v5256 = vsel %vm159, 0.0, %v5126
  %v5257 = vsel %vm159, 0.0, %v5129
  %v5258 = vsel %vm159, %v5037, 0.0
  %v5259 = vsel %vm159, %v5040, 0.0
  %v5260 = vsel %vm159, %v5043, 0.0
  %v5261 = vsel %vm159, %v5046, 0.0
  %v5262 = vsel %vm159, %v5049, 0.0
  %v5263 = vsel %vm159, %v5052, 0.0
  %v5264 = vsel %vm159, %v5055, 0.0
  %v5265 = vsel %vm159, %v5058, 0.0
  %v5266 = vsel %vm159, %v5061, 0.0
  %v5267 = vsel %vm159, %v5064, 0.0
  %v5268 = vsel %vm159, %v5067, 0.0
  %v5269 = vsel %vm159, %v5070, 0.0
  %v5270 = vsel %vm159, %v5073, 0.0
  %v5271 = vsel %vm159, %v5076, 0.0
  %v5272 = vsel %vm159, %v5079, 0.0
  %v5273 = vsel %vm159, %v5082, 0.0
  %v5274 = vsel %vm159, %v5085, 0.0
  %v5275 = vsel %vm159, %v5088, 0.0
  %v5276 = vsel %vm159, %v5091, 0.0
  %v5277 = vsel %vm159, %v5094, 0.0
  %v5278 = vsel %vm159, %v5097, 0.0
  %v5279 = vsel %vm159, %v5100, 0.0
  %v5280 = vsel %vm159, %v5103, 0.0
  %v5281 = vsel %vm159, %v5106, 0.0
  %v5282 = vsel %vm159, %v5109, 0.0
  %v5283 = vsel %vm159, %v5112, 0.0
  %v5284 = vsel %vm159, %v5115, 0.0
  %v5285 = vsel %vm159, %v5118, 0.0
  %v5286 = vsel %vm159, %v5121, 0.0
  %v5287 = vsel %vm159, %v5124, 0.0
  %v5288 = vsel %vm159, %v5127, 0.0
  %v5289 = vsel %vm159, %v5130, 0.0
  %v5290 = vld [vmem:[%s5] sm:$0xff]
  %v5291 = vld [vmem:[%s5 + $0x8] sm:$0xff]
  %v5292 = vld [vmem:[%s5 + $0x10] sm:$0xff]
  %v5293 = vld [vmem:[%s5 + $0x18] sm:$0xff]
  %v5294 = vld [vmem:[%s5 + $0x20] sm:$0xf]
  %v5355 = vrot.slane %v5226, 1
  %v5356 = vrot.slane %v5038, 1
  %v5357 = vsel %vm480, %v5355, %v5356
  %v5358 = vrot.slane %v5258, 1
  %v5359 = vsel %vm480, %v5356, %v5358
  %v5360 = vrot.slane %v5227, 1
  %v5361 = vrot.slane %v5041, 1
  %v5362 = vsel %vm480, %v5360, %v5361
  %v5363 = vrot.slane %v5259, 1
  %v5364 = vsel %vm480, %v5361, %v5363
  %v5365 = vrot.slane %v5228, 1
  %v5366 = vrot.slane %v5044, 1
  %v5367 = vsel %vm480, %v5365, %v5366
  %v5368 = vrot.slane %v5260, 1
  %v5369 = vsel %vm480, %v5366, %v5368
  %v5370 = vrot.slane %v5229, 1
  %v5371 = vrot.slane %v5047, 1
  %v5372 = vsel %vm480, %v5370, %v5371
  %v5373 = vrot.slane %v5261, 1
  %v5374 = vsel %vm480, %v5371, %v5373
  %v5375 = vrot.slane %v5230, 1
  %v5376 = vrot.slane %v5050, 1
  %v5377 = vsel %vm480, %v5375, %v5376
  %v5378 = vrot.slane %v5262, 1
  %v5379 = vsel %vm480, %v5376, %v5378
  %v5380 = vrot.slane %v5231, 1
  %v5381 = vrot.slane %v5053, 1
  %v5382 = vsel %vm480, %v5380, %v5381
  %v5383 = vrot.slane %v5263, 1
  %v5384 = vsel %vm480, %v5381, %v5383
  %v5385 = vrot.slane %v5232, 1
  %v5386 = vrot.slane %v5056, 1
  %v5387 = vsel %vm480, %v5385, %v5386
  %v5388 = vrot.slane %v5264, 1
  %v5389 = vsel %vm480, %v5386, %v5388
  %v5390 = vrot.slane %v5233, 1
  %v5391 = vrot.slane %v5059, 1
  %v5392 = vsel %vm480, %v5390, %v5391
  %v5393 = vrot.slane %v5265, 1
  %v5394 = vsel %vm480, %v5391, %v5393
  %v5395 = vrot.slane %v5234, 1
  %v5396 = vrot.slane %v5062, 1
  %v5397 = vsel %vm480, %v5395, %v5396
  %v5398 = vrot.slane %v5266, 1
  %v5399 = vsel %vm480, %v5396, %v5398
  %v5400 = vrot.slane %v5235, 1
  %v5401 = vrot.slane %v5065, 1
  %v5402 = vsel %vm480, %v5400, %v5401
  %v5403 = vrot.slane %v5267, 1
  %v5404 = vsel %vm480, %v5401, %v5403
  %v5405 = vrot.slane %v5236, 1
  %v5406 = vrot.slane %v5068, 1
  %v5407 = vsel %vm480, %v5405, %v5406
  %v5408 = vrot.slane %v5268, 1
  %v5409 = vsel %vm480, %v5406, %v5408
  %v5410 = vrot.slane %v5237, 1
  %v5411 = vrot.slane %v5071, 1
  %v5412 = vsel %vm480, %v5410, %v5411
  %v5413 = vrot.slane %v5269, 1
  %v5414 = vsel %vm480, %v5411, %v5413
  %v5415 = vrot.slane %v5238, 1
  %v5416 = vrot.slane %v5074, 1
  %v5417 = vsel %vm480, %v5415, %v5416
  %v5418 = vrot.slane %v5270, 1
  %v5419 = vsel %vm480, %v5416, %v5418
  %v5420 = vrot.slane %v5239, 1
  %v5421 = vrot.slane %v5077, 1
  %v5422 = vsel %vm480, %v5420, %v5421
  %v5423 = vrot.slane %v5271, 1
  %v5424 = vsel %vm480, %v5421, %v5423
  %v5425 = vrot.slane %v5240, 1
  %v5426 = vrot.slane %v5080, 1
  %v5427 = vsel %vm480, %v5425, %v5426
  %v5428 = vrot.slane %v5272, 1
  %v5429 = vsel %vm480, %v5426, %v5428
  %v5430 = vrot.slane %v5242, 1
  %v5431 = vrot.slane %v5086, 1
  %v5432 = vsel %vm480, %v5430, %v5431
  %v5433 = vrot.slane %v5274, 1
  %v5434 = vsel %vm480, %v5431, %v5433
  %v5435 = vrot.slane %v5243, 1
  %v5436 = vrot.slane %v5089, 1
  %v5437 = vsel %vm480, %v5435, %v5436
  %v5438 = vrot.slane %v5275, 1
  %v5439 = vsel %vm480, %v5436, %v5438
  %v5440 = vrot.slane %v5244, 1
  %v5441 = vrot.slane %v5092, 1
  %v5442 = vsel %vm480, %v5440, %v5441
  %v5443 = vrot.slane %v5276, 1
  %v5444 = vsel %vm480, %v5441, %v5443
  %v5445 = vrot.slane %v5245, 1
  %v5446 = vrot.slane %v5095, 1
  %v5447 = vsel %vm480, %v5445, %v5446
  %v5448 = vrot.slane %v5277, 1
  %v5449 = vsel %vm480, %v5446, %v5448
  %v5450 = vrot.slane %v5246, 1
  %v5451 = vrot.slane %v5098, 1
  %v5452 = vsel %vm480, %v5450, %v5451
  %v5453 = vrot.slane %v5278, 1
  %v5454 = vsel %vm480, %v5451, %v5453
  %v5455 = vrot.slane %v5247, 1
  %v5456 = vrot.slane %v5101, 1
  %v5457 = vsel %vm480, %v5455, %v5456
  %v5458 = vrot.slane %v5279, 1
  %v5459 = vsel %vm480, %v5456, %v5458
  %v5460 = vrot.slane %v5248, 1
  %v5461 = vrot.slane %v5104, 1
  %v5462 = vsel %vm480, %v5460, %v5461
  %v5463 = vrot.slane %v5280, 1
  %v5464 = vsel %vm480, %v5461, %v5463
  %v5465 = vrot.slane %v5249, 1
  %v5466 = vrot.slane %v5107, 1
  %v5467 = vsel %vm480, %v5465, %v5466
  %v5468 = vrot.slane %v5281, 1
  %v5469 = vsel %vm480, %v5466, %v5468
  %v5470 = vrot.slane %v5250, 1
  %v5471 = vrot.slane %v5110, 1
  %v5472 = vsel %vm480, %v5470, %v5471
  %v5473 = vrot.slane %v5282, 1
  %v5474 = vsel %vm480, %v5471, %v5473
  %v5475 = vrot.slane %v5251, 1
  %v5476 = vrot.slane %v5113, 1
  %v5477 = vsel %vm480, %v5475, %v5476
  %v5478 = vrot.slane %v5283, 1
  %v5479 = vsel %vm480, %v5476, %v5478
  %v5480 = vrot.slane %v5252, 1
  %v5481 = vrot.slane %v5116, 1
  %v5482 = vsel %vm480, %v5480, %v5481
  %v5483 = vrot.slane %v5284, 1
  %v5484 = vsel %vm480, %v5481, %v5483
  %v5485 = vrot.slane %v5253, 1
  %v5486 = vrot.slane %v5119, 1
  %v5487 = vsel %vm480, %v5485, %v5486
  %v5488 = vrot.slane %v5285, 1
  %v5489 = vsel %vm480, %v5486, %v5488
  %v5490 = vrot.slane %v5254, 1
  %v5491 = vrot.slane %v5122, 1
  %v5492 = vsel %vm480, %v5490, %v5491
  %v5493 = vrot.slane %v5286, 1
  %v5494 = vsel %vm480, %v5491, %v5493
  %v5495 = vrot.slane %v5255, 1
  %v5496 = vrot.slane %v5125, 1
  %v5497 = vsel %vm480, %v5495, %v5496
  %v5498 = vrot.slane %v5287, 1
  %v5499 = vsel %vm480, %v5496, %v5498
  %v5500 = vrot.slane %v5256, 1
  %v5501 = vrot.slane %v5128, 1
  %v5502 = vsel %vm480, %v5500, %v5501
  %v5503 = vrot.slane %v5288, 1
  %v5504 = vsel %vm480, %v5501, %v5503
  %5505 = vrot.lane.b32.xlu0 %v5357, 4
  %v5506 = vpop.permute.xlu0 %5505
  %5507 = vrot.lane.b32.xlu0 %v5359, 4
  %v5508 = vpop.permute.xlu0 %5507
  %5509 = vrot.lane.b32.xlu0 %v5362, 4
  %v5510 = vpop.permute.xlu0 %5509
  %5511 = vrot.lane.b32.xlu0 %v5364, 4
  %v5512 = vpop.permute.xlu0 %5511
  %5513 = vrot.lane.b32.xlu0 %v5367, 4
  %v5514 = vpop.permute.xlu0 %5513
  %5515 = vrot.lane.b32.xlu0 %v5369, 4
  %v5516 = vpop.permute.xlu0 %5515
  %5517 = vrot.lane.b32.xlu0 %v5372, 4
  %v5518 = vpop.permute.xlu0 %5517
  %5519 = vrot.lane.b32.xlu0 %v5374, 4
  %v5520 = vpop.permute.xlu0 %5519
  %5521 = vrot.lane.b32.xlu0 %v5377, 4
  %v5522 = vpop.permute.xlu0 %5521
  %5523 = vrot.lane.b32.xlu0 %v5379, 4
  %v5524 = vpop.permute.xlu0 %5523
  %5525 = vrot.lane.b32.xlu0 %v5382, 4
  %v5526 = vpop.permute.xlu0 %5525
  %5527 = vrot.lane.b32.xlu0 %v5384, 4
  %v5528 = vpop.permute.xlu0 %5527
  %5529 = vrot.lane.b32.xlu0 %v5387, 4
  %v5530 = vpop.permute.xlu0 %5529
  %5531 = vrot.lane.b32.xlu0 %v5389, 4
  %v5532 = vpop.permute.xlu0 %5531
  %5533 = vrot.lane.b32.xlu0 %v5392, 4
  %v5534 = vpop.permute.xlu0 %5533
  %5535 = vrot.lane.b32.xlu0 %v5394, 4
  %v5536 = vpop.permute.xlu0 %5535
  %5537 = vrot.lane.b32.xlu0 %v5397, 4
  %v5538 = vpop.permute.xlu0 %5537
  %5539 = vrot.lane.b32.xlu0 %v5399, 4
  %v5540 = vpop.permute.xlu0 %5539
  %5541 = vrot.lane.b32.xlu0 %v5402, 4
  %v5542 = vpop.permute.xlu0 %5541
  %5543 = vrot.lane.b32.xlu0 %v5404, 4
  %v5544 = vpop.permute.xlu0 %5543
  %5545 = vrot.lane.b32.xlu0 %v5407, 4
  %v5546 = vpop.permute.xlu0 %5545
  %5547 = vrot.lane.b32.xlu0 %v5409, 4
  %v5548 = vpop.permute.xlu0 %5547
  %5549 = vrot.lane.b32.xlu0 %v5412, 4
  %v5550 = vpop.permute.xlu0 %5549
  %5551 = vrot.lane.b32.xlu0 %v5414, 4
  %v5552 = vpop.permute.xlu0 %5551
  %5553 = vrot.lane.b32.xlu0 %v5417, 4
  %v5554 = vpop.permute.xlu0 %5553
  %5555 = vrot.lane.b32.xlu0 %v5419, 4
  %v5556 = vpop.permute.xlu0 %5555
  %5557 = vrot.lane.b32.xlu0 %v5422, 4
  %v5558 = vpop.permute.xlu0 %5557
  %5559 = vrot.lane.b32.xlu0 %v5424, 4
  %v5560 = vpop.permute.xlu0 %5559
  %5561 = vrot.lane.b32.xlu0 %v5427, 4
  %v5562 = vpop.permute.xlu0 %5561
  %5563 = vrot.lane.b32.xlu0 %v5429, 4
  %v5564 = vpop.permute.xlu0 %5563
  %5565 = vrot.lane.b32.xlu0 %v5432, 4
  %v5566 = vpop.permute.xlu0 %5565
  %5567 = vrot.lane.b32.xlu0 %v5434, 4
  %v5568 = vpop.permute.xlu0 %5567
  %5569 = vrot.lane.b32.xlu0 %v5437, 4
  %v5570 = vpop.permute.xlu0 %5569
  %5571 = vrot.lane.b32.xlu0 %v5439, 4
  %v5572 = vpop.permute.xlu0 %5571
  %5573 = vrot.lane.b32.xlu0 %v5442, 4
  %v5574 = vpop.permute.xlu0 %5573
  %5575 = vrot.lane.b32.xlu0 %v5444, 4
  %v5576 = vpop.permute.xlu0 %5575
  %5577 = vrot.lane.b32.xlu0 %v5447, 4
  %v5578 = vpop.permute.xlu0 %5577
  %5579 = vrot.lane.b32.xlu0 %v5449, 4
  %v5580 = vpop.permute.xlu0 %5579
  %5581 = vrot.lane.b32.xlu0 %v5452, 4
  %v5582 = vpop.permute.xlu0 %5581
  %5583 = vrot.lane.b32.xlu0 %v5454, 4
  %v5584 = vpop.permute.xlu0 %5583
  %5585 = vrot.lane.b32.xlu0 %v5457, 4
  %v5586 = vpop.permute.xlu0 %5585
  %5587 = vrot.lane.b32.xlu0 %v5459, 4
  %v5588 = vpop.permute.xlu0 %5587
  %5589 = vrot.lane.b32.xlu0 %v5462, 4
  %v5590 = vpop.permute.xlu0 %5589
  %5591 = vrot.lane.b32.xlu0 %v5464, 4
  %v5592 = vpop.permute.xlu0 %5591
  %5593 = vrot.lane.b32.xlu0 %v5467, 4
  %v5594 = vpop.permute.xlu0 %5593
  %5595 = vrot.lane.b32.xlu0 %v5469, 4
  %v5596 = vpop.permute.xlu0 %5595
  %5597 = vrot.lane.b32.xlu0 %v5472, 4
  %v5598 = vpop.permute.xlu0 %5597
  %5599 = vrot.lane.b32.xlu0 %v5474, 4
  %v5600 = vpop.permute.xlu0 %5599
  %5601 = vrot.lane.b32.xlu0 %v5477, 4
  %v5602 = vpop.permute.xlu0 %5601
  %5603 = vrot.lane.b32.xlu0 %v5479, 4
  %v5604 = vpop.permute.xlu0 %5603
  %5605 = vrot.lane.b32.xlu0 %v5482, 4
  %v5606 = vpop.permute.xlu0 %5605
  %5607 = vrot.lane.b32.xlu0 %v5484, 4
  %v5608 = vpop.permute.xlu0 %5607
  %5609 = vrot.lane.b32.xlu0 %v5487, 4
  %v5610 = vpop.permute.xlu0 %5609
  %5611 = vrot.lane.b32.xlu0 %v5489, 4
  %v5612 = vpop.permute.xlu0 %5611
  %5613 = vrot.lane.b32.xlu0 %v5492, 4
  %v5614 = vpop.permute.xlu0 %5613
  %5615 = vrot.lane.b32.xlu0 %v5494, 4
  %v5616 = vpop.permute.xlu0 %5615
  %5617 = vrot.lane.b32.xlu0 %v5497, 4
  %v5618 = vpop.permute.xlu0 %5617
  %5619 = vrot.lane.b32.xlu0 %v5499, 4
  %v5620 = vpop.permute.xlu0 %5619
  %5621 = vrot.lane.b32.xlu0 %v5502, 4
  %v5622 = vpop.permute.xlu0 %5621
  %5623 = vrot.lane.b32.xlu0 %v5504, 4
  %v5624 = vpop.permute.xlu0 %5623
  %v5685 = vrot.slane %v5226, 2
  %v5686 = vrot.slane %v5038, 2
  %v5687 = vsel %vm816, %v5685, %v5686
  %v5688 = vrot.slane %v5258, 2
  %v5689 = vsel %vm816, %v5686, %v5688
  %v5690 = vrot.slane %v5227, 2
  %v5691 = vrot.slane %v5041, 2
  %v5692 = vsel %vm816, %v5690, %v5691
  %v5693 = vrot.slane %v5259, 2
  %v5694 = vsel %vm816, %v5691, %v5693
  %v5695 = vrot.slane %v5228, 2
  %v5696 = vrot.slane %v5044, 2
  %v5697 = vsel %vm816, %v5695, %v5696
  %v5698 = vrot.slane %v5260, 2
  %v5699 = vsel %vm816, %v5696, %v5698
  %v5700 = vrot.slane %v5229, 2
  %v5701 = vrot.slane %v5047, 2
  %v5702 = vsel %vm816, %v5700, %v5701
  %v5703 = vrot.slane %v5261, 2
  %v5704 = vsel %vm816, %v5701, %v5703
  %v5705 = vrot.slane %v5230, 2
  %v5706 = vrot.slane %v5050, 2
  %v5707 = vsel %vm816, %v5705, %v5706
  %v5708 = vrot.slane %v5262, 2
  %v5709 = vsel %vm816, %v5706, %v5708
  %v5710 = vrot.slane %v5231, 2
  %v5711 = vrot.slane %v5053, 2
  %v5712 = vsel %vm816, %v5710, %v5711
  %v5713 = vrot.slane %v5263, 2
  %v5714 = vsel %vm816, %v5711, %v5713
  %v5715 = vrot.slane %v5232, 2
  %v5716 = vrot.slane %v5056, 2
  %v5717 = vsel %vm816, %v5715, %v5716
  %v5718 = vrot.slane %v5264, 2
  %v5719 = vsel %vm816, %v5716, %v5718
  %v5720 = vrot.slane %v5233, 2
  %v5721 = vrot.slane %v5059, 2
  %v5722 = vsel %vm816, %v5720, %v5721
  %v5723 = vrot.slane %v5265, 2
  %v5724 = vsel %vm816, %v5721, %v5723
  %v5725 = vrot.slane %v5234, 2
  %v5726 = vrot.slane %v5062, 2
  %v5727 = vsel %vm816, %v5725, %v5726
  %v5728 = vrot.slane %v5266, 2
  %v5729 = vsel %vm816, %v5726, %v5728
  %v5730 = vrot.slane %v5235, 2
  %v5731 = vrot.slane %v5065, 2
  %v5732 = vsel %vm816, %v5730, %v5731
  %v5733 = vrot.slane %v5267, 2
  %v5734 = vsel %vm816, %v5731, %v5733
  %v5735 = vrot.slane %v5236, 2
  %v5736 = vrot.slane %v5068, 2
  %v5737 = vsel %vm816, %v5735, %v5736
  %v5738 = vrot.slane %v5268, 2
  %v5739 = vsel %vm816, %v5736, %v5738
  %v5740 = vrot.slane %v5237, 2
  %v5741 = vrot.slane %v5071, 2
  %v5742 = vsel %vm816, %v5740, %v5741
  %v5743 = vrot.slane %v5269, 2
  %v5744 = vsel %vm816, %v5741, %v5743
  %v5745 = vrot.slane %v5238, 2
  %v5746 = vrot.slane %v5074, 2
  %v5747 = vsel %vm816, %v5745, %v5746
  %v5748 = vrot.slane %v5270, 2
  %v5749 = vsel %vm816, %v5746, %v5748
  %v5750 = vrot.slane %v5239, 2
  %v5751 = vrot.slane %v5077, 2
  %v5752 = vsel %vm816, %v5750, %v5751
  %v5753 = vrot.slane %v5271, 2
  %v5754 = vsel %vm816, %v5751, %v5753
  %v5755 = vrot.slane %v5240, 2
  %v5756 = vrot.slane %v5080, 2
  %v5757 = vsel %vm816, %v5755, %v5756
  %v5758 = vrot.slane %v5272, 2
  %v5759 = vsel %vm816, %v5756, %v5758
  %v5760 = vrot.slane %v5242, 2
  %v5761 = vrot.slane %v5086, 2
  %v5762 = vsel %vm816, %v5760, %v5761
  %v5763 = vrot.slane %v5274, 2
  %v5764 = vsel %vm816, %v5761, %v5763
  %v5765 = vrot.slane %v5243, 2
  %v5766 = vrot.slane %v5089, 2
  %v5767 = vsel %vm816, %v5765, %v5766
  %v5768 = vrot.slane %v5275, 2
  %v5769 = vsel %vm816, %v5766, %v5768
  %v5770 = vrot.slane %v5244, 2
  %v5771 = vrot.slane %v5092, 2
  %v5772 = vsel %vm816, %v5770, %v5771
  %v5773 = vrot.slane %v5276, 2
  %v5774 = vsel %vm816, %v5771, %v5773
  %v5775 = vrot.slane %v5245, 2
  %v5776 = vrot.slane %v5095, 2
  %v5777 = vsel %vm816, %v5775, %v5776
  %v5778 = vrot.slane %v5277, 2
  %v5779 = vsel %vm816, %v5776, %v5778
  %v5780 = vrot.slane %v5246, 2
  %v5781 = vrot.slane %v5098, 2
  %v5782 = vsel %vm816, %v5780, %v5781
  %v5783 = vrot.slane %v5278, 2
  %v5784 = vsel %vm816, %v5781, %v5783
  %v5785 = vrot.slane %v5247, 2
  %v5786 = vrot.slane %v5101, 2
  %v5787 = vsel %vm816, %v5785, %v5786
  %v5788 = vrot.slane %v5279, 2
  %v5789 = vsel %vm816, %v5786, %v5788
  %v5790 = vrot.slane %v5248, 2
  %v5791 = vrot.slane %v5104, 2
  %v5792 = vsel %vm816, %v5790, %v5791
  %v5793 = vrot.slane %v5280, 2
  %v5794 = vsel %vm816, %v5791, %v5793
  %v5795 = vrot.slane %v5249, 2
  %v5796 = vrot.slane %v5107, 2
  %v5797 = vsel %vm816, %v5795, %v5796
  %v5798 = vrot.slane %v5281, 2
  %v5799 = vsel %vm816, %v5796, %v5798
  %v5800 = vrot.slane %v5250, 2
  %v5801 = vrot.slane %v5110, 2
  %v5802 = vsel %vm816, %v5800, %v5801
  %v5803 = vrot.slane %v5282, 2
  %v5804 = vsel %vm816, %v5801, %v5803
  %v5805 = vrot.slane %v5251, 2
  %v5806 = vrot.slane %v5113, 2
  %v5807 = vsel %vm816, %v5805, %v5806
  %v5808 = vrot.slane %v5283, 2
  %v5809 = vsel %vm816, %v5806, %v5808
  %v5810 = vrot.slane %v5252, 2
  %v5811 = vrot.slane %v5116, 2
  %v5812 = vsel %vm816, %v5810, %v5811
  %v5813 = vrot.slane %v5284, 2
  %v5814 = vsel %vm816, %v5811, %v5813
  %v5815 = vrot.slane %v5253, 2
  %v5816 = vrot.slane %v5119, 2
  %v5817 = vsel %vm816, %v5815, %v5816
  %v5818 = vrot.slane %v5285, 2
  %v5819 = vsel %vm816, %v5816, %v5818
  %v5820 = vrot.slane %v5254, 2
  %v5821 = vrot.slane %v5122, 2
  %v5822 = vsel %vm816, %v5820, %v5821
  %v5823 = vrot.slane %v5286, 2
  %v5824 = vsel %vm816, %v5821, %v5823
  %v5825 = vrot.slane %v5255, 2
  %v5826 = vrot.slane %v5125, 2
  %v5827 = vsel %vm816, %v5825, %v5826
  %v5828 = vrot.slane %v5287, 2
  %v5829 = vsel %vm816, %v5826, %v5828
  %v5830 = vrot.slane %v5256, 2
  %v5831 = vrot.slane %v5128, 2
  %v5832 = vsel %vm816, %v5830, %v5831
  %v5833 = vrot.slane %v5288, 2
  %v5834 = vsel %vm816, %v5831, %v5833
  %5835 = vrot.lane.b32.xlu0 %v5687, 8
  %v5836 = vpop.permute.xlu0 %5835
  %5837 = vrot.lane.b32.xlu0 %v5689, 8
  %v5838 = vpop.permute.xlu0 %5837
  %5839 = vrot.lane.b32.xlu0 %v5692, 8
  %v5840 = vpop.permute.xlu0 %5839
  %5841 = vrot.lane.b32.xlu0 %v5694, 8
  %v5842 = vpop.permute.xlu0 %5841
  %5843 = vrot.lane.b32.xlu0 %v5697, 8
  %v5844 = vpop.permute.xlu0 %5843
  %5845 = vrot.lane.b32.xlu0 %v5699, 8
  %v5846 = vpop.permute.xlu0 %5845
  %5847 = vrot.lane.b32.xlu0 %v5702, 8
  %v5848 = vpop.permute.xlu0 %5847
  %5849 = vrot.lane.b32.xlu0 %v5704, 8
  %v5850 = vpop.permute.xlu0 %5849
  %5851 = vrot.lane.b32.xlu0 %v5707, 8
  %v5852 = vpop.permute.xlu0 %5851
  %5853 = vrot.lane.b32.xlu0 %v5709, 8
  %v5854 = vpop.permute.xlu0 %5853
  %5855 = vrot.lane.b32.xlu0 %v5712, 8
  %v5856 = vpop.permute.xlu0 %5855
  %5857 = vrot.lane.b32.xlu0 %v5714, 8
  %v5858 = vpop.permute.xlu0 %5857
  %5859 = vrot.lane.b32.xlu0 %v5717, 8
  %v5860 = vpop.permute.xlu0 %5859
  %5861 = vrot.lane.b32.xlu0 %v5719, 8
  %v5862 = vpop.permute.xlu0 %5861
  %5863 = vrot.lane.b32.xlu0 %v5722, 8
  %v5864 = vpop.permute.xlu0 %5863
  %5865 = vrot.lane.b32.xlu0 %v5724, 8
  %v5866 = vpop.permute.xlu0 %5865
  %5867 = vrot.lane.b32.xlu0 %v5727, 8
  %v5868 = vpop.permute.xlu0 %5867
  %5869 = vrot.lane.b32.xlu0 %v5729, 8
  %v5870 = vpop.permute.xlu0 %5869
  %5871 = vrot.lane.b32.xlu0 %v5732, 8
  %v5872 = vpop.permute.xlu0 %5871
  %5873 = vrot.lane.b32.xlu0 %v5734, 8
  %v5874 = vpop.permute.xlu0 %5873
  %5875 = vrot.lane.b32.xlu0 %v5737, 8
  %v5876 = vpop.permute.xlu0 %5875
  %5877 = vrot.lane.b32.xlu0 %v5739, 8
  %v5878 = vpop.permute.xlu0 %5877
  %5879 = vrot.lane.b32.xlu0 %v5742, 8
  %v5880 = vpop.permute.xlu0 %5879
  %5881 = vrot.lane.b32.xlu0 %v5744, 8
  %v5882 = vpop.permute.xlu0 %5881
  %5883 = vrot.lane.b32.xlu0 %v5747, 8
  %v5884 = vpop.permute.xlu0 %5883
  %5885 = vrot.lane.b32.xlu0 %v5749, 8
  %v5886 = vpop.permute.xlu0 %5885
  %5887 = vrot.lane.b32.xlu0 %v5752, 8
  %v5888 = vpop.permute.xlu0 %5887
  %5889 = vrot.lane.b32.xlu0 %v5754, 8
  %v5890 = vpop.permute.xlu0 %5889
  %5891 = vrot.lane.b32.xlu0 %v5757, 8
  %v5892 = vpop.permute.xlu0 %5891
  %5893 = vrot.lane.b32.xlu0 %v5759, 8
  %v5894 = vpop.permute.xlu0 %5893
  %5895 = vrot.lane.b32.xlu0 %v5762, 8
  %v5896 = vpop.permute.xlu0 %5895
  %5897 = vrot.lane.b32.xlu0 %v5764, 8
  %v5898 = vpop.permute.xlu0 %5897
  %5899 = vrot.lane.b32.xlu0 %v5767, 8
  %v5900 = vpop.permute.xlu0 %5899
  %5901 = vrot.lane.b32.xlu0 %v5769, 8
  %v5902 = vpop.permute.xlu0 %5901
  %5903 = vrot.lane.b32.xlu0 %v5772, 8
  %v5904 = vpop.permute.xlu0 %5903
  %5905 = vrot.lane.b32.xlu0 %v5774, 8
  %v5906 = vpop.permute.xlu0 %5905
  %5907 = vrot.lane.b32.xlu0 %v5777, 8
  %v5908 = vpop.permute.xlu0 %5907
  %5909 = vrot.lane.b32.xlu0 %v5779, 8
  %v5910 = vpop.permute.xlu0 %5909
  %5911 = vrot.lane.b32.xlu0 %v5782, 8
  %v5912 = vpop.permute.xlu0 %5911
  %5913 = vrot.lane.b32.xlu0 %v5784, 8
  %v5914 = vpop.permute.xlu0 %5913
  %5915 = vrot.lane.b32.xlu0 %v5787, 8
  %v5916 = vpop.permute.xlu0 %5915
  %5917 = vrot.lane.b32.xlu0 %v5789, 8
  %v5918 = vpop.permute.xlu0 %5917
  %5919 = vrot.lane.b32.xlu0 %v5792, 8
  %v5920 = vpop.permute.xlu0 %5919
  %5921 = vrot.lane.b32.xlu0 %v5794, 8
  %v5922 = vpop.permute.xlu0 %5921
  %5923 = vrot.lane.b32.xlu0 %v5797, 8
  %v5924 = vpop.permute.xlu0 %5923
  %5925 = vrot.lane.b32.xlu0 %v5799, 8
  %v5926 = vpop.permute.xlu0 %5925
  %5927 = vrot.lane.b32.xlu0 %v5802, 8
  %v5928 = vpop.permute.xlu0 %5927
  %5929 = vrot.lane.b32.xlu0 %v5804, 8
  %v5930 = vpop.permute.xlu0 %5929
  %5931 = vrot.lane.b32.xlu0 %v5807, 8
  %v5932 = vpop.permute.xlu0 %5931
  %5933 = vrot.lane.b32.xlu0 %v5809, 8
  %v5934 = vpop.permute.xlu0 %5933
  %5935 = vrot.lane.b32.xlu0 %v5812, 8
  %v5936 = vpop.permute.xlu0 %5935
  %5937 = vrot.lane.b32.xlu0 %v5814, 8
  %v5938 = vpop.permute.xlu0 %5937
  %5939 = vrot.lane.b32.xlu0 %v5817, 8
  %v5940 = vpop.permute.xlu0 %5939
  %5941 = vrot.lane.b32.xlu0 %v5819, 8
  %v5942 = vpop.permute.xlu0 %5941
  %5943 = vrot.lane.b32.xlu0 %v5822, 8
  %v5944 = vpop.permute.xlu0 %5943
  %5945 = vrot.lane.b32.xlu0 %v5824, 8
  %v5946 = vpop.permute.xlu0 %5945
  %5947 = vrot.lane.b32.xlu0 %v5827, 8
  %v5948 = vpop.permute.xlu0 %5947
  %5949 = vrot.lane.b32.xlu0 %v5829, 8
  %v5950 = vpop.permute.xlu0 %5949
  %5951 = vrot.lane.b32.xlu0 %v5832, 8
  %v5952 = vpop.permute.xlu0 %5951
  %5953 = vrot.lane.b32.xlu0 %v5834, 8
  %v5954 = vpop.permute.xlu0 %5953
  %6017 = vrot.lane.b32.xlu0 %v5226, 12
  %v6018 = vpop.permute.xlu0 %6017
  %6019 = vrot.lane.b32.xlu0 %v5038, 12
  %v6020 = vpop.permute.xlu0 %6019
  %6021 = vrot.lane.b32.xlu0 %v5227, 12
  %v6022 = vpop.permute.xlu0 %6021
  %6023 = vrot.lane.b32.xlu0 %v5041, 12
  %v6024 = vpop.permute.xlu0 %6023
  %6025 = vrot.lane.b32.xlu0 %v5228, 12
  %v6026 = vpop.permute.xlu0 %6025
  %6027 = vrot.lane.b32.xlu0 %v5044, 12
  %v6028 = vpop.permute.xlu0 %6027
  %6029 = vrot.lane.b32.xlu0 %v5229, 12
  %v6030 = vpop.permute.xlu0 %6029
  %6031 = vrot.lane.b32.xlu0 %v5047, 12
  %v6032 = vpop.permute.xlu0 %6031
  %6033 = vrot.lane.b32.xlu0 %v5230, 12
  %v6034 = vpop.permute.xlu0 %6033
  %6035 = vrot.lane.b32.xlu0 %v5050, 12
  %v6036 = vpop.permute.xlu0 %6035
  %6037 = vrot.lane.b32.xlu0 %v5231, 12
  %v6038 = vpop.permute.xlu0 %6037
  %6039 = vrot.lane.b32.xlu0 %v5053, 12
  %v6040 = vpop.permute.xlu0 %6039
  %6041 = vrot.lane.b32.xlu0 %v5232, 12
  %v6042 = vpop.permute.xlu0 %6041
  %6043 = vrot.lane.b32.xlu0 %v5056, 12
  %v6044 = vpop.permute.xlu0 %6043
  %6045 = vrot.lane.b32.xlu0 %v5233, 12
  %v6046 = vpop.permute.xlu0 %6045
  %6047 = vrot.lane.b32.xlu0 %v5059, 12
  %v6048 = vpop.permute.xlu0 %6047
  %6049 = vrot.lane.b32.xlu0 %v5234, 12
  %v6050 = vpop.permute.xlu0 %6049
  %6051 = vrot.lane.b32.xlu0 %v5062, 12
  %v6052 = vpop.permute.xlu0 %6051
  %6053 = vrot.lane.b32.xlu0 %v5235, 12
  %v6054 = vpop.permute.xlu0 %6053
  %6055 = vrot.lane.b32.xlu0 %v5065, 12
  %v6056 = vpop.permute.xlu0 %6055
  %6057 = vrot.lane.b32.xlu0 %v5236, 12
  %v6058 = vpop.permute.xlu0 %6057
  %6059 = vrot.lane.b32.xlu0 %v5068, 12
  %v6060 = vpop.permute.xlu0 %6059
  %6061 = vrot.lane.b32.xlu0 %v5237, 12
  %v6062 = vpop.permute.xlu0 %6061
  %6063 = vrot.lane.b32.xlu0 %v5071, 12
  %v6064 = vpop.permute.xlu0 %6063
  %6065 = vrot.lane.b32.xlu0 %v5238, 12
  %v6066 = vpop.permute.xlu0 %6065
  %6067 = vrot.lane.b32.xlu0 %v5074, 12
  %v6068 = vpop.permute.xlu0 %6067
  %6069 = vrot.lane.b32.xlu0 %v5239, 12
  %v6070 = vpop.permute.xlu0 %6069
  %6071 = vrot.lane.b32.xlu0 %v5077, 12
  %v6072 = vpop.permute.xlu0 %6071
  %6073 = vrot.lane.b32.xlu0 %v5240, 12
  %v6074 = vpop.permute.xlu0 %6073
  %6075 = vrot.lane.b32.xlu0 %v5080, 12
  %v6076 = vpop.permute.xlu0 %6075
  %6077 = vrot.lane.b32.xlu0 %v5241, 12
  %v6078 = vpop.permute.xlu0 %6077
  %6079 = vrot.lane.b32.xlu0 %v5083, 12
  %v6080 = vpop.permute.xlu0 %6079
  %6081 = vrot.lane.b32.xlu0 %v5242, 12
  %v6082 = vpop.permute.xlu0 %6081
  %6083 = vrot.lane.b32.xlu0 %v5086, 12
  %v6084 = vpop.permute.xlu0 %6083
  %6085 = vrot.lane.b32.xlu0 %v5243, 12
  %v6086 = vpop.permute.xlu0 %6085
  %6087 = vrot.lane.b32.xlu0 %v5089, 12
  %v6088 = vpop.permute.xlu0 %6087
  %6089 = vrot.lane.b32.xlu0 %v5244, 12
  %v6090 = vpop.permute.xlu0 %6089
  %6091 = vrot.lane.b32.xlu0 %v5092, 12
  %v6092 = vpop.permute.xlu0 %6091
  %6093 = vrot.lane.b32.xlu0 %v5245, 12
  %v6094 = vpop.permute.xlu0 %6093
  %6095 = vrot.lane.b32.xlu0 %v5095, 12
  %v6096 = vpop.permute.xlu0 %6095
  %6097 = vrot.lane.b32.xlu0 %v5246, 12
  %v6098 = vpop.permute.xlu0 %6097
  %6099 = vrot.lane.b32.xlu0 %v5098, 12
  %v6100 = vpop.permute.xlu0 %6099
  %6101 = vrot.lane.b32.xlu0 %v5247, 12
  %v6102 = vpop.permute.xlu0 %6101
  %6103 = vrot.lane.b32.xlu0 %v5101, 12
  %v6104 = vpop.permute.xlu0 %6103
  %6105 = vrot.lane.b32.xlu0 %v5248, 12
  %v6106 = vpop.permute.xlu0 %6105
  %6107 = vrot.lane.b32.xlu0 %v5104, 12
  %v6108 = vpop.permute.xlu0 %6107
  %6109 = vrot.lane.b32.xlu0 %v5249, 12
  %v6110 = vpop.permute.xlu0 %6109
  %6111 = vrot.lane.b32.xlu0 %v5107, 12
  %v6112 = vpop.permute.xlu0 %6111
  %6113 = vrot.lane.b32.xlu0 %v5250, 12
  %v6114 = vpop.permute.xlu0 %6113
  %6115 = vrot.lane.b32.xlu0 %v5110, 12
  %v6116 = vpop.permute.xlu0 %6115
  %6117 = vrot.lane.b32.xlu0 %v5251, 12
  %v6118 = vpop.permute.xlu0 %6117
  %6119 = vrot.lane.b32.xlu0 %v5113, 12
  %v6120 = vpop.permute.xlu0 %6119
  %6121 = vrot.lane.b32.xlu0 %v5252, 12
  %v6122 = vpop.permute.xlu0 %6121
  %6123 = vrot.lane.b32.xlu0 %v5116, 12
  %v6124 = vpop.permute.xlu0 %6123
  %6125 = vrot.lane.b32.xlu0 %v5253, 12
  %v6126 = vpop.permute.xlu0 %6125
  %6127 = vrot.lane.b32.xlu0 %v5119, 12
  %v6128 = vpop.permute.xlu0 %6127
  %6129 = vrot.lane.b32.xlu0 %v5254, 12
  %v6130 = vpop.permute.xlu0 %6129
  %6131 = vrot.lane.b32.xlu0 %v5122, 12
  %v6132 = vpop.permute.xlu0 %6131
  %6133 = vrot.lane.b32.xlu0 %v5255, 12
  %v6134 = vpop.permute.xlu0 %6133
  %6135 = vrot.lane.b32.xlu0 %v5125, 12
  %v6136 = vpop.permute.xlu0 %6135
  %6137 = vrot.lane.b32.xlu0 %v5256, 12
  %v6138 = vpop.permute.xlu0 %6137
  %6139 = vrot.lane.b32.xlu0 %v5128, 12
  %v6140 = vpop.permute.xlu0 %6139
  %6141 = vrot.lane.b32.xlu0 %v5257, 12
  %v6142 = vpop.permute.xlu0 %6141
  %6143 = vrot.lane.b32.xlu0 %v5131, 12
  %v6144 = vpop.permute.xlu0 %6143
  %v6211 = vrot.slane %v5241, 1
  %v6212 = vrot.slane %v5083, 1
  %v6213 = vsel %vm480, %v6211, %v6212
  %v6214 = vrot.slane %v5273, 1
  %v6215 = vsel %vm480, %v6212, %v6214
  %v6216 = vrot.slane %v5257, 1
  %v6217 = vrot.slane %v5131, 1
  %v6218 = vsel %vm480, %v6216, %v6217
  %v6219 = vrot.slane %v5289, 1
  %v6220 = vsel %vm480, %v6217, %v6219
  %6221 = vrot.lane.b32.xlu0 %v5357, 16
  %v6222 = vpop.permute.xlu0 %6221
  %6223 = vrot.lane.b32.xlu0 %v5359, 16
  %v6224 = vpop.permute.xlu0 %6223
  %6225 = vrot.lane.b32.xlu0 %v5362, 16
  %v6226 = vpop.permute.xlu0 %6225
  %6227 = vrot.lane.b32.xlu0 %v5364, 16
  %v6228 = vpop.permute.xlu0 %6227
  %6229 = vrot.lane.b32.xlu0 %v5367, 16
  %v6230 = vpop.permute.xlu0 %6229
  %6231 = vrot.lane.b32.xlu0 %v5369, 16
  %v6232 = vpop.permute.xlu0 %6231
  %6233 = vrot.lane.b32.xlu0 %v5372, 16
  %v6234 = vpop.permute.xlu0 %6233
  %6235 = vrot.lane.b32.xlu0 %v5374, 16
  %v6236 = vpop.permute.xlu0 %6235
  %6237 = vrot.lane.b32.xlu0 %v5377, 16
  %v6238 = vpop.permute.xlu0 %6237
  %6239 = vrot.lane.b32.xlu0 %v5379, 16
  %v6240 = vpop.permute.xlu0 %6239
  %6241 = vrot.lane.b32.xlu0 %v5382, 16
  %v6242 = vpop.permute.xlu0 %6241
  %6243 = vrot.lane.b32.xlu0 %v5384, 16
  %v6244 = vpop.permute.xlu0 %6243
  %6245 = vrot.lane.b32.xlu0 %v5387, 16
  %v6246 = vpop.permute.xlu0 %6245
  %6247 = vrot.lane.b32.xlu0 %v5389, 16
  %v6248 = vpop.permute.xlu0 %6247
  %6249 = vrot.lane.b32.xlu0 %v5392, 16
  %v6250 = vpop.permute.xlu0 %6249
  %6251 = vrot.lane.b32.xlu0 %v5394, 16
  %v6252 = vpop.permute.xlu0 %6251
  %6253 = vrot.lane.b32.xlu0 %v5397, 16
  %v6254 = vpop.permute.xlu0 %6253
  %6255 = vrot.lane.b32.xlu0 %v5399, 16
  %v6256 = vpop.permute.xlu0 %6255
  %6257 = vrot.lane.b32.xlu0 %v5402, 16
  %v6258 = vpop.permute.xlu0 %6257
  %6259 = vrot.lane.b32.xlu0 %v5404, 16
  %v6260 = vpop.permute.xlu0 %6259
  %6261 = vrot.lane.b32.xlu0 %v5407, 16
  %v6262 = vpop.permute.xlu0 %6261
  %6263 = vrot.lane.b32.xlu0 %v5409, 16
  %v6264 = vpop.permute.xlu0 %6263
  %6265 = vrot.lane.b32.xlu0 %v5412, 16
  %v6266 = vpop.permute.xlu0 %6265
  %6267 = vrot.lane.b32.xlu0 %v5414, 16
  %v6268 = vpop.permute.xlu0 %6267
  %6269 = vrot.lane.b32.xlu0 %v5417, 16
  %v6270 = vpop.permute.xlu0 %6269
  %6271 = vrot.lane.b32.xlu0 %v5419, 16
  %v6272 = vpop.permute.xlu0 %6271
  %6273 = vrot.lane.b32.xlu0 %v5422, 16
  %v6274 = vpop.permute.xlu0 %6273
  %6275 = vrot.lane.b32.xlu0 %v5424, 16
  %v6276 = vpop.permute.xlu0 %6275
  %6277 = vrot.lane.b32.xlu0 %v5427, 16
  %v6278 = vpop.permute.xlu0 %6277
  %6279 = vrot.lane.b32.xlu0 %v5429, 16
  %v6280 = vpop.permute.xlu0 %6279
  %6281 = vrot.lane.b32.xlu0 %v6213, 16
  %v6282 = vpop.permute.xlu0 %6281
  %6283 = vrot.lane.b32.xlu0 %v6215, 16
  %v6284 = vpop.permute.xlu0 %6283
  %6285 = vrot.lane.b32.xlu0 %v5432, 16
  %v6286 = vpop.permute.xlu0 %6285
  %6287 = vrot.lane.b32.xlu0 %v5434, 16
  %v6288 = vpop.permute.xlu0 %6287
  %6289 = vrot.lane.b32.xlu0 %v5437, 16
  %v6290 = vpop.permute.xlu0 %6289
  %6291 = vrot.lane.b32.xlu0 %v5439, 16
  %v6292 = vpop.permute.xlu0 %6291
  %6293 = vrot.lane.b32.xlu0 %v5442, 16
  %v6294 = vpop.permute.xlu0 %6293
  %6295 = vrot.lane.b32.xlu0 %v5444, 16
  %v6296 = vpop.permute.xlu0 %6295
  %6297 = vrot.lane.b32.xlu0 %v5447, 16
  %v6298 = vpop.permute.xlu0 %6297
  %6299 = vrot.lane.b32.xlu0 %v5449, 16
  %v6300 = vpop.permute.xlu0 %6299
  %6301 = vrot.lane.b32.xlu0 %v5452, 16
  %v6302 = vpop.permute.xlu0 %6301
  %6303 = vrot.lane.b32.xlu0 %v5454, 16
  %v6304 = vpop.permute.xlu0 %6303
  %6305 = vrot.lane.b32.xlu0 %v5457, 16
  %v6306 = vpop.permute.xlu0 %6305
  %6307 = vrot.lane.b32.xlu0 %v5459, 16
  %v6308 = vpop.permute.xlu0 %6307
  %6309 = vrot.lane.b32.xlu0 %v5462, 16
  %v6310 = vpop.permute.xlu0 %6309
  %6311 = vrot.lane.b32.xlu0 %v5464, 16
  %v6312 = vpop.permute.xlu0 %6311
  %6313 = vrot.lane.b32.xlu0 %v5467, 16
  %v6314 = vpop.permute.xlu0 %6313
  %6315 = vrot.lane.b32.xlu0 %v5469, 16
  %v6316 = vpop.permute.xlu0 %6315
  %6317 = vrot.lane.b32.xlu0 %v5472, 16
  %v6318 = vpop.permute.xlu0 %6317
  %6319 = vrot.lane.b32.xlu0 %v5474, 16
  %v6320 = vpop.permute.xlu0 %6319
  %6321 = vrot.lane.b32.xlu0 %v5477, 16
  %v6322 = vpop.permute.xlu0 %6321
  %6323 = vrot.lane.b32.xlu0 %v5479, 16
  %v6324 = vpop.permute.xlu0 %6323
  %6325 = vrot.lane.b32.xlu0 %v5482, 16
  %v6326 = vpop.permute.xlu0 %6325
  %6327 = vrot.lane.b32.xlu0 %v5484, 16
  %v6328 = vpop.permute.xlu0 %6327
  %6329 = vrot.lane.b32.xlu0 %v5487, 16
  %v6330 = vpop.permute.xlu0 %6329
  %6331 = vrot.lane.b32.xlu0 %v5489, 16
  %v6332 = vpop.permute.xlu0 %6331
  %6333 = vrot.lane.b32.xlu0 %v5492, 16
  %v6334 = vpop.permute.xlu0 %6333
  %6335 = vrot.lane.b32.xlu0 %v5494, 16
  %v6336 = vpop.permute.xlu0 %6335
  %6337 = vrot.lane.b32.xlu0 %v5497, 16
  %v6338 = vpop.permute.xlu0 %6337
  %6339 = vrot.lane.b32.xlu0 %v5499, 16
  %v6340 = vpop.permute.xlu0 %6339
  %6341 = vrot.lane.b32.xlu0 %v5502, 16
  %v6342 = vpop.permute.xlu0 %6341
  %6343 = vrot.lane.b32.xlu0 %v5504, 16
  %v6344 = vpop.permute.xlu0 %6343
  %6345 = vrot.lane.b32.xlu0 %v6218, 16
  %v6346 = vpop.permute.xlu0 %6345
  %6347 = vrot.lane.b32.xlu0 %v6220, 16
  %v6348 = vpop.permute.xlu0 %6347
  %v6413 = vrot.slane %v5241, 2
  %v6414 = vrot.slane %v5083, 2
  %v6415 = vsel %vm816, %v6413, %v6414
  %v6416 = vrot.slane %v5273, 2
  %v6417 = vsel %vm816, %v6414, %v6416
  %v6418 = vrot.slane %v5257, 2
  %v6419 = vrot.slane %v5131, 2
  %v6420 = vsel %vm816, %v6418, %v6419
  %v6421 = vrot.slane %v5289, 2
  %v6422 = vsel %vm816, %v6419, %v6421
  %6423 = vrot.lane.b32.xlu0 %v5687, 20
  %v6424 = vpop.permute.xlu0 %6423
  %6425 = vrot.lane.b32.xlu0 %v5689, 20
  %v6426 = vpop.permute.xlu0 %6425
  %6427 = vrot.lane.b32.xlu0 %v5692, 20
  %v6428 = vpop.permute.xlu0 %6427
  %6429 = vrot.lane.b32.xlu0 %v5694, 20
  %v6430 = vpop.permute.xlu0 %6429
  %6431 = vrot.lane.b32.xlu0 %v5697, 20
  %v6432 = vpop.permute.xlu0 %6431
  %6433 = vrot.lane.b32.xlu0 %v5699, 20
  %v6434 = vpop.permute.xlu0 %6433
  %6435 = vrot.lane.b32.xlu0 %v5702, 20
  %v6436 = vpop.permute.xlu0 %6435
  %6437 = vrot.lane.b32.xlu0 %v5704, 20
  %v6438 = vpop.permute.xlu0 %6437
  %6439 = vrot.lane.b32.xlu0 %v5707, 20
  %v6440 = vpop.permute.xlu0 %6439
  %6441 = vrot.lane.b32.xlu0 %v5709, 20
  %v6442 = vpop.permute.xlu0 %6441
  %6443 = vrot.lane.b32.xlu0 %v5712, 20
  %v6444 = vpop.permute.xlu0 %6443
  %6445 = vrot.lane.b32.xlu0 %v5714, 20
  %v6446 = vpop.permute.xlu0 %6445
  %6447 = vrot.lane.b32.xlu0 %v5717, 20
  %v6448 = vpop.permute.xlu0 %6447
  %6449 = vrot.lane.b32.xlu0 %v5719, 20
  %v6450 = vpop.permute.xlu0 %6449
  %6451 = vrot.lane.b32.xlu0 %v5722, 20
  %v6452 = vpop.permute.xlu0 %6451
  %6453 = vrot.lane.b32.xlu0 %v5724, 20
  %v6454 = vpop.permute.xlu0 %6453
  %6455 = vrot.lane.b32.xlu0 %v5727, 20
  %v6456 = vpop.permute.xlu0 %6455
  %6457 = vrot.lane.b32.xlu0 %v5729, 20
  %v6458 = vpop.permute.xlu0 %6457
  %6459 = vrot.lane.b32.xlu0 %v5732, 20
  %v6460 = vpop.permute.xlu0 %6459
  %6461 = vrot.lane.b32.xlu0 %v5734, 20
  %v6462 = vpop.permute.xlu0 %6461
  %6463 = vrot.lane.b32.xlu0 %v5737, 20
  %v6464 = vpop.permute.xlu0 %6463
  %6465 = vrot.lane.b32.xlu0 %v5739, 20
  %v6466 = vpop.permute.xlu0 %6465
  %6467 = vrot.lane.b32.xlu0 %v5742, 20
  %v6468 = vpop.permute.xlu0 %6467
  %6469 = vrot.lane.b32.xlu0 %v5744, 20
  %v6470 = vpop.permute.xlu0 %6469
  %6471 = vrot.lane.b32.xlu0 %v5747, 20
  %v6472 = vpop.permute.xlu0 %6471
  %6473 = vrot.lane.b32.xlu0 %v5749, 20
  %v6474 = vpop.permute.xlu0 %6473
  %6475 = vrot.lane.b32.xlu0 %v5752, 20
  %v6476 = vpop.permute.xlu0 %6475
  %6477 = vrot.lane.b32.xlu0 %v5754, 20
  %v6478 = vpop.permute.xlu0 %6477
  %6479 = vrot.lane.b32.xlu0 %v5757, 20
  %v6480 = vpop.permute.xlu0 %6479
  %6481 = vrot.lane.b32.xlu0 %v5759, 20
  %v6482 = vpop.permute.xlu0 %6481
  %6483 = vrot.lane.b32.xlu0 %v6415, 20
  %v6484 = vpop.permute.xlu0 %6483
  %6485 = vrot.lane.b32.xlu0 %v6417, 20
  %v6486 = vpop.permute.xlu0 %6485
  %6487 = vrot.lane.b32.xlu0 %v5762, 20
  %v6488 = vpop.permute.xlu0 %6487
  %6489 = vrot.lane.b32.xlu0 %v5764, 20
  %v6490 = vpop.permute.xlu0 %6489
  %6491 = vrot.lane.b32.xlu0 %v5767, 20
  %v6492 = vpop.permute.xlu0 %6491
  %6493 = vrot.lane.b32.xlu0 %v5769, 20
  %v6494 = vpop.permute.xlu0 %6493
  %6495 = vrot.lane.b32.xlu0 %v5772, 20
  %v6496 = vpop.permute.xlu0 %6495
  %6497 = vrot.lane.b32.xlu0 %v5774, 20
  %v6498 = vpop.permute.xlu0 %6497
  %6499 = vrot.lane.b32.xlu0 %v5777, 20
  %v6500 = vpop.permute.xlu0 %6499
  %6501 = vrot.lane.b32.xlu0 %v5779, 20
  %v6502 = vpop.permute.xlu0 %6501
  %6503 = vrot.lane.b32.xlu0 %v5782, 20
  %v6504 = vpop.permute.xlu0 %6503
  %6505 = vrot.lane.b32.xlu0 %v5784, 20
  %v6506 = vpop.permute.xlu0 %6505
  %6507 = vrot.lane.b32.xlu0 %v5787, 20
  %v6508 = vpop.permute.xlu0 %6507
  %6509 = vrot.lane.b32.xlu0 %v5789, 20
  %v6510 = vpop.permute.xlu0 %6509
  %6511 = vrot.lane.b32.xlu0 %v5792, 20
  %v6512 = vpop.permute.xlu0 %6511
  %6513 = vrot.lane.b32.xlu0 %v5794, 20
  %v6514 = vpop.permute.xlu0 %6513
  %6515 = vrot.lane.b32.xlu0 %v5797, 20
  %v6516 = vpop.permute.xlu0 %6515
  %6517 = vrot.lane.b32.xlu0 %v5799, 20
  %v6518 = vpop.permute.xlu0 %6517
  %6519 = vrot.lane.b32.xlu0 %v5802, 20
  %v6520 = vpop.permute.xlu0 %6519
  %6521 = vrot.lane.b32.xlu0 %v5804, 20
  %v6522 = vpop.permute.xlu0 %6521
  %6523 = vrot.lane.b32.xlu0 %v5807, 20
  %v6524 = vpop.permute.xlu0 %6523
  %6525 = vrot.lane.b32.xlu0 %v5809, 20
  %v6526 = vpop.permute.xlu0 %6525
  %6527 = vrot.lane.b32.xlu0 %v5812, 20
  %v6528 = vpop.permute.xlu0 %6527
  %6529 = vrot.lane.b32.xlu0 %v5814, 20
  %v6530 = vpop.permute.xlu0 %6529
  %6531 = vrot.lane.b32.xlu0 %v5817, 20
  %v6532 = vpop.permute.xlu0 %6531
  %6533 = vrot.lane.b32.xlu0 %v5819, 20
  %v6534 = vpop.permute.xlu0 %6533
  %6535 = vrot.lane.b32.xlu0 %v5822, 20
  %v6536 = vpop.permute.xlu0 %6535
  %6537 = vrot.lane.b32.xlu0 %v5824, 20
  %v6538 = vpop.permute.xlu0 %6537
  %6539 = vrot.lane.b32.xlu0 %v5827, 20
  %v6540 = vpop.permute.xlu0 %6539
  %6541 = vrot.lane.b32.xlu0 %v5829, 20
  %v6542 = vpop.permute.xlu0 %6541
  %6543 = vrot.lane.b32.xlu0 %v5832, 20
  %v6544 = vpop.permute.xlu0 %6543
  %6545 = vrot.lane.b32.xlu0 %v5834, 20
  %v6546 = vpop.permute.xlu0 %6545
  %6547 = vrot.lane.b32.xlu0 %v6420, 20
  %v6548 = vpop.permute.xlu0 %6547
  %6549 = vrot.lane.b32.xlu0 %v6422, 20
  %v6550 = vpop.permute.xlu0 %6549
  %6615 = vrot.lane.b32.xlu0 %v5227, 24
  %v6616 = vpop.permute.xlu0 %6615
  %6617 = vrot.lane.b32.xlu0 %v5041, 24
  %v6618 = vpop.permute.xlu0 %6617
  %6619 = vrot.lane.b32.xlu0 %v5228, 24
  %v6620 = vpop.permute.xlu0 %6619
  %6621 = vrot.lane.b32.xlu0 %v5044, 24
  %v6622 = vpop.permute.xlu0 %6621
  %6623 = vrot.lane.b32.xlu0 %v5229, 24
  %v6624 = vpop.permute.xlu0 %6623
  %6625 = vrot.lane.b32.xlu0 %v5047, 24
  %v6626 = vpop.permute.xlu0 %6625
  %6627 = vrot.lane.b32.xlu0 %v5230, 24
  %v6628 = vpop.permute.xlu0 %6627
  %6629 = vrot.lane.b32.xlu0 %v5050, 24
  %v6630 = vpop.permute.xlu0 %6629
  %6631 = vrot.lane.b32.xlu0 %v5231, 24
  %v6632 = vpop.permute.xlu0 %6631
  %6633 = vrot.lane.b32.xlu0 %v5053, 24
  %v6634 = vpop.permute.xlu0 %6633
  %6635 = vrot.lane.b32.xlu0 %v5232, 24
  %v6636 = vpop.permute.xlu0 %6635
  %6637 = vrot.lane.b32.xlu0 %v5056, 24
  %v6638 = vpop.permute.xlu0 %6637
  %6639 = vrot.lane.b32.xlu0 %v5233, 24
  %v6640 = vpop.permute.xlu0 %6639
  %6641 = vrot.lane.b32.xlu0 %v5059, 24
  %v6642 = vpop.permute.xlu0 %6641
  %6643 = vrot.lane.b32.xlu0 %v5234, 24
  %v6644 = vpop.permute.xlu0 %6643
  %6645 = vrot.lane.b32.xlu0 %v5062, 24
  %v6646 = vpop.permute.xlu0 %6645
  %6647 = vrot.lane.b32.xlu0 %v5235, 24
  %v6648 = vpop.permute.xlu0 %6647
  %6649 = vrot.lane.b32.xlu0 %v5065, 24
  %v6650 = vpop.permute.xlu0 %6649
  %6651 = vrot.lane.b32.xlu0 %v5236, 24
  %v6652 = vpop.permute.xlu0 %6651
  %6653 = vrot.lane.b32.xlu0 %v5068, 24
  %v6654 = vpop.permute.xlu0 %6653
  %6655 = vrot.lane.b32.xlu0 %v5237, 24
  %v6656 = vpop.permute.xlu0 %6655
  %6657 = vrot.lane.b32.xlu0 %v5071, 24
  %v6658 = vpop.permute.xlu0 %6657
  %6659 = vrot.lane.b32.xlu0 %v5238, 24
  %v6660 = vpop.permute.xlu0 %6659
  %6661 = vrot.lane.b32.xlu0 %v5074, 24
  %v6662 = vpop.permute.xlu0 %6661
  %6663 = vrot.lane.b32.xlu0 %v5239, 24
  %v6664 = vpop.permute.xlu0 %6663
  %6665 = vrot.lane.b32.xlu0 %v5077, 24
  %v6666 = vpop.permute.xlu0 %6665
  %6667 = vrot.lane.b32.xlu0 %v5240, 24
  %v6668 = vpop.permute.xlu0 %6667
  %6669 = vrot.lane.b32.xlu0 %v5080, 24
  %v6670 = vpop.permute.xlu0 %6669
  %6671 = vrot.lane.b32.xlu0 %v5241, 24
  %v6672 = vpop.permute.xlu0 %6671
  %6673 = vrot.lane.b32.xlu0 %v5083, 24
  %v6674 = vpop.permute.xlu0 %6673
  %6675 = vrot.lane.b32.xlu0 %v5243, 24
  %v6676 = vpop.permute.xlu0 %6675
  %6677 = vrot.lane.b32.xlu0 %v5089, 24
  %v6678 = vpop.permute.xlu0 %6677
  %6679 = vrot.lane.b32.xlu0 %v5244, 24
  %v6680 = vpop.permute.xlu0 %6679
  %6681 = vrot.lane.b32.xlu0 %v5092, 24
  %v6682 = vpop.permute.xlu0 %6681
  %6683 = vrot.lane.b32.xlu0 %v5245, 24
  %v6684 = vpop.permute.xlu0 %6683
  %6685 = vrot.lane.b32.xlu0 %v5095, 24
  %v6686 = vpop.permute.xlu0 %6685
  %6687 = vrot.lane.b32.xlu0 %v5246, 24
  %v6688 = vpop.permute.xlu0 %6687
  %6689 = vrot.lane.b32.xlu0 %v5098, 24
  %v6690 = vpop.permute.xlu0 %6689
  %6691 = vrot.lane.b32.xlu0 %v5247, 24
  %v6692 = vpop.permute.xlu0 %6691
  %6693 = vrot.lane.b32.xlu0 %v5101, 24
  %v6694 = vpop.permute.xlu0 %6693
  %6695 = vrot.lane.b32.xlu0 %v5248, 24
  %v6696 = vpop.permute.xlu0 %6695
  %6697 = vrot.lane.b32.xlu0 %v5104, 24
  %v6698 = vpop.permute.xlu0 %6697
  %6699 = vrot.lane.b32.xlu0 %v5249, 24
  %v6700 = vpop.permute.xlu0 %6699
  %6701 = vrot.lane.b32.xlu0 %v5107, 24
  %v6702 = vpop.permute.xlu0 %6701
  %6703 = vrot.lane.b32.xlu0 %v5250, 24
  %v6704 = vpop.permute.xlu0 %6703
  %6705 = vrot.lane.b32.xlu0 %v5110, 24
  %v6706 = vpop.permute.xlu0 %6705
  %6707 = vrot.lane.b32.xlu0 %v5251, 24
  %v6708 = vpop.permute.xlu0 %6707
  %6709 = vrot.lane.b32.xlu0 %v5113, 24
  %v6710 = vpop.permute.xlu0 %6709
  %6711 = vrot.lane.b32.xlu0 %v5252, 24
  %v6712 = vpop.permute.xlu0 %6711
  %6713 = vrot.lane.b32.xlu0 %v5116, 24
  %v6714 = vpop.permute.xlu0 %6713
  %6715 = vrot.lane.b32.xlu0 %v5253, 24
  %v6716 = vpop.permute.xlu0 %6715
  %6717 = vrot.lane.b32.xlu0 %v5119, 24
  %v6718 = vpop.permute.xlu0 %6717
  %6719 = vrot.lane.b32.xlu0 %v5254, 24
  %v6720 = vpop.permute.xlu0 %6719
  %6721 = vrot.lane.b32.xlu0 %v5122, 24
  %v6722 = vpop.permute.xlu0 %6721
  %6723 = vrot.lane.b32.xlu0 %v5255, 24
  %v6724 = vpop.permute.xlu0 %6723
  %6725 = vrot.lane.b32.xlu0 %v5125, 24
  %v6726 = vpop.permute.xlu0 %6725
  %6727 = vrot.lane.b32.xlu0 %v5256, 24
  %v6728 = vpop.permute.xlu0 %6727
  %6729 = vrot.lane.b32.xlu0 %v5128, 24
  %v6730 = vpop.permute.xlu0 %6729
  %6731 = vrot.lane.b32.xlu0 %v5257, 24
  %v6732 = vpop.permute.xlu0 %6731
  %6733 = vrot.lane.b32.xlu0 %v5131, 24
  %v6734 = vpop.permute.xlu0 %6733
  %6795 = vrot.lane.b32.xlu0 %v5362, 28
  %v6796 = vpop.permute.xlu0 %6795
  %6797 = vrot.lane.b32.xlu0 %v5364, 28
  %v6798 = vpop.permute.xlu0 %6797
  %6799 = vrot.lane.b32.xlu0 %v5367, 28
  %v6800 = vpop.permute.xlu0 %6799
  %6801 = vrot.lane.b32.xlu0 %v5369, 28
  %v6802 = vpop.permute.xlu0 %6801
  %6803 = vrot.lane.b32.xlu0 %v5372, 28
  %v6804 = vpop.permute.xlu0 %6803
  %6805 = vrot.lane.b32.xlu0 %v5374, 28
  %v6806 = vpop.permute.xlu0 %6805
  %6807 = vrot.lane.b32.xlu0 %v5377, 28
  %v6808 = vpop.permute.xlu0 %6807
  %6809 = vrot.lane.b32.xlu0 %v5379, 28
  %v6810 = vpop.permute.xlu0 %6809
  %6811 = vrot.lane.b32.xlu0 %v5382, 28
  %v6812 = vpop.permute.xlu0 %6811
  %6813 = vrot.lane.b32.xlu0 %v5384, 28
  %v6814 = vpop.permute.xlu0 %6813
  %6815 = vrot.lane.b32.xlu0 %v5387, 28
  %v6816 = vpop.permute.xlu0 %6815
  %6817 = vrot.lane.b32.xlu0 %v5389, 28
  %v6818 = vpop.permute.xlu0 %6817
  %6819 = vrot.lane.b32.xlu0 %v5392, 28
  %v6820 = vpop.permute.xlu0 %6819
  %6821 = vrot.lane.b32.xlu0 %v5394, 28
  %v6822 = vpop.permute.xlu0 %6821
  %6823 = vrot.lane.b32.xlu0 %v5397, 28
  %v6824 = vpop.permute.xlu0 %6823
  %6825 = vrot.lane.b32.xlu0 %v5399, 28
  %v6826 = vpop.permute.xlu0 %6825
  %6827 = vrot.lane.b32.xlu0 %v5402, 28
  %v6828 = vpop.permute.xlu0 %6827
  %6829 = vrot.lane.b32.xlu0 %v5404, 28
  %v6830 = vpop.permute.xlu0 %6829
  %6831 = vrot.lane.b32.xlu0 %v5407, 28
  %v6832 = vpop.permute.xlu0 %6831
  %6833 = vrot.lane.b32.xlu0 %v5409, 28
  %v6834 = vpop.permute.xlu0 %6833
  %6835 = vrot.lane.b32.xlu0 %v5412, 28
  %v6836 = vpop.permute.xlu0 %6835
  %6837 = vrot.lane.b32.xlu0 %v5414, 28
  %v6838 = vpop.permute.xlu0 %6837
  %6839 = vrot.lane.b32.xlu0 %v5417, 28
  %v6840 = vpop.permute.xlu0 %6839
  %6841 = vrot.lane.b32.xlu0 %v5419, 28
  %v6842 = vpop.permute.xlu0 %6841
  %6843 = vrot.lane.b32.xlu0 %v5422, 28
  %v6844 = vpop.permute.xlu0 %6843
  %6845 = vrot.lane.b32.xlu0 %v5424, 28
  %v6846 = vpop.permute.xlu0 %6845
  %6847 = vrot.lane.b32.xlu0 %v5427, 28
  %v6848 = vpop.permute.xlu0 %6847
  %6849 = vrot.lane.b32.xlu0 %v5429, 28
  %v6850 = vpop.permute.xlu0 %6849
  %6851 = vrot.lane.b32.xlu0 %v6213, 28
  %v6852 = vpop.permute.xlu0 %6851
  %6853 = vrot.lane.b32.xlu0 %v6215, 28
  %v6854 = vpop.permute.xlu0 %6853
  %6855 = vrot.lane.b32.xlu0 %v5437, 28
  %v6856 = vpop.permute.xlu0 %6855
  %6857 = vrot.lane.b32.xlu0 %v5439, 28
  %v6858 = vpop.permute.xlu0 %6857
  %6859 = vrot.lane.b32.xlu0 %v5442, 28
  %v6860 = vpop.permute.xlu0 %6859
  %6861 = vrot.lane.b32.xlu0 %v5444, 28
  %v6862 = vpop.permute.xlu0 %6861
  %6863 = vrot.lane.b32.xlu0 %v5447, 28
  %v6864 = vpop.permute.xlu0 %6863
  %6865 = vrot.lane.b32.xlu0 %v5449, 28
  %v6866 = vpop.permute.xlu0 %6865
  %6867 = vrot.lane.b32.xlu0 %v5452, 28
  %v6868 = vpop.permute.xlu0 %6867
  %6869 = vrot.lane.b32.xlu0 %v5454, 28
  %v6870 = vpop.permute.xlu0 %6869
  %6871 = vrot.lane.b32.xlu0 %v5457, 28
  %v6872 = vpop.permute.xlu0 %6871
  %6873 = vrot.lane.b32.xlu0 %v5459, 28
  %v6874 = vpop.permute.xlu0 %6873
  %6875 = vrot.lane.b32.xlu0 %v5462, 28
  %v6876 = vpop.permute.xlu0 %6875
  %6877 = vrot.lane.b32.xlu0 %v5464, 28
  %v6878 = vpop.permute.xlu0 %6877
  %6879 = vrot.lane.b32.xlu0 %v5467, 28
  %v6880 = vpop.permute.xlu0 %6879
  %6881 = vrot.lane.b32.xlu0 %v5469, 28
  %v6882 = vpop.permute.xlu0 %6881
  %6883 = vrot.lane.b32.xlu0 %v5472, 28
  %v6884 = vpop.permute.xlu0 %6883
  %6885 = vrot.lane.b32.xlu0 %v5474, 28
  %v6886 = vpop.permute.xlu0 %6885
  %6887 = vrot.lane.b32.xlu0 %v5477, 28
  %v6888 = vpop.permute.xlu0 %6887
  %6889 = vrot.lane.b32.xlu0 %v5479, 28
  %v6890 = vpop.permute.xlu0 %6889
  %6891 = vrot.lane.b32.xlu0 %v5482, 28
  %v6892 = vpop.permute.xlu0 %6891
  %6893 = vrot.lane.b32.xlu0 %v5484, 28
  %v6894 = vpop.permute.xlu0 %6893
  %6895 = vrot.lane.b32.xlu0 %v5487, 28
  %v6896 = vpop.permute.xlu0 %6895
  %6897 = vrot.lane.b32.xlu0 %v5489, 28
  %v6898 = vpop.permute.xlu0 %6897
  %6899 = vrot.lane.b32.xlu0 %v5492, 28
  %v6900 = vpop.permute.xlu0 %6899
  %6901 = vrot.lane.b32.xlu0 %v5494, 28
  %v6902 = vpop.permute.xlu0 %6901
  %6903 = vrot.lane.b32.xlu0 %v5497, 28
  %v6904 = vpop.permute.xlu0 %6903
  %6905 = vrot.lane.b32.xlu0 %v5499, 28
  %v6906 = vpop.permute.xlu0 %6905
  %6907 = vrot.lane.b32.xlu0 %v5502, 28
  %v6908 = vpop.permute.xlu0 %6907
  %6909 = vrot.lane.b32.xlu0 %v5504, 28
  %v6910 = vpop.permute.xlu0 %6909
  %6911 = vrot.lane.b32.xlu0 %v6218, 28
  %v6912 = vpop.permute.xlu0 %6911
  %6913 = vrot.lane.b32.xlu0 %v6220, 28
  %v6914 = vpop.permute.xlu0 %6913
  %6975 = vrot.lane.b32.xlu0 %v5692, 32
  %v6976 = vpop.permute.xlu0 %6975
  %6977 = vrot.lane.b32.xlu0 %v5694, 32
  %v6978 = vpop.permute.xlu0 %6977
  %6979 = vrot.lane.b32.xlu0 %v5697, 32
  %v6980 = vpop.permute.xlu0 %6979
  %6981 = vrot.lane.b32.xlu0 %v5699, 32
  %v6982 = vpop.permute.xlu0 %6981
  %6983 = vrot.lane.b32.xlu0 %v5702, 32
  %v6984 = vpop.permute.xlu0 %6983
  %6985 = vrot.lane.b32.xlu0 %v5704, 32
  %v6986 = vpop.permute.xlu0 %6985
  %6987 = vrot.lane.b32.xlu0 %v5707, 32
  %v6988 = vpop.permute.xlu0 %6987
  %6989 = vrot.lane.b32.xlu0 %v5709, 32
  %v6990 = vpop.permute.xlu0 %6989
  %6991 = vrot.lane.b32.xlu0 %v5712, 32
  %v6992 = vpop.permute.xlu0 %6991
  %6993 = vrot.lane.b32.xlu0 %v5714, 32
  %v6994 = vpop.permute.xlu0 %6993
  %6995 = vrot.lane.b32.xlu0 %v5717, 32
  %v6996 = vpop.permute.xlu0 %6995
  %6997 = vrot.lane.b32.xlu0 %v5719, 32
  %v6998 = vpop.permute.xlu0 %6997
  %6999 = vrot.lane.b32.xlu0 %v5722, 32
  %v7000 = vpop.permute.xlu0 %6999
  %7001 = vrot.lane.b32.xlu0 %v5724, 32
  %v7002 = vpop.permute.xlu0 %7001
  %7003 = vrot.lane.b32.xlu0 %v5727, 32
  %v7004 = vpop.permute.xlu0 %7003
  %7005 = vrot.lane.b32.xlu0 %v5729, 32
  %v7006 = vpop.permute.xlu0 %7005
  %7007 = vrot.lane.b32.xlu0 %v5732, 32
  %v7008 = vpop.permute.xlu0 %7007
  %7009 = vrot.lane.b32.xlu0 %v5734, 32
  %v7010 = vpop.permute.xlu0 %7009
  %7011 = vrot.lane.b32.xlu0 %v5737, 32
  %v7012 = vpop.permute.xlu0 %7011
  %7013 = vrot.lane.b32.xlu0 %v5739, 32
  %v7014 = vpop.permute.xlu0 %7013
  %7015 = vrot.lane.b32.xlu0 %v5742, 32
  %v7016 = vpop.permute.xlu0 %7015
  %7017 = vrot.lane.b32.xlu0 %v5744, 32
  %v7018 = vpop.permute.xlu0 %7017
  %7019 = vrot.lane.b32.xlu0 %v5747, 32
  %v7020 = vpop.permute.xlu0 %7019
  %7021 = vrot.lane.b32.xlu0 %v5749, 32
  %v7022 = vpop.permute.xlu0 %7021
  %7023 = vrot.lane.b32.xlu0 %v5752, 32
  %v7024 = vpop.permute.xlu0 %7023
  %7025 = vrot.lane.b32.xlu0 %v5754, 32
  %v7026 = vpop.permute.xlu0 %7025
  %7027 = vrot.lane.b32.xlu0 %v5757, 32
  %v7028 = vpop.permute.xlu0 %7027
  %7029 = vrot.lane.b32.xlu0 %v5759, 32
  %v7030 = vpop.permute.xlu0 %7029
  %7031 = vrot.lane.b32.xlu0 %v6415, 32
  %v7032 = vpop.permute.xlu0 %7031
  %7033 = vrot.lane.b32.xlu0 %v6417, 32
  %v7034 = vpop.permute.xlu0 %7033
  %7035 = vrot.lane.b32.xlu0 %v5767, 32
  %v7036 = vpop.permute.xlu0 %7035
  %7037 = vrot.lane.b32.xlu0 %v5769, 32
  %v7038 = vpop.permute.xlu0 %7037
  %7039 = vrot.lane.b32.xlu0 %v5772, 32
  %v7040 = vpop.permute.xlu0 %7039
  %7041 = vrot.lane.b32.xlu0 %v5774, 32
  %v7042 = vpop.permute.xlu0 %7041
  %7043 = vrot.lane.b32.xlu0 %v5777, 32
  %v7044 = vpop.permute.xlu0 %7043
  %7045 = vrot.lane.b32.xlu0 %v5779, 32
  %v7046 = vpop.permute.xlu0 %7045
  %7047 = vrot.lane.b32.xlu0 %v5782, 32
  %v7048 = vpop.permute.xlu0 %7047
  %7049 = vrot.lane.b32.xlu0 %v5784, 32
  %v7050 = vpop.permute.xlu0 %7049
  %7051 = vrot.lane.b32.xlu0 %v5787, 32
  %v7052 = vpop.permute.xlu0 %7051
  %7053 = vrot.lane.b32.xlu0 %v5789, 32
  %v7054 = vpop.permute.xlu0 %7053
  %7055 = vrot.lane.b32.xlu0 %v5792, 32
  %v7056 = vpop.permute.xlu0 %7055
  %7057 = vrot.lane.b32.xlu0 %v5794, 32
  %v7058 = vpop.permute.xlu0 %7057
  %7059 = vrot.lane.b32.xlu0 %v5797, 32
  %v7060 = vpop.permute.xlu0 %7059
  %7061 = vrot.lane.b32.xlu0 %v5799, 32
  %v7062 = vpop.permute.xlu0 %7061
  %7063 = vrot.lane.b32.xlu0 %v5802, 32
  %v7064 = vpop.permute.xlu0 %7063
  %7065 = vrot.lane.b32.xlu0 %v5804, 32
  %v7066 = vpop.permute.xlu0 %7065
  %7067 = vrot.lane.b32.xlu0 %v5807, 32
  %v7068 = vpop.permute.xlu0 %7067
  %7069 = vrot.lane.b32.xlu0 %v5809, 32
  %v7070 = vpop.permute.xlu0 %7069
  %7071 = vrot.lane.b32.xlu0 %v5812, 32
  %v7072 = vpop.permute.xlu0 %7071
  %7073 = vrot.lane.b32.xlu0 %v5814, 32
  %v7074 = vpop.permute.xlu0 %7073
  %7075 = vrot.lane.b32.xlu0 %v5817, 32
  %v7076 = vpop.permute.xlu0 %7075
  %7077 = vrot.lane.b32.xlu0 %v5819, 32
  %v7078 = vpop.permute.xlu0 %7077
  %7079 = vrot.lane.b32.xlu0 %v5822, 32
  %v7080 = vpop.permute.xlu0 %7079
  %7081 = vrot.lane.b32.xlu0 %v5824, 32
  %v7082 = vpop.permute.xlu0 %7081
  %7083 = vrot.lane.b32.xlu0 %v5827, 32
  %v7084 = vpop.permute.xlu0 %7083
  %7085 = vrot.lane.b32.xlu0 %v5829, 32
  %v7086 = vpop.permute.xlu0 %7085
  %7087 = vrot.lane.b32.xlu0 %v5832, 32
  %v7088 = vpop.permute.xlu0 %7087
  %7089 = vrot.lane.b32.xlu0 %v5834, 32
  %v7090 = vpop.permute.xlu0 %7089
  %7091 = vrot.lane.b32.xlu0 %v6420, 32
  %v7092 = vpop.permute.xlu0 %7091
  %7093 = vrot.lane.b32.xlu0 %v6422, 32
  %v7094 = vpop.permute.xlu0 %7093
  %v7155 = vsel %vm2301, %v5226, %v5506
  %v7156 = vsel %vm2301, %v5038, %v5508
  %v7157 = vsel %vm2301, %v5227, %v5510
  %v7158 = vsel %vm2301, %v5041, %v5512
  %v7159 = vsel %vm2301, %v5228, %v5514
  %v7160 = vsel %vm2301, %v5044, %v5516
  %v7161 = vsel %vm2301, %v5229, %v5518
  %v7162 = vsel %vm2301, %v5047, %v5520
  %v7163 = vsel %vm2301, %v5230, %v5522
  %v7164 = vsel %vm2301, %v5050, %v5524
  %v7165 = vsel %vm2301, %v5231, %v5526
  %v7166 = vsel %vm2301, %v5053, %v5528
  %v7167 = vsel %vm2301, %v5232, %v5530
  %v7168 = vsel %vm2301, %v5056, %v5532
  %v7169 = vsel %vm2301, %v5233, %v5534
  %v7170 = vsel %vm2301, %v5059, %v5536
  %v7171 = vsel %vm2301, %v5234, %v5538
  %v7172 = vsel %vm2301, %v5062, %v5540
  %v7173 = vsel %vm2301, %v5235, %v5542
  %v7174 = vsel %vm2301, %v5065, %v5544
  %v7175 = vsel %vm2301, %v5236, %v5546
  %v7176 = vsel %vm2301, %v5068, %v5548
  %v7177 = vsel %vm2301, %v5237, %v5550
  %v7178 = vsel %vm2301, %v5071, %v5552
  %v7179 = vsel %vm2301, %v5238, %v5554
  %v7180 = vsel %vm2301, %v5074, %v5556
  %v7181 = vsel %vm2301, %v5239, %v5558
  %v7182 = vsel %vm2301, %v5077, %v5560
  %v7183 = vsel %vm2301, %v5240, %v5562
  %v7184 = vsel %vm2301, %v5080, %v5564
  %v7185 = vsel %vm2301, %v5242, %v5566
  %v7186 = vsel %vm2301, %v5086, %v5568
  %v7187 = vsel %vm2301, %v5243, %v5570
  %v7188 = vsel %vm2301, %v5089, %v5572
  %v7189 = vsel %vm2301, %v5244, %v5574
  %v7190 = vsel %vm2301, %v5092, %v5576
  %v7191 = vsel %vm2301, %v5245, %v5578
  %v7192 = vsel %vm2301, %v5095, %v5580
  %v7193 = vsel %vm2301, %v5246, %v5582
  %v7194 = vsel %vm2301, %v5098, %v5584
  %v7195 = vsel %vm2301, %v5247, %v5586
  %v7196 = vsel %vm2301, %v5101, %v5588
  %v7197 = vsel %vm2301, %v5248, %v5590
  %v7198 = vsel %vm2301, %v5104, %v5592
  %v7199 = vsel %vm2301, %v5249, %v5594
  %v7200 = vsel %vm2301, %v5107, %v5596
  %v7201 = vsel %vm2301, %v5250, %v5598
  %v7202 = vsel %vm2301, %v5110, %v5600
  %v7203 = vsel %vm2301, %v5251, %v5602
  %v7204 = vsel %vm2301, %v5113, %v5604
  %v7205 = vsel %vm2301, %v5252, %v5606
  %v7206 = vsel %vm2301, %v5116, %v5608
  %v7207 = vsel %vm2301, %v5253, %v5610
  %v7208 = vsel %vm2301, %v5119, %v5612
  %v7209 = vsel %vm2301, %v5254, %v5614
  %v7210 = vsel %vm2301, %v5122, %v5616
  %v7211 = vsel %vm2301, %v5255, %v5618
  %v7212 = vsel %vm2301, %v5125, %v5620
  %v7213 = vsel %vm2301, %v5256, %v5622
  %v7214 = vsel %vm2301, %v5128, %v5624
  %v7215 = vsel %vm2363, %v7155, %v5836
  %v7216 = vsel %vm2363, %v7156, %v5838
  %v7217 = vsel %vm2363, %v7157, %v5840
  %v7218 = vsel %vm2363, %v7158, %v5842
  %v7219 = vsel %vm2363, %v7159, %v5844
  %v7220 = vsel %vm2363, %v7160, %v5846
  %v7221 = vsel %vm2363, %v7161, %v5848
  %v7222 = vsel %vm2363, %v7162, %v5850
  %v7223 = vsel %vm2363, %v7163, %v5852
  %v7224 = vsel %vm2363, %v7164, %v5854
  %v7225 = vsel %vm2363, %v7165, %v5856
  %v7226 = vsel %vm2363, %v7166, %v5858
  %v7227 = vsel %vm2363, %v7167, %v5860
  %v7228 = vsel %vm2363, %v7168, %v5862
  %v7229 = vsel %vm2363, %v7169, %v5864
  %v7230 = vsel %vm2363, %v7170, %v5866
  %v7231 = vsel %vm2363, %v7171, %v5868
  %v7232 = vsel %vm2363, %v7172, %v5870
  %v7233 = vsel %vm2363, %v7173, %v5872
  %v7234 = vsel %vm2363, %v7174, %v5874
  %v7235 = vsel %vm2363, %v7175, %v5876
  %v7236 = vsel %vm2363, %v7176, %v5878
  %v7237 = vsel %vm2363, %v7177, %v5880
  %v7238 = vsel %vm2363, %v7178, %v5882
  %v7239 = vsel %vm2363, %v7179, %v5884
  %v7240 = vsel %vm2363, %v7180, %v5886
  %v7241 = vsel %vm2363, %v7181, %v5888
  %v7242 = vsel %vm2363, %v7182, %v5890
  %v7243 = vsel %vm2363, %v7183, %v5892
  %v7244 = vsel %vm2363, %v7184, %v5894
  %v7245 = vsel %vm2363, %v7185, %v5896
  %v7246 = vsel %vm2363, %v7186, %v5898
  %v7247 = vsel %vm2363, %v7187, %v5900
  %v7248 = vsel %vm2363, %v7188, %v5902
  %v7249 = vsel %vm2363, %v7189, %v5904
  %v7250 = vsel %vm2363, %v7190, %v5906
  %v7251 = vsel %vm2363, %v7191, %v5908
  %v7252 = vsel %vm2363, %v7192, %v5910
  %v7253 = vsel %vm2363, %v7193, %v5912
  %v7254 = vsel %vm2363, %v7194, %v5914
  %v7255 = vsel %vm2363, %v7195, %v5916
  %v7256 = vsel %vm2363, %v7196, %v5918
  %v7257 = vsel %vm2363, %v7197, %v5920
  %v7258 = vsel %vm2363, %v7198, %v5922
  %v7259 = vsel %vm2363, %v7199, %v5924
  %v7260 = vsel %vm2363, %v7200, %v5926
  %v7261 = vsel %vm2363, %v7201, %v5928
  %v7262 = vsel %vm2363, %v7202, %v5930
  %v7263 = vsel %vm2363, %v7203, %v5932
  %v7264 = vsel %vm2363, %v7204, %v5934
  %v7265 = vsel %vm2363, %v7205, %v5936
  %v7266 = vsel %vm2363, %v7206, %v5938
  %v7267 = vsel %vm2363, %v7207, %v5940
  %v7268 = vsel %vm2363, %v7208, %v5942
  %v7269 = vsel %vm2363, %v7209, %v5944
  %v7270 = vsel %vm2363, %v7210, %v5946
  %v7271 = vsel %vm2363, %v7211, %v5948
  %v7272 = vsel %vm2363, %v7212, %v5950
  %v7273 = vsel %vm2363, %v7213, %v5952
  %v7274 = vsel %vm2363, %v7214, %v5954
  %v7275 = vsel %vm2425, %v2364, %v6018
  %v7276 = vsel %vm2425, %v2364, %v6020
  %v7277 = vsel %vm2425, %v7215, %v6022
  %v7278 = vsel %vm2425, %v7216, %v6024
  %v7279 = vsel %vm2425, %v7217, %v6026
  %v7280 = vsel %vm2425, %v7218, %v6028
  %v7281 = vsel %vm2425, %v7219, %v6030
  %v7282 = vsel %vm2425, %v7220, %v6032
  %v7283 = vsel %vm2425, %v7221, %v6034
  %v7284 = vsel %vm2425, %v7222, %v6036
  %v7285 = vsel %vm2425, %v7223, %v6038
  %v7286 = vsel %vm2425, %v7224, %v6040
  %v7287 = vsel %vm2425, %v7225, %v6042
  %v7288 = vsel %vm2425, %v7226, %v6044
  %v7289 = vsel %vm2425, %v7227, %v6046
  %v7290 = vsel %vm2425, %v7228, %v6048
  %v7291 = vsel %vm2425, %v7229, %v6050
  %v7292 = vsel %vm2425, %v7230, %v6052
  %v7293 = vsel %vm2425, %v7231, %v6054
  %v7294 = vsel %vm2425, %v7232, %v6056
  %v7295 = vsel %vm2425, %v7233, %v6058
  %v7296 = vsel %vm2425, %v7234, %v6060
  %v7297 = vsel %vm2425, %v7235, %v6062
  %v7298 = vsel %vm2425, %v7236, %v6064
  %v7299 = vsel %vm2425, %v7237, %v6066
  %v7300 = vsel %vm2425, %v7238, %v6068
  %v7301 = vsel %vm2425, %v7239, %v6070
  %v7302 = vsel %vm2425, %v7240, %v6072
  %v7303 = vsel %vm2425, %v7241, %v6074
  %v7304 = vsel %vm2425, %v7242, %v6076
  %v7305 = vsel %vm2425, %v7243, %v6078
  %v7306 = vsel %vm2425, %v7244, %v6080
  %v7307 = vsel %vm2425, %v2364, %v6082
  %v7308 = vsel %vm2425, %v2364, %v6084
  %v7309 = vsel %vm2425, %v7245, %v6086
  %v7310 = vsel %vm2425, %v7246, %v6088
  %v7311 = vsel %vm2425, %v7247, %v6090
  %v7312 = vsel %vm2425, %v7248, %v6092
  %v7313 = vsel %vm2425, %v7249, %v6094
  %v7314 = vsel %vm2425, %v7250, %v6096
  %v7315 = vsel %vm2425, %v7251, %v6098
  %v7316 = vsel %vm2425, %v7252, %v6100
  %v7317 = vsel %vm2425, %v7253, %v6102
  %v7318 = vsel %vm2425, %v7254, %v6104
  %v7319 = vsel %vm2425, %v7255, %v6106
  %v7320 = vsel %vm2425, %v7256, %v6108
  %v7321 = vsel %vm2425, %v7257, %v6110
  %v7322 = vsel %vm2425, %v7258, %v6112
  %v7323 = vsel %vm2425, %v7259, %v6114
  %v7324 = vsel %vm2425, %v7260, %v6116
  %v7325 = vsel %vm2425, %v7261, %v6118
  %v7326 = vsel %vm2425, %v7262, %v6120
  %v7327 = vsel %vm2425, %v7263, %v6122
  %v7328 = vsel %vm2425, %v7264, %v6124
  %v7329 = vsel %vm2425, %v7265, %v6126
  %v7330 = vsel %vm2425, %v7266, %v6128
  %v7331 = vsel %vm2425, %v7267, %v6130
  %v7332 = vsel %vm2425, %v7268, %v6132
  %v7333 = vsel %vm2425, %v7269, %v6134
  %v7334 = vsel %vm2425, %v7270, %v6136
  %v7335 = vsel %vm2425, %v7271, %v6138
  %v7336 = vsel %vm2425, %v7272, %v6140
  %v7337 = vsel %vm2425, %v7273, %v6142
  %v7338 = vsel %vm2425, %v7274, %v6144
  %v7339 = vsel %vm2490, %v7275, %v6222
  %v7340 = vsel %vm2490, %v7276, %v6224
  %v7341 = vsel %vm2490, %v7277, %v6226
  %v7342 = vsel %vm2490, %v7278, %v6228
  %v7343 = vsel %vm2490, %v7279, %v6230
  %v7344 = vsel %vm2490, %v7280, %v6232
  %v7345 = vsel %vm2490, %v7281, %v6234
  %v7346 = vsel %vm2490, %v7282, %v6236
  %v7347 = vsel %vm2490, %v7283, %v6238
  %v7348 = vsel %vm2490, %v7284, %v6240
  %v7349 = vsel %vm2490, %v7285, %v6242
  %v7350 = vsel %vm2490, %v7286, %v6244
  %v7351 = vsel %vm2490, %v7287, %v6246
  %v7352 = vsel %vm2490, %v7288, %v6248
  %v7353 = vsel %vm2490, %v7289, %v6250
  %v7354 = vsel %vm2490, %v7290, %v6252
  %v7355 = vsel %vm2490, %v7291, %v6254
  %v7356 = vsel %vm2490, %v7292, %v6256
  %v7357 = vsel %vm2490, %v7293, %v6258
  %v7358 = vsel %vm2490, %v7294, %v6260
  %v7359 = vsel %vm2490, %v7295, %v6262
  %v7360 = vsel %vm2490, %v7296, %v6264
  %v7361 = vsel %vm2490, %v7297, %v6266
  %v7362 = vsel %vm2490, %v7298, %v6268
  %v7363 = vsel %vm2490, %v7299, %v6270
  %v7364 = vsel %vm2490, %v7300, %v6272
  %v7365 = vsel %vm2490, %v7301, %v6274
  %v7366 = vsel %vm2490, %v7302, %v6276
  %v7367 = vsel %vm2490, %v7303, %v6278
  %v7368 = vsel %vm2490, %v7304, %v6280
  %v7369 = vsel %vm2490, %v7305, %v6282
  %v7370 = vsel %vm2490, %v7306, %v6284
  %v7371 = vsel %vm2490, %v7307, %v6286
  %v7372 = vsel %vm2490, %v7308, %v6288
  %v7373 = vsel %vm2490, %v7309, %v6290
  %v7374 = vsel %vm2490, %v7310, %v6292
  %v7375 = vsel %vm2490, %v7311, %v6294
  %v7376 = vsel %vm2490, %v7312, %v6296
  %v7377 = vsel %vm2490, %v7313, %v6298
  %v7378 = vsel %vm2490, %v7314, %v6300
  %v7379 = vsel %vm2490, %v7315, %v6302
  %v7380 = vsel %vm2490, %v7316, %v6304
  %v7381 = vsel %vm2490, %v7317, %v6306
  %v7382 = vsel %vm2490, %v7318, %v6308
  %v7383 = vsel %vm2490, %v7319, %v6310
  %v7384 = vsel %vm2490, %v7320, %v6312
  %v7385 = vsel %vm2490, %v7321, %v6314
  %v7386 = vsel %vm2490, %v7322, %v6316
  %v7387 = vsel %vm2490, %v7323, %v6318
  %v7388 = vsel %vm2490, %v7324, %v6320
  %v7389 = vsel %vm2490, %v7325, %v6322
  %v7390 = vsel %vm2490, %v7326, %v6324
  %v7391 = vsel %vm2490, %v7327, %v6326
  %v7392 = vsel %vm2490, %v7328, %v6328
  %v7393 = vsel %vm2490, %v7329, %v6330
  %v7394 = vsel %vm2490, %v7330, %v6332
  %v7395 = vsel %vm2490, %v7331, %v6334
  %v7396 = vsel %vm2490, %v7332, %v6336
  %v7397 = vsel %vm2490, %v7333, %v6338
  %v7398 = vsel %vm2490, %v7334, %v6340
  %v7399 = vsel %vm2490, %v7335, %v6342
  %v7400 = vsel %vm2490, %v7336, %v6344
  %v7401 = vsel %vm2490, %v7337, %v6346
  %v7402 = vsel %vm2490, %v7338, %v6348
  %v7403 = vsel %vm2555, %v7339, %v6424
  %v7404 = vsel %vm2555, %v7340, %v6426
  %v7405 = vsel %vm2555, %v7341, %v6428
  %v7406 = vsel %vm2555, %v7342, %v6430
  %v7407 = vsel %vm2555, %v7343, %v6432
  %v7408 = vsel %vm2555, %v7344, %v6434
  %v7409 = vsel %vm2555, %v7345, %v6436
  %v7410 = vsel %vm2555, %v7346, %v6438
  %v7411 = vsel %vm2555, %v7347, %v6440
  %v7412 = vsel %vm2555, %v7348, %v6442
  %v7413 = vsel %vm2555, %v7349, %v6444
  %v7414 = vsel %vm2555, %v7350, %v6446
  %v7415 = vsel %vm2555, %v7351, %v6448
  %v7416 = vsel %vm2555, %v7352, %v6450
  %v7417 = vsel %vm2555, %v7353, %v6452
  %v7418 = vsel %vm2555, %v7354, %v6454
  %v7419 = vsel %vm2555, %v7355, %v6456
  %v7420 = vsel %vm2555, %v7356, %v6458
  %v7421 = vsel %vm2555, %v7357, %v6460
  %v7422 = vsel %vm2555, %v7358, %v6462
  %v7423 = vsel %vm2555, %v7359, %v6464
  %v7424 = vsel %vm2555, %v7360, %v6466
  %v7425 = vsel %vm2555, %v7361, %v6468
  %v7426 = vsel %vm2555, %v7362, %v6470
  %v7427 = vsel %vm2555, %v7363, %v6472
  %v7428 = vsel %vm2555, %v7364, %v6474
  %v7429 = vsel %vm2555, %v7365, %v6476
  %v7430 = vsel %vm2555, %v7366, %v6478
  %v7431 = vsel %vm2555, %v7367, %v6480
  %v7432 = vsel %vm2555, %v7368, %v6482
  %v7433 = vsel %vm2555, %v7369, %v6484
  %v7434 = vsel %vm2555, %v7370, %v6486
  %v7435 = vsel %vm2555, %v7371, %v6488
  %v7436 = vsel %vm2555, %v7372, %v6490
  %v7437 = vsel %vm2555, %v7373, %v6492
  %v7438 = vsel %vm2555, %v7374, %v6494
  %v7439 = vsel %vm2555, %v7375, %v6496
  %v7440 = vsel %vm2555, %v7376, %v6498
  %v7441 = vsel %vm2555, %v7377, %v6500
  %v7442 = vsel %vm2555, %v7378, %v6502
  %v7443 = vsel %vm2555, %v7379, %v6504
  %v7444 = vsel %vm2555, %v7380, %v6506
  %v7445 = vsel %vm2555, %v7381, %v6508
  %v7446 = vsel %vm2555, %v7382, %v6510
  %v7447 = vsel %vm2555, %v7383, %v6512
  %v7448 = vsel %vm2555, %v7384, %v6514
  %v7449 = vsel %vm2555, %v7385, %v6516
  %v7450 = vsel %vm2555, %v7386, %v6518
  %v7451 = vsel %vm2555, %v7387, %v6520
  %v7452 = vsel %vm2555, %v7388, %v6522
  %v7453 = vsel %vm2555, %v7389, %v6524
  %v7454 = vsel %vm2555, %v7390, %v6526
  %v7455 = vsel %vm2555, %v7391, %v6528
  %v7456 = vsel %vm2555, %v7392, %v6530
  %v7457 = vsel %vm2555, %v7393, %v6532
  %v7458 = vsel %vm2555, %v7394, %v6534
  %v7459 = vsel %vm2555, %v7395, %v6536
  %v7460 = vsel %vm2555, %v7396, %v6538
  %v7461 = vsel %vm2555, %v7397, %v6540
  %v7462 = vsel %vm2555, %v7398, %v6542
  %v7463 = vsel %vm2555, %v7399, %v6544
  %v7464 = vsel %vm2555, %v7400, %v6546
  %v7465 = vsel %vm2555, %v7401, %v6548
  %v7466 = vsel %vm2555, %v7402, %v6550
  %v7467 = vsel %vm2620, %v7403, %v6616
  %v7468 = vsel %vm2620, %v7404, %v6618
  %v7469 = vsel %vm2620, %v7405, %v6620
  %v7470 = vsel %vm2620, %v7406, %v6622
  %v7471 = vsel %vm2620, %v7407, %v6624
  %v7472 = vsel %vm2620, %v7408, %v6626
  %v7473 = vsel %vm2620, %v7409, %v6628
  %v7474 = vsel %vm2620, %v7410, %v6630
  %v7475 = vsel %vm2620, %v7411, %v6632
  %v7476 = vsel %vm2620, %v7412, %v6634
  %v7477 = vsel %vm2620, %v7413, %v6636
  %v7478 = vsel %vm2620, %v7414, %v6638
  %v7479 = vsel %vm2620, %v7415, %v6640
  %v7480 = vsel %vm2620, %v7416, %v6642
  %v7481 = vsel %vm2620, %v7417, %v6644
  %v7482 = vsel %vm2620, %v7418, %v6646
  %v7483 = vsel %vm2620, %v7419, %v6648
  %v7484 = vsel %vm2620, %v7420, %v6650
  %v7485 = vsel %vm2620, %v7421, %v6652
  %v7486 = vsel %vm2620, %v7422, %v6654
  %v7487 = vsel %vm2620, %v7423, %v6656
  %v7488 = vsel %vm2620, %v7424, %v6658
  %v7489 = vsel %vm2620, %v7425, %v6660
  %v7490 = vsel %vm2620, %v7426, %v6662
  %v7491 = vsel %vm2620, %v7427, %v6664
  %v7492 = vsel %vm2620, %v7428, %v6666
  %v7493 = vsel %vm2620, %v7429, %v6668
  %v7494 = vsel %vm2620, %v7430, %v6670
  %v7495 = vsel %vm2620, %v7431, %v6672
  %v7496 = vsel %vm2620, %v7432, %v6674
  %v7497 = vsel %vm2620, %v7433, %v1813
  %v7498 = vsel %vm2620, %v7434, %v1813
  %v7499 = vsel %vm2620, %v7435, %v6676
  %v7500 = vsel %vm2620, %v7436, %v6678
  %v7501 = vsel %vm2620, %v7437, %v6680
  %v7502 = vsel %vm2620, %v7438, %v6682
  %v7503 = vsel %vm2620, %v7439, %v6684
  %v7504 = vsel %vm2620, %v7440, %v6686
  %v7505 = vsel %vm2620, %v7441, %v6688
  %v7506 = vsel %vm2620, %v7442, %v6690
  %v7507 = vsel %vm2620, %v7443, %v6692
  %v7508 = vsel %vm2620, %v7444, %v6694
  %v7509 = vsel %vm2620, %v7445, %v6696
  %v7510 = vsel %vm2620, %v7446, %v6698
  %v7511 = vsel %vm2620, %v7447, %v6700
  %v7512 = vsel %vm2620, %v7448, %v6702
  %v7513 = vsel %vm2620, %v7449, %v6704
  %v7514 = vsel %vm2620, %v7450, %v6706
  %v7515 = vsel %vm2620, %v7451, %v6708
  %v7516 = vsel %vm2620, %v7452, %v6710
  %v7517 = vsel %vm2620, %v7453, %v6712
  %v7518 = vsel %vm2620, %v7454, %v6714
  %v7519 = vsel %vm2620, %v7455, %v6716
  %v7520 = vsel %vm2620, %v7456, %v6718
  %v7521 = vsel %vm2620, %v7457, %v6720
  %v7522 = vsel %vm2620, %v7458, %v6722
  %v7523 = vsel %vm2620, %v7459, %v6724
  %v7524 = vsel %vm2620, %v7460, %v6726
  %v7525 = vsel %vm2620, %v7461, %v6728
  %v7526 = vsel %vm2620, %v7462, %v6730
  %v7527 = vsel %vm2620, %v7463, %v6732
  %v7528 = vsel %vm2620, %v7464, %v6734
  %v7529 = vsel %vm2620, %v7465, %v1813
  %v7530 = vsel %vm2620, %v7466, %v1813
  %v7531 = vsel %vm2685, %v7467, %v6796
  %v7532 = vsel %vm2685, %v7468, %v6798
  %v7533 = vsel %vm2685, %v7469, %v6800
  %v7534 = vsel %vm2685, %v7470, %v6802
  %v7535 = vsel %vm2685, %v7471, %v6804
  %v7536 = vsel %vm2685, %v7472, %v6806
  %v7537 = vsel %vm2685, %v7473, %v6808
  %v7538 = vsel %vm2685, %v7474, %v6810
  %v7539 = vsel %vm2685, %v7475, %v6812
  %v7540 = vsel %vm2685, %v7476, %v6814
  %v7541 = vsel %vm2685, %v7477, %v6816
  %v7542 = vsel %vm2685, %v7478, %v6818
  %v7543 = vsel %vm2685, %v7479, %v6820
  %v7544 = vsel %vm2685, %v7480, %v6822
  %v7545 = vsel %vm2685, %v7481, %v6824
  %v7546 = vsel %vm2685, %v7482, %v6826
  %v7547 = vsel %vm2685, %v7483, %v6828
  %v7548 = vsel %vm2685, %v7484, %v6830
  %v7549 = vsel %vm2685, %v7485, %v6832
  %v7550 = vsel %vm2685, %v7486, %v6834
  %v7551 = vsel %vm2685, %v7487, %v6836
  %v7552 = vsel %vm2685, %v7488, %v6838
  %v7553 = vsel %vm2685, %v7489, %v6840
  %v7554 = vsel %vm2685, %v7490, %v6842
  %v7555 = vsel %vm2685, %v7491, %v6844
  %v7556 = vsel %vm2685, %v7492, %v6846
  %v7557 = vsel %vm2685, %v7493, %v6848
  %v7558 = vsel %vm2685, %v7494, %v6850
  %v7559 = vsel %vm2685, %v7495, %v6852
  %v7560 = vsel %vm2685, %v7496, %v6854
  %v7561 = vsel %vm2685, %v7497, %v1996
  %v7562 = vsel %vm2685, %v7498, %v1996
  %v7563 = vsel %vm2685, %v7499, %v6856
  %v7564 = vsel %vm2685, %v7500, %v6858
  %v7565 = vsel %vm2685, %v7501, %v6860
  %v7566 = vsel %vm2685, %v7502, %v6862
  %v7567 = vsel %vm2685, %v7503, %v6864
  %v7568 = vsel %vm2685, %v7504, %v6866
  %v7569 = vsel %vm2685, %v7505, %v6868
  %v7570 = vsel %vm2685, %v7506, %v6870
  %v7571 = vsel %vm2685, %v7507, %v6872
  %v7572 = vsel %vm2685, %v7508, %v6874
  %v7573 = vsel %vm2685, %v7509, %v6876
  %v7574 = vsel %vm2685, %v7510, %v6878
  %v7575 = vsel %vm2685, %v7511, %v6880
  %v7576 = vsel %vm2685, %v7512, %v6882
  %v7577 = vsel %vm2685, %v7513, %v6884
  %v7578 = vsel %vm2685, %v7514, %v6886
  %v7579 = vsel %vm2685, %v7515, %v6888
  %v7580 = vsel %vm2685, %v7516, %v6890
  %v7581 = vsel %vm2685, %v7517, %v6892
  %v7582 = vsel %vm2685, %v7518, %v6894
  %v7583 = vsel %vm2685, %v7519, %v6896
  %v7584 = vsel %vm2685, %v7520, %v6898
  %v7585 = vsel %vm2685, %v7521, %v6900
  %v7586 = vsel %vm2685, %v7522, %v6902
  %v7587 = vsel %vm2685, %v7523, %v6904
  %v7588 = vsel %vm2685, %v7524, %v6906
  %v7589 = vsel %vm2685, %v7525, %v6908
  %v7590 = vsel %vm2685, %v7526, %v6910
  %v7591 = vsel %vm2685, %v7527, %v6912
  %v7592 = vsel %vm2685, %v7528, %v6914
  %v7593 = vsel %vm2685, %v7529, %v1996
  %v7594 = vsel %vm2685, %v7530, %v1996
  %v7595 = vsel %vm2750, %v7531, %v6976
  %v7596 = vsel %vm2750, %v7532, %v6978
  %v7597 = vsel %vm2750, %v7533, %v6980
  %v7598 = vsel %vm2750, %v7534, %v6982
  %v7599 = vsel %vm2750, %v7535, %v6984
  %v7600 = vsel %vm2750, %v7536, %v6986
  %v7601 = vsel %vm2750, %v7537, %v6988
  %v7602 = vsel %vm2750, %v7538, %v6990
  %v7603 = vsel %vm2750, %v7539, %v6992
  %v7604 = vsel %vm2750, %v7540, %v6994
  %v7605 = vsel %vm2750, %v7541, %v6996
  %v7606 = vsel %vm2750, %v7542, %v6998
  %v7607 = vsel %vm2750, %v7543, %v7000
  %v7608 = vsel %vm2750, %v7544, %v7002
  %v7609 = vsel %vm2750, %v7545, %v7004
  %v7610 = vsel %vm2750, %v7546, %v7006
  %v7611 = vsel %vm2750, %v7547, %v7008
  %v7612 = vsel %vm2750, %v7548, %v7010
  %v7613 = vsel %vm2750, %v7549, %v7012
  %v7614 = vsel %vm2750, %v7550, %v7014
  %v7615 = vsel %vm2750, %v7551, %v7016
  %v7616 = vsel %vm2750, %v7552, %v7018
  %v7617 = vsel %vm2750, %v7553, %v7020
  %v7618 = vsel %vm2750, %v7554, %v7022
  %v7619 = vsel %vm2750, %v7555, %v7024
  %v7620 = vsel %vm2750, %v7556, %v7026
  %v7621 = vsel %vm2750, %v7557, %v7028
  %v7622 = vsel %vm2750, %v7558, %v7030
  %v7623 = vsel %vm2750, %v7559, %v7032
  %v7624 = vsel %vm2750, %v7560, %v7034
  %v7625 = vsel %vm2750, %v7561, %v2179
  %v7626 = vsel %vm2750, %v7562, %v2179
  %v7627 = vsel %vm2750, %v7563, %v7036
  %v7628 = vsel %vm2750, %v7564, %v7038
  %v7629 = vsel %vm2750, %v7565, %v7040
  %v7630 = vsel %vm2750, %v7566, %v7042
  %v7631 = vsel %vm2750, %v7567, %v7044
  %v7632 = vsel %vm2750, %v7568, %v7046
  %v7633 = vsel %vm2750, %v7569, %v7048
  %v7634 = vsel %vm2750, %v7570, %v7050
  %v7635 = vsel %vm2750, %v7571, %v7052
  %v7636 = vsel %vm2750, %v7572, %v7054
  %v7637 = vsel %vm2750, %v7573, %v7056
  %v7638 = vsel %vm2750, %v7574, %v7058
  %v7639 = vsel %vm2750, %v7575, %v7060
  %v7640 = vsel %vm2750, %v7576, %v7062
  %v7641 = vsel %vm2750, %v7577, %v7064
  %v7642 = vsel %vm2750, %v7578, %v7066
  %v7643 = vsel %vm2750, %v7579, %v7068
  %v7644 = vsel %vm2750, %v7580, %v7070
  %v7645 = vsel %vm2750, %v7581, %v7072
  %v7646 = vsel %vm2750, %v7582, %v7074
  %v7647 = vsel %vm2750, %v7583, %v7076
  %v7648 = vsel %vm2750, %v7584, %v7078
  %v7649 = vsel %vm2750, %v7585, %v7080
  %v7650 = vsel %vm2750, %v7586, %v7082
  %v7651 = vsel %vm2750, %v7587, %v7084
  %v7652 = vsel %vm2750, %v7588, %v7086
  %v7653 = vsel %vm2750, %v7589, %v7088
  %v7654 = vsel %vm2750, %v7590, %v7090
  %v7655 = vsel %vm2750, %v7591, %v7092
  %v7656 = vsel %vm2750, %v7592, %v7094
  %v7657 = vsel %vm2750, %v7593, %v2179
  %v7658 = vsel %vm2750, %v7594, %v2179
  %v7660 = vsel %vm2815, %v7595, 0
  %v7663 = vsel %vm2815, %v7596, 0
  %v7666 = vsel %vm2815, %v7597, 0
  %v7669 = vsel %vm2815, %v7598, 0
  %v7672 = vsel %vm2815, %v7599, 0
  %v7675 = vsel %vm2815, %v7600, 0
  %v7678 = vsel %vm2815, %v7601, 0
  %v7681 = vsel %vm2815, %v7602, 0
  %v7684 = vsel %vm2815, %v7603, 0
  %v7687 = vsel %vm2815, %v7604, 0
  %v7690 = vsel %vm2815, %v7605, 0
  %v7693 = vsel %vm2815, %v7606, 0
  %v7696 = vsel %vm2815, %v7607, 0
  %v7699 = vsel %vm2815, %v7608, 0
  %v7702 = vsel %vm2815, %v7609, 0
  %v7705 = vsel %vm2815, %v7610, 0
  %v7708 = vsel %vm2815, %v7611, 0
  %v7711 = vsel %vm2815, %v7612, 0
  %v7714 = vsel %vm2815, %v7613, 0
  %v7717 = vsel %vm2815, %v7614, 0
  %v7720 = vsel %vm2815, %v7615, 0
  %v7723 = vsel %vm2815, %v7616, 0
  %v7726 = vsel %vm2815, %v7617, 0
  %v7729 = vsel %vm2815, %v7618, 0
  %v7732 = vsel %vm2815, %v7619, 0
  %v7735 = vsel %vm2815, %v7620, 0
  %v7738 = vsel %vm2815, %v7621, 0
  %v7741 = vsel %vm2815, %v7622, 0
  %v7744 = vsel %vm2815, %v7623, 0
  %v7747 = vsel %vm2815, %v7624, 0
  %v7750 = vsel %vm2815, %v7625, 0
  %v7753 = vsel %vm2815, %v7626, 0
  %v7756 = vsel %vm2815, %v7627, 0
  %v7759 = vsel %vm2815, %v7628, 0
  %v7762 = vsel %vm2815, %v7629, 0
  %v7765 = vsel %vm2815, %v7630, 0
  %v7768 = vsel %vm2815, %v7631, 0
  %v7771 = vsel %vm2815, %v7632, 0
  %v7774 = vsel %vm2815, %v7633, 0
  %v7777 = vsel %vm2815, %v7634, 0
  %v7780 = vsel %vm2815, %v7635, 0
  %v7783 = vsel %vm2815, %v7636, 0
  %v7786 = vsel %vm2815, %v7637, 0
  %v7789 = vsel %vm2815, %v7638, 0
  %v7792 = vsel %vm2815, %v7639, 0
  %v7795 = vsel %vm2815, %v7640, 0
  %v7798 = vsel %vm2815, %v7641, 0
  %v7801 = vsel %vm2815, %v7642, 0
  %v7804 = vsel %vm2815, %v7643, 0
  %v7807 = vsel %vm2815, %v7644, 0
  %v7810 = vsel %vm2815, %v7645, 0
  %v7813 = vsel %vm2815, %v7646, 0
  %v7816 = vsel %vm2815, %v7647, 0
  %v7819 = vsel %vm2815, %v7648, 0
  %v7822 = vsel %vm2815, %v7649, 0
  %v7825 = vsel %vm2815, %v7650, 0
  %v7828 = vsel %vm2815, %v7651, 0
  %v7831 = vsel %vm2815, %v7652, 0
  %v7834 = vsel %vm2815, %v7653, 0
  %v7837 = vsel %vm2815, %v7654, 0
  %v7840 = vsel %vm2815, %v7655, 0
  %v7843 = vsel %vm2815, %v7656, 0
  %v7846 = vsel %vm2815, %v7657, 0
  %v7849 = vsel %vm2815, %v7658, 0
  %v7852 = vsel %vm3008, %v5294, 0
  %7854 = vmatprep.subr.mxu0 0.0
  %7855 = vmatpush1.msra.mxu0 0.0
  %7856 = vmatprep.subr.mxu0 0.0
  %7857 = vmatpush1.msra.mxu0 0.0
  %7858 = vmatprep.subr.mxu0 0.0
  %7859 = vmatpush1.msra.mxu0 0.0
  %7860 = vmatprep.subr.mxu0 0.0
  %7861 = vmatpush1.msra.mxu0 0.0
  %7862 = vmatprep.subr.mxu0 0.0
  %7863 = vmatpush1.msra.mxu0 0.0
  %7864 = vmatprep.subr.mxu0 0.0
  %7865 = vmatpush1.msra.mxu0 0.0
  %7866 = vmatprep.subr.mxu0 0.0
  %7867 = vmatpush1.msra.mxu0 0.0
  %7868 = vmatprep.subr.mxu0 0.0
  %7869 = vmatpush1.msra.mxu0 0.0
  %7870 = vmatprep.subr.mxu0 0.0
  %7871 = vmatpush1.msra.mxu0 0.0
  %7872 = vmatprep.subr.mxu0 0.0
  %7873 = vmatpush1.msra.mxu0 0.0
  %7874 = vmatprep.subr.mxu0 0.0
  %7875 = vmatpush1.msra.mxu0 0.0
  %7876 = vmatprep.subr.mxu0 0.0
  %7877 = vmatpush1.msra.mxu0 %v7852
  %7878 = vmatprep.subr.mxu0 0.0
  %7879 = vmatpush1.msra.mxu0 %v5293
  %7880 = vmatprep.subr.mxu0 0.0
  %7881 = vmatpush1.msra.mxu0 %v5292
  %7882 = vmatprep.subr.mxu0 0.0
  %7883 = vmatpush1.msra.mxu0 %v5291
  %7884 = vmatprep.subr.mxu0 0.0
  %7885 = vmatpush1.msra.mxu0 %v5290
  %7886 = vmatprep.subr.mxu0 0.0
  %7887 = vmatpush2.msra.mxu0 0.0
  %7888 = vmatprep.subr.mxu0 0.0
  %7889 = vmatpush2.msra.mxu0 0.0
  %7890 = vmatprep.subr.mxu0 0.0
  %7891 = vmatpush2.msra.mxu0 0.0
  %7892 = vmatprep.subr.mxu0 0.0
  %7893 = vmatpush2.msra.mxu0 0.0
  %7894 = vmatprep.subr.mxu0 0.0
  %7895 = vmatpush2.msra.mxu0 0.0
  %7896 = vmatprep.subr.mxu0 0.0
  %7897 = vmatpush2.msra.mxu0 0.0
  %7898 = vmatprep.subr.mxu0 0.0
  %7899 = vmatpush2.msra.mxu0 0.0
  %7900 = vmatprep.subr.mxu0 0.0
  %7901 = vmatpush2.msra.mxu0 0.0
  %7902 = vmatprep.subr.mxu0 0.0
  %7903 = vmatpush2.msra.mxu0 0.0
  %7904 = vmatprep.subr.mxu0 0.0
  %7905 = vmatpush2.msra.mxu0 0.0
  %7906 = vmatprep.subr.mxu0 0.0
  %7907 = vmatpush2.msra.mxu0 0.0
  %7908 = vmatprep.subr.mxu0 0.0
  %7909 = vmatpush2.msra.mxu0 0.0
  %7910 = vmatprep.subr.mxu0 0.0
  %7911 = vmatpush2.msra.mxu0 0.0
  %7912 = vmatprep.subr.mxu0 0.0
  %7913 = vmatpush2.msra.mxu0 0.0
  %7914 = vmatprep.subr.mxu0 0.0
  %7915 = vmatpush2.msra.mxu0 0.0
  %7916 = vmatprep.subr.mxu0 0.0
  %7917 = vmatpush2.msra.mxu0 0.0
  %7918 = vmatprep.mubr.f32.mxu0 0.0
  %7919 = vmatmul.mubr.f32.gmra.mxu0 %v7660
  %v7920 = vpop.f32.mrf.mxu0
  %v7921 = vadd.f32 0.0, %v7920
  %v7922 = vpop.f32.mrf.mxu0
  %7923 = vmatprep.mubr.f32.mxu0 0.0
  %7924 = vmatmul.mubr.f32.gmra.mxu0 %v7663
  %v7925 = vpop.f32.mrf.mxu0
  %v7926 = vadd.f32 0.0, %v7925
  %v7927 = vpop.f32.mrf.mxu0
  %7928 = vmatprep.mubr.f32.mxu0 0.0
  %7929 = vmatmul.mubr.f32.gmra.mxu0 %v7666
  %v7930 = vpop.f32.mrf.mxu0
  %v7931 = vadd.f32 0.0, %v7930
  %v7932 = vpop.f32.mrf.mxu0
  %7933 = vmatprep.mubr.f32.mxu0 0.0
  %7934 = vmatmul.mubr.f32.gmra.mxu0 %v7669
  %v7935 = vpop.f32.mrf.mxu0
  %v7936 = vadd.f32 0.0, %v7935
  %v7937 = vpop.f32.mrf.mxu0
  %7938 = vmatprep.mubr.f32.mxu0 0.0
  %7939 = vmatmul.mubr.f32.gmra.mxu0 %v7672
  %v7940 = vpop.f32.mrf.mxu0
  %v7941 = vadd.f32 0.0, %v7940
  %v7942 = vpop.f32.mrf.mxu0
  %7943 = vmatprep.mubr.f32.mxu0 0.0
  %7944 = vmatmul.mubr.f32.gmra.mxu0 %v7675
  %v7945 = vpop.f32.mrf.mxu0
  %v7946 = vadd.f32 0.0, %v7945
  %v7947 = vpop.f32.mrf.mxu0
  %7948 = vmatprep.mubr.f32.mxu0 0.0
  %7949 = vmatmul.mubr.f32.gmra.mxu0 %v7678
  %v7950 = vpop.f32.mrf.mxu0
  %v7951 = vadd.f32 0.0, %v7950
  %v7952 = vpop.f32.mrf.mxu0
  %7953 = vmatprep.mubr.f32.mxu0 0.0
  %7954 = vmatmul.mubr.f32.gmra.mxu0 %v7681
  %v7955 = vpop.f32.mrf.mxu0
  %v7956 = vadd.f32 0.0, %v7955
  %v7957 = vpop.f32.mrf.mxu0
  %7958 = vmatprep.mubr.f32.mxu0 0.0
  %7959 = vmatmul.mubr.f32.gmra.mxu0 %v7684
  %v7960 = vpop.f32.mrf.mxu0
  %v7961 = vadd.f32 0.0, %v7960
  %v7962 = vpop.f32.mrf.mxu0
  %7963 = vmatprep.mubr.f32.mxu0 0.0
  %7964 = vmatmul.mubr.f32.gmra.mxu0 %v7687
  %v7965 = vpop.f32.mrf.mxu0
  %v7966 = vadd.f32 0.0, %v7965
  %v7967 = vpop.f32.mrf.mxu0
  %7968 = vmatprep.mubr.f32.mxu0 0.0
  %7969 = vmatmul.mubr.f32.gmra.mxu0 %v7690
  %v7970 = vpop.f32.mrf.mxu0
  %v7971 = vadd.f32 0.0, %v7970
  %v7972 = vpop.f32.mrf.mxu0
  %7973 = vmatprep.mubr.f32.mxu0 0.0
  %7974 = vmatmul.mubr.f32.gmra.mxu0 %v7693
  %v7975 = vpop.f32.mrf.mxu0
  %v7976 = vadd.f32 0.0, %v7975
  %v7977 = vpop.f32.mrf.mxu0
  %7978 = vmatprep.mubr.f32.mxu0 0.0
  %7979 = vmatmul.mubr.f32.gmra.mxu0 %v7696
  %v7980 = vpop.f32.mrf.mxu0
  %v7981 = vadd.f32 0.0, %v7980
  %v7982 = vpop.f32.mrf.mxu0
  %7983 = vmatprep.mubr.f32.mxu0 0.0
  %7984 = vmatmul.mubr.f32.gmra.mxu0 %v7699
  %v7985 = vpop.f32.mrf.mxu0
  %v7986 = vadd.f32 0.0, %v7985
  %v7987 = vpop.f32.mrf.mxu0
  %7988 = vmatprep.mubr.f32.mxu0 0.0
  %7989 = vmatmul.mubr.f32.gmra.mxu0 %v7702
  %v7990 = vpop.f32.mrf.mxu0
  %v7991 = vadd.f32 0.0, %v7990
  %v7992 = vpop.f32.mrf.mxu0
  %7993 = vmatprep.mubr.f32.mxu0 0.0
  %7994 = vmatmul.mubr.f32.gmra.mxu0 %v7705
  %v7995 = vpop.f32.mrf.mxu0
  %v7996 = vadd.f32 0.0, %v7995
  %v7997 = vpop.f32.mrf.mxu0
  %7998 = vmatprep.mubr.f32.mxu0 0.0
  %7999 = vmatmul.mubr.f32.gmra.mxu0 %v7708
  %v8000 = vpop.f32.mrf.mxu0
  %v8001 = vadd.f32 0.0, %v8000
  %v8002 = vpop.f32.mrf.mxu0
  %8003 = vmatprep.mubr.f32.mxu0 0.0
  %8004 = vmatmul.mubr.f32.gmra.mxu0 %v7711
  %v8005 = vpop.f32.mrf.mxu0
  %v8006 = vadd.f32 0.0, %v8005
  %v8007 = vpop.f32.mrf.mxu0
  %8008 = vmatprep.mubr.f32.mxu0 0.0
  %8009 = vmatmul.mubr.f32.gmra.mxu0 %v7714
  %v8010 = vpop.f32.mrf.mxu0
  %v8011 = vadd.f32 0.0, %v8010
  %v8012 = vpop.f32.mrf.mxu0
  %8013 = vmatprep.mubr.f32.mxu0 0.0
  %8014 = vmatmul.mubr.f32.gmra.mxu0 %v7717
  %v8015 = vpop.f32.mrf.mxu0
  %v8016 = vadd.f32 0.0, %v8015
  %v8017 = vpop.f32.mrf.mxu0
  %8018 = vmatprep.mubr.f32.mxu0 0.0
  %8019 = vmatmul.mubr.f32.gmra.mxu0 %v7720
  %v8020 = vpop.f32.mrf.mxu0
  %v8021 = vadd.f32 0.0, %v8020
  %v8022 = vpop.f32.mrf.mxu0
  %8023 = vmatprep.mubr.f32.mxu0 0.0
  %8024 = vmatmul.mubr.f32.gmra.mxu0 %v7723
  %v8025 = vpop.f32.mrf.mxu0
  %v8026 = vadd.f32 0.0, %v8025
  %v8027 = vpop.f32.mrf.mxu0
  %8028 = vmatprep.mubr.f32.mxu0 0.0
  %8029 = vmatmul.mubr.f32.gmra.mxu0 %v7726
  %v8030 = vpop.f32.mrf.mxu0
  %v8031 = vadd.f32 0.0, %v8030
  %v8032 = vpop.f32.mrf.mxu0
  %8033 = vmatprep.mubr.f32.mxu0 0.0
  %8034 = vmatmul.mubr.f32.gmra.mxu0 %v7729
  %v8035 = vpop.f32.mrf.mxu0
  %v8036 = vadd.f32 0.0, %v8035
  %v8037 = vpop.f32.mrf.mxu0
  %8038 = vmatprep.mubr.f32.mxu0 0.0
  %8039 = vmatmul.mubr.f32.gmra.mxu0 %v7732
  %v8040 = vpop.f32.mrf.mxu0
  %v8041 = vadd.f32 0.0, %v8040
  %v8042 = vpop.f32.mrf.mxu0
  %8043 = vmatprep.mubr.f32.mxu0 0.0
  %8044 = vmatmul.mubr.f32.gmra.mxu0 %v7735
  %v8045 = vpop.f32.mrf.mxu0
  %v8046 = vadd.f32 0.0, %v8045
  %v8047 = vpop.f32.mrf.mxu0
  %8048 = vmatprep.mubr.f32.mxu0 0.0
  %8049 = vmatmul.mubr.f32.gmra.mxu0 %v7738
  %v8050 = vpop.f32.mrf.mxu0
  %v8051 = vadd.f32 0.0, %v8050
  %v8052 = vpop.f32.mrf.mxu0
  %8053 = vmatprep.mubr.f32.mxu0 0.0
  %8054 = vmatmul.mubr.f32.gmra.mxu0 %v7741
  %v8055 = vpop.f32.mrf.mxu0
  %v8056 = vadd.f32 0.0, %v8055
  %v8057 = vpop.f32.mrf.mxu0
  %8058 = vmatprep.mubr.f32.mxu0 0.0
  %8059 = vmatmul.mubr.f32.gmra.mxu0 %v7744
  %v8060 = vpop.f32.mrf.mxu0
  %v8061 = vadd.f32 0.0, %v8060
  %v8062 = vpop.f32.mrf.mxu0
  %8063 = vmatprep.mubr.f32.mxu0 0.0
  %8064 = vmatmul.mubr.f32.gmra.mxu0 %v7747
  %v8065 = vpop.f32.mrf.mxu0
  %v8066 = vadd.f32 0.0, %v8065
  %v8067 = vpop.f32.mrf.mxu0
  %8068 = vmatprep.mubr.f32.mxu0 0.0
  %8069 = vmatmul.mubr.f32.gmra.mxu0 %v7750
  %v8070 = vpop.f32.mrf.mxu0
  %v8071 = vadd.f32 0.0, %v8070
  %v8072 = vpop.f32.mrf.mxu0
  %8073 = vmatprep.mubr.f32.mxu0 0.0
  %8074 = vmatmul.mubr.f32.gmra.mxu0 %v7753
  %v8075 = vpop.f32.mrf.mxu0
  %v8076 = vadd.f32 0.0, %v8075
  %v8077 = vpop.f32.mrf.mxu0
  %8078 = vmatprep.mubr.f32.mxu0 0.0
  %8079 = vmatmul.mubr.f32.gmra.mxu0 %v7756
  %v8080 = vpop.f32.mrf.mxu0
  %v8081 = vadd.f32 0.0, %v8080
  %v8082 = vpop.f32.mrf.mxu0
  %8083 = vmatprep.mubr.f32.mxu0 0.0
  %8084 = vmatmul.mubr.f32.gmra.mxu0 %v7759
  %v8085 = vpop.f32.mrf.mxu0
  %v8086 = vadd.f32 0.0, %v8085
  %v8087 = vpop.f32.mrf.mxu0
  %8088 = vmatprep.mubr.f32.mxu0 0.0
  %8089 = vmatmul.mubr.f32.gmra.mxu0 %v7762
  %v8090 = vpop.f32.mrf.mxu0
  %v8091 = vadd.f32 0.0, %v8090
  %v8092 = vpop.f32.mrf.mxu0
  %8093 = vmatprep.mubr.f32.mxu0 0.0
  %8094 = vmatmul.mubr.f32.gmra.mxu0 %v7765
  %v8095 = vpop.f32.mrf.mxu0
  %v8096 = vadd.f32 0.0, %v8095
  %v8097 = vpop.f32.mrf.mxu0
  %8098 = vmatprep.mubr.f32.mxu0 0.0
  %8099 = vmatmul.mubr.f32.gmra.mxu0 %v7768
  %v8100 = vpop.f32.mrf.mxu0
  %v8101 = vadd.f32 0.0, %v8100
  %v8102 = vpop.f32.mrf.mxu0
  %8103 = vmatprep.mubr.f32.mxu0 0.0
  %8104 = vmatmul.mubr.f32.gmra.mxu0 %v7771
  %v8105 = vpop.f32.mrf.mxu0
  %v8106 = vadd.f32 0.0, %v8105
  %v8107 = vpop.f32.mrf.mxu0
  %8108 = vmatprep.mubr.f32.mxu0 0.0
  %8109 = vmatmul.mubr.f32.gmra.mxu0 %v7774
  %v8110 = vpop.f32.mrf.mxu0
  %v8111 = vadd.f32 0.0, %v8110
  %v8112 = vpop.f32.mrf.mxu0
  %8113 = vmatprep.mubr.f32.mxu0 0.0
  %8114 = vmatmul.mubr.f32.gmra.mxu0 %v7777
  %v8115 = vpop.f32.mrf.mxu0
  %v8116 = vadd.f32 0.0, %v8115
  %v8117 = vpop.f32.mrf.mxu0
  %8118 = vmatprep.mubr.f32.mxu0 0.0
  %8119 = vmatmul.mubr.f32.gmra.mxu0 %v7780
  %v8120 = vpop.f32.mrf.mxu0
  %v8121 = vadd.f32 0.0, %v8120
  %v8122 = vpop.f32.mrf.mxu0
  %8123 = vmatprep.mubr.f32.mxu0 0.0
  %8124 = vmatmul.mubr.f32.gmra.mxu0 %v7783
  %v8125 = vpop.f32.mrf.mxu0
  %v8126 = vadd.f32 0.0, %v8125
  %v8127 = vpop.f32.mrf.mxu0
  %8128 = vmatprep.mubr.f32.mxu0 0.0
  %8129 = vmatmul.mubr.f32.gmra.mxu0 %v7786
  %v8130 = vpop.f32.mrf.mxu0
  %v8131 = vadd.f32 0.0, %v8130
  %v8132 = vpop.f32.mrf.mxu0
  %8133 = vmatprep.mubr.f32.mxu0 0.0
  %8134 = vmatmul.mubr.f32.gmra.mxu0 %v7789
  %v8135 = vpop.f32.mrf.mxu0
  %v8136 = vadd.f32 0.0, %v8135
  %v8137 = vpop.f32.mrf.mxu0
  %8138 = vmatprep.mubr.f32.mxu0 0.0
  %8139 = vmatmul.mubr.f32.gmra.mxu0 %v7792
  %v8140 = vpop.f32.mrf.mxu0
  %v8141 = vadd.f32 0.0, %v8140
  %v8142 = vpop.f32.mrf.mxu0
  %8143 = vmatprep.mubr.f32.mxu0 0.0
  %8144 = vmatmul.mubr.f32.gmra.mxu0 %v7795
  %v8145 = vpop.f32.mrf.mxu0
  %v8146 = vadd.f32 0.0, %v8145
  %v8147 = vpop.f32.mrf.mxu0
  %8148 = vmatprep.mubr.f32.mxu0 0.0
  %8149 = vmatmul.mubr.f32.gmra.mxu0 %v7798
  %v8150 = vpop.f32.mrf.mxu0
  %v8151 = vadd.f32 0.0, %v8150
  %v8152 = vpop.f32.mrf.mxu0
  %8153 = vmatprep.mubr.f32.mxu0 0.0
  %8154 = vmatmul.mubr.f32.gmra.mxu0 %v7801
  %v8155 = vpop.f32.mrf.mxu0
  %v8156 = vadd.f32 0.0, %v8155
  %v8157 = vpop.f32.mrf.mxu0
  %8158 = vmatprep.mubr.f32.mxu0 0.0
  %8159 = vmatmul.mubr.f32.gmra.mxu0 %v7804
  %v8160 = vpop.f32.mrf.mxu0
  %v8161 = vadd.f32 0.0, %v8160
  %v8162 = vpop.f32.mrf.mxu0
  %8163 = vmatprep.mubr.f32.mxu0 0.0
  %8164 = vmatmul.mubr.f32.gmra.mxu0 %v7807
  %v8165 = vpop.f32.mrf.mxu0
  %v8166 = vadd.f32 0.0, %v8165
  %v8167 = vpop.f32.mrf.mxu0
  %8168 = vmatprep.mubr.f32.mxu0 0.0
  %8169 = vmatmul.mubr.f32.gmra.mxu0 %v7810
  %v8170 = vpop.f32.mrf.mxu0
  %v8171 = vadd.f32 0.0, %v8170
  %v8172 = vpop.f32.mrf.mxu0
  %8173 = vmatprep.mubr.f32.mxu0 0.0
  %8174 = vmatmul.mubr.f32.gmra.mxu0 %v7813
  %v8175 = vpop.f32.mrf.mxu0
  %v8176 = vadd.f32 0.0, %v8175
  %v8177 = vpop.f32.mrf.mxu0
  %8178 = vmatprep.mubr.f32.mxu0 0.0
  %8179 = vmatmul.mubr.f32.gmra.mxu0 %v7816
  %v8180 = vpop.f32.mrf.mxu0
  %v8181 = vadd.f32 0.0, %v8180
  %v8182 = vpop.f32.mrf.mxu0
  %8183 = vmatprep.mubr.f32.mxu0 0.0
  %8184 = vmatmul.mubr.f32.gmra.mxu0 %v7819
  %v8185 = vpop.f32.mrf.mxu0
  %v8186 = vadd.f32 0.0, %v8185
  %v8187 = vpop.f32.mrf.mxu0
  %8188 = vmatprep.mubr.f32.mxu0 0.0
  %8189 = vmatmul.mubr.f32.gmra.mxu0 %v7822
  %v8190 = vpop.f32.mrf.mxu0
  %v8191 = vadd.f32 0.0, %v8190
  %v8192 = vpop.f32.mrf.mxu0
  %8193 = vmatprep.mubr.f32.mxu0 0.0
  %8194 = vmatmul.mubr.f32.gmra.mxu0 %v7825
  %v8195 = vpop.f32.mrf.mxu0
  %v8196 = vadd.f32 0.0, %v8195
  %v8197 = vpop.f32.mrf.mxu0
  %8198 = vmatprep.mubr.f32.mxu0 0.0
  %8199 = vmatmul.mubr.f32.gmra.mxu0 %v7828
  %v8200 = vpop.f32.mrf.mxu0
  %v8201 = vadd.f32 0.0, %v8200
  %v8202 = vpop.f32.mrf.mxu0
  %8203 = vmatprep.mubr.f32.mxu0 0.0
  %8204 = vmatmul.mubr.f32.gmra.mxu0 %v7831
  %v8205 = vpop.f32.mrf.mxu0
  %v8206 = vadd.f32 0.0, %v8205
  %v8207 = vpop.f32.mrf.mxu0
  %8208 = vmatprep.mubr.f32.mxu0 0.0
  %8209 = vmatmul.mubr.f32.gmra.mxu0 %v7834
  %v8210 = vpop.f32.mrf.mxu0
  %v8211 = vadd.f32 0.0, %v8210
  %v8212 = vpop.f32.mrf.mxu0
  %8213 = vmatprep.mubr.f32.mxu0 0.0
  %8214 = vmatmul.mubr.f32.gmra.mxu0 %v7837
  %v8215 = vpop.f32.mrf.mxu0
  %v8216 = vadd.f32 0.0, %v8215
  %v8217 = vpop.f32.mrf.mxu0
  %8218 = vmatprep.mubr.f32.mxu0 0.0
  %8219 = vmatmul.mubr.f32.gmra.mxu0 %v7840
  %v8220 = vpop.f32.mrf.mxu0
  %v8221 = vadd.f32 0.0, %v8220
  %v8222 = vpop.f32.mrf.mxu0
  %8223 = vmatprep.mubr.f32.mxu0 0.0
  %8224 = vmatmul.mubr.f32.gmra.mxu0 %v7843
  %v8225 = vpop.f32.mrf.mxu0
  %v8226 = vadd.f32 0.0, %v8225
  %v8227 = vpop.f32.mrf.mxu0
  %8228 = vmatprep.mubr.f32.mxu0 0.0
  %8229 = vmatmul.mubr.f32.gmra.mxu0 %v7846
  %v8230 = vpop.f32.mrf.mxu0
  %v8231 = vadd.f32 0.0, %v8230
  %v8232 = vpop.f32.mrf.mxu0
  %8233 = vmatprep.mubr.f32.mxu0 0.0
  %8234 = vmatmul.mubr.f32.gmra.mxu0 %v7849
  %v8235 = vpop.f32.mrf.mxu0
  %v8236 = vadd.f32 0.0, %v8235
  %v8237 = vpop.f32.mrf.mxu0
  %8238 = vdwg.mxu0
  %v8239 = vld [vmem:[%s6] sm:$0x1]
  %v8240 = vld [vmem:[%s7] sm:$0x1]
  %v8241 = vsel %vm2301, %v7921, 0.0
  %v8242 = vsel %vm2301, %v7926, 0.0
  %v8243 = vadd.f32 %v8241, %v8242
  %v8244 = vsel %vm2301, %v7931, 0.0
  %v8245 = vadd.f32 %v8243, %v8244
  %v8246 = vsel %vm2301, %v7936, 0.0
  %v8247 = vadd.f32 %v8245, %v8246
  %v8248 = vsel %vm2301, %v7941, 0.0
  %v8249 = vadd.f32 %v8247, %v8248
  %v8250 = vsel %vm2301, %v7946, 0.0
  %v8251 = vadd.f32 %v8249, %v8250
  %v8252 = vsel %vm2301, %v7951, 0.0
  %v8253 = vadd.f32 %v8251, %v8252
  %v8254 = vsel %vm2301, %v7956, 0.0
  %v8255 = vadd.f32 %v8253, %v8254
  %v8256 = vsel %vm2301, %v7961, 0.0
  %v8257 = vadd.f32 %v8255, %v8256
  %v8258 = vsel %vm2301, %v7966, 0.0
  %v8259 = vadd.f32 %v8257, %v8258
  %v8260 = vsel %vm2301, %v7971, 0.0
  %v8261 = vadd.f32 %v8259, %v8260
  %v8262 = vsel %vm2301, %v7976, 0.0
  %v8263 = vadd.f32 %v8261, %v8262
  %v8264 = vsel %vm2301, %v7981, 0.0
  %v8265 = vadd.f32 %v8263, %v8264
  %v8266 = vsel %vm2301, %v7986, 0.0
  %v8267 = vadd.f32 %v8265, %v8266
  %v8268 = vsel %vm2301, %v7991, 0.0
  %v8269 = vadd.f32 %v8267, %v8268
  %v8270 = vsel %vm2301, %v7996, 0.0
  %v8271 = vadd.f32 %v8269, %v8270
  %v8272 = vsel %vm2301, %v8001, 0.0
  %v8273 = vadd.f32 %v8271, %v8272
  %v8274 = vsel %vm2301, %v8006, 0.0
  %v8275 = vadd.f32 %v8273, %v8274
  %v8276 = vsel %vm2301, %v8011, 0.0
  %v8277 = vadd.f32 %v8275, %v8276
  %v8278 = vsel %vm2301, %v8016, 0.0
  %v8279 = vadd.f32 %v8277, %v8278
  %v8280 = vsel %vm2301, %v8021, 0.0
  %v8281 = vadd.f32 %v8279, %v8280
  %v8282 = vsel %vm2301, %v8026, 0.0
  %v8283 = vadd.f32 %v8281, %v8282
  %v8284 = vsel %vm2301, %v8031, 0.0
  %v8285 = vadd.f32 %v8283, %v8284
  %v8286 = vsel %vm2301, %v8036, 0.0
  %v8287 = vadd.f32 %v8285, %v8286
  %v8288 = vsel %vm2301, %v8041, 0.0
  %v8289 = vadd.f32 %v8287, %v8288
  %v8290 = vsel %vm2301, %v8046, 0.0
  %v8291 = vadd.f32 %v8289, %v8290
  %v8292 = vsel %vm2301, %v8051, 0.0
  %v8293 = vadd.f32 %v8291, %v8292
  %v8294 = vsel %vm2301, %v8056, 0.0
  %v8295 = vadd.f32 %v8293, %v8294
  %v8296 = vsel %vm2301, %v8061, 0.0
  %v8297 = vadd.f32 %v8295, %v8296
  %v8298 = vsel %vm2301, %v8066, 0.0
  %v8299 = vadd.f32 %v8297, %v8298
  %v8300 = vsel %vm2301, %v8071, 0.0
  %v8301 = vadd.f32 %v8299, %v8300
  %v8302 = vsel %vm2301, %v8076, 0.0
  %v8303 = vadd.f32 %v8301, %v8302
  %v8304 = vsel %vm2301, %v8081, 0.0
  %v8305 = vadd.f32 %v8303, %v8304
  %v8306 = vsel %vm2301, %v8086, 0.0
  %v8307 = vadd.f32 %v8305, %v8306
  %v8308 = vsel %vm2301, %v8091, 0.0
  %v8309 = vadd.f32 %v8307, %v8308
  %v8310 = vsel %vm2301, %v8096, 0.0
  %v8311 = vadd.f32 %v8309, %v8310
  %v8312 = vsel %vm2301, %v8101, 0.0
  %v8313 = vadd.f32 %v8311, %v8312
  %v8314 = vsel %vm2301, %v8106, 0.0
  %v8315 = vadd.f32 %v8313, %v8314
  %v8316 = vsel %vm2301, %v8111, 0.0
  %v8317 = vadd.f32 %v8315, %v8316
  %v8318 = vsel %vm2301, %v8116, 0.0
  %v8319 = vadd.f32 %v8317, %v8318
  %v8320 = vsel %vm2301, %v8121, 0.0
  %v8321 = vadd.f32 %v8319, %v8320
  %v8322 = vsel %vm2301, %v8126, 0.0
  %v8323 = vadd.f32 %v8321, %v8322
  %v8324 = vsel %vm2301, %v8131, 0.0
  %v8325 = vadd.f32 %v8323, %v8324
  %v8326 = vsel %vm2301, %v8136, 0.0
  %v8327 = vadd.f32 %v8325, %v8326
  %v8328 = vsel %vm2301, %v8141, 0.0
  %v8329 = vadd.f32 %v8327, %v8328
  %v8330 = vsel %vm2301, %v8146, 0.0
  %v8331 = vadd.f32 %v8329, %v8330
  %v8332 = vsel %vm2301, %v8151, 0.0
  %v8333 = vadd.f32 %v8331, %v8332
  %v8334 = vsel %vm2301, %v8156, 0.0
  %v8335 = vadd.f32 %v8333, %v8334
  %v8336 = vsel %vm2301, %v8161, 0.0
  %v8337 = vadd.f32 %v8335, %v8336
  %v8338 = vsel %vm2301, %v8166, 0.0
  %v8339 = vadd.f32 %v8337, %v8338
  %v8340 = vsel %vm2301, %v8171, 0.0
  %v8341 = vadd.f32 %v8339, %v8340
  %v8342 = vsel %vm2301, %v8176, 0.0
  %v8343 = vadd.f32 %v8341, %v8342
  %v8344 = vsel %vm2301, %v8181, 0.0
  %v8345 = vadd.f32 %v8343, %v8344
  %v8346 = vsel %vm2301, %v8186, 0.0
  %v8347 = vadd.f32 %v8345, %v8346
  %v8348 = vsel %vm2301, %v8191, 0.0
  %v8349 = vadd.f32 %v8347, %v8348
  %v8350 = vsel %vm2301, %v8196, 0.0
  %v8351 = vadd.f32 %v8349, %v8350
  %v8352 = vsel %vm2301, %v8201, 0.0
  %v8353 = vadd.f32 %v8351, %v8352
  %v8354 = vsel %vm2301, %v8206, 0.0
  %v8355 = vadd.f32 %v8353, %v8354
  %v8356 = vsel %vm2301, %v8211, 0.0
  %v8357 = vadd.f32 %v8355, %v8356
  %v8358 = vsel %vm2301, %v8216, 0.0
  %v8359 = vadd.f32 %v8357, %v8358
  %v8360 = vsel %vm2301, %v8221, 0.0
  %v8361 = vadd.f32 %v8359, %v8360
  %v8362 = vsel %vm2301, %v8226, 0.0
  %v8363 = vadd.f32 %v8361, %v8362
  %v8364 = vsel %vm2301, %v8231, 0.0
  %v8365 = vadd.f32 %v8363, %v8364
  %v8366 = vsel %vm2301, %v8236, 0.0
  %v8367 = vadd.f32 %v8365, %v8366
  %v8368 = vrot.slane %v8367, 4
  %v8369 = vadd.f32 %v8367, %v8368
  %v8370 = vrot.slane %v8369, 2
  %v8371 = vadd.f32 %v8369, %v8370
  %v8372 = vrot.slane %v8371, 1
  %v8373 = vadd.f32 %v8371, %v8372
  %v8374 = vmul.f32 %v7921, %v7921
  %v8375 = vmul.f32 %v7926, %v7926
  %v8376 = vmul.f32 %v7931, %v7931
  %v8377 = vmul.f32 %v7936, %v7936
  %v8378 = vmul.f32 %v7941, %v7941
  %v8379 = vmul.f32 %v7946, %v7946
  %v8380 = vmul.f32 %v7951, %v7951
  %v8381 = vmul.f32 %v7956, %v7956
  %v8382 = vmul.f32 %v7961, %v7961
  %v8383 = vmul.f32 %v7966, %v7966
  %v8384 = vmul.f32 %v7971, %v7971
  %v8385 = vmul.f32 %v7976, %v7976
  %v8386 = vmul.f32 %v7981, %v7981
  %v8387 = vmul.f32 %v7986, %v7986
  %v8388 = vmul.f32 %v7991, %v7991
  %v8389 = vmul.f32 %v7996, %v7996
  %v8390 = vmul.f32 %v8001, %v8001
  %v8391 = vmul.f32 %v8006, %v8006
  %v8392 = vmul.f32 %v8011, %v8011
  %v8393 = vmul.f32 %v8016, %v8016
  %v8394 = vmul.f32 %v8021, %v8021
  %v8395 = vmul.f32 %v8026, %v8026
  %v8396 = vmul.f32 %v8031, %v8031
  %v8397 = vmul.f32 %v8036, %v8036
  %v8398 = vmul.f32 %v8041, %v8041
  %v8399 = vmul.f32 %v8046, %v8046
  %v8400 = vmul.f32 %v8051, %v8051
  %v8401 = vmul.f32 %v8056, %v8056
  %v8402 = vmul.f32 %v8061, %v8061
  %v8403 = vmul.f32 %v8066, %v8066
  %v8404 = vmul.f32 %v8071, %v8071
  %v8405 = vmul.f32 %v8076, %v8076
  %v8406 = vmul.f32 %v8081, %v8081
  %v8407 = vmul.f32 %v8086, %v8086
  %v8408 = vmul.f32 %v8091, %v8091
  %v8409 = vmul.f32 %v8096, %v8096
  %v8410 = vmul.f32 %v8101, %v8101
  %v8411 = vmul.f32 %v8106, %v8106
  %v8412 = vmul.f32 %v8111, %v8111
  %v8413 = vmul.f32 %v8116, %v8116
  %v8414 = vmul.f32 %v8121, %v8121
  %v8415 = vmul.f32 %v8126, %v8126
  %v8416 = vmul.f32 %v8131, %v8131
  %v8417 = vmul.f32 %v8136, %v8136
  %v8418 = vmul.f32 %v8141, %v8141
  %v8419 = vmul.f32 %v8146, %v8146
  %v8420 = vmul.f32 %v8151, %v8151
  %v8421 = vmul.f32 %v8156, %v8156
  %v8422 = vmul.f32 %v8161, %v8161
  %v8423 = vmul.f32 %v8166, %v8166
  %v8424 = vmul.f32 %v8171, %v8171
  %v8425 = vmul.f32 %v8176, %v8176
  %v8426 = vmul.f32 %v8181, %v8181
  %v8427 = vmul.f32 %v8186, %v8186
  %v8428 = vmul.f32 %v8191, %v8191
  %v8429 = vmul.f32 %v8196, %v8196
  %v8430 = vmul.f32 %v8201, %v8201
  %v8431 = vmul.f32 %v8206, %v8206
  %v8432 = vmul.f32 %v8211, %v8211
  %v8433 = vmul.f32 %v8216, %v8216
  %v8434 = vmul.f32 %v8221, %v8221
  %v8435 = vmul.f32 %v8226, %v8226
  %v8436 = vmul.f32 %v8231, %v8231
  %v8437 = vmul.f32 %v8236, %v8236
  %v8438 = vsel %vm2301, %v8374, 0.0
  %v8439 = vsel %vm2301, %v8375, 0.0
  %v8440 = vadd.f32 %v8438, %v8439
  %v8441 = vsel %vm2301, %v8376, 0.0
  %v8442 = vadd.f32 %v8440, %v8441
  %v8443 = vsel %vm2301, %v8377, 0.0
  %v8444 = vadd.f32 %v8442, %v8443
  %v8445 = vsel %vm2301, %v8378, 0.0
  %v8446 = vadd.f32 %v8444, %v8445
  %v8447 = vsel %vm2301, %v8379, 0.0
  %v8448 = vadd.f32 %v8446, %v8447
  %v8449 = vsel %vm2301, %v8380, 0.0
  %v8450 = vadd.f32 %v8448, %v8449
  %v8451 = vsel %vm2301, %v8381, 0.0
  %v8452 = vadd.f32 %v8450, %v8451
  %v8453 = vsel %vm2301, %v8382, 0.0
  %v8454 = vadd.f32 %v8452, %v8453
  %v8455 = vsel %vm2301, %v8383, 0.0
  %v8456 = vadd.f32 %v8454, %v8455
  %v8457 = vsel %vm2301, %v8384, 0.0
  %v8458 = vadd.f32 %v8456, %v8457
  %v8459 = vsel %vm2301, %v8385, 0.0
  %v8460 = vadd.f32 %v8458, %v8459
  %v8461 = vsel %vm2301, %v8386, 0.0
  %v8462 = vadd.f32 %v8460, %v8461
  %v8463 = vsel %vm2301, %v8387, 0.0
  %v8464 = vadd.f32 %v8462, %v8463
  %v8465 = vsel %vm2301, %v8388, 0.0
  %v8466 = vadd.f32 %v8464, %v8465
  %v8467 = vsel %vm2301, %v8389, 0.0
  %v8468 = vadd.f32 %v8466, %v8467
  %v8469 = vsel %vm2301, %v8390, 0.0
  %v8470 = vadd.f32 %v8468, %v8469
  %v8471 = vsel %vm2301, %v8391, 0.0
  %v8472 = vadd.f32 %v8470, %v8471
  %v8473 = vsel %vm2301, %v8392, 0.0
  %v8474 = vadd.f32 %v8472, %v8473
  %v8475 = vsel %vm2301, %v8393, 0.0
  %v8476 = vadd.f32 %v8474, %v8475
  %v8477 = vsel %vm2301, %v8394, 0.0
  %v8478 = vadd.f32 %v8476, %v8477
  %v8479 = vsel %vm2301, %v8395, 0.0
  %v8480 = vadd.f32 %v8478, %v8479
  %v8481 = vsel %vm2301, %v8396, 0.0
  %v8482 = vadd.f32 %v8480, %v8481
  %v8483 = vsel %vm2301, %v8397, 0.0
  %v8484 = vadd.f32 %v8482, %v8483
  %v8485 = vsel %vm2301, %v8398, 0.0
  %v8486 = vadd.f32 %v8484, %v8485
  %v8487 = vsel %vm2301, %v8399, 0.0
  %v8488 = vadd.f32 %v8486, %v8487
  %v8489 = vsel %vm2301, %v8400, 0.0
  %v8490 = vadd.f32 %v8488, %v8489
  %v8491 = vsel %vm2301, %v8401, 0.0
  %v8492 = vadd.f32 %v8490, %v8491
  %v8493 = vsel %vm2301, %v8402, 0.0
  %v8494 = vadd.f32 %v8492, %v8493
  %v8495 = vsel %vm2301, %v8403, 0.0
  %v8496 = vadd.f32 %v8494, %v8495
  %v8497 = vsel %vm2301, %v8404, 0.0
  %v8498 = vadd.f32 %v8496, %v8497
  %v8499 = vsel %vm2301, %v8405, 0.0
  %v8500 = vadd.f32 %v8498, %v8499
  %v8501 = vsel %vm2301, %v8406, 0.0
  %v8502 = vadd.f32 %v8500, %v8501
  %v8503 = vsel %vm2301, %v8407, 0.0
  %v8504 = vadd.f32 %v8502, %v8503
  %v8505 = vsel %vm2301, %v8408, 0.0
  %v8506 = vadd.f32 %v8504, %v8505
  %v8507 = vsel %vm2301, %v8409, 0.0
  %v8508 = vadd.f32 %v8506, %v8507
  %v8509 = vsel %vm2301, %v8410, 0.0
  %v8510 = vadd.f32 %v8508, %v8509
  %v8511 = vsel %vm2301, %v8411, 0.0
  %v8512 = vadd.f32 %v8510, %v8511
  %v8513 = vsel %vm2301, %v8412, 0.0
  %v8514 = vadd.f32 %v8512, %v8513
  %v8515 = vsel %vm2301, %v8413, 0.0
  %v8516 = vadd.f32 %v8514, %v8515
  %v8517 = vsel %vm2301, %v8414, 0.0
  %v8518 = vadd.f32 %v8516, %v8517
  %v8519 = vsel %vm2301, %v8415, 0.0
  %v8520 = vadd.f32 %v8518, %v8519
  %v8521 = vsel %vm2301, %v8416, 0.0
  %v8522 = vadd.f32 %v8520, %v8521
  %v8523 = vsel %vm2301, %v8417, 0.0
  %v8524 = vadd.f32 %v8522, %v8523
  %v8525 = vsel %vm2301, %v8418, 0.0
  %v8526 = vadd.f32 %v8524, %v8525
  %v8527 = vsel %vm2301, %v8419, 0.0
  %v8528 = vadd.f32 %v8526, %v8527
  %v8529 = vsel %vm2301, %v8420, 0.0
  %v8530 = vadd.f32 %v8528, %v8529
  %v8531 = vsel %vm2301, %v8421, 0.0
  %v8532 = vadd.f32 %v8530, %v8531
  %v8533 = vsel %vm2301, %v8422, 0.0
  %v8534 = vadd.f32 %v8532, %v8533
  %v8535 = vsel %vm2301, %v8423, 0.0
  %v8536 = vadd.f32 %v8534, %v8535
  %v8537 = vsel %vm2301, %v8424, 0.0
  %v8538 = vadd.f32 %v8536, %v8537
  %v8539 = vsel %vm2301, %v8425, 0.0
  %v8540 = vadd.f32 %v8538, %v8539
  %v8541 = vsel %vm2301, %v8426, 0.0
  %v8542 = vadd.f32 %v8540, %v8541
  %v8543 = vsel %vm2301, %v8427, 0.0
  %v8544 = vadd.f32 %v8542, %v8543
  %v8545 = vsel %vm2301, %v8428, 0.0
  %v8546 = vadd.f32 %v8544, %v8545
  %v8547 = vsel %vm2301, %v8429, 0.0
  %v8548 = vadd.f32 %v8546, %v8547
  %v8549 = vsel %vm2301, %v8430, 0.0
  %v8550 = vadd.f32 %v8548, %v8549
  %v8551 = vsel %vm2301, %v8431, 0.0
  %v8552 = vadd.f32 %v8550, %v8551
  %v8553 = vsel %vm2301, %v8432, 0.0
  %v8554 = vadd.f32 %v8552, %v8553
  %v8555 = vsel %vm2301, %v8433, 0.0
  %v8556 = vadd.f32 %v8554, %v8555
  %v8557 = vsel %vm2301, %v8434, 0.0
  %v8558 = vadd.f32 %v8556, %v8557
  %v8559 = vsel %vm2301, %v8435, 0.0
  %v8560 = vadd.f32 %v8558, %v8559
  %v8561 = vsel %vm2301, %v8436, 0.0
  %v8562 = vadd.f32 %v8560, %v8561
  %v8563 = vsel %vm2301, %v8437, 0.0
  %v8564 = vadd.f32 %v8562, %v8563
  %v8565 = vrot.slane %v8564, 4
  %v8566 = vadd.f32 %v8564, %v8565
  %v8567 = vrot.slane %v8566, 2
  %v8568 = vadd.f32 %v8566, %v8567
  %v8569 = vrot.slane %v8568, 1
  %v8570 = vadd.f32 %v8568, %v8569
  %v8571 = vmul.f32 %v8373, 0.001953125
  %v8572 = vmul.f32 %v8570, 0.001953125
  %v8573 = vmul.f32 %v8571, %v8571
  %v8574 = vsub.f32 %v8572, %v8573
  %v8575 = vmax.f32 %v8574, 0.0
  %v8576 = vadd.f32 %v8575, 1e-05
  %v8577 = vrsqrt.pop %v8576
  %v8578 = vmul.f32 %v8239, %v8577
  %v8579 = vmul.f32 %v8571, %v8578
  %v8580 = vsub.f32 %v8240, %v8579
  %v8582 = vlaneseq
  %v8583 = vshrl.u32 %v8582, 7
  %v8584 = vsub.s32 0, %v8583
  %v8585 = vrot.slane %v8578, %v8584
  %v8587 = vmul.f32 %v7921, %v8585
  %v8588 = vmul.f32 %v7926, %v8585
  %v8589 = vmul.f32 %v7931, %v8585
  %v8590 = vmul.f32 %v7936, %v8585
  %v8591 = vmul.f32 %v7941, %v8585
  %v8592 = vmul.f32 %v7946, %v8585
  %v8593 = vmul.f32 %v7951, %v8585
  %v8594 = vmul.f32 %v7956, %v8585
  %v8595 = vmul.f32 %v7961, %v8585
  %v8596 = vmul.f32 %v7966, %v8585
  %v8597 = vmul.f32 %v7971, %v8585
  %v8598 = vmul.f32 %v7976, %v8585
  %v8599 = vmul.f32 %v7981, %v8585
  %v8600 = vmul.f32 %v7986, %v8585
  %v8601 = vmul.f32 %v7991, %v8585
  %v8602 = vmul.f32 %v7996, %v8585
  %v8603 = vmul.f32 %v8001, %v8585
  %v8604 = vmul.f32 %v8006, %v8585
  %v8605 = vmul.f32 %v8011, %v8585
  %v8606 = vmul.f32 %v8016, %v8585
  %v8607 = vmul.f32 %v8021, %v8585
  %v8608 = vmul.f32 %v8026, %v8585
  %v8609 = vmul.f32 %v8031, %v8585
  %v8610 = vmul.f32 %v8036, %v8585
  %v8611 = vmul.f32 %v8041, %v8585
  %v8612 = vmul.f32 %v8046, %v8585
  %v8613 = vmul.f32 %v8051, %v8585
  %v8614 = vmul.f32 %v8056, %v8585
  %v8615 = vmul.f32 %v8061, %v8585
  %v8616 = vmul.f32 %v8066, %v8585
  %v8617 = vmul.f32 %v8071, %v8585
  %v8618 = vmul.f32 %v8076, %v8585
  %v8619 = vmul.f32 %v8081, %v8585
  %v8620 = vmul.f32 %v8086, %v8585
  %v8621 = vmul.f32 %v8091, %v8585
  %v8622 = vmul.f32 %v8096, %v8585
  %v8623 = vmul.f32 %v8101, %v8585
  %v8624 = vmul.f32 %v8106, %v8585
  %v8625 = vmul.f32 %v8111, %v8585
  %v8626 = vmul.f32 %v8116, %v8585
  %v8627 = vmul.f32 %v8121, %v8585
  %v8628 = vmul.f32 %v8126, %v8585
  %v8629 = vmul.f32 %v8131, %v8585
  %v8630 = vmul.f32 %v8136, %v8585
  %v8631 = vmul.f32 %v8141, %v8585
  %v8632 = vmul.f32 %v8146, %v8585
  %v8633 = vmul.f32 %v8151, %v8585
  %v8634 = vmul.f32 %v8156, %v8585
  %v8635 = vmul.f32 %v8161, %v8585
  %v8636 = vmul.f32 %v8166, %v8585
  %v8637 = vmul.f32 %v8171, %v8585
  %v8638 = vmul.f32 %v8176, %v8585
  %v8639 = vmul.f32 %v8181, %v8585
  %v8640 = vmul.f32 %v8186, %v8585
  %v8641 = vmul.f32 %v8191, %v8585
  %v8642 = vmul.f32 %v8196, %v8585
  %v8643 = vmul.f32 %v8201, %v8585
  %v8644 = vmul.f32 %v8206, %v8585
  %v8645 = vmul.f32 %v8211, %v8585
  %v8646 = vmul.f32 %v8216, %v8585
  %v8647 = vmul.f32 %v8221, %v8585
  %v8648 = vmul.f32 %v8226, %v8585
  %v8649 = vmul.f32 %v8231, %v8585
  %v8650 = vmul.f32 %v8236, %v8585
  %v8652 = vlaneseq
  %v8653 = vshrl.u32 %v8652, 7
  %v8654 = vsub.s32 0, %v8653
  %v8655 = vrot.slane %v8580, %v8654
  %v8657 = vadd.f32 %v8587, %v8655
  %v8658 = vadd.f32 %v8588, %v8655
  %v8659 = vadd.f32 %v8589, %v8655
  %v8660 = vadd.f32 %v8590, %v8655
  %v8661 = vadd.f32 %v8591, %v8655
  %v8662 = vadd.f32 %v8592, %v8655
  %v8663 = vadd.f32 %v8593, %v8655
  %v8664 = vadd.f32 %v8594, %v8655
  %v8665 = vadd.f32 %v8595, %v8655
  %v8666 = vadd.f32 %v8596, %v8655
  %v8667 = vadd.f32 %v8597, %v8655
  %v8668 = vadd.f32 %v8598, %v8655
  %v8669 = vadd.f32 %v8599, %v8655
  %v8670 = vadd.f32 %v8600, %v8655
  %v8671 = vadd.f32 %v8601, %v8655
  %v8672 = vadd.f32 %v8602, %v8655
  %v8673 = vadd.f32 %v8603, %v8655
  %v8674 = vadd.f32 %v8604, %v8655
  %v8675 = vadd.f32 %v8605, %v8655
  %v8676 = vadd.f32 %v8606, %v8655
  %v8677 = vadd.f32 %v8607, %v8655
  %v8678 = vadd.f32 %v8608, %v8655
  %v8679 = vadd.f32 %v8609, %v8655
  %v8680 = vadd.f32 %v8610, %v8655
  %v8681 = vadd.f32 %v8611, %v8655
  %v8682 = vadd.f32 %v8612, %v8655
  %v8683 = vadd.f32 %v8613, %v8655
  %v8684 = vadd.f32 %v8614, %v8655
  %v8685 = vadd.f32 %v8615, %v8655
  %v8686 = vadd.f32 %v8616, %v8655
  %v8687 = vadd.f32 %v8617, %v8655
  %v8688 = vadd.f32 %v8618, %v8655
  %v8689 = vadd.f32 %v8619, %v8655
  %v8690 = vadd.f32 %v8620, %v8655
  %v8691 = vadd.f32 %v8621, %v8655
  %v8692 = vadd.f32 %v8622, %v8655
  %v8693 = vadd.f32 %v8623, %v8655
  %v8694 = vadd.f32 %v8624, %v8655
  %v8695 = vadd.f32 %v8625, %v8655
  %v8696 = vadd.f32 %v8626, %v8655
  %v8697 = vadd.f32 %v8627, %v8655
  %v8698 = vadd.f32 %v8628, %v8655
  %v8699 = vadd.f32 %v8629, %v8655
  %v8700 = vadd.f32 %v8630, %v8655
  %v8701 = vadd.f32 %v8631, %v8655
  %v8702 = vadd.f32 %v8632, %v8655
  %v8703 = vadd.f32 %v8633, %v8655
  %v8704 = vadd.f32 %v8634, %v8655
  %v8705 = vadd.f32 %v8635, %v8655
  %v8706 = vadd.f32 %v8636, %v8655
  %v8707 = vadd.f32 %v8637, %v8655
  %v8708 = vadd.f32 %v8638, %v8655
  %v8709 = vadd.f32 %v8639, %v8655
  %v8710 = vadd.f32 %v8640, %v8655
  %v8711 = vadd.f32 %v8641, %v8655
  %v8712 = vadd.f32 %v8642, %v8655
  %v8713 = vadd.f32 %v8643, %v8655
  %v8714 = vadd.f32 %v8644, %v8655
  %v8715 = vadd.f32 %v8645, %v8655
  %v8716 = vadd.f32 %v8646, %v8655
  %v8717 = vadd.f32 %v8647, %v8655
  %v8718 = vadd.f32 %v8648, %v8655
  %v8719 = vadd.f32 %v8649, %v8655
  %v8720 = vadd.f32 %v8650, %v8655
  %v8721 = vadd.s32 %v4140, 2
  %v8722 = vadd.s32 %v4141, 2
  %v8723 = vadd.s32 %v4142, 2
  %v8724 = vadd.s32 %v4143, 2
  %v8725 = vadd.s32 %v4144, 2
  %v8726 = vadd.s32 %v4145, 2
  %v8727 = vadd.s32 %v4146, 2
  %v8728 = vadd.s32 %v4147, 2
  %v8729 = vadd.s32 %v4148, 2
  %v8730 = vadd.s32 %v4149, 2
  %v8731 = vadd.s32 %v4150, 2
  %v8732 = vadd.s32 %v4151, 2
  %v8733 = vadd.s32 %v4152, 2
  %v8734 = vadd.s32 %v4153, 2
  %v8735 = vadd.s32 %v4154, 2
  %v8736 = vadd.s32 %v4155, 2
  %v8737 = vadd.s32 %v4156, 2
  %v8738 = vadd.s32 %v4157, 2
  %v8739 = vadd.s32 %v4158, 2
  %v8740 = vadd.s32 %v4159, 2
  %v8741 = vadd.s32 %v4160, 2
  %v8742 = vadd.s32 %v4161, 2
  %v8743 = vadd.s32 %v4162, 2
  %v8744 = vadd.s32 %v4163, 2
  %v8745 = vadd.s32 %v4164, 2
  %v8746 = vadd.s32 %v4165, 2
  %v8747 = vadd.s32 %v4166, 2
  %v8748 = vadd.s32 %v4167, 2
  %v8749 = vadd.s32 %v4168, 2
  %v8750 = vadd.s32 %v4169, 2
  %v8751 = vadd.s32 %v4170, 2
  %v8752 = vadd.s32 %v4171, 2
  %v8753 = vadd.s32 %v4172, 2
  %v8754 = vadd.s32 %v4173, 2
  %v8755 = vadd.s32 %v4174, 2
  %v8756 = vadd.s32 %v4175, 2
  %v8757 = vadd.s32 %v4176, 2
  %v8758 = vadd.s32 %v4177, 2
  %v8759 = vadd.s32 %v4178, 2
  %v8760 = vadd.s32 %v4179, 2
  %v8761 = vadd.s32 %v4180, 2
  %v8762 = vadd.s32 %v4181, 2
  %v8763 = vadd.s32 %v4182, 2
  %v8764 = vadd.s32 %v4183, 2
  %v8765 = vadd.s32 %v4184, 2
  %v8766 = vadd.s32 %v4185, 2
  %v8767 = vadd.s32 %v4186, 2
  %v8768 = vadd.s32 %v4187, 2
  %v8769 = vadd.s32 %v4188, 2
  %v8770 = vadd.s32 %v4189, 2
  %v8771 = vadd.s32 %v4190, 2
  %v8772 = vadd.s32 %v4191, 2
  %v8773 = vadd.s32 %v4192, 2
  %v8774 = vadd.s32 %v4193, 2
  %v8775 = vadd.s32 %v4194, 2
  %v8776 = vadd.s32 %v4195, 2
  %v8777 = vadd.s32 %v4196, 2
  %v8778 = vadd.s32 %v4197, 2
  %v8779 = vadd.s32 %v4198, 2
  %v8780 = vadd.s32 %v4199, 2
  %v8781 = vadd.s32 %v4200, 2
  %v8782 = vadd.s32 %v4201, 2
  %v8783 = vadd.s32 %v4202, 2
  %v8784 = vadd.s32 %v4203, 2
  %v8785 = vshrl.u32 %v8721, 16
  %v8786 = vshrl.u32 %v8722, 16
  %v8787 = vshrl.u32 %v8723, 16
  %v8788 = vshrl.u32 %v8724, 16
  %v8789 = vshrl.u32 %v8725, 16
  %v8790 = vshrl.u32 %v8726, 16
  %v8791 = vshrl.u32 %v8727, 16
  %v8792 = vshrl.u32 %v8728, 16
  %v8793 = vshrl.u32 %v8729, 16
  %v8794 = vshrl.u32 %v8730, 16
  %v8795 = vshrl.u32 %v8731, 16
  %v8796 = vshrl.u32 %v8732, 16
  %v8797 = vshrl.u32 %v8733, 16
  %v8798 = vshrl.u32 %v8734, 16
  %v8799 = vshrl.u32 %v8735, 16
  %v8800 = vshrl.u32 %v8736, 16
  %v8801 = vshrl.u32 %v8737, 16
  %v8802 = vshrl.u32 %v8738, 16
  %v8803 = vshrl.u32 %v8739, 16
  %v8804 = vshrl.u32 %v8740, 16
  %v8805 = vshrl.u32 %v8741, 16
  %v8806 = vshrl.u32 %v8742, 16
  %v8807 = vshrl.u32 %v8743, 16
  %v8808 = vshrl.u32 %v8744, 16
  %v8809 = vshrl.u32 %v8745, 16
  %v8810 = vshrl.u32 %v8746, 16
  %v8811 = vshrl.u32 %v8747, 16
  %v8812 = vshrl.u32 %v8748, 16
  %v8813 = vshrl.u32 %v8749, 16
  %v8814 = vshrl.u32 %v8750, 16
  %v8815 = vshrl.u32 %v8751, 16
  %v8816 = vshrl.u32 %v8752, 16
  %v8817 = vshrl.u32 %v8753, 16
  %v8818 = vshrl.u32 %v8754, 16
  %v8819 = vshrl.u32 %v8755, 16
  %v8820 = vshrl.u32 %v8756, 16
  %v8821 = vshrl.u32 %v8757, 16
  %v8822 = vshrl.u32 %v8758, 16
  %v8823 = vshrl.u32 %v8759, 16
  %v8824 = vshrl.u32 %v8760, 16
  %v8825 = vshrl.u32 %v8761, 16
  %v8826 = vshrl.u32 %v8762, 16
  %v8827 = vshrl.u32 %v8763, 16
  %v8828 = vshrl.u32 %v8764, 16
  %v8829 = vshrl.u32 %v8765, 16
  %v8830 = vshrl.u32 %v8766, 16
  %v8831 = vshrl.u32 %v8767, 16
  %v8832 = vshrl.u32 %v8768, 16
  %v8833 = vshrl.u32 %v8769, 16
  %v8834 = vshrl.u32 %v8770, 16
  %v8835 = vshrl.u32 %v8771, 16
  %v8836 = vshrl.u32 %v8772, 16
  %v8837 = vshrl.u32 %v8773, 16
  %v8838 = vshrl.u32 %v8774, 16
  %v8839 = vshrl.u32 %v8775, 16
  %v8840 = vshrl.u32 %v8776, 16
  %v8841 = vshrl.u32 %v8777, 16
  %v8842 = vshrl.u32 %v8778, 16
  %v8843 = vshrl.u32 %v8779, 16
  %v8844 = vshrl.u32 %v8780, 16
  %v8845 = vshrl.u32 %v8781, 16
  %v8846 = vshrl.u32 %v8782, 16
  %v8847 = vshrl.u32 %v8783, 16
  %v8848 = vshrl.u32 %v8784, 16
  %v8849 = vxor.u32 %v8721, %v8785
  %v8850 = vxor.u32 %v8722, %v8786
  %v8851 = vxor.u32 %v8723, %v8787
  %v8852 = vxor.u32 %v8724, %v8788
  %v8853 = vxor.u32 %v8725, %v8789
  %v8854 = vxor.u32 %v8726, %v8790
  %v8855 = vxor.u32 %v8727, %v8791
  %v8856 = vxor.u32 %v8728, %v8792
  %v8857 = vxor.u32 %v8729, %v8793
  %v8858 = vxor.u32 %v8730, %v8794
  %v8859 = vxor.u32 %v8731, %v8795
  %v8860 = vxor.u32 %v8732, %v8796
  %v8861 = vxor.u32 %v8733, %v8797
  %v8862 = vxor.u32 %v8734, %v8798
  %v8863 = vxor.u32 %v8735, %v8799
  %v8864 = vxor.u32 %v8736, %v8800
  %v8865 = vxor.u32 %v8737, %v8801
  %v8866 = vxor.u32 %v8738, %v8802
  %v8867 = vxor.u32 %v8739, %v8803
  %v8868 = vxor.u32 %v8740, %v8804
  %v8869 = vxor.u32 %v8741, %v8805
  %v8870 = vxor.u32 %v8742, %v8806
  %v8871 = vxor.u32 %v8743, %v8807
  %v8872 = vxor.u32 %v8744, %v8808
  %v8873 = vxor.u32 %v8745, %v8809
  %v8874 = vxor.u32 %v8746, %v8810
  %v8875 = vxor.u32 %v8747, %v8811
  %v8876 = vxor.u32 %v8748, %v8812
  %v8877 = vxor.u32 %v8749, %v8813
  %v8878 = vxor.u32 %v8750, %v8814
  %v8879 = vxor.u32 %v8751, %v8815
  %v8880 = vxor.u32 %v8752, %v8816
  %v8881 = vxor.u32 %v8753, %v8817
  %v8882 = vxor.u32 %v8754, %v8818
  %v8883 = vxor.u32 %v8755, %v8819
  %v8884 = vxor.u32 %v8756, %v8820
  %v8885 = vxor.u32 %v8757, %v8821
  %v8886 = vxor.u32 %v8758, %v8822
  %v8887 = vxor.u32 %v8759, %v8823
  %v8888 = vxor.u32 %v8760, %v8824
  %v8889 = vxor.u32 %v8761, %v8825
  %v8890 = vxor.u32 %v8762, %v8826
  %v8891 = vxor.u32 %v8763, %v8827
  %v8892 = vxor.u32 %v8764, %v8828
  %v8893 = vxor.u32 %v8765, %v8829
  %v8894 = vxor.u32 %v8766, %v8830
  %v8895 = vxor.u32 %v8767, %v8831
  %v8896 = vxor.u32 %v8768, %v8832
  %v8897 = vxor.u32 %v8769, %v8833
  %v8898 = vxor.u32 %v8770, %v8834
  %v8899 = vxor.u32 %v8771, %v8835
  %v8900 = vxor.u32 %v8772, %v8836
  %v8901 = vxor.u32 %v8773, %v8837
  %v8902 = vxor.u32 %v8774, %v8838
  %v8903 = vxor.u32 %v8775, %v8839
  %v8904 = vxor.u32 %v8776, %v8840
  %v8905 = vxor.u32 %v8777, %v8841
  %v8906 = vxor.u32 %v8778, %v8842
  %v8907 = vxor.u32 %v8779, %v8843
  %v8908 = vxor.u32 %v8780, %v8844
  %v8909 = vxor.u32 %v8781, %v8845
  %v8910 = vxor.u32 %v8782, %v8846
  %v8911 = vxor.u32 %v8783, %v8847
  %v8912 = vxor.u32 %v8784, %v8848
  %v8913 = vmul.u32 %v8849, 2146121005
  %v8914 = vmul.u32 %v8850, 2146121005
  %v8915 = vmul.u32 %v8851, 2146121005
  %v8916 = vmul.u32 %v8852, 2146121005
  %v8917 = vmul.u32 %v8853, 2146121005
  %v8918 = vmul.u32 %v8854, 2146121005
  %v8919 = vmul.u32 %v8855, 2146121005
  %v8920 = vmul.u32 %v8856, 2146121005
  %v8921 = vmul.u32 %v8857, 2146121005
  %v8922 = vmul.u32 %v8858, 2146121005
  %v8923 = vmul.u32 %v8859, 2146121005
  %v8924 = vmul.u32 %v8860, 2146121005
  %v8925 = vmul.u32 %v8861, 2146121005
  %v8926 = vmul.u32 %v8862, 2146121005
  %v8927 = vmul.u32 %v8863, 2146121005
  %v8928 = vmul.u32 %v8864, 2146121005
  %v8929 = vmul.u32 %v8865, 2146121005
  %v8930 = vmul.u32 %v8866, 2146121005
  %v8931 = vmul.u32 %v8867, 2146121005
  %v8932 = vmul.u32 %v8868, 2146121005
  %v8933 = vmul.u32 %v8869, 2146121005
  %v8934 = vmul.u32 %v8870, 2146121005
  %v8935 = vmul.u32 %v8871, 2146121005
  %v8936 = vmul.u32 %v8872, 2146121005
  %v8937 = vmul.u32 %v8873, 2146121005
  %v8938 = vmul.u32 %v8874, 2146121005
  %v8939 = vmul.u32 %v8875, 2146121005
  %v8940 = vmul.u32 %v8876, 2146121005
  %v8941 = vmul.u32 %v8877, 2146121005
  %v8942 = vmul.u32 %v8878, 2146121005
  %v8943 = vmul.u32 %v8879, 2146121005
  %v8944 = vmul.u32 %v8880, 2146121005
  %v8945 = vmul.u32 %v8881, 2146121005
  %v8946 = vmul.u32 %v8882, 2146121005
  %v8947 = vmul.u32 %v8883, 2146121005
  %v8948 = vmul.u32 %v8884, 2146121005
  %v8949 = vmul.u32 %v8885, 2146121005
  %v8950 = vmul.u32 %v8886, 2146121005
  %v8951 = vmul.u32 %v8887, 2146121005
  %v8952 = vmul.u32 %v8888, 2146121005
  %v8953 = vmul.u32 %v8889, 2146121005
  %v8954 = vmul.u32 %v8890, 2146121005
  %v8955 = vmul.u32 %v8891, 2146121005
  %v8956 = vmul.u32 %v8892, 2146121005
  %v8957 = vmul.u32 %v8893, 2146121005
  %v8958 = vmul.u32 %v8894, 2146121005
  %v8959 = vmul.u32 %v8895, 2146121005
  %v8960 = vmul.u32 %v8896, 2146121005
  %v8961 = vmul.u32 %v8897, 2146121005
  %v8962 = vmul.u32 %v8898, 2146121005
  %v8963 = vmul.u32 %v8899, 2146121005
  %v8964 = vmul.u32 %v8900, 2146121005
  %v8965 = vmul.u32 %v8901, 2146121005
  %v8966 = vmul.u32 %v8902, 2146121005
  %v8967 = vmul.u32 %v8903, 2146121005
  %v8968 = vmul.u32 %v8904, 2146121005
  %v8969 = vmul.u32 %v8905, 2146121005
  %v8970 = vmul.u32 %v8906, 2146121005
  %v8971 = vmul.u32 %v8907, 2146121005
  %v8972 = vmul.u32 %v8908, 2146121005
  %v8973 = vmul.u32 %v8909, 2146121005
  %v8974 = vmul.u32 %v8910, 2146121005
  %v8975 = vmul.u32 %v8911, 2146121005
  %v8976 = vmul.u32 %v8912, 2146121005
  %v8977 = vshrl.u32 %v8913, 15
  %v8978 = vshrl.u32 %v8914, 15
  %v8979 = vshrl.u32 %v8915, 15
  %v8980 = vshrl.u32 %v8916, 15
  %v8981 = vshrl.u32 %v8917, 15
  %v8982 = vshrl.u32 %v8918, 15
  %v8983 = vshrl.u32 %v8919, 15
  %v8984 = vshrl.u32 %v8920, 15
  %v8985 = vshrl.u32 %v8921, 15
  %v8986 = vshrl.u32 %v8922, 15
  %v8987 = vshrl.u32 %v8923, 15
  %v8988 = vshrl.u32 %v8924, 15
  %v8989 = vshrl.u32 %v8925, 15
  %v8990 = vshrl.u32 %v8926, 15
  %v8991 = vshrl.u32 %v8927, 15
  %v8992 = vshrl.u32 %v8928, 15
  %v8993 = vshrl.u32 %v8929, 15
  %v8994 = vshrl.u32 %v8930, 15
  %v8995 = vshrl.u32 %v8931, 15
  %v8996 = vshrl.u32 %v8932, 15
  %v8997 = vshrl.u32 %v8933, 15
  %v8998 = vshrl.u32 %v8934, 15
  %v8999 = vshrl.u32 %v8935, 15
  %v9000 = vshrl.u32 %v8936, 15
  %v9001 = vshrl.u32 %v8937, 15
  %v9002 = vshrl.u32 %v8938, 15
  %v9003 = vshrl.u32 %v8939, 15
  %v9004 = vshrl.u32 %v8940, 15
  %v9005 = vshrl.u32 %v8941, 15
  %v9006 = vshrl.u32 %v8942, 15
  %v9007 = vshrl.u32 %v8943, 15
  %v9008 = vshrl.u32 %v8944, 15
  %v9009 = vshrl.u32 %v8945, 15
  %v9010 = vshrl.u32 %v8946, 15
  %v9011 = vshrl.u32 %v8947, 15
  %v9012 = vshrl.u32 %v8948, 15
  %v9013 = vshrl.u32 %v8949, 15
  %v9014 = vshrl.u32 %v8950, 15
  %v9015 = vshrl.u32 %v8951, 15
  %v9016 = vshrl.u32 %v8952, 15
  %v9017 = vshrl.u32 %v8953, 15
  %v9018 = vshrl.u32 %v8954, 15
  %v9019 = vshrl.u32 %v8955, 15
  %v9020 = vshrl.u32 %v8956, 15
  %v9021 = vshrl.u32 %v8957, 15
  %v9022 = vshrl.u32 %v8958, 15
  %v9023 = vshrl.u32 %v8959, 15
  %v9024 = vshrl.u32 %v8960, 15
  %v9025 = vshrl.u32 %v8961, 15
  %v9026 = vshrl.u32 %v8962, 15
  %v9027 = vshrl.u32 %v8963, 15
  %v9028 = vshrl.u32 %v8964, 15
  %v9029 = vshrl.u32 %v8965, 15
  %v9030 = vshrl.u32 %v8966, 15
  %v9031 = vshrl.u32 %v8967, 15
  %v9032 = vshrl.u32 %v8968, 15
  %v9033 = vshrl.u32 %v8969, 15
  %v9034 = vshrl.u32 %v8970, 15
  %v9035 = vshrl.u32 %v8971, 15
  %v9036 = vshrl.u32 %v8972, 15
  %v9037 = vshrl.u32 %v8973, 15
  %v9038 = vshrl.u32 %v8974, 15
  %v9039 = vshrl.u32 %v8975, 15
  %v9040 = vshrl.u32 %v8976, 15
  %v9041 = vxor.u32 %v8913, %v8977
  %v9042 = vxor.u32 %v8914, %v8978
  %v9043 = vxor.u32 %v8915, %v8979
  %v9044 = vxor.u32 %v8916, %v8980
  %v9045 = vxor.u32 %v8917, %v8981
  %v9046 = vxor.u32 %v8918, %v8982
  %v9047 = vxor.u32 %v8919, %v8983
  %v9048 = vxor.u32 %v8920, %v8984
  %v9049 = vxor.u32 %v8921, %v8985
  %v9050 = vxor.u32 %v8922, %v8986
  %v9051 = vxor.u32 %v8923, %v8987
  %v9052 = vxor.u32 %v8924, %v8988
  %v9053 = vxor.u32 %v8925, %v8989
  %v9054 = vxor.u32 %v8926, %v8990
  %v9055 = vxor.u32 %v8927, %v8991
  %v9056 = vxor.u32 %v8928, %v8992
  %v9057 = vxor.u32 %v8929, %v8993
  %v9058 = vxor.u32 %v8930, %v8994
  %v9059 = vxor.u32 %v8931, %v8995
  %v9060 = vxor.u32 %v8932, %v8996
  %v9061 = vxor.u32 %v8933, %v8997
  %v9062 = vxor.u32 %v8934, %v8998
  %v9063 = vxor.u32 %v8935, %v8999
  %v9064 = vxor.u32 %v8936, %v9000
  %v9065 = vxor.u32 %v8937, %v9001
  %v9066 = vxor.u32 %v8938, %v9002
  %v9067 = vxor.u32 %v8939, %v9003
  %v9068 = vxor.u32 %v8940, %v9004
  %v9069 = vxor.u32 %v8941, %v9005
  %v9070 = vxor.u32 %v8942, %v9006
  %v9071 = vxor.u32 %v8943, %v9007
  %v9072 = vxor.u32 %v8944, %v9008
  %v9073 = vxor.u32 %v8945, %v9009
  %v9074 = vxor.u32 %v8946, %v9010
  %v9075 = vxor.u32 %v8947, %v9011
  %v9076 = vxor.u32 %v8948, %v9012
  %v9077 = vxor.u32 %v8949, %v9013
  %v9078 = vxor.u32 %v8950, %v9014
  %v9079 = vxor.u32 %v8951, %v9015
  %v9080 = vxor.u32 %v8952, %v9016
  %v9081 = vxor.u32 %v8953, %v9017
  %v9082 = vxor.u32 %v8954, %v9018
  %v9083 = vxor.u32 %v8955, %v9019
  %v9084 = vxor.u32 %v8956, %v9020
  %v9085 = vxor.u32 %v8957, %v9021
  %v9086 = vxor.u32 %v8958, %v9022
  %v9087 = vxor.u32 %v8959, %v9023
  %v9088 = vxor.u32 %v8960, %v9024
  %v9089 = vxor.u32 %v8961, %v9025
  %v9090 = vxor.u32 %v8962, %v9026
  %v9091 = vxor.u32 %v8963, %v9027
  %v9092 = vxor.u32 %v8964, %v9028
  %v9093 = vxor.u32 %v8965, %v9029
  %v9094 = vxor.u32 %v8966, %v9030
  %v9095 = vxor.u32 %v8967, %v9031
  %v9096 = vxor.u32 %v8968, %v9032
  %v9097 = vxor.u32 %v8969, %v9033
  %v9098 = vxor.u32 %v8970, %v9034
  %v9099 = vxor.u32 %v8971, %v9035
  %v9100 = vxor.u32 %v8972, %v9036
  %v9101 = vxor.u32 %v8973, %v9037
  %v9102 = vxor.u32 %v8974, %v9038
  %v9103 = vxor.u32 %v8975, %v9039
  %v9104 = vxor.u32 %v8976, %v9040
  %v9105 = vmul.u32 %v9041, 2221713035
  %v9106 = vmul.u32 %v9042, 2221713035
  %v9107 = vmul.u32 %v9043, 2221713035
  %v9108 = vmul.u32 %v9044, 2221713035
  %v9109 = vmul.u32 %v9045, 2221713035
  %v9110 = vmul.u32 %v9046, 2221713035
  %v9111 = vmul.u32 %v9047, 2221713035
  %v9112 = vmul.u32 %v9048, 2221713035
  %v9113 = vmul.u32 %v9049, 2221713035
  %v9114 = vmul.u32 %v9050, 2221713035
  %v9115 = vmul.u32 %v9051, 2221713035
  %v9116 = vmul.u32 %v9052, 2221713035
  %v9117 = vmul.u32 %v9053, 2221713035
  %v9118 = vmul.u32 %v9054, 2221713035
  %v9119 = vmul.u32 %v9055, 2221713035
  %v9120 = vmul.u32 %v9056, 2221713035
  %v9121 = vmul.u32 %v9057, 2221713035
  %v9122 = vmul.u32 %v9058, 2221713035
  %v9123 = vmul.u32 %v9059, 2221713035
  %v9124 = vmul.u32 %v9060, 2221713035
  %v9125 = vmul.u32 %v9061, 2221713035
  %v9126 = vmul.u32 %v9062, 2221713035
  %v9127 = vmul.u32 %v9063, 2221713035
  %v9128 = vmul.u32 %v9064, 2221713035
  %v9129 = vmul.u32 %v9065, 2221713035
  %v9130 = vmul.u32 %v9066, 2221713035
  %v9131 = vmul.u32 %v9067, 2221713035
  %v9132 = vmul.u32 %v9068, 2221713035
  %v9133 = vmul.u32 %v9069, 2221713035
  %v9134 = vmul.u32 %v9070, 2221713035
  %v9135 = vmul.u32 %v9071, 2221713035
  %v9136 = vmul.u32 %v9072, 2221713035
  %v9137 = vmul.u32 %v9073, 2221713035
  %v9138 = vmul.u32 %v9074, 2221713035
  %v9139 = vmul.u32 %v9075, 2221713035
  %v9140 = vmul.u32 %v9076, 2221713035
  %v9141 = vmul.u32 %v9077, 2221713035
  %v9142 = vmul.u32 %v9078, 2221713035
  %v9143 = vmul.u32 %v9079, 2221713035
  %v9144 = vmul.u32 %v9080, 2221713035
  %v9145 = vmul.u32 %v9081, 2221713035
  %v9146 = vmul.u32 %v9082, 2221713035
  %v9147 = vmul.u32 %v9083, 2221713035
  %v9148 = vmul.u32 %v9084, 2221713035
  %v9149 = vmul.u32 %v9085, 2221713035
  %v9150 = vmul.u32 %v9086, 2221713035
  %v9151 = vmul.u32 %v9087, 2221713035
  %v9152 = vmul.u32 %v9088, 2221713035
  %v9153 = vmul.u32 %v9089, 2221713035
  %v9154 = vmul.u32 %v9090, 2221713035
  %v9155 = vmul.u32 %v9091, 2221713035
  %v9156 = vmul.u32 %v9092, 2221713035
  %v9157 = vmul.u32 %v9093, 2221713035
  %v9158 = vmul.u32 %v9094, 2221713035
  %v9159 = vmul.u32 %v9095, 2221713035
  %v9160 = vmul.u32 %v9096, 2221713035
  %v9161 = vmul.u32 %v9097, 2221713035
  %v9162 = vmul.u32 %v9098, 2221713035
  %v9163 = vmul.u32 %v9099, 2221713035
  %v9164 = vmul.u32 %v9100, 2221713035
  %v9165 = vmul.u32 %v9101, 2221713035
  %v9166 = vmul.u32 %v9102, 2221713035
  %v9167 = vmul.u32 %v9103, 2221713035
  %v9168 = vmul.u32 %v9104, 2221713035
  %v9169 = vshrl.u32 %v9105, 16
  %v9170 = vshrl.u32 %v9106, 16
  %v9171 = vshrl.u32 %v9107, 16
  %v9172 = vshrl.u32 %v9108, 16
  %v9173 = vshrl.u32 %v9109, 16
  %v9174 = vshrl.u32 %v9110, 16
  %v9175 = vshrl.u32 %v9111, 16
  %v9176 = vshrl.u32 %v9112, 16
  %v9177 = vshrl.u32 %v9113, 16
  %v9178 = vshrl.u32 %v9114, 16
  %v9179 = vshrl.u32 %v9115, 16
  %v9180 = vshrl.u32 %v9116, 16
  %v9181 = vshrl.u32 %v9117, 16
  %v9182 = vshrl.u32 %v9118, 16
  %v9183 = vshrl.u32 %v9119, 16
  %v9184 = vshrl.u32 %v9120, 16
  %v9185 = vshrl.u32 %v9121, 16
  %v9186 = vshrl.u32 %v9122, 16
  %v9187 = vshrl.u32 %v9123, 16
  %v9188 = vshrl.u32 %v9124, 16
  %v9189 = vshrl.u32 %v9125, 16
  %v9190 = vshrl.u32 %v9126, 16
  %v9191 = vshrl.u32 %v9127, 16
  %v9192 = vshrl.u32 %v9128, 16
  %v9193 = vshrl.u32 %v9129, 16
  %v9194 = vshrl.u32 %v9130, 16
  %v9195 = vshrl.u32 %v9131, 16
  %v9196 = vshrl.u32 %v9132, 16
  %v9197 = vshrl.u32 %v9133, 16
  %v9198 = vshrl.u32 %v9134, 16
  %v9199 = vshrl.u32 %v9135, 16
  %v9200 = vshrl.u32 %v9136, 16
  %v9201 = vshrl.u32 %v9137, 16
  %v9202 = vshrl.u32 %v9138, 16
  %v9203 = vshrl.u32 %v9139, 16
  %v9204 = vshrl.u32 %v9140, 16
  %v9205 = vshrl.u32 %v9141, 16
  %v9206 = vshrl.u32 %v9142, 16
  %v9207 = vshrl.u32 %v9143, 16
  %v9208 = vshrl.u32 %v9144, 16
  %v9209 = vshrl.u32 %v9145, 16
  %v9210 = vshrl.u32 %v9146, 16
  %v9211 = vshrl.u32 %v9147, 16
  %v9212 = vshrl.u32 %v9148, 16
  %v9213 = vshrl.u32 %v9149, 16
  %v9214 = vshrl.u32 %v9150, 16
  %v9215 = vshrl.u32 %v9151, 16
  %v9216 = vshrl.u32 %v9152, 16
  %v9217 = vshrl.u32 %v9153, 16
  %v9218 = vshrl.u32 %v9154, 16
  %v9219 = vshrl.u32 %v9155, 16
  %v9220 = vshrl.u32 %v9156, 16
  %v9221 = vshrl.u32 %v9157, 16
  %v9222 = vshrl.u32 %v9158, 16
  %v9223 = vshrl.u32 %v9159, 16
  %v9224 = vshrl.u32 %v9160, 16
  %v9225 = vshrl.u32 %v9161, 16
  %v9226 = vshrl.u32 %v9162, 16
  %v9227 = vshrl.u32 %v9163, 16
  %v9228 = vshrl.u32 %v9164, 16
  %v9229 = vshrl.u32 %v9165, 16
  %v9230 = vshrl.u32 %v9166, 16
  %v9231 = vshrl.u32 %v9167, 16
  %v9232 = vshrl.u32 %v9168, 16
  %v9233 = vxor.u32 %v9105, %v9169
  %v9234 = vxor.u32 %v9106, %v9170
  %v9235 = vxor.u32 %v9107, %v9171
  %v9236 = vxor.u32 %v9108, %v9172
  %v9237 = vxor.u32 %v9109, %v9173
  %v9238 = vxor.u32 %v9110, %v9174
  %v9239 = vxor.u32 %v9111, %v9175
  %v9240 = vxor.u32 %v9112, %v9176
  %v9241 = vxor.u32 %v9113, %v9177
  %v9242 = vxor.u32 %v9114, %v9178
  %v9243 = vxor.u32 %v9115, %v9179
  %v9244 = vxor.u32 %v9116, %v9180
  %v9245 = vxor.u32 %v9117, %v9181
  %v9246 = vxor.u32 %v9118, %v9182
  %v9247 = vxor.u32 %v9119, %v9183
  %v9248 = vxor.u32 %v9120, %v9184
  %v9249 = vxor.u32 %v9121, %v9185
  %v9250 = vxor.u32 %v9122, %v9186
  %v9251 = vxor.u32 %v9123, %v9187
  %v9252 = vxor.u32 %v9124, %v9188
  %v9253 = vxor.u32 %v9125, %v9189
  %v9254 = vxor.u32 %v9126, %v9190
  %v9255 = vxor.u32 %v9127, %v9191
  %v9256 = vxor.u32 %v9128, %v9192
  %v9257 = vxor.u32 %v9129, %v9193
  %v9258 = vxor.u32 %v9130, %v9194
  %v9259 = vxor.u32 %v9131, %v9195
  %v9260 = vxor.u32 %v9132, %v9196
  %v9261 = vxor.u32 %v9133, %v9197
  %v9262 = vxor.u32 %v9134, %v9198
  %v9263 = vxor.u32 %v9135, %v9199
  %v9264 = vxor.u32 %v9136, %v9200
  %v9265 = vxor.u32 %v9137, %v9201
  %v9266 = vxor.u32 %v9138, %v9202
  %v9267 = vxor.u32 %v9139, %v9203
  %v9268 = vxor.u32 %v9140, %v9204
  %v9269 = vxor.u32 %v9141, %v9205
  %v9270 = vxor.u32 %v9142, %v9206
  %v9271 = vxor.u32 %v9143, %v9207
  %v9272 = vxor.u32 %v9144, %v9208
  %v9273 = vxor.u32 %v9145, %v9209
  %v9274 = vxor.u32 %v9146, %v9210
  %v9275 = vxor.u32 %v9147, %v9211
  %v9276 = vxor.u32 %v9148, %v9212
  %v9277 = vxor.u32 %v9149, %v9213
  %v9278 = vxor.u32 %v9150, %v9214
  %v9279 = vxor.u32 %v9151, %v9215
  %v9280 = vxor.u32 %v9152, %v9216
  %v9281 = vxor.u32 %v9153, %v9217
  %v9282 = vxor.u32 %v9154, %v9218
  %v9283 = vxor.u32 %v9155, %v9219
  %v9284 = vxor.u32 %v9156, %v9220
  %v9285 = vxor.u32 %v9157, %v9221
  %v9286 = vxor.u32 %v9158, %v9222
  %v9287 = vxor.u32 %v9159, %v9223
  %v9288 = vxor.u32 %v9160, %v9224
  %v9289 = vxor.u32 %v9161, %v9225
  %v9290 = vxor.u32 %v9162, %v9226
  %v9291 = vxor.u32 %v9163, %v9227
  %v9292 = vxor.u32 %v9164, %v9228
  %v9293 = vxor.u32 %v9165, %v9229
  %v9294 = vxor.u32 %v9166, %v9230
  %v9295 = vxor.u32 %v9167, %v9231
  %v9296 = vxor.u32 %v9168, %v9232
  %vm9297 = vcmp.ge.u32.totalorder %v9233, 1288490189
  %vm9298 = vcmp.ge.u32.totalorder %v9234, 1288490189
  %vm9299 = vcmp.ge.u32.totalorder %v9235, 1288490189
  %vm9300 = vcmp.ge.u32.totalorder %v9236, 1288490189
  %vm9301 = vcmp.ge.u32.totalorder %v9237, 1288490189
  %vm9302 = vcmp.ge.u32.totalorder %v9238, 1288490189
  %vm9303 = vcmp.ge.u32.totalorder %v9239, 1288490189
  %vm9304 = vcmp.ge.u32.totalorder %v9240, 1288490189
  %vm9305 = vcmp.ge.u32.totalorder %v9241, 1288490189
  %vm9306 = vcmp.ge.u32.totalorder %v9242, 1288490189
  %vm9307 = vcmp.ge.u32.totalorder %v9243, 1288490189
  %vm9308 = vcmp.ge.u32.totalorder %v9244, 1288490189
  %vm9309 = vcmp.ge.u32.totalorder %v9245, 1288490189
  %vm9310 = vcmp.ge.u32.totalorder %v9246, 1288490189
  %vm9311 = vcmp.ge.u32.totalorder %v9247, 1288490189
  %vm9312 = vcmp.ge.u32.totalorder %v9248, 1288490189
  %vm9313 = vcmp.ge.u32.totalorder %v9249, 1288490189
  %vm9314 = vcmp.ge.u32.totalorder %v9250, 1288490189
  %vm9315 = vcmp.ge.u32.totalorder %v9251, 1288490189
  %vm9316 = vcmp.ge.u32.totalorder %v9252, 1288490189
  %vm9317 = vcmp.ge.u32.totalorder %v9253, 1288490189
  %vm9318 = vcmp.ge.u32.totalorder %v9254, 1288490189
  %vm9319 = vcmp.ge.u32.totalorder %v9255, 1288490189
  %vm9320 = vcmp.ge.u32.totalorder %v9256, 1288490189
  %vm9321 = vcmp.ge.u32.totalorder %v9257, 1288490189
  %vm9322 = vcmp.ge.u32.totalorder %v9258, 1288490189
  %vm9323 = vcmp.ge.u32.totalorder %v9259, 1288490189
  %vm9324 = vcmp.ge.u32.totalorder %v9260, 1288490189
  %vm9325 = vcmp.ge.u32.totalorder %v9261, 1288490189
  %vm9326 = vcmp.ge.u32.totalorder %v9262, 1288490189
  %vm9327 = vcmp.ge.u32.totalorder %v9263, 1288490189
  %vm9328 = vcmp.ge.u32.totalorder %v9264, 1288490189
  %vm9329 = vcmp.ge.u32.totalorder %v9265, 1288490189
  %vm9330 = vcmp.ge.u32.totalorder %v9266, 1288490189
  %vm9331 = vcmp.ge.u32.totalorder %v9267, 1288490189
  %vm9332 = vcmp.ge.u32.totalorder %v9268, 1288490189
  %vm9333 = vcmp.ge.u32.totalorder %v9269, 1288490189
  %vm9334 = vcmp.ge.u32.totalorder %v9270, 1288490189
  %vm9335 = vcmp.ge.u32.totalorder %v9271, 1288490189
  %vm9336 = vcmp.ge.u32.totalorder %v9272, 1288490189
  %vm9337 = vcmp.ge.u32.totalorder %v9273, 1288490189
  %vm9338 = vcmp.ge.u32.totalorder %v9274, 1288490189
  %vm9339 = vcmp.ge.u32.totalorder %v9275, 1288490189
  %vm9340 = vcmp.ge.u32.totalorder %v9276, 1288490189
  %vm9341 = vcmp.ge.u32.totalorder %v9277, 1288490189
  %vm9342 = vcmp.ge.u32.totalorder %v9278, 1288490189
  %vm9343 = vcmp.ge.u32.totalorder %v9279, 1288490189
  %vm9344 = vcmp.ge.u32.totalorder %v9280, 1288490189
  %vm9345 = vcmp.ge.u32.totalorder %v9281, 1288490189
  %vm9346 = vcmp.ge.u32.totalorder %v9282, 1288490189
  %vm9347 = vcmp.ge.u32.totalorder %v9283, 1288490189
  %vm9348 = vcmp.ge.u32.totalorder %v9284, 1288490189
  %vm9349 = vcmp.ge.u32.totalorder %v9285, 1288490189
  %vm9350 = vcmp.ge.u32.totalorder %v9286, 1288490189
  %vm9351 = vcmp.ge.u32.totalorder %v9287, 1288490189
  %vm9352 = vcmp.ge.u32.totalorder %v9288, 1288490189
  %vm9353 = vcmp.ge.u32.totalorder %v9289, 1288490189
  %vm9354 = vcmp.ge.u32.totalorder %v9290, 1288490189
  %vm9355 = vcmp.ge.u32.totalorder %v9291, 1288490189
  %vm9356 = vcmp.ge.u32.totalorder %v9292, 1288490189
  %vm9357 = vcmp.ge.u32.totalorder %v9293, 1288490189
  %vm9358 = vcmp.ge.u32.totalorder %v9294, 1288490189
  %vm9359 = vcmp.ge.u32.totalorder %v9295, 1288490189
  %vm9360 = vcmp.ge.u32.totalorder %v9296, 1288490189
  %v9361 = vmul.f32 %v8657, 1.4285715
  %v9362 = vmul.f32 %v8658, 1.4285715
  %v9363 = vmul.f32 %v8659, 1.4285715
  %v9364 = vmul.f32 %v8660, 1.4285715
  %v9365 = vmul.f32 %v8661, 1.4285715
  %v9366 = vmul.f32 %v8662, 1.4285715
  %v9367 = vmul.f32 %v8663, 1.4285715
  %v9368 = vmul.f32 %v8664, 1.4285715
  %v9369 = vmul.f32 %v8665, 1.4285715
  %v9370 = vmul.f32 %v8666, 1.4285715
  %v9371 = vmul.f32 %v8667, 1.4285715
  %v9372 = vmul.f32 %v8668, 1.4285715
  %v9373 = vmul.f32 %v8669, 1.4285715
  %v9374 = vmul.f32 %v8670, 1.4285715
  %v9375 = vmul.f32 %v8671, 1.4285715
  %v9376 = vmul.f32 %v8672, 1.4285715
  %v9377 = vmul.f32 %v8673, 1.4285715
  %v9378 = vmul.f32 %v8674, 1.4285715
  %v9379 = vmul.f32 %v8675, 1.4285715
  %v9380 = vmul.f32 %v8676, 1.4285715
  %v9381 = vmul.f32 %v8677, 1.4285715
  %v9382 = vmul.f32 %v8678, 1.4285715
  %v9383 = vmul.f32 %v8679, 1.4285715
  %v9384 = vmul.f32 %v8680, 1.4285715
  %v9385 = vmul.f32 %v8681, 1.4285715
  %v9386 = vmul.f32 %v8682, 1.4285715
  %v9387 = vmul.f32 %v8683, 1.4285715
  %v9388 = vmul.f32 %v8684, 1.4285715
  %v9389 = vmul.f32 %v8685, 1.4285715
  %v9390 = vmul.f32 %v8686, 1.4285715
  %v9391 = vmul.f32 %v8687, 1.4285715
  %v9392 = vmul.f32 %v8688, 1.4285715
  %v9393 = vmul.f32 %v8689, 1.4285715
  %v9394 = vmul.f32 %v8690, 1.4285715
  %v9395 = vmul.f32 %v8691, 1.4285715
  %v9396 = vmul.f32 %v8692, 1.4285715
  %v9397 = vmul.f32 %v8693, 1.4285715
  %v9398 = vmul.f32 %v8694, 1.4285715
  %v9399 = vmul.f32 %v8695, 1.4285715
  %v9400 = vmul.f32 %v8696, 1.4285715
  %v9401 = vmul.f32 %v8697, 1.4285715
  %v9402 = vmul.f32 %v8698, 1.4285715
  %v9403 = vmul.f32 %v8699, 1.4285715
  %v9404 = vmul.f32 %v8700, 1.4285715
  %v9405 = vmul.f32 %v8701, 1.4285715
  %v9406 = vmul.f32 %v8702, 1.4285715
  %v9407 = vmul.f32 %v8703, 1.4285715
  %v9408 = vmul.f32 %v8704, 1.4285715
  %v9409 = vmul.f32 %v8705, 1.4285715
  %v9410 = vmul.f32 %v8706, 1.4285715
  %v9411 = vmul.f32 %v8707, 1.4285715
  %v9412 = vmul.f32 %v8708, 1.4285715
  %v9413 = vmul.f32 %v8709, 1.4285715
  %v9414 = vmul.f32 %v8710, 1.4285715
  %v9415 = vmul.f32 %v8711, 1.4285715
  %v9416 = vmul.f32 %v8712, 1.4285715
  %v9417 = vmul.f32 %v8713, 1.4285715
  %v9418 = vmul.f32 %v8714, 1.4285715
  %v9419 = vmul.f32 %v8715, 1.4285715
  %v9420 = vmul.f32 %v8716, 1.4285715
  %v9421 = vmul.f32 %v8717, 1.4285715
  %v9422 = vmul.f32 %v8718, 1.4285715
  %v9423 = vmul.f32 %v8719, 1.4285715
  %v9424 = vmul.f32 %v8720, 1.4285715
  %v9425 = vsel %vm9297, %v9361, 0.0
  %v9426 = vsel %vm9298, %v9362, 0.0
  %v9427 = vsel %vm9299, %v9363, 0.0
  %v9428 = vsel %vm9300, %v9364, 0.0
  %v9429 = vsel %vm9301, %v9365, 0.0
  %v9430 = vsel %vm9302, %v9366, 0.0
  %v9431 = vsel %vm9303, %v9367, 0.0
  %v9432 = vsel %vm9304, %v9368, 0.0
  %v9433 = vsel %vm9305, %v9369, 0.0
  %v9434 = vsel %vm9306, %v9370, 0.0
  %v9435 = vsel %vm9307, %v9371, 0.0
  %v9436 = vsel %vm9308, %v9372, 0.0
  %v9437 = vsel %vm9309, %v9373, 0.0
  %v9438 = vsel %vm9310, %v9374, 0.0
  %v9439 = vsel %vm9311, %v9375, 0.0
  %v9440 = vsel %vm9312, %v9376, 0.0
  %v9441 = vsel %vm9313, %v9377, 0.0
  %v9442 = vsel %vm9314, %v9378, 0.0
  %v9443 = vsel %vm9315, %v9379, 0.0
  %v9444 = vsel %vm9316, %v9380, 0.0
  %v9445 = vsel %vm9317, %v9381, 0.0
  %v9446 = vsel %vm9318, %v9382, 0.0
  %v9447 = vsel %vm9319, %v9383, 0.0
  %v9448 = vsel %vm9320, %v9384, 0.0
  %v9449 = vsel %vm9321, %v9385, 0.0
  %v9450 = vsel %vm9322, %v9386, 0.0
  %v9451 = vsel %vm9323, %v9387, 0.0
  %v9452 = vsel %vm9324, %v9388, 0.0
  %v9453 = vsel %vm9325, %v9389, 0.0
  %v9454 = vsel %vm9326, %v9390, 0.0
  %v9455 = vsel %vm9327, %v9391, 0.0
  %v9456 = vsel %vm9328, %v9392, 0.0
  %v9457 = vsel %vm9329, %v9393, 0.0
  %v9458 = vsel %vm9330, %v9394, 0.0
  %v9459 = vsel %vm9331, %v9395, 0.0
  %v9460 = vsel %vm9332, %v9396, 0.0
  %v9461 = vsel %vm9333, %v9397, 0.0
  %v9462 = vsel %vm9334, %v9398, 0.0
  %v9463 = vsel %vm9335, %v9399, 0.0
  %v9464 = vsel %vm9336, %v9400, 0.0
  %v9465 = vsel %vm9337, %v9401, 0.0
  %v9466 = vsel %vm9338, %v9402, 0.0
  %v9467 = vsel %vm9339, %v9403, 0.0
  %v9468 = vsel %vm9340, %v9404, 0.0
  %v9469 = vsel %vm9341, %v9405, 0.0
  %v9470 = vsel %vm9342, %v9406, 0.0
  %v9471 = vsel %vm9343, %v9407, 0.0
  %v9472 = vsel %vm9344, %v9408, 0.0
  %v9473 = vsel %vm9345, %v9409, 0.0
  %v9474 = vsel %vm9346, %v9410, 0.0
  %v9475 = vsel %vm9347, %v9411, 0.0
  %v9476 = vsel %vm9348, %v9412, 0.0
  %v9477 = vsel %vm9349, %v9413, 0.0
  %v9478 = vsel %vm9350, %v9414, 0.0
  %v9479 = vsel %vm9351, %v9415, 0.0
  %v9480 = vsel %vm9352, %v9416, 0.0
  %v9481 = vsel %vm9353, %v9417, 0.0
  %v9482 = vsel %vm9354, %v9418, 0.0
  %v9483 = vsel %vm9355, %v9419, 0.0
  %v9484 = vsel %vm9356, %v9420, 0.0
  %v9485 = vsel %vm9357, %v9421, 0.0
  %v9486 = vsel %vm9358, %v9422, 0.0
  %v9487 = vsel %vm9359, %v9423, 0.0
  %v9488 = vsel %vm9360, %v9424, 0.0
  %v9489 = vadd.f32 %v9425, %v31
  %v9490 = vadd.f32 %v9426, %v32
  %v9491 = vadd.f32 %v9427, %v33
  %v9492 = vadd.f32 %v9428, %v34
  %v9493 = vadd.f32 %v9429, %v35
  %v9494 = vadd.f32 %v9430, %v36
  %v9495 = vadd.f32 %v9431, %v37
  %v9496 = vadd.f32 %v9432, %v38
  %v9497 = vadd.f32 %v9433, %v39
  %v9498 = vadd.f32 %v9434, %v40
  %v9499 = vadd.f32 %v9435, %v41
  %v9500 = vadd.f32 %v9436, %v42
  %v9501 = vadd.f32 %v9437, %v43
  %v9502 = vadd.f32 %v9438, %v44
  %v9503 = vadd.f32 %v9439, %v45
  %v9504 = vadd.f32 %v9440, %v46
  %v9505 = vadd.f32 %v9441, %v47
  %v9506 = vadd.f32 %v9442, %v48
  %v9507 = vadd.f32 %v9443, %v49
  %v9508 = vadd.f32 %v9444, %v50
  %v9509 = vadd.f32 %v9445, %v51
  %v9510 = vadd.f32 %v9446, %v52
  %v9511 = vadd.f32 %v9447, %v53
  %v9512 = vadd.f32 %v9448, %v54
  %v9513 = vadd.f32 %v9449, %v55
  %v9514 = vadd.f32 %v9450, %v56
  %v9515 = vadd.f32 %v9451, %v57
  %v9516 = vadd.f32 %v9452, %v58
  %v9517 = vadd.f32 %v9453, %v59
  %v9518 = vadd.f32 %v9454, %v60
  %v9519 = vadd.f32 %v9455, %v61
  %v9520 = vadd.f32 %v9456, %v62
  %v9521 = vadd.f32 %v9457, %v63
  %v9522 = vadd.f32 %v9458, %v64
  %v9523 = vadd.f32 %v9459, %v65
  %v9524 = vadd.f32 %v9460, %v66
  %v9525 = vadd.f32 %v9461, %v67
  %v9526 = vadd.f32 %v9462, %v68
  %v9527 = vadd.f32 %v9463, %v69
  %v9528 = vadd.f32 %v9464, %v70
  %v9529 = vadd.f32 %v9465, %v71
  %v9530 = vadd.f32 %v9466, %v72
  %v9531 = vadd.f32 %v9467, %v73
  %v9532 = vadd.f32 %v9468, %v74
  %v9533 = vadd.f32 %v9469, %v75
  %v9534 = vadd.f32 %v9470, %v76
  %v9535 = vadd.f32 %v9471, %v77
  %v9536 = vadd.f32 %v9472, %v78
  %v9537 = vadd.f32 %v9473, %v79
  %v9538 = vadd.f32 %v9474, %v80
  %v9539 = vadd.f32 %v9475, %v81
  %v9540 = vadd.f32 %v9476, %v82
  %v9541 = vadd.f32 %v9477, %v83
  %v9542 = vadd.f32 %v9478, %v84
  %v9543 = vadd.f32 %v9479, %v85
  %v9544 = vadd.f32 %v9480, %v86
  %v9545 = vadd.f32 %v9481, %v87
  %v9546 = vadd.f32 %v9482, %v88
  %v9547 = vadd.f32 %v9483, %v89
  %v9548 = vadd.f32 %v9484, %v90
  %v9549 = vadd.f32 %v9485, %v91
  %v9550 = vadd.f32 %v9486, %v92
  %v9551 = vadd.f32 %v9487, %v93
  %v9552 = vadd.f32 %v9488, %v94
  %v9553 = vmax.f32 %v9489, 0.0
  %v9554 = vmax.f32 %v9490, 0.0
  %v9555 = vmax.f32 %v9491, 0.0
  %v9556 = vmax.f32 %v9492, 0.0
  %v9557 = vmax.f32 %v9493, 0.0
  %v9558 = vmax.f32 %v9494, 0.0
  %v9559 = vmax.f32 %v9495, 0.0
  %v9560 = vmax.f32 %v9496, 0.0
  %v9561 = vmax.f32 %v9497, 0.0
  %v9562 = vmax.f32 %v9498, 0.0
  %v9563 = vmax.f32 %v9499, 0.0
  %v9564 = vmax.f32 %v9500, 0.0
  %v9565 = vmax.f32 %v9501, 0.0
  %v9566 = vmax.f32 %v9502, 0.0
  %v9567 = vmax.f32 %v9503, 0.0
  %v9568 = vmax.f32 %v9504, 0.0
  %v9569 = vmax.f32 %v9505, 0.0
  %v9570 = vmax.f32 %v9506, 0.0
  %v9571 = vmax.f32 %v9507, 0.0
  %v9572 = vmax.f32 %v9508, 0.0
  %v9573 = vmax.f32 %v9509, 0.0
  %v9574 = vmax.f32 %v9510, 0.0
  %v9575 = vmax.f32 %v9511, 0.0
  %v9576 = vmax.f32 %v9512, 0.0
  %v9577 = vmax.f32 %v9513, 0.0
  %v9578 = vmax.f32 %v9514, 0.0
  %v9579 = vmax.f32 %v9515, 0.0
  %v9580 = vmax.f32 %v9516, 0.0
  %v9581 = vmax.f32 %v9517, 0.0
  %v9582 = vmax.f32 %v9518, 0.0
  %v9583 = vmax.f32 %v9519, 0.0
  %v9584 = vmax.f32 %v9520, 0.0
  %v9585 = vmax.f32 %v9521, 0.0
  %v9586 = vmax.f32 %v9522, 0.0
  %v9587 = vmax.f32 %v9523, 0.0
  %v9588 = vmax.f32 %v9524, 0.0
  %v9589 = vmax.f32 %v9525, 0.0
  %v9590 = vmax.f32 %v9526, 0.0
  %v9591 = vmax.f32 %v9527, 0.0
  %v9592 = vmax.f32 %v9528, 0.0
  %v9593 = vmax.f32 %v9529, 0.0
  %v9594 = vmax.f32 %v9530, 0.0
  %v9595 = vmax.f32 %v9531, 0.0
  %v9596 = vmax.f32 %v9532, 0.0
  %v9597 = vmax.f32 %v9533, 0.0
  %v9598 = vmax.f32 %v9534, 0.0
  %v9599 = vmax.f32 %v9535, 0.0
  %v9600 = vmax.f32 %v9536, 0.0
  %v9601 = vmax.f32 %v9537, 0.0
  %v9602 = vmax.f32 %v9538, 0.0
  %v9603 = vmax.f32 %v9539, 0.0
  %v9604 = vmax.f32 %v9540, 0.0
  %v9605 = vmax.f32 %v9541, 0.0
  %v9606 = vmax.f32 %v9542, 0.0
  %v9607 = vmax.f32 %v9543, 0.0
  %v9608 = vmax.f32 %v9544, 0.0
  %v9609 = vmax.f32 %v9545, 0.0
  %v9610 = vmax.f32 %v9546, 0.0
  %v9611 = vmax.f32 %v9547, 0.0
  %v9612 = vmax.f32 %v9548, 0.0
  %v9613 = vmax.f32 %v9549, 0.0
  %v9614 = vmax.f32 %v9550, 0.0
  %v9615 = vmax.f32 %v9551, 0.0
  %v9616 = vmax.f32 %v9552, 0.0
  %9617 = vst.msk [vmem:[%s8] sm:$0xff] %vm2301, %v9553
  %9618 = vst.msk [vmem:[%s8 + $0x8] sm:$0xff] %vm2301, %v9554
  %9619 = vst.msk [vmem:[%s8 + $0x10] sm:$0xff] %vm2301, %v9555
  %9620 = vst.msk [vmem:[%s8 + $0x18] sm:$0xff] %vm2301, %v9556
  %9621 = vst.msk [vmem:[%s8 + $0x20] sm:$0xff] %vm2301, %v9557
  %9622 = vst.msk [vmem:[%s8 + $0x28] sm:$0xff] %vm2301, %v9558
  %9623 = vst.msk [vmem:[%s8 + $0x30] sm:$0xff] %vm2301, %v9559
  %9624 = vst.msk [vmem:[%s8 + $0x38] sm:$0xff] %vm2301, %v9560
  %9625 = vst.msk [vmem:[%s8 + $0x40] sm:$0xff] %vm2301, %v9561
  %9626 = vst.msk [vmem:[%s8 + $0x48] sm:$0xff] %vm2301, %v9562
  %9627 = vst.msk [vmem:[%s8 + $0x50] sm:$0xff] %vm2301, %v9563
  %9628 = vst.msk [vmem:[%s8 + $0x58] sm:$0xff] %vm2301, %v9564
  %9629 = vst.msk [vmem:[%s8 + $0x60] sm:$0xff] %vm2301, %v9565
  %9630 = vst.msk [vmem:[%s8 + $0x68] sm:$0xff] %vm2301, %v9566
  %9631 = vst.msk [vmem:[%s8 + $0x70] sm:$0xff] %vm2301, %v9567
  %9632 = vst.msk [vmem:[%s8 + $0x78] sm:$0xff] %vm2301, %v9568
  %9633 = vst.msk [vmem:[%s8 + $0x80] sm:$0xff] %vm2301, %v9569
  %9634 = vst.msk [vmem:[%s8 + $0x88] sm:$0xff] %vm2301, %v9570
  %9635 = vst.msk [vmem:[%s8 + $0x90] sm:$0xff] %vm2301, %v9571
  %9636 = vst.msk [vmem:[%s8 + $0x98] sm:$0xff] %vm2301, %v9572
  %9637 = vst.msk [vmem:[%s8 + $0xa0] sm:$0xff] %vm2301, %v9573
  %9638 = vst.msk [vmem:[%s8 + $0xa8] sm:$0xff] %vm2301, %v9574
  %9639 = vst.msk [vmem:[%s8 + $0xb0] sm:$0xff] %vm2301, %v9575
  %9640 = vst.msk [vmem:[%s8 + $0xb8] sm:$0xff] %vm2301, %v9576
  %9641 = vst.msk [vmem:[%s8 + $0xc0] sm:$0xff] %vm2301, %v9577
  %9642 = vst.msk [vmem:[%s8 + $0xc8] sm:$0xff] %vm2301, %v9578
  %9643 = vst.msk [vmem:[%s8 + $0xd0] sm:$0xff] %vm2301, %v9579
  %9644 = vst.msk [vmem:[%s8 + $0xd8] sm:$0xff] %vm2301, %v9580
  %9645 = vst.msk [vmem:[%s8 + $0xe0] sm:$0xff] %vm2301, %v9581
  %9646 = vst.msk [vmem:[%s8 + $0xe8] sm:$0xff] %vm2301, %v9582
  %9647 = vst.msk [vmem:[%s8 + $0xf0] sm:$0xff] %vm2301, %v9583
  %9648 = vst.msk [vmem:[%s8 + $0xf8] sm:$0xff] %vm2301, %v9584
  %9649 = vst.msk [vmem:[%s8 + $0x100] sm:$0xff] %vm2301, %v9585
  %9650 = vst.msk [vmem:[%s8 + $0x108] sm:$0xff] %vm2301, %v9586
  %9651 = vst.msk [vmem:[%s8 + $0x110] sm:$0xff] %vm2301, %v9587
  %9652 = vst.msk [vmem:[%s8 + $0x118] sm:$0xff] %vm2301, %v9588
  %9653 = vst.msk [vmem:[%s8 + $0x120] sm:$0xff] %vm2301, %v9589
  %9654 = vst.msk [vmem:[%s8 + $0x128] sm:$0xff] %vm2301, %v9590
  %9655 = vst.msk [vmem:[%s8 + $0x130] sm:$0xff] %vm2301, %v9591
  %9656 = vst.msk [vmem:[%s8 + $0x138] sm:$0xff] %vm2301, %v9592
  %9657 = vst.msk [vmem:[%s8 + $0x140] sm:$0xff] %vm2301, %v9593
  %9658 = vst.msk [vmem:[%s8 + $0x148] sm:$0xff] %vm2301, %v9594
  %9659 = vst.msk [vmem:[%s8 + $0x150] sm:$0xff] %vm2301, %v9595
  %9660 = vst.msk [vmem:[%s8 + $0x158] sm:$0xff] %vm2301, %v9596
  %9661 = vst.msk [vmem:[%s8 + $0x160] sm:$0xff] %vm2301, %v9597
  %9662 = vst.msk [vmem:[%s8 + $0x168] sm:$0xff] %vm2301, %v9598
  %9663 = vst.msk [vmem:[%s8 + $0x170] sm:$0xff] %vm2301, %v9599
  %9664 = vst.msk [vmem:[%s8 + $0x178] sm:$0xff] %vm2301, %v9600
  %9665 = vst.msk [vmem:[%s8 + $0x180] sm:$0xff] %vm2301, %v9601
  %9666 = vst.msk [vmem:[%s8 + $0x188] sm:$0xff] %vm2301, %v9602
  %9667 = vst.msk [vmem:[%s8 + $0x190] sm:$0xff] %vm2301, %v9603
  %9668 = vst.msk [vmem:[%s8 + $0x198] sm:$0xff] %vm2301, %v9604
  %9669 = vst.msk [vmem:[%s8 + $0x1a0] sm:$0xff] %vm2301, %v9605
  %9670 = vst.msk [vmem:[%s8 + $0x1a8] sm:$0xff] %vm2301, %v9606
  %9671 = vst.msk [vmem:[%s8 + $0x1b0] sm:$0xff] %vm2301, %v9607
  %9672 = vst.msk [vmem:[%s8 + $0x1b8] sm:$0xff] %vm2301, %v9608
  %9673 = vst.msk [vmem:[%s8 + $0x1c0] sm:$0xff] %vm2301, %v9609
  %9674 = vst.msk [vmem:[%s8 + $0x1c8] sm:$0xff] %vm2301, %v9610
  %9675 = vst.msk [vmem:[%s8 + $0x1d0] sm:$0xff] %vm2301, %v9611
  %9676 = vst.msk [vmem:[%s8 + $0x1d8] sm:$0xff] %vm2301, %v9612
  %9677 = vst.msk [vmem:[%s8 + $0x1e0] sm:$0xff] %vm2301, %v9613
  %9678 = vst.msk [vmem:[%s8 + $0x1e8] sm:$0xff] %vm2301, %v9614
  %9679 = vst.msk [vmem:[%s8 + $0x1f0] sm:$0xff] %vm2301, %v9615
  %9680 = vst.msk [vmem:[%s8 + $0x1f8] sm:$0xff] %vm2301, %v9616
  // Predicated region
  $region34: #{basic_block2.1} parent=0 // pred_check
    _
  $region35: #{basic_block2.1} parent=0 // pred_check_branch
    %9682 = sbr.rel (0) target = $region37
  $region36: #{basic_block2.1} parent=0 // pred_region
    _
  $region37: #{basic_block2.1} parent=0 // pred_fallthru
    _
  // Predicated region
  $region38: #{basic_block2.1} parent=0 // pred_check
    _
  $region39: #{basic_block2.1} parent=0 // pred_check_branch
    %9684 = sbr.rel (0) target = $region41
  $region40: #{basic_block2.1} parent=0 // pred_region
    _
  $region41: #{basic_block2.1} parent=0 // pred_fallthru
    _

</llo_original>
